<compile_context>
chip_gen: v7x
topology: tpu7x:2x2x1
jax: 0.10.0
libtpu: 0.0.40
codegen_flags: <defaults>
</compile_context>

<pallas_src>
import jax
import jax.numpy as jnp
from jax.experimental import pallas as pl
from jax.experimental.pallas import tpu as pltpu

# ---- model dims (fixed by ExampleNet) ----
N_BATCH = 2
C_IN, H_IN, W_IN = 3, 44, 44
C_OUT = 32
KH = KW = 3
OH, OW = H_IN - KH + 1, W_IN - KW + 1          # 42, 42
PH, PW = OH // 2, OW // 2                      # 21, 21
FLAT = C_OUT * PH * PW                         # 14112
N_CLASSES = 1000

# ---- kernel tiling parameters ----
TAPS = KH * KW * C_IN                          # 27
TAPS_PAD = 32                                  # im2col contraction dim padded for the MXU
N_PAD = 1024                                   # classifier out-dim padded to lane multiple
N_HALF = N_PAD // 2                            # 512-wide output halves (one per parallel grid idx)
K_PAD = 14336                                  # FLAT padded to a multiple of 128 (112 * 128)
TK = 7168                                      # K tile (56 * 128): 2 contiguous ~3.5 MiB int8 DMAs/half
K_TILES = K_PAD // TK                          # 2


# --------------------------------------------------------------------------------------
# Kernel 1: fused Conv2d(3->32, 3x3, valid) + bias + ReLU + 2x2 MaxPool
#   grid = (batch,). Four MXU dots (one per pool member) + elementwise 4-way max.
# --------------------------------------------------------------------------------------
def conv_relu_pool_kernel(p00_ref, p01_ref, p10_ref, p11_ref, w_ref, b_ref, o_ref):
    # p??_ref: (1, 441, 32) f32  im2col patches for pool member (row-phase, col-phase)
    # w_ref:   (32, 32)     f32  conv weight (kh*9 + kw*3 + c, c_out), zero-padded rows 27..31
    # b_ref:   (1, 32)      f32
    # o_ref:   (1, 441, 32) bf16 pooled NHWC activations (pr*21 + pc, c_out)
    w = w_ref[...]
    c00 = jnp.dot(p00_ref[0], w, preferred_element_type=jnp.float32)   # conv @ (2pr,   2pc)
    c01 = jnp.dot(p01_ref[0], w, preferred_element_type=jnp.float32)   # conv @ (2pr,   2pc+1)
    c10 = jnp.dot(p10_ref[0], w, preferred_element_type=jnp.float32)   # conv @ (2pr+1, 2pc)
    c11 = jnp.dot(p11_ref[0], w, preferred_element_type=jnp.float32)   # conv @ (2pr+1, 2pc+1)
    # 2x2 max-pool; bias + ReLU commute with max, so apply them once on the pooled values.
    v = jnp.maximum(jnp.maximum(c00, c01), jnp.maximum(c10, c11))       # (441, 32)
    o_ref[0] = jnp.maximum(v + b_ref[...], 0.0).astype(jnp.bfloat16)


def make_pool_patches(x_nhwc):
    """im2col patches split by 2x2-pool member, tap order (kh, kw, c) matching w32 rows."""
    n = x_nhwc.shape[0]
    patches = []
    for rp in range(2):              # conv-output row phase inside the pool window
        for cp in range(2):          # conv-output col phase inside the pool window
            taps = [x_nhwc[:, rp + kh: rp + kh + 2 * PH: 2,
                              cp + kw: cp + kw + 2 * PW: 2, :]
                    for kh in range(KH) for kw in range(KW)]             # each (N, 21, 21, 3)
            p = jnp.concatenate(taps, axis=-1)                           # (N, 21, 21, 27)
            p = jnp.pad(p, ((0, 0), (0, 0), (0, 0), (0, TAPS_PAD - TAPS)))
            patches.append(p.reshape(n, PH * PW, TAPS_PAD))              # (N, 441, 32)
    return tuple(patches)


def conv_relu_pool(p00, p01, p10, p11, w32, b_1xc):
    n = p00.shape[0]
    p_spec = pl.BlockSpec((1, PH * PW, TAPS_PAD), lambda b: (b, 0, 0))
    return pl.pallas_call(
        conv_relu_pool_kernel,
        out_shape=jax.ShapeDtypeStruct((n, PH * PW, C_OUT), jnp.bfloat16),
        grid=(n,),
        in_specs=[p_spec, p_spec, p_spec, p_spec,
                  pl.BlockSpec((TAPS_PAD, C_OUT), lambda b: (0, 0)),
                  pl.BlockSpec((1, C_OUT), lambda b: (0, 0))],
        out_specs=pl.BlockSpec((1, PH * PW, C_OUT), lambda b: (b, 0, 0)),
        compiler_params=pltpu.CompilerParams(
            dimension_semantics=("parallel",)),
    )(p00, p01, p10, p11, w32, b_1xc)


# --------------------------------------------------------------------------------------
# Kernel 2: classifier  Dropout(identity, eval) -> ReLU(identity: inputs >= 0) -> Linear
#   grid = (N-half, K-tile); int8 weight stream + per-output-channel f32 scales,
#   in-kernel dequant to bf16, f32 accumulation in the resident output block.
# --------------------------------------------------------------------------------------
def relu_linear_kernel(x_ref, w_ref, s_ref, b_ref, o_ref):
    # x_ref: (K_TILES, N, TK) bf16 (resident, fetched once)    w_ref: (1, TK, 512) int8
    # s_ref: (1, 1, 512) f32 per-output-channel scale          b_ref: (1, 1, 512) f32
    # o_ref: (N, 512) f32 (resident accumulator across the K axis)
    # TODO(synk): nn.Dropout is treated as identity (eval mode); training-mode stochastic
    #             masking + 1/(1-p) scaling is not implemented.
    k = pl.program_id(1)

    @pl.when(k == 0)
    def _():
        o_ref[...] = jnp.zeros_like(o_ref)

    x = x_ref[k]                                                  # (N, TK) bf16
    w = w_ref[0].astype(jnp.bfloat16)                             # int8 -> bf16 dequant (unscaled)
    o_ref[...] += jnp.dot(x, w, preferred_element_type=jnp.float32)

    @pl.when(k == pl.num_programs(1) - 1)
    def _():
        o_ref[...] = o_ref[...] * s_ref[0] + b_ref[0]             # apply scale + bias once


def relu_linear(flat_pad_bf16, w_split, s_split, b_split):
    m, k_pad = flat_pad_bf16.shape
    k_tiles = k_pad // TK
    # (K_TILES, N, TK): lets the kernel pick the K tile with ref[k] from a single resident copy.
    x3 = flat_pad_bf16.reshape(m, k_tiles, TK).transpose(1, 0, 2)
    return pl.pallas_call(
        relu_linear_kernel,
        out_shape=jax.ShapeDtypeStruct((m, N_PAD), jnp.float32),
        grid=(2, k_tiles),
        in_specs=[pl.BlockSpec((k_tiles, m, TK), lambda j, k: (0, 0, 0)),
                  pl.BlockSpec((1, TK, N_HALF), lambda j, k: (j, k, 0)),
                  pl.BlockSpec((1, 1, N_HALF), lambda j, k: (j, 0, 0)),
                  pl.BlockSpec((1, 1, N_HALF), lambda j, k: (j, 0, 0))],
        out_specs=pl.BlockSpec((m, N_HALF), lambda j, k: (0, j)),
        compiler_params=pltpu.CompilerParams(
            dimension_semantics=("parallel", "arbitrary"),
            vmem_limit_bytes=32 * 1024 * 1024),
    )(x3, w_split, s_split, b_split)


# --------------------------------------------------------------------------------------
# End-to-end forward (glue in plain JAX)
# --------------------------------------------------------------------------------------
@jax.jit
def example_net_forward(x_nchw, conv_w, conv_b, fc_w_split, fc_s_split, fc_b_split):
    n = x_nchw.shape[0]
    x_nhwc = jnp.transpose(x_nchw, (0, 2, 3, 1))                        # (N, 44, 44, 3)
    w32 = jnp.pad(conv_w.reshape(TAPS, C_OUT), ((0, TAPS_PAD - TAPS), (0, 0)))   # (32, 32)
    b_1xc = conv_b.reshape(1, C_OUT)

    p00, p01, p10, p11 = make_pool_patches(x_nhwc)                      # 4 x (N, 441, 32)
    pooled = conv_relu_pool(p00, p01, p10, p11, w32, b_1xc)             # (N, 441, 32) bf16

    # NHWC-order flatten (free reshape); the FC weight rows were pre-permuted to match.
    flat = pooled.reshape(n, FLAT)
    flat = jnp.pad(flat, ((0, 0), (0, K_PAD - FLAT)))                   # zero K padding
    out_pad = relu_linear(flat, fc_w_split, fc_s_split, fc_b_split)     # (N, 1024) f32
    return out_pad[:, :N_CLASSES]                                       # (N, 1000)


def pack_fc_weights(fc_w, fc_b):
    """One-time setup: permute FC weight rows from NCHW-flatten to NHWC-flatten order,
    pad K to K_PAD / N to N_PAD, quantize to int8 with per-output-channel scales, and
    split into two contiguous 512-wide halves (one per parallel grid index)."""
    perm = (jnp.arange(C_OUT)[None, None, :] * (PH * PW)
            + jnp.arange(PH)[:, None, None] * PW
            + jnp.arange(PW)[None, :, None]).reshape(FLAT)
    w_nhwc = fc_w[perm, :]                                                      # (FLAT, 1000)
    w_full = jnp.zeros((K_PAD, N_PAD), jnp.float32).at[:FLAT, :N_CLASSES].set(w_nhwc)

    amax = jnp.max(jnp.abs(w_full), axis=0)                                     # (N_PAD,)
    scale = jnp.where(amax > 0.0, amax / 127.0, 1.0)                            # avoid 0-div on pad cols
    w_q = jnp.round(w_full / scale).astype(jnp.int8)                            # symmetric int8
    w_split = w_q.reshape(K_PAD, 2, N_HALF).transpose(1, 0, 2)                  # (2, K_PAD, 512) int8
    s_split = scale.reshape(2, 1, N_HALF).astype(jnp.float32)                   # (2, 1, 512)
    b_split = jnp.zeros((N_PAD,), jnp.float32).at[:N_CLASSES].set(fc_b).reshape(2, 1, N_HALF)
    return w_split, s_split, b_split


# --------------------------------------------------------------------------------------
# Pure-JAX references for validation
# --------------------------------------------------------------------------------------
def reference_pooled_nhwc(x_nchw, conv_w, conv_b):
    x_nhwc = jnp.transpose(x_nchw, (0, 2, 3, 1))
    conv = jax.lax.conv_general_dilated(
        x_nhwc, conv_w, window_strides=(1, 1), padding="VALID",
        dimension_numbers=("NHWC", "HWIO", "NHWC"),
        precision=jax.lax.Precision.HIGHEST)
    conv = jnp.maximum(conv + conv_b.reshape(1, 1, 1, C_OUT), 0.0)
    return jax.lax.reduce_window(conv, -jnp.inf, jax.lax.max,
                                 (1, 2, 2, 1), (1, 2, 2, 1), "VALID")           # (N, 21, 21, 32)


def reference_forward_quantized(x_nchw, conv_w, conv_b, w_split, s_split, b_split):
    """Reference using the SAME int8-dequantized weights + bf16 activations (tight check)."""
    n = x_nchw.shape[0]
    pooled = reference_pooled_nhwc(x_nchw, conv_w, conv_b)
    h = pooled.reshape(n, FLAT).astype(jnp.bfloat16).astype(jnp.float32)        # NHWC flatten
    h = jnp.pad(h, ((0, 0), (0, K_PAD - FLAT)))
    w_deq = w_split.astype(jnp.float32) * s_split                               # (2, K_PAD, 512)
    w_deq = jnp.transpose(w_deq, (1, 0, 2)).reshape(K_PAD, N_PAD)
    out = jnp.dot(h, w_deq, precision=jax.lax.Precision.HIGHEST) + b_split.reshape(N_PAD)
    return out[:, :N_CLASSES]


def reference_forward_f32(x_nchw, conv_w, conv_b, fc_w, fc_b):
    """Full-f32 PyTorch-equivalent reference (bounds the int8/bf16 quantization effect)."""
    n = x_nchw.shape[0]
    pooled = reference_pooled_nhwc(x_nchw, conv_w, conv_b)
    flat = jnp.transpose(pooled, (0, 3, 1, 2)).reshape(n, FLAT)                 # NCHW flatten
    h = jnp.maximum(flat, 0.0)
    return jnp.dot(h, fc_w, precision=jax.lax.Precision.HIGHEST) + fc_b


if __name__ == "__main__":
    key = jax.random.PRNGKey(0)
    kx, kw1, kb1, kw2, kb2 = jax.random.split(key, 5)
    x_nchw = jax.random.normal(kx, (N_BATCH, C_IN, H_IN, W_IN), jnp.float32)
    conv_w = jax.random.normal(kw1, (KH, KW, C_IN, C_OUT), jnp.float32) * 0.1   # HWIO
    conv_b = jax.random.normal(kb1, (C_OUT,), jnp.float32) * 0.1
    fc_w = jax.random.normal(kw2, (FLAT, N_CLASSES), jnp.float32) * 0.01        # (in, out)
    fc_b = jax.random.normal(kb2, (N_CLASSES,), jnp.float32) * 0.01

    fc_w_split, fc_s_split, fc_b_split = pack_fc_weights(fc_w, fc_b)

    out = example_net_forward(x_nchw, conv_w, conv_b, fc_w_split, fc_s_split, fc_b_split)
    out = jax.block_until_ready(out)
    assert out.shape == (N_BATCH, N_CLASSES) and out.dtype == jnp.float32

    # tight check: reference using the same int8-dequantized FC weights + bf16 activations
    ref_q = reference_forward_quantized(x_nchw, conv_w, conv_b,
                                        fc_w_split, fc_s_split, fc_b_split)
    err_q = float(jnp.max(jnp.abs(out - ref_q)))
    assert err_q < 5e-3, f"max abs error vs matched-quantization reference {err_q}"

    # loose check: full-f32 PyTorch-equivalent reference (expected ~2-3e-2 from int8 weights)
    ref_f32 = reference_forward_f32(x_nchw, conv_w, conv_b, fc_w, fc_b)
    err_f32 = float(jnp.max(jnp.abs(out - ref_f32)))
    assert err_f32 < 1e-1, f"max abs error vs f32 reference {err_f32}"

    print("KERNEL_OK")
</pallas_src>

<mosaic_0001>
module attributes {stable_mosaic.version = 11 : i64} {
  func.func @conv_relu_pool_kernel(%arg0: i32, %arg1: memref<1x441x32xf32, #tpu.memory_space<vmem>>, %arg2: memref<1x441x32xf32, #tpu.memory_space<vmem>>, %arg3: memref<1x441x32xf32, #tpu.memory_space<vmem>>, %arg4: memref<1x441x32xf32, #tpu.memory_space<vmem>>, %arg5: memref<32x32xf32, #tpu.memory_space<vmem>>, %arg6: memref<1x32xf32, #tpu.memory_space<vmem>>, %arg7: memref<1x441x32xbf16, #tpu.memory_space<vmem>>) attributes {dimension_semantics = [#tpu.dimension_semantics<parallel>], iteration_bounds = array<i64: 2>, scalar_prefetch = 0 : i64, scratch_operands = 0 : i64, tpu.core_type = #tpu.core_type<tc>, window_params = [{transform_indices = @transform_0, window_bounds = array<i64: 1, 441, 32>}, {transform_indices = @transform_1, window_bounds = array<i64: 1, 441, 32>}, {transform_indices = @transform_2, window_bounds = array<i64: 1, 441, 32>}, {transform_indices = @transform_3, window_bounds = array<i64: 1, 441, 32>}, {pipeline_mode = #tpu.pipeline_mode<synchronous>, transform_indices = @transform_4, window_bounds = array<i64: 32, 32>}, {pipeline_mode = #tpu.pipeline_mode<synchronous>, transform_indices = @transform_5, window_bounds = array<i64: 1, 32>}, {transform_indices = @transform_6, window_bounds = array<i64: 1, 441, 32>}]} {
    %c0 = arith.constant 0 : index
    %c0_0 = arith.constant 0 : index
    %0 = vector.load %arg5[%c0, %c0_0] : memref<32x32xf32, #tpu.memory_space<vmem>>, vector<32x32xf32>
    %c0_1 = arith.constant 0 : index
    %c0_2 = arith.constant 0 : index
    %c0_3 = arith.constant 0 : index
    %1 = vector.load %arg1[%c0_1, %c0_2, %c0_3] : memref<1x441x32xf32, #tpu.memory_space<vmem>>, vector<1x441x32xf32>
    %2 = vector.shape_cast %1 : vector<1x441x32xf32> to vector<441x32xf32>
    %cst = arith.constant dense<0.000000e+00> : vector<441x32xf32>
    %3 = tpu.matmul %2, %0, %cst {dimension_numbers = #tpu.dot_dimension_numbers<[1], [0], [0], [1], [0, 0, 1, 1], [], []>} : vector<441x32xf32>, vector<32x32xf32>, vector<441x32xf32> -> vector<441x32xf32>
    %c0_4 = arith.constant 0 : index
    %c0_5 = arith.constant 0 : index
    %c0_6 = arith.constant 0 : index
    %4 = vector.load %arg2[%c0_4, %c0_5, %c0_6] : memref<1x441x32xf32, #tpu.memory_space<vmem>>, vector<1x441x32xf32>
    %5 = vector.shape_cast %4 : vector<1x441x32xf32> to vector<441x32xf32>
    %cst_7 = arith.constant dense<0.000000e+00> : vector<441x32xf32>
    %6 = tpu.matmul %5, %0, %cst_7 {dimension_numbers = #tpu.dot_dimension_numbers<[1], [0], [0], [1], [0, 0, 1, 1], [], []>} : vector<441x32xf32>, vector<32x32xf32>, vector<441x32xf32> -> vector<441x32xf32>
    %c0_8 = arith.constant 0 : index
    %c0_9 = arith.constant 0 : index
    %c0_10 = arith.constant 0 : index
    %7 = vector.load %arg3[%c0_8, %c0_9, %c0_10] : memref<1x441x32xf32, #tpu.memory_space<vmem>>, vector<1x441x32xf32>
    %8 = vector.shape_cast %7 : vector<1x441x32xf32> to vector<441x32xf32>
    %cst_11 = arith.constant dense<0.000000e+00> : vector<441x32xf32>
    %9 = tpu.matmul %8, %0, %cst_11 {dimension_numbers = #tpu.dot_dimension_numbers<[1], [0], [0], [1], [0, 0, 1, 1], [], []>} : vector<441x32xf32>, vector<32x32xf32>, vector<441x32xf32> -> vector<441x32xf32>
    %c0_12 = arith.constant 0 : index
    %c0_13 = arith.constant 0 : index
    %c0_14 = arith.constant 0 : index
    %10 = vector.load %arg4[%c0_12, %c0_13, %c0_14] : memref<1x441x32xf32, #tpu.memory_space<vmem>>, vector<1x441x32xf32>
    %11 = vector.shape_cast %10 : vector<1x441x32xf32> to vector<441x32xf32>
    %cst_15 = arith.constant dense<0.000000e+00> : vector<441x32xf32>
    %12 = tpu.matmul %11, %0, %cst_15 {dimension_numbers = #tpu.dot_dimension_numbers<[1], [0], [0], [1], [0, 0, 1, 1], [], []>} : vector<441x32xf32>, vector<32x32xf32>, vector<441x32xf32> -> vector<441x32xf32>
    %13 = arith.maximumf %3, %6 : vector<441x32xf32>
    %14 = arith.maximumf %9, %12 : vector<441x32xf32>
    %15 = arith.maximumf %13, %14 : vector<441x32xf32>
    %c0_16 = arith.constant 0 : index
    %c0_17 = arith.constant 0 : index
    %16 = vector.load %arg6[%c0_16, %c0_17] : memref<1x32xf32, #tpu.memory_space<vmem>>, vector<1x32xf32>
    %17 = vector.broadcast %16 : vector<1x32xf32> to vector<441x32xf32>
    %18 = arith.addf %15, %17 : vector<441x32xf32>
    %cst_18 = arith.constant 0.000000e+00 : f32
    %19 = vector.broadcast %cst_18 : f32 to vector<441x32xf32>
    %20 = arith.maximumf %18, %19 : vector<441x32xf32>
    %21 = arith.truncf %20 : vector<441x32xf32> to vector<441x32xbf16>
    %c0_19 = arith.constant 0 : index
    %c0_20 = arith.constant 0 : index
    %c0_21 = arith.constant 0 : index
    %22 = vector.load %arg7[%c0_19, %c0_20, %c0_21] : memref<1x441x32xbf16, #tpu.memory_space<vmem>>, vector<1x441x32xbf16>
    %23 = vector.shape_cast %22 : vector<1x441x32xbf16> to vector<441x32xbf16>
    %24 = vector.shape_cast %21 : vector<441x32xbf16> to vector<1x441x32xbf16>
    tpu.vector_store %arg7[%c0_19, %c0_20, %c0_21], %24 {strides = array<i32>} : memref<1x441x32xbf16, #tpu.memory_space<vmem>>, vector<1x441x32xbf16>,
    return
  }
  func.func @transform_0(%arg0: i32) -> (i32, i32, i32) {
    %c0_i32 = arith.constant 0 : i32
    %c0_i32_0 = arith.constant 0 : i32
    %c0_i32_1 = arith.constant 0 : i32
    return %arg0, %c0_i32, %c0_i32_0 : i32, i32, i32
  }
  func.func @transform_1(%arg0: i32) -> (i32, i32, i32) {
    %c0_i32 = arith.constant 0 : i32
    %c0_i32_0 = arith.constant 0 : i32
    %c0_i32_1 = arith.constant 0 : i32
    return %arg0, %c0_i32, %c0_i32_0 : i32, i32, i32
  }
  func.func @transform_2(%arg0: i32) -> (i32, i32, i32) {
    %c0_i32 = arith.constant 0 : i32
    %c0_i32_0 = arith.constant 0 : i32
    %c0_i32_1 = arith.constant 0 : i32
    return %arg0, %c0_i32, %c0_i32_0 : i32, i32, i32
  }
  func.func @transform_3(%arg0: i32) -> (i32, i32, i32) {
    %c0_i32 = arith.constant 0 : i32
    %c0_i32_0 = arith.constant 0 : i32
    %c0_i32_1 = arith.constant 0 : i32
    return %arg0, %c0_i32, %c0_i32_0 : i32, i32, i32
  }
  func.func @transform_4(%arg0: i32) -> (i32, i32) {
    %c0_i32 = arith.constant 0 : i32
    %c0_i32_0 = arith.constant 0 : i32
    %c0_i32_1 = arith.constant 0 : i32
    return %c0_i32, %c0_i32_0 : i32, i32
  }
  func.func @transform_5(%arg0: i32) -> (i32, i32) {
    %c0_i32 = arith.constant 0 : i32
    %c0_i32_0 = arith.constant 0 : i32
    %c0_i32_1 = arith.constant 0 : i32
    return %c0_i32, %c0_i32_0 : i32, i32
  }
  func.func @transform_6(%arg0: i32) -> (i32, i32, i32) {
    %c0_i32 = arith.constant 0 : i32
    %c0_i32_0 = arith.constant 0 : i32
    %c0_i32_1 = arith.constant 0 : i32
    return %arg0, %c0_i32, %c0_i32_0 : i32, i32, i32
  }
}

module attributes {stable_mosaic.version = 11 : i64} {
  func.func @relu_linear_kernel(%arg0: i32, %arg1: i32, %arg2: memref<2x2x7168xbf16, #tpu.memory_space<vmem>>, %arg3: memref<1x7168x512xi8, #tpu.memory_space<vmem>>, %arg4: memref<1x1x512xf32, #tpu.memory_space<vmem>>, %arg5: memref<1x1x512xf32, #tpu.memory_space<vmem>>, %arg6: memref<2x512xf32, #tpu.memory_space<vmem>>) attributes {dimension_semantics = [#tpu.dimension_semantics<parallel>, #tpu.dimension_semantics<arbitrary>], iteration_bounds = array<i64: 2, 2>, scalar_prefetch = 0 : i64, scratch_operands = 0 : i64, tpu.core_type = #tpu.core_type<tc>, window_params = [{pipeline_mode = #tpu.pipeline_mode<synchronous>, transform_indices = @transform_0, window_bounds = array<i64: 2, 2, 7168>}, {transform_indices = @transform_1, window_bounds = array<i64: 1, 7168, 512>}, {transform_indices = @transform_2, window_bounds = array<i64: 1, 1, 512>}, {transform_indices = @transform_3, window_bounds = array<i64: 1, 1, 512>}, {transform_indices = @transform_4, window_bounds = array<i64: 2, 512>}]} {
    %c0_i32 = arith.constant 0 : i32
    %0 = arith.cmpi eq, %arg1, %c0_i32 : i32
    %1 = arith.extui %0 : i1 to i32
    %c0_i32_0 = arith.constant 0 : i32
    %2 = arith.cmpi ne, %1, %c0_i32_0 : i32
    scf.if %2 {
      %cst_10 = arith.constant 0.000000e+00 : f32
      %16 = vector.broadcast %cst_10 : f32 to vector<2x512xf32>
      %c0_11 = arith.constant 0 : index
      %c0_12 = arith.constant 0 : index
      %17 = vector.load %arg6[%c0_11, %c0_12] : memref<2x512xf32, #tpu.memory_space<vmem>>, vector<2x512xf32>
      tpu.vector_store %arg6[%c0_11, %c0_12], %16 {strides = array<i32>} : memref<2x512xf32, #tpu.memory_space<vmem>>, vector<2x512xf32>,
    } else {
    }
    %3 = arith.index_cast %arg1 : i32 to index
    %c0 = arith.constant 0 : index
    %c0_1 = arith.constant 0 : index
    %4 = vector.load %arg2[%3, %c0, %c0_1] : memref<2x2x7168xbf16, #tpu.memory_space<vmem>>, vector<1x2x7168xbf16>
    %5 = vector.shape_cast %4 : vector<1x2x7168xbf16> to vector<2x7168xbf16>
    %c0_2 = arith.constant 0 : index
    %c0_3 = arith.constant 0 : index
    %c0_4 = arith.constant 0 : index
    %6 = vector.load %arg3[%c0_2, %c0_3, %c0_4] : memref<1x7168x512xi8, #tpu.memory_space<vmem>>, vector<1x7168x512xi8>
    %7 = vector.shape_cast %6 : vector<1x7168x512xi8> to vector<7168x512xi8>
    %8 = arith.sitofp %7 : vector<7168x512xi8> to vector<7168x512xbf16>
    %c0_5 = arith.constant 0 : index
    %c0_6 = arith.constant 0 : index
    %9 = vector.load %arg6[%c0_5, %c0_6] : memref<2x512xf32, #tpu.memory_space<vmem>>, vector<2x512xf32>
    %cst = arith.constant dense<0.000000e+00> : vector<2x512xf32>
    %10 = tpu.matmul %5, %8, %cst {dimension_numbers = #tpu.dot_dimension_numbers<[1], [0], [0], [1], [0, 0, 1, 1], [], []>} : vector<2x7168xbf16>, vector<7168x512xbf16>, vector<2x512xf32> -> vector<2x512xf32>
    %11 = arith.addf %9, %10 : vector<2x512xf32>
    %c0_7 = arith.constant 0 : index
    %c0_8 = arith.constant 0 : index
    %12 = vector.load %arg6[%c0_7, %c0_8] : memref<2x512xf32, #tpu.memory_space<vmem>>, vector<2x512xf32>
    tpu.vector_store %arg6[%c0_7, %c0_8], %11 {strides = array<i32>} : memref<2x512xf32, #tpu.memory_space<vmem>>, vector<2x512xf32>,
    %c1_i32 = arith.constant 1 : i32
    %13 = arith.cmpi eq, %arg1, %c1_i32 : i32
    %14 = arith.extui %13 : i1 to i32
    %c0_i32_9 = arith.constant 0 : i32
    %15 = arith.cmpi ne, %14, %c0_i32_9 : i32
    scf.if %15 {
      %c0_10 = arith.constant 0 : index
      %c0_11 = arith.constant 0 : index
      %16 = vector.load %arg6[%c0_10, %c0_11] : memref<2x512xf32, #tpu.memory_space<vmem>>, vector<2x512xf32>
      %c0_12 = arith.constant 0 : index
      %c0_13 = arith.constant 0 : index
      %c0_14 = arith.constant 0 : index
      %17 = vector.load %arg4[%c0_12, %c0_13, %c0_14] : memref<1x1x512xf32, #tpu.memory_space<vmem>>, vector<1x1x512xf32>
      %18 = vector.shape_cast %17 : vector<1x1x512xf32> to vector<1x512xf32>
      %19 = vector.broadcast %18 : vector<1x512xf32> to vector<2x512xf32>
      %20 = arith.mulf %16, %19 : vector<2x512xf32>
      %c0_15 = arith.constant 0 : index
      %c0_16 = arith.constant 0 : index
      %c0_17 = arith.constant 0 : index
      %21 = vector.load %arg5[%c0_15, %c0_16, %c0_17] : memref<1x1x512xf32, #tpu.memory_space<vmem>>, vector<1x1x512xf32>
      %22 = vector.shape_cast %21 : vector<1x1x512xf32> to vector<1x512xf32>
      %23 = vector.broadcast %22 : vector<1x512xf32> to vector<2x512xf32>
      %24 = arith.addf %20, %23 : vector<2x512xf32>
      %c0_18 = arith.constant 0 : index
      %c0_19 = arith.constant 0 : index
      %25 = vector.load %arg6[%c0_18, %c0_19] : memref<2x512xf32, #tpu.memory_space<vmem>>, vector<2x512xf32>
      tpu.vector_store %arg6[%c0_18, %c0_19], %24 {strides = array<i32>} : memref<2x512xf32, #tpu.memory_space<vmem>>, vector<2x512xf32>,
    } else {
    }
    return
  }
  func.func @transform_0(%arg0: i32, %arg1: i32) -> (i32, i32, i32) {
    %c0_i32 = arith.constant 0 : i32
    %c0_i32_0 = arith.constant 0 : i32
    %c0_i32_1 = arith.constant 0 : i32
    %c0_i32_2 = arith.constant 0 : i32
    return %c0_i32, %c0_i32_0, %c0_i32_1 : i32, i32, i32
  }
  func.func @transform_1(%arg0: i32, %arg1: i32) -> (i32, i32, i32) {
    %c0_i32 = arith.constant 0 : i32
    %c0_i32_0 = arith.constant 0 : i32
    return %arg0, %arg1, %c0_i32 : i32, i32, i32
  }
  func.func @transform_2(%arg0: i32, %arg1: i32) -> (i32, i32, i32) {
    %c0_i32 = arith.constant 0 : i32
    %c0_i32_0 = arith.constant 0 : i32
    %c0_i32_1 = arith.constant 0 : i32
    return %arg0, %c0_i32, %c0_i32_0 : i32, i32, i32
  }
  func.func @transform_3(%arg0: i32, %arg1: i32) -> (i32, i32, i32) {
    %c0_i32 = arith.constant 0 : i32
    %c0_i32_0 = arith.constant 0 : i32
    %c0_i32_1 = arith.constant 0 : i32
    return %arg0, %c0_i32, %c0_i32_0 : i32, i32, i32
  }
  func.func @transform_4(%arg0: i32, %arg1: i32) -> (i32, i32) {
    %c0_i32 = arith.constant 0 : i32
    %c0_i32_0 = arith.constant 0 : i32
    return %c0_i32, %arg0 : i32, i32
  }
}

</mosaic_0001>

<llo_original>
// kernel: example_net_forward.2
$region0: #{example_net_forward.2}
  #allocation0 [shape = 'u32[]', space=smem, size = 0x4, offset = 0x4, fixed_abs, tag = 'smem constant byte address 0x4 - core index']
  #allocation1 [shape = 'u32[144,128]{1,0:T(1,128)}', space=vmem, size = 0x12000, scoped, tag = 'internal scratch']
  %s0 = inlined_call_operand.vmem [shape: f32[2,441,32], index: 0, kind: input, shape index: {}]
  %s1 = inlined_call_operand.vmem [shape: f32[2,441,32], index: 1, kind: input, shape index: {}]
  %s2 = inlined_call_operand.vmem [shape: f32[2,441,32], index: 2, kind: input, shape index: {}]
  %s3 = inlined_call_operand.vmem [shape: f32[2,441,32], index: 3, kind: input, shape index: {}]
  %s4 = inlined_call_operand.vmem [shape: f32[32,32], index: 4, kind: input, shape index: {}]
  %s5 = inlined_call_operand.vmem [shape: f32[1,32], index: 5, kind: input, shape index: {}]
  %s6 = inlined_call_operand.vmem [shape: bf16[2,441,32], index: 6, kind: output, shape index: {}]
  %s7 = sld [smem:[#allocation0]]
  $region57: #{example_net_forward.2} parent=0
    _
  %s9 = ssub.s32 1, %s7
  %s10 = scalar_select 0, %s9, %s7
  loop: start=0, step=1, limit=4
  $region2: #{example_net_forward.2} parent=0 // loop_pre_header
    _
  $region3: #{example_net_forward.2} parent=0 // loop_header
    %s12 = sphi 0, %s16
    %p13 = scmp.ge.s32.totalorder %s12, 4
    %s22 = sphi 0, %s24
    %s25 = sphi 0, %s22
    %s26 = sphi 0, %s25
    %s42 = sphi 0, %s26
    %s48 = sphi 0, %s50
    %s51 = sphi 0, %s48
    %s52 = sphi 0, %s51
    %s68 = sphi 0, %s52
    %s74 = sphi 0, %s76
    %s77 = sphi 0, %s74
    %s78 = sphi 0, %s77
    %s94 = sphi 0, %s78
    %s100 = sphi 0, %s102
    %s103 = sphi 0, %s100
    %s104 = sphi 0, %s103
    %s120 = sphi 0, %s104
    %s124 = sphi 0, %s124
    %s126 = sphi 0, %s124
    %s127 = sphi 0, %s126
    %s141 = sphi 0, %s127
    %s145 = sphi 0, %s145
    %s147 = sphi 0, %s145
    %s148 = sphi 0, %s147
    %s162 = sphi 0, %s148
    %s168 = sphi 0, %s170
    %s171 = sphi 0, %s168
    %s172 = sphi 0, %s171
    %s188 = sphi 0, %s172
  $region4: #{example_net_forward.2} parent=0 // loop_header_branch
    %15 = sbr.rel (%p13) target = $region8
  $region5: #{example_net_forward.2} parent=0 // loop_body
    %s17 = ssub.s32 %s12, 1
    %s18 = ssub.s32 %s12, 2
    %s19 = sadd.s32 %s12, 1
    %s20 = ssub.s32 %s12, %s19
    %p21 = scmp.eq.s32.totalorder %s20, 0
    %s23 = sadd.s32 %s22, 1
    %s24 = scalar_select %p21, %s22, %s23
    %p27 = pneg %p21
    %p28 = scmp.eq.s32.totalorder %s12, 1
    %p29 = por %p27, %p28
    %p30 = scmp.ne.s32.totalorder %s22, %s25
    %p31 = scmp.eq.s32.totalorder %s12, 0
    %p32 = por %p30, %p31
    %p33 = scmp.ne.s32.totalorder %s22, %s25
    %p34 = scmp.eq.s32.totalorder %s17, 1
    %p35 = por %p33, %p34
    %p36 = scmp.ne.s32.totalorder %s25, %s26
    %p37 = scmp.eq.s32.totalorder %s17, 0
    %p38 = por %p36, %p37
    %p39 = scmp.ne.s32.totalorder %s25, %s26
    %p40 = scmp.eq.s32.totalorder %s18, 1
    %p41 = por %p39, %p40
    %p43 = scmp.ne.s32.totalorder %s26, %s42
    %p44 = scmp.eq.s32.totalorder %s18, 0
    %p45 = por %p43, %p44
    %s46 = ssub.s32 %s12, %s19
    %p47 = scmp.eq.s32.totalorder %s46, 0
    %s49 = sadd.s32 %s48, 1
    %s50 = scalar_select %p47, %s48, %s49
    %p53 = pneg %p47
    %p54 = scmp.eq.s32.totalorder %s12, 1
    %p55 = por %p53, %p54
    %p56 = scmp.ne.s32.totalorder %s48, %s51
    %p57 = scmp.eq.s32.totalorder %s12, 0
    %p58 = por %p56, %p57
    %p59 = scmp.ne.s32.totalorder %s48, %s51
    %p60 = scmp.eq.s32.totalorder %s17, 1
    %p61 = por %p59, %p60
    %p62 = scmp.ne.s32.totalorder %s51, %s52
    %p63 = scmp.eq.s32.totalorder %s17, 0
    %p64 = por %p62, %p63
    %p65 = scmp.ne.s32.totalorder %s51, %s52
    %p66 = scmp.eq.s32.totalorder %s18, 1
    %p67 = por %p65, %p66
    %p69 = scmp.ne.s32.totalorder %s52, %s68
    %p70 = scmp.eq.s32.totalorder %s18, 0
    %p71 = por %p69, %p70
    %s72 = ssub.s32 %s12, %s19
    %p73 = scmp.eq.s32.totalorder %s72, 0
    %s75 = sadd.s32 %s74, 1
    %s76 = scalar_select %p73, %s74, %s75
    %p79 = pneg %p73
    %p80 = scmp.eq.s32.totalorder %s12, 1
    %p81 = por %p79, %p80
    %p82 = scmp.ne.s32.totalorder %s74, %s77
    %p83 = scmp.eq.s32.totalorder %s12, 0
    %p84 = por %p82, %p83
    %p85 = scmp.ne.s32.totalorder %s74, %s77
    %p86 = scmp.eq.s32.totalorder %s17, 1
    %p87 = por %p85, %p86
    %p88 = scmp.ne.s32.totalorder %s77, %s78
    %p89 = scmp.eq.s32.totalorder %s17, 0
    %p90 = por %p88, %p89
    %p91 = scmp.ne.s32.totalorder %s77, %s78
    %p92 = scmp.eq.s32.totalorder %s18, 1
    %p93 = por %p91, %p92
    %p95 = scmp.ne.s32.totalorder %s78, %s94
    %p96 = scmp.eq.s32.totalorder %s18, 0
    %p97 = por %p95, %p96
    %s98 = ssub.s32 %s12, %s19
    %p99 = scmp.eq.s32.totalorder %s98, 0
    %s101 = sadd.s32 %s100, 1
    %s102 = scalar_select %p99, %s100, %s101
    %p105 = pneg %p99
    %p106 = scmp.eq.s32.totalorder %s12, 1
    %p107 = por %p105, %p106
    %p108 = scmp.ne.s32.totalorder %s100, %s103
    %p109 = scmp.eq.s32.totalorder %s12, 0
    %p110 = por %p108, %p109
    %p111 = scmp.ne.s32.totalorder %s100, %s103
    %p112 = scmp.eq.s32.totalorder %s17, 1
    %p113 = por %p111, %p112
    %p114 = scmp.ne.s32.totalorder %s103, %s104
    %p115 = scmp.eq.s32.totalorder %s17, 0
    %p116 = por %p114, %p115
    %p117 = scmp.ne.s32.totalorder %s103, %s104
    %p118 = scmp.eq.s32.totalorder %s18, 1
    %p119 = por %p117, %p118
    %p121 = scmp.ne.s32.totalorder %s104, %s120
    %p122 = scmp.eq.s32.totalorder %s18, 0
    %p123 = por %p121, %p122
    %s125 = sadd.s32 %s124, 1
    %p128 = scmp.eq.s32.totalorder %s12, 1
    %p129 = scmp.ne.s32.totalorder %s124, %s126
    %p130 = scmp.eq.s32.totalorder %s12, 0
    %p131 = por %p129, %p130
    %p132 = scmp.ne.s32.totalorder %s124, %s126
    %p133 = scmp.eq.s32.totalorder %s17, 1
    %p134 = por %p132, %p133
    %p135 = scmp.ne.s32.totalorder %s126, %s127
    %p136 = scmp.eq.s32.totalorder %s17, 0
    %p137 = por %p135, %p136
    %p138 = scmp.ne.s32.totalorder %s126, %s127
    %p139 = scmp.eq.s32.totalorder %s18, 1
    %p140 = por %p138, %p139
    %p142 = scmp.ne.s32.totalorder %s127, %s141
    %p143 = scmp.eq.s32.totalorder %s18, 0
    %p144 = por %p142, %p143
    %s146 = sadd.s32 %s145, 1
    %p149 = scmp.eq.s32.totalorder %s12, 1
    %p150 = scmp.ne.s32.totalorder %s145, %s147
    %p151 = scmp.eq.s32.totalorder %s12, 0
    %p152 = por %p150, %p151
    %p153 = scmp.ne.s32.totalorder %s145, %s147
    %p154 = scmp.eq.s32.totalorder %s17, 1
    %p155 = por %p153, %p154
    %p156 = scmp.ne.s32.totalorder %s147, %s148
    %p157 = scmp.eq.s32.totalorder %s17, 0
    %p158 = por %p156, %p157
    %p159 = scmp.ne.s32.totalorder %s147, %s148
    %p160 = scmp.eq.s32.totalorder %s18, 1
    %p161 = por %p159, %p160
    %p163 = scmp.ne.s32.totalorder %s148, %s162
    %p164 = scmp.eq.s32.totalorder %s18, 0
    %p165 = por %p163, %p164
    %s166 = ssub.s32 %s12, %s19
    %p167 = scmp.eq.s32.totalorder %s166, 0
    %s169 = sadd.s32 %s168, 1
    %s170 = scalar_select %p167, %s168, %s169
    %p173 = pneg %p167
    %p174 = scmp.eq.s32.totalorder %s12, 1
    %p175 = por %p173, %p174
    %p176 = scmp.ne.s32.totalorder %s168, %s171
    %p177 = scmp.eq.s32.totalorder %s12, 0
    %p178 = por %p176, %p177
    %p179 = scmp.ne.s32.totalorder %s168, %s171
    %p180 = scmp.eq.s32.totalorder %s17, 1
    %p181 = por %p179, %p180
    %p182 = scmp.ne.s32.totalorder %s171, %s172
    %p183 = scmp.eq.s32.totalorder %s17, 0
    %p184 = por %p182, %p183
    %p185 = scmp.ne.s32.totalorder %s171, %s172
    %p186 = scmp.eq.s32.totalorder %s18, 1
    %p187 = por %p185, %p186
    %p189 = scmp.ne.s32.totalorder %s172, %s188
    %p190 = scmp.eq.s32.totalorder %s18, 0
    %p191 = por %p189, %p190
    %p192 = scmp.le.s32.totalorder 1, %s12
    %p193 = scmp.lt.s32.totalorder %s12, 3
    %p194 = pnand %p192, %p193
    %p195 = pneg %p194
    // Predicated region
    $region9: #{example_net_forward.2} parent=5 // pred_check
      _
    $region10: #{example_net_forward.2} parent=5 // pred_check_branch
      %197 = sbr.rel (%p194) target = $region12
    $region11: #{example_net_forward.2} parent=5 // pred_region
      %s198 = ssub.s32 %s12, 1
      // Predicated region
      $region13: #{example_net_forward.2} parent=11 // pred_check
        %p199 = pneg %p137
      $region14: #{example_net_forward.2} parent=11 // pred_check_branch
        %201 = sbr.rel (%p199) target = $region16
      $region15: #{example_net_forward.2} parent=11 // pred_region
        _
      $region16: #{example_net_forward.2} parent=11 // pred_fallthru
        _
      // Predicated region
      $region17: #{example_net_forward.2} parent=11 // pred_check
        %p202 = pneg %p158
      $region18: #{example_net_forward.2} parent=11 // pred_check_branch
        %204 = sbr.rel (%p202) target = $region20
      $region19: #{example_net_forward.2} parent=11 // pred_region
        _
      $region20: #{example_net_forward.2} parent=11 // pred_fallthru
        _
    $region12: #{example_net_forward.2} parent=5 // pred_fallthru
      _
    %p205 = scmp.lt.s32.totalorder %s12, 2
    // Predicated region
    $region21: #{example_net_forward.2} parent=5 // pred_check
      %p206 = pneg %p205
    $region22: #{example_net_forward.2} parent=5 // pred_check_branch
      %208 = sbr.rel (%p206) target = $region24
    $region23: #{example_net_forward.2} parent=5 // pred_region
      // Predicated region
      $region25: #{example_net_forward.2} parent=23 // pred_check
        %p209 = pneg %p32
      $region26: #{example_net_forward.2} parent=23 // pred_check_branch
        %211 = sbr.rel (%p209) target = $region28
      $region27: #{example_net_forward.2} parent=23 // pred_region
        %p212 = scmp.lt.s32.totalorder %s12, 1
        %s213 = scalar_select %p212, %s12, 1
        %s214 = smul.addr %s213, 56
        %s215 = smul.addr %s214, 8
        %s216 = scalar_lea.vmem %s0, %s215
      $region28: #{example_net_forward.2} parent=23 // pred_fallthru
        _
      // Predicated region
      $region29: #{example_net_forward.2} parent=23 // pred_check
        %p217 = pneg %p58
      $region30: #{example_net_forward.2} parent=23 // pred_check_branch
        %219 = sbr.rel (%p217) target = $region32
      $region31: #{example_net_forward.2} parent=23 // pred_region
        %p220 = scmp.lt.s32.totalorder %s12, 1
        %s221 = scalar_select %p220, %s12, 1
        %s222 = smul.addr %s221, 56
        %s223 = smul.addr %s222, 8
        %s224 = scalar_lea.vmem %s1, %s223
      $region32: #{example_net_forward.2} parent=23 // pred_fallthru
        _
      // Predicated region
      $region33: #{example_net_forward.2} parent=23 // pred_check
        %p225 = pneg %p84
      $region34: #{example_net_forward.2} parent=23 // pred_check_branch
        %227 = sbr.rel (%p225) target = $region36
      $region35: #{example_net_forward.2} parent=23 // pred_region
        %p228 = scmp.lt.s32.totalorder %s12, 1
        %s229 = scalar_select %p228, %s12, 1
        %s230 = smul.addr %s229, 56
        %s231 = smul.addr %s230, 8
        %s232 = scalar_lea.vmem %s2, %s231
      $region36: #{example_net_forward.2} parent=23 // pred_fallthru
        _
      // Predicated region
      $region37: #{example_net_forward.2} parent=23 // pred_check
        %p233 = pneg %p110
      $region38: #{example_net_forward.2} parent=23 // pred_check_branch
        %235 = sbr.rel (%p233) target = $region40
      $region39: #{example_net_forward.2} parent=23 // pred_region
        %p236 = scmp.lt.s32.totalorder %s12, 1
        %s237 = scalar_select %p236, %s12, 1
        %s238 = smul.addr %s237, 56
        %s239 = smul.addr %s238, 8
        %s240 = scalar_lea.vmem %s3, %s239
      $region40: #{example_net_forward.2} parent=23 // pred_fallthru
        _
    $region24: #{example_net_forward.2} parent=5 // pred_fallthru
      _
    %p241 = scmp.le.s32.totalorder 1, %s12
    %p242 = scmp.lt.s32.totalorder %s12, 3
    %p243 = pnand %p241, %p242
    %p244 = pneg %p243
    // Predicated region
    $region41: #{example_net_forward.2} parent=5 // pred_check
      _
    $region42: #{example_net_forward.2} parent=5 // pred_check_branch
      %246 = sbr.rel (%p243) target = $region44
    $region43: #{example_net_forward.2} parent=5 // pred_region
      %s247 = ssub.s32 %s12, 1
      %p248 = scmp.lt.s32.totalorder %s17, 1
      %s249 = scalar_select %p248, %s17, 1
      %s250 = smul.addr %s249, 56
      %s251 = smul.addr %s250, 8
      %s252 = scalar_lea.vmem %s0, %s251
      %p253 = pneg %p38
      %p254 = pneg %p35
      %p255 = scmp.lt.s32.totalorder %s17, 1
      %s256 = scalar_select %p255, %s17, 1
      %s257 = smul.addr %s256, 56
      %s258 = smul.addr %s257, 8
      %s259 = scalar_lea.vmem %s1, %s258
      %p260 = pneg %p64
      %p261 = pneg %p61
      %p262 = scmp.lt.s32.totalorder %s17, 1
      %s263 = scalar_select %p262, %s17, 1
      %s264 = smul.addr %s263, 56
      %s265 = smul.addr %s264, 8
      %s266 = scalar_lea.vmem %s2, %s265
      %p267 = pneg %p90
      %p268 = pneg %p87
      %p269 = scmp.lt.s32.totalorder %s17, 1
      %s270 = scalar_select %p269, %s17, 1
      %s271 = smul.addr %s270, 56
      %s272 = smul.addr %s271, 8
      %s273 = scalar_lea.vmem %s3, %s272
      %p274 = pneg %p116
      %p275 = pneg %p113
      %p276 = pneg %p137
      %p277 = pneg %p134
      %p278 = pneg %p158
      %p279 = pneg %p155
      %p280 = pneg %p184
      %p281 = pneg %p181
      %p282 = scmp.lt.s32.totalorder %s17, 1
      %s283 = scalar_select %p282, %s17, 1
      %s284 = smul.addr %s283, 56
      %s285 = smul.addr %s284, 4
      %s286 = scalar_lea.vmem %s6, %s285
      %p287 = scmp.lt.s32.totalorder %s17, 1
      %s288 = scalar_select %p287, %s17, 1
      %s289 = smul.addr %s288, 56
      %s290 = smul.addr %s289, 8
      %s291 = scalar_lea.vmem %s0, %s290
      %p292 = scmp.lt.s32.totalorder %s17, 1
      %s293 = scalar_select %p292, %s17, 1
      %s294 = smul.addr %s293, 56
      %s295 = smul.addr %s294, 8
      %s296 = scalar_lea.vmem %s1, %s295
      %p297 = scmp.lt.s32.totalorder %s17, 1
      %s298 = scalar_select %p297, %s17, 1
      %s299 = smul.addr %s298, 56
      %s300 = smul.addr %s299, 8
      %s301 = scalar_lea.vmem %s2, %s300
      %p302 = scmp.lt.s32.totalorder %s17, 1
      %s303 = scalar_select %p302, %s17, 1
      %s304 = smul.addr %s303, 56
      %s305 = smul.addr %s304, 8
      %s306 = scalar_lea.vmem %s3, %s305
      %p307 = scmp.lt.s32.totalorder %s17, 1
      %s308 = scalar_select %p307, %s17, 1
      %s309 = smul.addr %s308, 56
      %s310 = smul.addr %s309, 4
      %s311 = scalar_lea.vmem %s6, %s310
      %v312 = vld [vmem:[%s4] sm:$0xff]
      %v313 = vld [vmem:[%s4 + $0x8] sm:$0xff]
      %v314 = vld [vmem:[%s4 + $0x10] sm:$0xff]
      %v315 = vld [vmem:[%s4 + $0x18] sm:$0xff]
      %v316 = vld [vmem:[%s291] sm:$0xff]
      %v317 = vld [vmem:[%s291 + $0x8] sm:$0xff]
      %v318 = vld [vmem:[%s291 + $0x10] sm:$0xff]
      %v319 = vld [vmem:[%s291 + $0x18] sm:$0xff]
      %v320 = vld [vmem:[%s291 + $0x20] sm:$0xff]
      %v321 = vld [vmem:[%s291 + $0x28] sm:$0xff]
      %v322 = vld [vmem:[%s291 + $0x30] sm:$0xff]
      %v323 = vld [vmem:[%s291 + $0x38] sm:$0xff]
      %v324 = vld [vmem:[%s291 + $0x40] sm:$0xff]
      %v325 = vld [vmem:[%s291 + $0x48] sm:$0xff]
      %v326 = vld [vmem:[%s291 + $0x50] sm:$0xff]
      %v327 = vld [vmem:[%s291 + $0x58] sm:$0xff]
      %v328 = vld [vmem:[%s291 + $0x60] sm:$0xff]
      %v329 = vld [vmem:[%s291 + $0x68] sm:$0xff]
      %v330 = vld [vmem:[%s291 + $0x70] sm:$0xff]
      %v331 = vld [vmem:[%s291 + $0x78] sm:$0xff]
      %v332 = vld [vmem:[%s291 + $0x80] sm:$0xff]
      %v333 = vld [vmem:[%s291 + $0x88] sm:$0xff]
      %v334 = vld [vmem:[%s291 + $0x90] sm:$0xff]
      %v335 = vld [vmem:[%s291 + $0x98] sm:$0xff]
      %v336 = vld [vmem:[%s291 + $0xa0] sm:$0xff]
      %v337 = vld [vmem:[%s291 + $0xa8] sm:$0xff]
      %v338 = vld [vmem:[%s291 + $0xb0] sm:$0xff]
      %v339 = vld [vmem:[%s291 + $0xb8] sm:$0xff]
      %v340 = vld [vmem:[%s291 + $0xc0] sm:$0xff]
      %v341 = vld [vmem:[%s291 + $0xc8] sm:$0xff]
      %v342 = vld [vmem:[%s291 + $0xd0] sm:$0xff]
      %v343 = vld [vmem:[%s291 + $0xd8] sm:$0xff]
      %v344 = vld [vmem:[%s291 + $0xe0] sm:$0xff]
      %v345 = vld [vmem:[%s291 + $0xe8] sm:$0xff]
      %v346 = vld [vmem:[%s291 + $0xf0] sm:$0xff]
      %v347 = vld [vmem:[%s291 + $0xf8] sm:$0xff]
      %v348 = vld [vmem:[%s291 + $0x100] sm:$0xff]
      %v349 = vld [vmem:[%s291 + $0x108] sm:$0xff]
      %v350 = vld [vmem:[%s291 + $0x110] sm:$0xff]
      %v351 = vld [vmem:[%s291 + $0x118] sm:$0xff]
      %v352 = vld [vmem:[%s291 + $0x120] sm:$0xff]
      %v353 = vld [vmem:[%s291 + $0x128] sm:$0xff]
      %v354 = vld [vmem:[%s291 + $0x130] sm:$0xff]
      %v355 = vld [vmem:[%s291 + $0x138] sm:$0xff]
      %v356 = vld [vmem:[%s291 + $0x140] sm:$0xff]
      %v357 = vld [vmem:[%s291 + $0x148] sm:$0xff]
      %v358 = vld [vmem:[%s291 + $0x150] sm:$0xff]
      %v359 = vld [vmem:[%s291 + $0x158] sm:$0xff]
      %v360 = vld [vmem:[%s291 + $0x160] sm:$0xff]
      %v361 = vld [vmem:[%s291 + $0x168] sm:$0xff]
      %v362 = vld [vmem:[%s291 + $0x170] sm:$0xff]
      %v363 = vld [vmem:[%s291 + $0x178] sm:$0xff]
      %v364 = vld [vmem:[%s291 + $0x180] sm:$0xff]
      %v365 = vld [vmem:[%s291 + $0x188] sm:$0xff]
      %v366 = vld [vmem:[%s291 + $0x190] sm:$0xff]
      %v367 = vld [vmem:[%s291 + $0x198] sm:$0xff]
      %v368 = vld [vmem:[%s291 + $0x1a0] sm:$0xff]
      %v369 = vld [vmem:[%s291 + $0x1a8] sm:$0xff]
      %v370 = vld [vmem:[%s291 + $0x1b0] sm:$0xff]
      %v371 = vld [vmem:[%s291 + $0x1b8] sm:$0x1]
      %vm372 = vcmask 261120
      %v374 = vsel %vm372, %v316, 0
      %v377 = vsel %vm372, %v317, 0
      %v380 = vsel %vm372, %v318, 0
      %v383 = vsel %vm372, %v319, 0
      %v386 = vsel %vm372, %v320, 0
      %v389 = vsel %vm372, %v321, 0
      %v392 = vsel %vm372, %v322, 0
      %v395 = vsel %vm372, %v323, 0
      %v398 = vsel %vm372, %v324, 0
      %v401 = vsel %vm372, %v325, 0
      %v404 = vsel %vm372, %v326, 0
      %v407 = vsel %vm372, %v327, 0
      %v410 = vsel %vm372, %v328, 0
      %v413 = vsel %vm372, %v329, 0
      %v416 = vsel %vm372, %v330, 0
      %v419 = vsel %vm372, %v331, 0
      %v422 = vsel %vm372, %v332, 0
      %v425 = vsel %vm372, %v333, 0
      %v428 = vsel %vm372, %v334, 0
      %v431 = vsel %vm372, %v335, 0
      %v434 = vsel %vm372, %v336, 0
      %v437 = vsel %vm372, %v337, 0
      %v440 = vsel %vm372, %v338, 0
      %v443 = vsel %vm372, %v339, 0
      %v446 = vsel %vm372, %v340, 0
      %v449 = vsel %vm372, %v341, 0
      %v452 = vsel %vm372, %v342, 0
      %v455 = vsel %vm372, %v343, 0
      %v458 = vsel %vm372, %v344, 0
      %v461 = vsel %vm372, %v345, 0
      %v464 = vsel %vm372, %v346, 0
      %v467 = vsel %vm372, %v347, 0
      %v470 = vsel %vm372, %v348, 0
      %v473 = vsel %vm372, %v349, 0
      %v476 = vsel %vm372, %v350, 0
      %v479 = vsel %vm372, %v351, 0
      %v482 = vsel %vm372, %v352, 0
      %v485 = vsel %vm372, %v353, 0
      %v488 = vsel %vm372, %v354, 0
      %v491 = vsel %vm372, %v355, 0
      %v494 = vsel %vm372, %v356, 0
      %v497 = vsel %vm372, %v357, 0
      %v500 = vsel %vm372, %v358, 0
      %v503 = vsel %vm372, %v359, 0
      %v506 = vsel %vm372, %v360, 0
      %v509 = vsel %vm372, %v361, 0
      %v512 = vsel %vm372, %v362, 0
      %v515 = vsel %vm372, %v363, 0
      %v518 = vsel %vm372, %v364, 0
      %v521 = vsel %vm372, %v365, 0
      %v524 = vsel %vm372, %v366, 0
      %v527 = vsel %vm372, %v367, 0
      %v530 = vsel %vm372, %v368, 0
      %v533 = vsel %vm372, %v369, 0
      %v536 = vsel %vm372, %v370, 0
      %v539 = vsel %vm372, %v371, 0
      %541 = vmatprep.subr.mxu0 0.0
      %542 = vmatpush1.msra.mxu0 %v312
      %543 = vmatprep.subr.mxu0 0.0
      %544 = vmatpush1.msra.mxu0 %v313
      %545 = vmatprep.subr.mxu0 0.0
      %546 = vmatpush1.msra.mxu0 %v314
      %547 = vmatprep.subr.mxu0 0.0
      %548 = vmatpush1.msra.mxu0 %v315
      %549 = vmatprep.subr.mxu0 0.0
      %550 = vmatpush1.msra.mxu0 0.0
      %551 = vmatprep.subr.mxu0 0.0
      %552 = vmatpush1.msra.mxu0 0.0
      %553 = vmatprep.subr.mxu0 0.0
      %554 = vmatpush1.msra.mxu0 0.0
      %555 = vmatprep.subr.mxu0 0.0
      %556 = vmatpush1.msra.mxu0 0.0
      %557 = vmatprep.subr.mxu0 0.0
      %558 = vmatpush1.msra.mxu0 0.0
      %559 = vmatprep.subr.mxu0 0.0
      %560 = vmatpush1.msra.mxu0 0.0
      %561 = vmatprep.subr.mxu0 0.0
      %562 = vmatpush1.msra.mxu0 0.0
      %563 = vmatprep.subr.mxu0 0.0
      %564 = vmatpush1.msra.mxu0 0.0
      %565 = vmatprep.subr.mxu0 0.0
      %566 = vmatpush1.msra.mxu0 0.0
      %567 = vmatprep.subr.mxu0 0.0
      %568 = vmatpush1.msra.mxu0 0.0
      %569 = vmatprep.subr.mxu0 0.0
      %570 = vmatpush1.msra.mxu0 0.0
      %571 = vmatprep.subr.mxu0 0.0
      %572 = vmatpush1.msra.mxu0 0.0
      %573 = vmatprep.subr.mxu0 0.0
      %574 = vmatpush1.msra.mxu0 0.0
      %575 = vmatprep.subr.mxu0 0.0
      %576 = vmatpush1.msra.mxu0 0.0
      %577 = vmatprep.subr.mxu0 0.0
      %578 = vmatpush1.msra.mxu0 0.0
      %579 = vmatprep.subr.mxu0 0.0
      %580 = vmatpush1.msra.mxu0 0.0
      %581 = vmatprep.subr.mxu0 0.0
      %582 = vmatpush1.msra.mxu0 0.0
      %583 = vmatprep.subr.mxu0 0.0
      %584 = vmatpush1.msra.mxu0 0.0
      %585 = vmatprep.subr.mxu0 0.0
      %586 = vmatpush1.msra.mxu0 0.0
      %587 = vmatprep.subr.mxu0 0.0
      %588 = vmatpush1.msra.mxu0 0.0
      %589 = vmatprep.subr.mxu0 0.0
      %590 = vmatpush1.msra.mxu0 0.0
      %591 = vmatprep.subr.mxu0 0.0
      %592 = vmatpush1.msra.mxu0 0.0
      %593 = vmatprep.subr.mxu0 0.0
      %594 = vmatpush1.msra.mxu0 0.0
      %595 = vmatprep.subr.mxu0 0.0
      %596 = vmatpush1.msra.mxu0 0.0
      %597 = vmatprep.subr.mxu0 0.0
      %598 = vmatpush1.msra.mxu0 0.0
      %599 = vmatprep.subr.mxu0 0.0
      %600 = vmatpush1.msra.mxu0 0.0
      %601 = vmatprep.subr.mxu0 0.0
      %602 = vmatpush1.msra.mxu0 0.0
      %603 = vmatprep.subr.mxu0 0.0
      %604 = vmatpush1.msra.mxu0 0.0
      %605 = vmatprep.mubr.f32.mxu0 0.0
      %606 = vmatmul.mubr.f32.gmra.mrb[0].mxu0 %v374
      %v607 = vpop.f32.mrb[0].mxu0
      %v608 = vadd.f32 0.0, %v607
      %v609 = vpop.f32.mrb[0].mxu0
      %610 = vmatprep.mubr.f32.mxu0 0.0
      %611 = vmatmul.mubr.f32.gmra.mrb[0].mxu0 %v377
      %v612 = vpop.f32.mrb[0].mxu0
      %v613 = vadd.f32 0.0, %v612
      %v614 = vpop.f32.mrb[0].mxu0
      %615 = vmatprep.mubr.f32.mxu0 0.0
      %616 = vmatmul.mubr.f32.gmra.mrb[0].mxu0 %v380
      %v617 = vpop.f32.mrb[0].mxu0
      %v618 = vadd.f32 0.0, %v617
      %v619 = vpop.f32.mrb[0].mxu0
      %620 = vmatprep.mubr.f32.mxu0 0.0
      %621 = vmatmul.mubr.f32.gmra.mrb[0].mxu0 %v383
      %v622 = vpop.f32.mrb[0].mxu0
      %v623 = vadd.f32 0.0, %v622
      %v624 = vpop.f32.mrb[0].mxu0
      %625 = vmatprep.mubr.f32.mxu0 0.0
      %626 = vmatmul.mubr.f32.gmra.mrb[0].mxu0 %v386
      %v627 = vpop.f32.mrb[0].mxu0
      %v628 = vadd.f32 0.0, %v627
      %v629 = vpop.f32.mrb[0].mxu0
      %630 = vmatprep.mubr.f32.mxu0 0.0
      %631 = vmatmul.mubr.f32.gmra.mrb[0].mxu0 %v389
      %v632 = vpop.f32.mrb[0].mxu0
      %v633 = vadd.f32 0.0, %v632
      %v634 = vpop.f32.mrb[0].mxu0
      %635 = vmatprep.mubr.f32.mxu0 0.0
      %636 = vmatmul.mubr.f32.gmra.mrb[0].mxu0 %v392
      %v637 = vpop.f32.mrb[0].mxu0
      %v638 = vadd.f32 0.0, %v637
      %v639 = vpop.f32.mrb[0].mxu0
      %640 = vmatprep.mubr.f32.mxu0 0.0
      %641 = vmatmul.mubr.f32.gmra.mrb[0].mxu0 %v395
      %v642 = vpop.f32.mrb[0].mxu0
      %v643 = vadd.f32 0.0, %v642
      %v644 = vpop.f32.mrb[0].mxu0
      %645 = vmatprep.mubr.f32.mxu0 0.0
      %646 = vmatmul.mubr.f32.gmra.mrb[0].mxu0 %v398
      %v647 = vpop.f32.mrb[0].mxu0
      %v648 = vadd.f32 0.0, %v647
      %v649 = vpop.f32.mrb[0].mxu0
      %650 = vmatprep.mubr.f32.mxu0 0.0
      %651 = vmatmul.mubr.f32.gmra.mrb[0].mxu0 %v401
      %v652 = vpop.f32.mrb[0].mxu0
      %v653 = vadd.f32 0.0, %v652
      %v654 = vpop.f32.mrb[0].mxu0
      %655 = vmatprep.mubr.f32.mxu0 0.0
      %656 = vmatmul.mubr.f32.gmra.mrb[0].mxu0 %v404
      %v657 = vpop.f32.mrb[0].mxu0
      %v658 = vadd.f32 0.0, %v657
      %v659 = vpop.f32.mrb[0].mxu0
      %660 = vmatprep.mubr.f32.mxu0 0.0
      %661 = vmatmul.mubr.f32.gmra.mrb[0].mxu0 %v407
      %v662 = vpop.f32.mrb[0].mxu0
      %v663 = vadd.f32 0.0, %v662
      %v664 = vpop.f32.mrb[0].mxu0
      %665 = vmatprep.mubr.f32.mxu0 0.0
      %666 = vmatmul.mubr.f32.gmra.mrb[0].mxu0 %v410
      %v667 = vpop.f32.mrb[0].mxu0
      %v668 = vadd.f32 0.0, %v667
      %v669 = vpop.f32.mrb[0].mxu0
      %670 = vmatprep.mubr.f32.mxu0 0.0
      %671 = vmatmul.mubr.f32.gmra.mrb[0].mxu0 %v413
      %v672 = vpop.f32.mrb[0].mxu0
      %v673 = vadd.f32 0.0, %v672
      %v674 = vpop.f32.mrb[0].mxu0
      %675 = vmatprep.mubr.f32.mxu0 0.0
      %676 = vmatmul.mubr.f32.gmra.mrb[0].mxu0 %v416
      %v677 = vpop.f32.mrb[0].mxu0
      %v678 = vadd.f32 0.0, %v677
      %v679 = vpop.f32.mrb[0].mxu0
      %680 = vmatprep.mubr.f32.mxu0 0.0
      %681 = vmatmul.mubr.f32.gmra.mrb[0].mxu0 %v419
      %v682 = vpop.f32.mrb[0].mxu0
      %v683 = vadd.f32 0.0, %v682
      %v684 = vpop.f32.mrb[0].mxu0
      %685 = vmatprep.mubr.f32.mxu0 0.0
      %686 = vmatmul.mubr.f32.gmra.mrb[0].mxu0 %v422
      %v687 = vpop.f32.mrb[0].mxu0
      %v688 = vadd.f32 0.0, %v687
      %v689 = vpop.f32.mrb[0].mxu0
      %690 = vmatprep.mubr.f32.mxu0 0.0
      %691 = vmatmul.mubr.f32.gmra.mrb[0].mxu0 %v425
      %v692 = vpop.f32.mrb[0].mxu0
      %v693 = vadd.f32 0.0, %v692
      %v694 = vpop.f32.mrb[0].mxu0
      %695 = vmatprep.mubr.f32.mxu0 0.0
      %696 = vmatmul.mubr.f32.gmra.mrb[0].mxu0 %v428
      %v697 = vpop.f32.mrb[0].mxu0
      %v698 = vadd.f32 0.0, %v697
      %v699 = vpop.f32.mrb[0].mxu0
      %700 = vmatprep.mubr.f32.mxu0 0.0
      %701 = vmatmul.mubr.f32.gmra.mrb[0].mxu0 %v431
      %v702 = vpop.f32.mrb[0].mxu0
      %v703 = vadd.f32 0.0, %v702
      %v704 = vpop.f32.mrb[0].mxu0
      %705 = vmatprep.mubr.f32.mxu0 0.0
      %706 = vmatmul.mubr.f32.gmra.mrb[0].mxu0 %v434
      %v707 = vpop.f32.mrb[0].mxu0
      %v708 = vadd.f32 0.0, %v707
      %v709 = vpop.f32.mrb[0].mxu0
      %710 = vmatprep.mubr.f32.mxu0 0.0
      %711 = vmatmul.mubr.f32.gmra.mrb[0].mxu0 %v437
      %v712 = vpop.f32.mrb[0].mxu0
      %v713 = vadd.f32 0.0, %v712
      %v714 = vpop.f32.mrb[0].mxu0
      %715 = vmatprep.mubr.f32.mxu0 0.0
      %716 = vmatmul.mubr.f32.gmra.mrb[0].mxu0 %v440
      %v717 = vpop.f32.mrb[0].mxu0
      %v718 = vadd.f32 0.0, %v717
      %v719 = vpop.f32.mrb[0].mxu0
      %720 = vmatprep.mubr.f32.mxu0 0.0
      %721 = vmatmul.mubr.f32.gmra.mrb[0].mxu0 %v443
      %v722 = vpop.f32.mrb[0].mxu0
      %v723 = vadd.f32 0.0, %v722
      %v724 = vpop.f32.mrb[0].mxu0
      %725 = vmatprep.mubr.f32.mxu0 0.0
      %726 = vmatmul.mubr.f32.gmra.mrb[0].mxu0 %v446
      %v727 = vpop.f32.mrb[0].mxu0
      %v728 = vadd.f32 0.0, %v727
      %v729 = vpop.f32.mrb[0].mxu0
      %730 = vmatprep.mubr.f32.mxu0 0.0
      %731 = vmatmul.mubr.f32.gmra.mrb[0].mxu0 %v449
      %v732 = vpop.f32.mrb[0].mxu0
      %v733 = vadd.f32 0.0, %v732
      %v734 = vpop.f32.mrb[0].mxu0
      %735 = vmatprep.mubr.f32.mxu0 0.0
      %736 = vmatmul.mubr.f32.gmra.mrb[0].mxu0 %v452
      %v737 = vpop.f32.mrb[0].mxu0
      %v738 = vadd.f32 0.0, %v737
      %v739 = vpop.f32.mrb[0].mxu0
      %740 = vmatprep.mubr.f32.mxu0 0.0
      %741 = vmatmul.mubr.f32.gmra.mrb[0].mxu0 %v455
      %v742 = vpop.f32.mrb[0].mxu0
      %v743 = vadd.f32 0.0, %v742
      %v744 = vpop.f32.mrb[0].mxu0
      %745 = vmatprep.mubr.f32.mxu0 0.0
      %746 = vmatmul.mubr.f32.gmra.mrb[0].mxu0 %v458
      %v747 = vpop.f32.mrb[0].mxu0
      %v748 = vadd.f32 0.0, %v747
      %v749 = vpop.f32.mrb[0].mxu0
      %750 = vmatprep.mubr.f32.mxu0 0.0
      %751 = vmatmul.mubr.f32.gmra.mrb[0].mxu0 %v461
      %v752 = vpop.f32.mrb[0].mxu0
      %v753 = vadd.f32 0.0, %v752
      %v754 = vpop.f32.mrb[0].mxu0
      %755 = vmatprep.mubr.f32.mxu0 0.0
      %756 = vmatmul.mubr.f32.gmra.mrb[0].mxu0 %v464
      %v757 = vpop.f32.mrb[0].mxu0
      %v758 = vadd.f32 0.0, %v757
      %v759 = vpop.f32.mrb[0].mxu0
      %760 = vmatprep.mubr.f32.mxu0 0.0
      %761 = vmatmul.mubr.f32.gmra.mrb[0].mxu0 %v467
      %v762 = vpop.f32.mrb[0].mxu0
      %v763 = vadd.f32 0.0, %v762
      %v764 = vpop.f32.mrb[0].mxu0
      %765 = vmatprep.mubr.f32.mxu0 0.0
      %766 = vmatmul.mubr.f32.gmra.mrb[0].mxu0 %v470
      %v767 = vpop.f32.mrb[0].mxu0
      %v768 = vadd.f32 0.0, %v767
      %v769 = vpop.f32.mrb[0].mxu0
      %770 = vmatprep.mubr.f32.mxu0 0.0
      %771 = vmatmul.mubr.f32.gmra.mrb[0].mxu0 %v473
      %v772 = vpop.f32.mrb[0].mxu0
      %v773 = vadd.f32 0.0, %v772
      %v774 = vpop.f32.mrb[0].mxu0
      %775 = vmatprep.mubr.f32.mxu0 0.0
      %776 = vmatmul.mubr.f32.gmra.mrb[0].mxu0 %v476
      %v777 = vpop.f32.mrb[0].mxu0
      %v778 = vadd.f32 0.0, %v777
      %v779 = vpop.f32.mrb[0].mxu0
      %780 = vmatprep.mubr.f32.mxu0 0.0
      %781 = vmatmul.mubr.f32.gmra.mrb[0].mxu0 %v479
      %v782 = vpop.f32.mrb[0].mxu0
      %v783 = vadd.f32 0.0, %v782
      %v784 = vpop.f32.mrb[0].mxu0
      %785 = vmatprep.mubr.f32.mxu0 0.0
      %786 = vmatmul.mubr.f32.gmra.mrb[0].mxu0 %v482
      %v787 = vpop.f32.mrb[0].mxu0
      %v788 = vadd.f32 0.0, %v787
      %v789 = vpop.f32.mrb[0].mxu0
      %790 = vmatprep.mubr.f32.mxu0 0.0
      %791 = vmatmul.mubr.f32.gmra.mrb[0].mxu0 %v485
      %v792 = vpop.f32.mrb[0].mxu0
      %v793 = vadd.f32 0.0, %v792
      %v794 = vpop.f32.mrb[0].mxu0
      %795 = vmatprep.mubr.f32.mxu0 0.0
      %796 = vmatmul.mubr.f32.gmra.mrb[0].mxu0 %v488
      %v797 = vpop.f32.mrb[0].mxu0
      %v798 = vadd.f32 0.0, %v797
      %v799 = vpop.f32.mrb[0].mxu0
      %800 = vmatprep.mubr.f32.mxu0 0.0
      %801 = vmatmul.mubr.f32.gmra.mrb[0].mxu0 %v491
      %v802 = vpop.f32.mrb[0].mxu0
      %v803 = vadd.f32 0.0, %v802
      %v804 = vpop.f32.mrb[0].mxu0
      %805 = vmatprep.mubr.f32.mxu0 0.0
      %806 = vmatmul.mubr.f32.gmra.mrb[0].mxu0 %v494
      %v807 = vpop.f32.mrb[0].mxu0
      %v808 = vadd.f32 0.0, %v807
      %v809 = vpop.f32.mrb[0].mxu0
      %810 = vmatprep.mubr.f32.mxu0 0.0
      %811 = vmatmul.mubr.f32.gmra.mrb[0].mxu0 %v497
      %v812 = vpop.f32.mrb[0].mxu0
      %v813 = vadd.f32 0.0, %v812
      %v814 = vpop.f32.mrb[0].mxu0
      %815 = vmatprep.mubr.f32.mxu0 0.0
      %816 = vmatmul.mubr.f32.gmra.mrb[0].mxu0 %v500
      %v817 = vpop.f32.mrb[0].mxu0
      %v818 = vadd.f32 0.0, %v817
      %v819 = vpop.f32.mrb[0].mxu0
      %820 = vmatprep.mubr.f32.mxu0 0.0
      %821 = vmatmul.mubr.f32.gmra.mrb[0].mxu0 %v503
      %v822 = vpop.f32.mrb[0].mxu0
      %v823 = vadd.f32 0.0, %v822
      %v824 = vpop.f32.mrb[0].mxu0
      %825 = vmatprep.mubr.f32.mxu0 0.0
      %826 = vmatmul.mubr.f32.gmra.mrb[0].mxu0 %v506
      %v827 = vpop.f32.mrb[0].mxu0
      %v828 = vadd.f32 0.0, %v827
      %v829 = vpop.f32.mrb[0].mxu0
      %830 = vmatprep.mubr.f32.mxu0 0.0
      %831 = vmatmul.mubr.f32.gmra.mrb[0].mxu0 %v509
      %v832 = vpop.f32.mrb[0].mxu0
      %v833 = vadd.f32 0.0, %v832
      %v834 = vpop.f32.mrb[0].mxu0
      %835 = vmatprep.mubr.f32.mxu0 0.0
      %836 = vmatmul.mubr.f32.gmra.mrb[0].mxu0 %v512
      %v837 = vpop.f32.mrb[0].mxu0
      %v838 = vadd.f32 0.0, %v837
      %v839 = vpop.f32.mrb[0].mxu0
      %840 = vmatprep.mubr.f32.mxu0 0.0
      %841 = vmatmul.mubr.f32.gmra.mrb[0].mxu0 %v515
      %v842 = vpop.f32.mrb[0].mxu0
      %v843 = vadd.f32 0.0, %v842
      %v844 = vpop.f32.mrb[0].mxu0
      %845 = vmatprep.mubr.f32.mxu0 0.0
      %846 = vmatmul.mubr.f32.gmra.mrb[0].mxu0 %v518
      %v847 = vpop.f32.mrb[0].mxu0
      %v848 = vadd.f32 0.0, %v847
      %v849 = vpop.f32.mrb[0].mxu0
      %850 = vmatprep.mubr.f32.mxu0 0.0
      %851 = vmatmul.mubr.f32.gmra.mrb[0].mxu0 %v521
      %v852 = vpop.f32.mrb[0].mxu0
      %v853 = vadd.f32 0.0, %v852
      %v854 = vpop.f32.mrb[0].mxu0
      %855 = vmatprep.mubr.f32.mxu0 0.0
      %856 = vmatmul.mubr.f32.gmra.mrb[0].mxu0 %v524
      %v857 = vpop.f32.mrb[0].mxu0
      %v858 = vadd.f32 0.0, %v857
      %v859 = vpop.f32.mrb[0].mxu0
      %860 = vmatprep.mubr.f32.mxu0 0.0
      %861 = vmatmul.mubr.f32.gmra.mrb[0].mxu0 %v527
      %v862 = vpop.f32.mrb[0].mxu0
      %v863 = vadd.f32 0.0, %v862
      %v864 = vpop.f32.mrb[0].mxu0
      %865 = vmatprep.mubr.f32.mxu0 0.0
      %866 = vmatmul.mubr.f32.gmra.mrb[0].mxu0 %v530
      %v867 = vpop.f32.mrb[0].mxu0
      %v868 = vadd.f32 0.0, %v867
      %v869 = vpop.f32.mrb[0].mxu0
      %870 = vmatprep.mubr.f32.mxu0 0.0
      %871 = vmatmul.mubr.f32.gmra.mrb[0].mxu0 %v533
      %v872 = vpop.f32.mrb[0].mxu0
      %v873 = vadd.f32 0.0, %v872
      %v874 = vpop.f32.mrb[0].mxu0
      %875 = vmatprep.mubr.f32.mxu0 0.0
      %876 = vmatmul.mubr.f32.gmra.mrb[0].mxu0 %v536
      %v877 = vpop.f32.mrb[0].mxu0
      %v878 = vadd.f32 0.0, %v877
      %v879 = vpop.f32.mrb[0].mxu0
      %880 = vmatprep.mubr.f32.mxu0 0.0
      %881 = vmatmul.mubr.f32.gmra.mrb[0].mxu0 %v539
      %v882 = vpop.f32.mrb[0].mxu0
      %v883 = vadd.f32 0.0, %v882
      %v884 = vpop.f32.mrb[0].mxu0
      %885 = vdwg.mxu0
      %v886 = vld [vmem:[%s296] sm:$0xff]
      %v887 = vld [vmem:[%s296 + $0x8] sm:$0xff]
      %v888 = vld [vmem:[%s296 + $0x10] sm:$0xff]
      %v889 = vld [vmem:[%s296 + $0x18] sm:$0xff]
      %v890 = vld [vmem:[%s296 + $0x20] sm:$0xff]
      %v891 = vld [vmem:[%s296 + $0x28] sm:$0xff]
      %v892 = vld [vmem:[%s296 + $0x30] sm:$0xff]
      %v893 = vld [vmem:[%s296 + $0x38] sm:$0xff]
      %v894 = vld [vmem:[%s296 + $0x40] sm:$0xff]
      %v895 = vld [vmem:[%s296 + $0x48] sm:$0xff]
      %v896 = vld [vmem:[%s296 + $0x50] sm:$0xff]
      %v897 = vld [vmem:[%s296 + $0x58] sm:$0xff]
      %v898 = vld [vmem:[%s296 + $0x60] sm:$0xff]
      %v899 = vld [vmem:[%s296 + $0x68] sm:$0xff]
      %v900 = vld [vmem:[%s296 + $0x70] sm:$0xff]
      %v901 = vld [vmem:[%s296 + $0x78] sm:$0xff]
      %v902 = vld [vmem:[%s296 + $0x80] sm:$0xff]
      %v903 = vld [vmem:[%s296 + $0x88] sm:$0xff]
      %v904 = vld [vmem:[%s296 + $0x90] sm:$0xff]
      %v905 = vld [vmem:[%s296 + $0x98] sm:$0xff]
      %v906 = vld [vmem:[%s296 + $0xa0] sm:$0xff]
      %v907 = vld [vmem:[%s296 + $0xa8] sm:$0xff]
      %v908 = vld [vmem:[%s296 + $0xb0] sm:$0xff]
      %v909 = vld [vmem:[%s296 + $0xb8] sm:$0xff]
      %v910 = vld [vmem:[%s296 + $0xc0] sm:$0xff]
      %v911 = vld [vmem:[%s296 + $0xc8] sm:$0xff]
      %v912 = vld [vmem:[%s296 + $0xd0] sm:$0xff]
      %v913 = vld [vmem:[%s296 + $0xd8] sm:$0xff]
      %v914 = vld [vmem:[%s296 + $0xe0] sm:$0xff]
      %v915 = vld [vmem:[%s296 + $0xe8] sm:$0xff]
      %v916 = vld [vmem:[%s296 + $0xf0] sm:$0xff]
      %v917 = vld [vmem:[%s296 + $0xf8] sm:$0xff]
      %v918 = vld [vmem:[%s296 + $0x100] sm:$0xff]
      %v919 = vld [vmem:[%s296 + $0x108] sm:$0xff]
      %v920 = vld [vmem:[%s296 + $0x110] sm:$0xff]
      %v921 = vld [vmem:[%s296 + $0x118] sm:$0xff]
      %v922 = vld [vmem:[%s296 + $0x120] sm:$0xff]
      %v923 = vld [vmem:[%s296 + $0x128] sm:$0xff]
      %v924 = vld [vmem:[%s296 + $0x130] sm:$0xff]
      %v925 = vld [vmem:[%s296 + $0x138] sm:$0xff]
      %v926 = vld [vmem:[%s296 + $0x140] sm:$0xff]
      %v927 = vld [vmem:[%s296 + $0x148] sm:$0xff]
      %v928 = vld [vmem:[%s296 + $0x150] sm:$0xff]
      %v929 = vld [vmem:[%s296 + $0x158] sm:$0xff]
      %v930 = vld [vmem:[%s296 + $0x160] sm:$0xff]
      %v931 = vld [vmem:[%s296 + $0x168] sm:$0xff]
      %v932 = vld [vmem:[%s296 + $0x170] sm:$0xff]
      %v933 = vld [vmem:[%s296 + $0x178] sm:$0xff]
      %v934 = vld [vmem:[%s296 + $0x180] sm:$0xff]
      %v935 = vld [vmem:[%s296 + $0x188] sm:$0xff]
      %v936 = vld [vmem:[%s296 + $0x190] sm:$0xff]
      %v937 = vld [vmem:[%s296 + $0x198] sm:$0xff]
      %v938 = vld [vmem:[%s296 + $0x1a0] sm:$0xff]
      %v939 = vld [vmem:[%s296 + $0x1a8] sm:$0xff]
      %v940 = vld [vmem:[%s296 + $0x1b0] sm:$0xff]
      %v941 = vld [vmem:[%s296 + $0x1b8] sm:$0x1]
      %v943 = vsel %vm372, %v886, 0
      %v946 = vsel %vm372, %v887, 0
      %v949 = vsel %vm372, %v888, 0
      %v952 = vsel %vm372, %v889, 0
      %v955 = vsel %vm372, %v890, 0
      %v958 = vsel %vm372, %v891, 0
      %v961 = vsel %vm372, %v892, 0
      %v964 = vsel %vm372, %v893, 0
      %v967 = vsel %vm372, %v894, 0
      %v970 = vsel %vm372, %v895, 0
      %v973 = vsel %vm372, %v896, 0
      %v976 = vsel %vm372, %v897, 0
      %v979 = vsel %vm372, %v898, 0
      %v982 = vsel %vm372, %v899, 0
      %v985 = vsel %vm372, %v900, 0
      %v988 = vsel %vm372, %v901, 0
      %v991 = vsel %vm372, %v902, 0
      %v994 = vsel %vm372, %v903, 0
      %v997 = vsel %vm372, %v904, 0
      %v1000 = vsel %vm372, %v905, 0
      %v1003 = vsel %vm372, %v906, 0
      %v1006 = vsel %vm372, %v907, 0
      %v1009 = vsel %vm372, %v908, 0
      %v1012 = vsel %vm372, %v909, 0
      %v1015 = vsel %vm372, %v910, 0
      %v1018 = vsel %vm372, %v911, 0
      %v1021 = vsel %vm372, %v912, 0
      %v1024 = vsel %vm372, %v913, 0
      %v1027 = vsel %vm372, %v914, 0
      %v1030 = vsel %vm372, %v915, 0
      %v1033 = vsel %vm372, %v916, 0
      %v1036 = vsel %vm372, %v917, 0
      %v1039 = vsel %vm372, %v918, 0
      %v1042 = vsel %vm372, %v919, 0
      %v1045 = vsel %vm372, %v920, 0
      %v1048 = vsel %vm372, %v921, 0
      %v1051 = vsel %vm372, %v922, 0
      %v1054 = vsel %vm372, %v923, 0
      %v1057 = vsel %vm372, %v924, 0
      %v1060 = vsel %vm372, %v925, 0
      %v1063 = vsel %vm372, %v926, 0
      %v1066 = vsel %vm372, %v927, 0
      %v1069 = vsel %vm372, %v928, 0
      %v1072 = vsel %vm372, %v929, 0
      %v1075 = vsel %vm372, %v930, 0
      %v1078 = vsel %vm372, %v931, 0
      %v1081 = vsel %vm372, %v932, 0
      %v1084 = vsel %vm372, %v933, 0
      %v1087 = vsel %vm372, %v934, 0
      %v1090 = vsel %vm372, %v935, 0
      %v1093 = vsel %vm372, %v936, 0
      %v1096 = vsel %vm372, %v937, 0
      %v1099 = vsel %vm372, %v938, 0
      %v1102 = vsel %vm372, %v939, 0
      %v1105 = vsel %vm372, %v940, 0
      %v1108 = vsel %vm372, %v941, 0
      %1110 = vmatprep.subr.mxu0 0.0
      %1111 = vmatpush1.msra.mxu0 %v312
      %1112 = vmatprep.subr.mxu0 0.0
      %1113 = vmatpush1.msra.mxu0 %v313
      %1114 = vmatprep.subr.mxu0 0.0
      %1115 = vmatpush1.msra.mxu0 %v314
      %1116 = vmatprep.subr.mxu0 0.0
      %1117 = vmatpush1.msra.mxu0 %v315
      %1118 = vmatprep.subr.mxu0 0.0
      %1119 = vmatpush1.msra.mxu0 0.0
      %1120 = vmatprep.subr.mxu0 0.0
      %1121 = vmatpush1.msra.mxu0 0.0
      %1122 = vmatprep.subr.mxu0 0.0
      %1123 = vmatpush1.msra.mxu0 0.0
      %1124 = vmatprep.subr.mxu0 0.0
      %1125 = vmatpush1.msra.mxu0 0.0
      %1126 = vmatprep.subr.mxu0 0.0
      %1127 = vmatpush1.msra.mxu0 0.0
      %1128 = vmatprep.subr.mxu0 0.0
      %1129 = vmatpush1.msra.mxu0 0.0
      %1130 = vmatprep.subr.mxu0 0.0
      %1131 = vmatpush1.msra.mxu0 0.0
      %1132 = vmatprep.subr.mxu0 0.0
      %1133 = vmatpush1.msra.mxu0 0.0
      %1134 = vmatprep.subr.mxu0 0.0
      %1135 = vmatpush1.msra.mxu0 0.0
      %1136 = vmatprep.subr.mxu0 0.0
      %1137 = vmatpush1.msra.mxu0 0.0
      %1138 = vmatprep.subr.mxu0 0.0
      %1139 = vmatpush1.msra.mxu0 0.0
      %1140 = vmatprep.subr.mxu0 0.0
      %1141 = vmatpush1.msra.mxu0 0.0
      %1142 = vmatprep.subr.mxu0 0.0
      %1143 = vmatpush1.msra.mxu0 0.0
      %1144 = vmatprep.subr.mxu0 0.0
      %1145 = vmatpush1.msra.mxu0 0.0
      %1146 = vmatprep.subr.mxu0 0.0
      %1147 = vmatpush1.msra.mxu0 0.0
      %1148 = vmatprep.subr.mxu0 0.0
      %1149 = vmatpush1.msra.mxu0 0.0
      %1150 = vmatprep.subr.mxu0 0.0
      %1151 = vmatpush1.msra.mxu0 0.0
      %1152 = vmatprep.subr.mxu0 0.0
      %1153 = vmatpush1.msra.mxu0 0.0
      %1154 = vmatprep.subr.mxu0 0.0
      %1155 = vmatpush1.msra.mxu0 0.0
      %1156 = vmatprep.subr.mxu0 0.0
      %1157 = vmatpush1.msra.mxu0 0.0
      %1158 = vmatprep.subr.mxu0 0.0
      %1159 = vmatpush1.msra.mxu0 0.0
      %1160 = vmatprep.subr.mxu0 0.0
      %1161 = vmatpush1.msra.mxu0 0.0
      %1162 = vmatprep.subr.mxu0 0.0
      %1163 = vmatpush1.msra.mxu0 0.0
      %1164 = vmatprep.subr.mxu0 0.0
      %1165 = vmatpush1.msra.mxu0 0.0
      %1166 = vmatprep.subr.mxu0 0.0
      %1167 = vmatpush1.msra.mxu0 0.0
      %1168 = vmatprep.subr.mxu0 0.0
      %1169 = vmatpush1.msra.mxu0 0.0
      %1170 = vmatprep.subr.mxu0 0.0
      %1171 = vmatpush1.msra.mxu0 0.0
      %1172 = vmatprep.subr.mxu0 0.0
      %1173 = vmatpush1.msra.mxu0 0.0
      %1174 = vmatprep.mubr.f32.mxu0 0.0
      %1175 = vmatmul.mubr.f32.gmra.mrb[0].mxu0 %v943
      %v1176 = vpop.f32.mrb[0].mxu0
      %v1177 = vadd.f32 0.0, %v1176
      %v1178 = vpop.f32.mrb[0].mxu0
      %1179 = vmatprep.mubr.f32.mxu0 0.0
      %1180 = vmatmul.mubr.f32.gmra.mrb[0].mxu0 %v946
      %v1181 = vpop.f32.mrb[0].mxu0
      %v1182 = vadd.f32 0.0, %v1181
      %v1183 = vpop.f32.mrb[0].mxu0
      %1184 = vmatprep.mubr.f32.mxu0 0.0
      %1185 = vmatmul.mubr.f32.gmra.mrb[0].mxu0 %v949
      %v1186 = vpop.f32.mrb[0].mxu0
      %v1187 = vadd.f32 0.0, %v1186
      %v1188 = vpop.f32.mrb[0].mxu0
      %1189 = vmatprep.mubr.f32.mxu0 0.0
      %1190 = vmatmul.mubr.f32.gmra.mrb[0].mxu0 %v952
      %v1191 = vpop.f32.mrb[0].mxu0
      %v1192 = vadd.f32 0.0, %v1191
      %v1193 = vpop.f32.mrb[0].mxu0
      %1194 = vmatprep.mubr.f32.mxu0 0.0
      %1195 = vmatmul.mubr.f32.gmra.mrb[0].mxu0 %v955
      %v1196 = vpop.f32.mrb[0].mxu0
      %v1197 = vadd.f32 0.0, %v1196
      %v1198 = vpop.f32.mrb[0].mxu0
      %1199 = vmatprep.mubr.f32.mxu0 0.0
      %1200 = vmatmul.mubr.f32.gmra.mrb[0].mxu0 %v958
      %v1201 = vpop.f32.mrb[0].mxu0
      %v1202 = vadd.f32 0.0, %v1201
      %v1203 = vpop.f32.mrb[0].mxu0
      %1204 = vmatprep.mubr.f32.mxu0 0.0
      %1205 = vmatmul.mubr.f32.gmra.mrb[0].mxu0 %v961
      %v1206 = vpop.f32.mrb[0].mxu0
      %v1207 = vadd.f32 0.0, %v1206
      %v1208 = vpop.f32.mrb[0].mxu0
      %1209 = vmatprep.mubr.f32.mxu0 0.0
      %1210 = vmatmul.mubr.f32.gmra.mrb[0].mxu0 %v964
      %v1211 = vpop.f32.mrb[0].mxu0
      %v1212 = vadd.f32 0.0, %v1211
      %v1213 = vpop.f32.mrb[0].mxu0
      %1214 = vmatprep.mubr.f32.mxu0 0.0
      %1215 = vmatmul.mubr.f32.gmra.mrb[0].mxu0 %v967
      %v1216 = vpop.f32.mrb[0].mxu0
      %v1217 = vadd.f32 0.0, %v1216
      %v1218 = vpop.f32.mrb[0].mxu0
      %1219 = vmatprep.mubr.f32.mxu0 0.0
      %1220 = vmatmul.mubr.f32.gmra.mrb[0].mxu0 %v970
      %v1221 = vpop.f32.mrb[0].mxu0
      %v1222 = vadd.f32 0.0, %v1221
      %v1223 = vpop.f32.mrb[0].mxu0
      %1224 = vmatprep.mubr.f32.mxu0 0.0
      %1225 = vmatmul.mubr.f32.gmra.mrb[0].mxu0 %v973
      %v1226 = vpop.f32.mrb[0].mxu0
      %v1227 = vadd.f32 0.0, %v1226
      %v1228 = vpop.f32.mrb[0].mxu0
      %1229 = vmatprep.mubr.f32.mxu0 0.0
      %1230 = vmatmul.mubr.f32.gmra.mrb[0].mxu0 %v976
      %v1231 = vpop.f32.mrb[0].mxu0
      %v1232 = vadd.f32 0.0, %v1231
      %v1233 = vpop.f32.mrb[0].mxu0
      %1234 = vmatprep.mubr.f32.mxu0 0.0
      %1235 = vmatmul.mubr.f32.gmra.mrb[0].mxu0 %v979
      %v1236 = vpop.f32.mrb[0].mxu0
      %v1237 = vadd.f32 0.0, %v1236
      %v1238 = vpop.f32.mrb[0].mxu0
      %1239 = vmatprep.mubr.f32.mxu0 0.0
      %1240 = vmatmul.mubr.f32.gmra.mrb[0].mxu0 %v982
      %v1241 = vpop.f32.mrb[0].mxu0
      %v1242 = vadd.f32 0.0, %v1241
      %v1243 = vpop.f32.mrb[0].mxu0
      %1244 = vmatprep.mubr.f32.mxu0 0.0
      %1245 = vmatmul.mubr.f32.gmra.mrb[0].mxu0 %v985
      %v1246 = vpop.f32.mrb[0].mxu0
      %v1247 = vadd.f32 0.0, %v1246
      %v1248 = vpop.f32.mrb[0].mxu0
      %1249 = vmatprep.mubr.f32.mxu0 0.0
      %1250 = vmatmul.mubr.f32.gmra.mrb[0].mxu0 %v988
      %v1251 = vpop.f32.mrb[0].mxu0
      %v1252 = vadd.f32 0.0, %v1251
      %v1253 = vpop.f32.mrb[0].mxu0
      %1254 = vmatprep.mubr.f32.mxu0 0.0
      %1255 = vmatmul.mubr.f32.gmra.mrb[0].mxu0 %v991
      %v1256 = vpop.f32.mrb[0].mxu0
      %v1257 = vadd.f32 0.0, %v1256
      %v1258 = vpop.f32.mrb[0].mxu0
      %1259 = vmatprep.mubr.f32.mxu0 0.0
      %1260 = vmatmul.mubr.f32.gmra.mrb[0].mxu0 %v994
      %v1261 = vpop.f32.mrb[0].mxu0
      %v1262 = vadd.f32 0.0, %v1261
      %v1263 = vpop.f32.mrb[0].mxu0
      %1264 = vmatprep.mubr.f32.mxu0 0.0
      %1265 = vmatmul.mubr.f32.gmra.mrb[0].mxu0 %v997
      %v1266 = vpop.f32.mrb[0].mxu0
      %v1267 = vadd.f32 0.0, %v1266
      %v1268 = vpop.f32.mrb[0].mxu0
      %1269 = vmatprep.mubr.f32.mxu0 0.0
      %1270 = vmatmul.mubr.f32.gmra.mrb[0].mxu0 %v1000
      %v1271 = vpop.f32.mrb[0].mxu0
      %v1272 = vadd.f32 0.0, %v1271
      %v1273 = vpop.f32.mrb[0].mxu0
      %1274 = vmatprep.mubr.f32.mxu0 0.0
      %1275 = vmatmul.mubr.f32.gmra.mrb[0].mxu0 %v1003
      %v1276 = vpop.f32.mrb[0].mxu0
      %v1277 = vadd.f32 0.0, %v1276
      %v1278 = vpop.f32.mrb[0].mxu0
      %1279 = vmatprep.mubr.f32.mxu0 0.0
      %1280 = vmatmul.mubr.f32.gmra.mrb[0].mxu0 %v1006
      %v1281 = vpop.f32.mrb[0].mxu0
      %v1282 = vadd.f32 0.0, %v1281
      %v1283 = vpop.f32.mrb[0].mxu0
      %1284 = vmatprep.mubr.f32.mxu0 0.0
      %1285 = vmatmul.mubr.f32.gmra.mrb[0].mxu0 %v1009
      %v1286 = vpop.f32.mrb[0].mxu0
      %v1287 = vadd.f32 0.0, %v1286
      %v1288 = vpop.f32.mrb[0].mxu0
      %1289 = vmatprep.mubr.f32.mxu0 0.0
      %1290 = vmatmul.mubr.f32.gmra.mrb[0].mxu0 %v1012
      %v1291 = vpop.f32.mrb[0].mxu0
      %v1292 = vadd.f32 0.0, %v1291
      %v1293 = vpop.f32.mrb[0].mxu0
      %1294 = vmatprep.mubr.f32.mxu0 0.0
      %1295 = vmatmul.mubr.f32.gmra.mrb[0].mxu0 %v1015
      %v1296 = vpop.f32.mrb[0].mxu0
      %v1297 = vadd.f32 0.0, %v1296
      %v1298 = vpop.f32.mrb[0].mxu0
      %1299 = vmatprep.mubr.f32.mxu0 0.0
      %1300 = vmatmul.mubr.f32.gmra.mrb[0].mxu0 %v1018
      %v1301 = vpop.f32.mrb[0].mxu0
      %v1302 = vadd.f32 0.0, %v1301
      %v1303 = vpop.f32.mrb[0].mxu0
      %1304 = vmatprep.mubr.f32.mxu0 0.0
      %1305 = vmatmul.mubr.f32.gmra.mrb[0].mxu0 %v1021
      %v1306 = vpop.f32.mrb[0].mxu0
      %v1307 = vadd.f32 0.0, %v1306
      %v1308 = vpop.f32.mrb[0].mxu0
      %1309 = vmatprep.mubr.f32.mxu0 0.0
      %1310 = vmatmul.mubr.f32.gmra.mrb[0].mxu0 %v1024
      %v1311 = vpop.f32.mrb[0].mxu0
      %v1312 = vadd.f32 0.0, %v1311
      %v1313 = vpop.f32.mrb[0].mxu0
      %1314 = vmatprep.mubr.f32.mxu0 0.0
      %1315 = vmatmul.mubr.f32.gmra.mrb[0].mxu0 %v1027
      %v1316 = vpop.f32.mrb[0].mxu0
      %v1317 = vadd.f32 0.0, %v1316
      %v1318 = vpop.f32.mrb[0].mxu0
      %1319 = vmatprep.mubr.f32.mxu0 0.0
      %1320 = vmatmul.mubr.f32.gmra.mrb[0].mxu0 %v1030
      %v1321 = vpop.f32.mrb[0].mxu0
      %v1322 = vadd.f32 0.0, %v1321
      %v1323 = vpop.f32.mrb[0].mxu0
      %1324 = vmatprep.mubr.f32.mxu0 0.0
      %1325 = vmatmul.mubr.f32.gmra.mrb[0].mxu0 %v1033
      %v1326 = vpop.f32.mrb[0].mxu0
      %v1327 = vadd.f32 0.0, %v1326
      %v1328 = vpop.f32.mrb[0].mxu0
      %1329 = vmatprep.mubr.f32.mxu0 0.0
      %1330 = vmatmul.mubr.f32.gmra.mrb[0].mxu0 %v1036
      %v1331 = vpop.f32.mrb[0].mxu0
      %v1332 = vadd.f32 0.0, %v1331
      %v1333 = vpop.f32.mrb[0].mxu0
      %1334 = vmatprep.mubr.f32.mxu0 0.0
      %1335 = vmatmul.mubr.f32.gmra.mrb[0].mxu0 %v1039
      %v1336 = vpop.f32.mrb[0].mxu0
      %v1337 = vadd.f32 0.0, %v1336
      %v1338 = vpop.f32.mrb[0].mxu0
      %1339 = vmatprep.mubr.f32.mxu0 0.0
      %1340 = vmatmul.mubr.f32.gmra.mrb[0].mxu0 %v1042
      %v1341 = vpop.f32.mrb[0].mxu0
      %v1342 = vadd.f32 0.0, %v1341
      %v1343 = vpop.f32.mrb[0].mxu0
      %1344 = vmatprep.mubr.f32.mxu0 0.0
      %1345 = vmatmul.mubr.f32.gmra.mrb[0].mxu0 %v1045
      %v1346 = vpop.f32.mrb[0].mxu0
      %v1347 = vadd.f32 0.0, %v1346
      %v1348 = vpop.f32.mrb[0].mxu0
      %1349 = vmatprep.mubr.f32.mxu0 0.0
      %1350 = vmatmul.mubr.f32.gmra.mrb[0].mxu0 %v1048
      %v1351 = vpop.f32.mrb[0].mxu0
      %v1352 = vadd.f32 0.0, %v1351
      %v1353 = vpop.f32.mrb[0].mxu0
      %1354 = vmatprep.mubr.f32.mxu0 0.0
      %1355 = vmatmul.mubr.f32.gmra.mrb[0].mxu0 %v1051
      %v1356 = vpop.f32.mrb[0].mxu0
      %v1357 = vadd.f32 0.0, %v1356
      %v1358 = vpop.f32.mrb[0].mxu0
      %1359 = vmatprep.mubr.f32.mxu0 0.0
      %1360 = vmatmul.mubr.f32.gmra.mrb[0].mxu0 %v1054
      %v1361 = vpop.f32.mrb[0].mxu0
      %v1362 = vadd.f32 0.0, %v1361
      %v1363 = vpop.f32.mrb[0].mxu0
      %1364 = vmatprep.mubr.f32.mxu0 0.0
      %1365 = vmatmul.mubr.f32.gmra.mrb[0].mxu0 %v1057
      %v1366 = vpop.f32.mrb[0].mxu0
      %v1367 = vadd.f32 0.0, %v1366
      %v1368 = vpop.f32.mrb[0].mxu0
      %1369 = vmatprep.mubr.f32.mxu0 0.0
      %1370 = vmatmul.mubr.f32.gmra.mrb[0].mxu0 %v1060
      %v1371 = vpop.f32.mrb[0].mxu0
      %v1372 = vadd.f32 0.0, %v1371
      %v1373 = vpop.f32.mrb[0].mxu0
      %1374 = vmatprep.mubr.f32.mxu0 0.0
      %1375 = vmatmul.mubr.f32.gmra.mrb[0].mxu0 %v1063
      %v1376 = vpop.f32.mrb[0].mxu0
      %v1377 = vadd.f32 0.0, %v1376
      %v1378 = vpop.f32.mrb[0].mxu0
      %1379 = vmatprep.mubr.f32.mxu0 0.0
      %1380 = vmatmul.mubr.f32.gmra.mrb[0].mxu0 %v1066
      %v1381 = vpop.f32.mrb[0].mxu0
      %v1382 = vadd.f32 0.0, %v1381
      %v1383 = vpop.f32.mrb[0].mxu0
      %1384 = vmatprep.mubr.f32.mxu0 0.0
      %1385 = vmatmul.mubr.f32.gmra.mrb[0].mxu0 %v1069
      %v1386 = vpop.f32.mrb[0].mxu0
      %v1387 = vadd.f32 0.0, %v1386
      %v1388 = vpop.f32.mrb[0].mxu0
      %1389 = vmatprep.mubr.f32.mxu0 0.0
      %1390 = vmatmul.mubr.f32.gmra.mrb[0].mxu0 %v1072
      %v1391 = vpop.f32.mrb[0].mxu0
      %v1392 = vadd.f32 0.0, %v1391
      %v1393 = vpop.f32.mrb[0].mxu0
      %1394 = vmatprep.mubr.f32.mxu0 0.0
      %1395 = vmatmul.mubr.f32.gmra.mrb[0].mxu0 %v1075
      %v1396 = vpop.f32.mrb[0].mxu0
      %v1397 = vadd.f32 0.0, %v1396
      %v1398 = vpop.f32.mrb[0].mxu0
      %1399 = vmatprep.mubr.f32.mxu0 0.0
      %1400 = vmatmul.mubr.f32.gmra.mrb[0].mxu0 %v1078
      %v1401 = vpop.f32.mrb[0].mxu0
      %v1402 = vadd.f32 0.0, %v1401
      %v1403 = vpop.f32.mrb[0].mxu0
      %1404 = vmatprep.mubr.f32.mxu0 0.0
      %1405 = vmatmul.mubr.f32.gmra.mrb[0].mxu0 %v1081
      %v1406 = vpop.f32.mrb[0].mxu0
      %v1407 = vadd.f32 0.0, %v1406
      %v1408 = vpop.f32.mrb[0].mxu0
      %1409 = vmatprep.mubr.f32.mxu0 0.0
      %1410 = vmatmul.mubr.f32.gmra.mrb[0].mxu0 %v1084
      %v1411 = vpop.f32.mrb[0].mxu0
      %v1412 = vadd.f32 0.0, %v1411
      %v1413 = vpop.f32.mrb[0].mxu0
      %1414 = vmatprep.mubr.f32.mxu0 0.0
      %1415 = vmatmul.mubr.f32.gmra.mrb[0].mxu0 %v1087
      %v1416 = vpop.f32.mrb[0].mxu0
      %v1417 = vadd.f32 0.0, %v1416
      %v1418 = vpop.f32.mrb[0].mxu0
      %1419 = vmatprep.mubr.f32.mxu0 0.0
      %1420 = vmatmul.mubr.f32.gmra.mrb[0].mxu0 %v1090
      %v1421 = vpop.f32.mrb[0].mxu0
      %v1422 = vadd.f32 0.0, %v1421
      %v1423 = vpop.f32.mrb[0].mxu0
      %1424 = vmatprep.mubr.f32.mxu0 0.0
      %1425 = vmatmul.mubr.f32.gmra.mrb[0].mxu0 %v1093
      %v1426 = vpop.f32.mrb[0].mxu0
      %v1427 = vadd.f32 0.0, %v1426
      %v1428 = vpop.f32.mrb[0].mxu0
      %1429 = vmatprep.mubr.f32.mxu0 0.0
      %1430 = vmatmul.mubr.f32.gmra.mrb[0].mxu0 %v1096
      %v1431 = vpop.f32.mrb[0].mxu0
      %v1432 = vadd.f32 0.0, %v1431
      %v1433 = vpop.f32.mrb[0].mxu0
      %1434 = vmatprep.mubr.f32.mxu0 0.0
      %1435 = vmatmul.mubr.f32.gmra.mrb[0].mxu0 %v1099
      %v1436 = vpop.f32.mrb[0].mxu0
      %v1437 = vadd.f32 0.0, %v1436
      %v1438 = vpop.f32.mrb[0].mxu0
      %1439 = vmatprep.mubr.f32.mxu0 0.0
      %1440 = vmatmul.mubr.f32.gmra.mrb[0].mxu0 %v1102
      %v1441 = vpop.f32.mrb[0].mxu0
      %v1442 = vadd.f32 0.0, %v1441
      %v1443 = vpop.f32.mrb[0].mxu0
      %1444 = vmatprep.mubr.f32.mxu0 0.0
      %1445 = vmatmul.mubr.f32.gmra.mrb[0].mxu0 %v1105
      %v1446 = vpop.f32.mrb[0].mxu0
      %v1447 = vadd.f32 0.0, %v1446
      %v1448 = vpop.f32.mrb[0].mxu0
      %1449 = vmatprep.mubr.f32.mxu0 0.0
      %1450 = vmatmul.mubr.f32.gmra.mrb[0].mxu0 %v1108
      %v1451 = vpop.f32.mrb[0].mxu0
      %v1452 = vadd.f32 0.0, %v1451
      %v1453 = vpop.f32.mrb[0].mxu0
      %1454 = vdwg.mxu0
      %v1455 = vld [vmem:[%s301] sm:$0xff]
      %v1456 = vld [vmem:[%s301 + $0x8] sm:$0xff]
      %v1457 = vld [vmem:[%s301 + $0x10] sm:$0xff]
      %v1458 = vld [vmem:[%s301 + $0x18] sm:$0xff]
      %v1459 = vld [vmem:[%s301 + $0x20] sm:$0xff]
      %v1460 = vld [vmem:[%s301 + $0x28] sm:$0xff]
      %v1461 = vld [vmem:[%s301 + $0x30] sm:$0xff]
      %v1462 = vld [vmem:[%s301 + $0x38] sm:$0xff]
      %v1463 = vld [vmem:[%s301 + $0x40] sm:$0xff]
      %v1464 = vld [vmem:[%s301 + $0x48] sm:$0xff]
      %v1465 = vld [vmem:[%s301 + $0x50] sm:$0xff]
      %v1466 = vld [vmem:[%s301 + $0x58] sm:$0xff]
      %v1467 = vld [vmem:[%s301 + $0x60] sm:$0xff]
      %v1468 = vld [vmem:[%s301 + $0x68] sm:$0xff]
      %v1469 = vld [vmem:[%s301 + $0x70] sm:$0xff]
      %v1470 = vld [vmem:[%s301 + $0x78] sm:$0xff]
      %v1471 = vld [vmem:[%s301 + $0x80] sm:$0xff]
      %v1472 = vld [vmem:[%s301 + $0x88] sm:$0xff]
      %v1473 = vld [vmem:[%s301 + $0x90] sm:$0xff]
      %v1474 = vld [vmem:[%s301 + $0x98] sm:$0xff]
      %v1475 = vld [vmem:[%s301 + $0xa0] sm:$0xff]
      %v1476 = vld [vmem:[%s301 + $0xa8] sm:$0xff]
      %v1477 = vld [vmem:[%s301 + $0xb0] sm:$0xff]
      %v1478 = vld [vmem:[%s301 + $0xb8] sm:$0xff]
      %v1479 = vld [vmem:[%s301 + $0xc0] sm:$0xff]
      %v1480 = vld [vmem:[%s301 + $0xc8] sm:$0xff]
      %v1481 = vld [vmem:[%s301 + $0xd0] sm:$0xff]
      %v1482 = vld [vmem:[%s301 + $0xd8] sm:$0xff]
      %v1483 = vld [vmem:[%s301 + $0xe0] sm:$0xff]
      %v1484 = vld [vmem:[%s301 + $0xe8] sm:$0xff]
      %v1485 = vld [vmem:[%s301 + $0xf0] sm:$0xff]
      %v1486 = vld [vmem:[%s301 + $0xf8] sm:$0xff]
      %v1487 = vld [vmem:[%s301 + $0x100] sm:$0xff]
      %v1488 = vld [vmem:[%s301 + $0x108] sm:$0xff]
      %v1489 = vld [vmem:[%s301 + $0x110] sm:$0xff]
      %v1490 = vld [vmem:[%s301 + $0x118] sm:$0xff]
      %v1491 = vld [vmem:[%s301 + $0x120] sm:$0xff]
      %v1492 = vld [vmem:[%s301 + $0x128] sm:$0xff]
      %v1493 = vld [vmem:[%s301 + $0x130] sm:$0xff]
      %v1494 = vld [vmem:[%s301 + $0x138] sm:$0xff]
      %v1495 = vld [vmem:[%s301 + $0x140] sm:$0xff]
      %v1496 = vld [vmem:[%s301 + $0x148] sm:$0xff]
      %v1497 = vld [vmem:[%s301 + $0x150] sm:$0xff]
      %v1498 = vld [vmem:[%s301 + $0x158] sm:$0xff]
      %v1499 = vld [vmem:[%s301 + $0x160] sm:$0xff]
      %v1500 = vld [vmem:[%s301 + $0x168] sm:$0xff]
      %v1501 = vld [vmem:[%s301 + $0x170] sm:$0xff]
      %v1502 = vld [vmem:[%s301 + $0x178] sm:$0xff]
      %v1503 = vld [vmem:[%s301 + $0x180] sm:$0xff]
      %v1504 = vld [vmem:[%s301 + $0x188] sm:$0xff]
      %v1505 = vld [vmem:[%s301 + $0x190] sm:$0xff]
      %v1506 = vld [vmem:[%s301 + $0x198] sm:$0xff]
      %v1507 = vld [vmem:[%s301 + $0x1a0] sm:$0xff]
      %v1508 = vld [vmem:[%s301 + $0x1a8] sm:$0xff]
      %v1509 = vld [vmem:[%s301 + $0x1b0] sm:$0xff]
      %v1510 = vld [vmem:[%s301 + $0x1b8] sm:$0x1]
      %v1512 = vsel %vm372, %v1455, 0
      %v1515 = vsel %vm372, %v1456, 0
      %v1518 = vsel %vm372, %v1457, 0
      %v1521 = vsel %vm372, %v1458, 0
      %v1524 = vsel %vm372, %v1459, 0
      %v1527 = vsel %vm372, %v1460, 0
      %v1530 = vsel %vm372, %v1461, 0
      %v1533 = vsel %vm372, %v1462, 0
      %v1536 = vsel %vm372, %v1463, 0
      %v1539 = vsel %vm372, %v1464, 0
      %v1542 = vsel %vm372, %v1465, 0
      %v1545 = vsel %vm372, %v1466, 0
      %v1548 = vsel %vm372, %v1467, 0
      %v1551 = vsel %vm372, %v1468, 0
      %v1554 = vsel %vm372, %v1469, 0
      %v1557 = vsel %vm372, %v1470, 0
      %v1560 = vsel %vm372, %v1471, 0
      %v1563 = vsel %vm372, %v1472, 0
      %v1566 = vsel %vm372, %v1473, 0
      %v1569 = vsel %vm372, %v1474, 0
      %v1572 = vsel %vm372, %v1475, 0
      %v1575 = vsel %vm372, %v1476, 0
      %v1578 = vsel %vm372, %v1477, 0
      %v1581 = vsel %vm372, %v1478, 0
      %v1584 = vsel %vm372, %v1479, 0
      %v1587 = vsel %vm372, %v1480, 0
      %v1590 = vsel %vm372, %v1481, 0
      %v1593 = vsel %vm372, %v1482, 0
      %v1596 = vsel %vm372, %v1483, 0
      %v1599 = vsel %vm372, %v1484, 0
      %v1602 = vsel %vm372, %v1485, 0
      %v1605 = vsel %vm372, %v1486, 0
      %v1608 = vsel %vm372, %v1487, 0
      %v1611 = vsel %vm372, %v1488, 0
      %v1614 = vsel %vm372, %v1489, 0
      %v1617 = vsel %vm372, %v1490, 0
      %v1620 = vsel %vm372, %v1491, 0
      %v1623 = vsel %vm372, %v1492, 0
      %v1626 = vsel %vm372, %v1493, 0
      %v1629 = vsel %vm372, %v1494, 0
      %v1632 = vsel %vm372, %v1495, 0
      %v1635 = vsel %vm372, %v1496, 0
      %v1638 = vsel %vm372, %v1497, 0
      %v1641 = vsel %vm372, %v1498, 0
      %v1644 = vsel %vm372, %v1499, 0
      %v1647 = vsel %vm372, %v1500, 0
      %v1650 = vsel %vm372, %v1501, 0
      %v1653 = vsel %vm372, %v1502, 0
      %v1656 = vsel %vm372, %v1503, 0
      %v1659 = vsel %vm372, %v1504, 0
      %v1662 = vsel %vm372, %v1505, 0
      %v1665 = vsel %vm372, %v1506, 0
      %v1668 = vsel %vm372, %v1507, 0
      %v1671 = vsel %vm372, %v1508, 0
      %v1674 = vsel %vm372, %v1509, 0
      %v1677 = vsel %vm372, %v1510, 0
      %1679 = vmatprep.subr.mxu0 0.0
      %1680 = vmatpush1.msra.mxu0 %v312
      %1681 = vmatprep.subr.mxu0 0.0
      %1682 = vmatpush1.msra.mxu0 %v313
      %1683 = vmatprep.subr.mxu0 0.0
      %1684 = vmatpush1.msra.mxu0 %v314
      %1685 = vmatprep.subr.mxu0 0.0
      %1686 = vmatpush1.msra.mxu0 %v315
      %1687 = vmatprep.subr.mxu0 0.0
      %1688 = vmatpush1.msra.mxu0 0.0
      %1689 = vmatprep.subr.mxu0 0.0
      %1690 = vmatpush1.msra.mxu0 0.0
      %1691 = vmatprep.subr.mxu0 0.0
      %1692 = vmatpush1.msra.mxu0 0.0
      %1693 = vmatprep.subr.mxu0 0.0
      %1694 = vmatpush1.msra.mxu0 0.0
      %1695 = vmatprep.subr.mxu0 0.0
      %1696 = vmatpush1.msra.mxu0 0.0
      %1697 = vmatprep.subr.mxu0 0.0
      %1698 = vmatpush1.msra.mxu0 0.0
      %1699 = vmatprep.subr.mxu0 0.0
      %1700 = vmatpush1.msra.mxu0 0.0
      %1701 = vmatprep.subr.mxu0 0.0
      %1702 = vmatpush1.msra.mxu0 0.0
      %1703 = vmatprep.subr.mxu0 0.0
      %1704 = vmatpush1.msra.mxu0 0.0
      %1705 = vmatprep.subr.mxu0 0.0
      %1706 = vmatpush1.msra.mxu0 0.0
      %1707 = vmatprep.subr.mxu0 0.0
      %1708 = vmatpush1.msra.mxu0 0.0
      %1709 = vmatprep.subr.mxu0 0.0
      %1710 = vmatpush1.msra.mxu0 0.0
      %1711 = vmatprep.subr.mxu0 0.0
      %1712 = vmatpush1.msra.mxu0 0.0
      %1713 = vmatprep.subr.mxu0 0.0
      %1714 = vmatpush1.msra.mxu0 0.0
      %1715 = vmatprep.subr.mxu0 0.0
      %1716 = vmatpush1.msra.mxu0 0.0
      %1717 = vmatprep.subr.mxu0 0.0
      %1718 = vmatpush1.msra.mxu0 0.0
      %1719 = vmatprep.subr.mxu0 0.0
      %1720 = vmatpush1.msra.mxu0 0.0
      %1721 = vmatprep.subr.mxu0 0.0
      %1722 = vmatpush1.msra.mxu0 0.0
      %1723 = vmatprep.subr.mxu0 0.0
      %1724 = vmatpush1.msra.mxu0 0.0
      %1725 = vmatprep.subr.mxu0 0.0
      %1726 = vmatpush1.msra.mxu0 0.0
      %1727 = vmatprep.subr.mxu0 0.0
      %1728 = vmatpush1.msra.mxu0 0.0
      %1729 = vmatprep.subr.mxu0 0.0
      %1730 = vmatpush1.msra.mxu0 0.0
      %1731 = vmatprep.subr.mxu0 0.0
      %1732 = vmatpush1.msra.mxu0 0.0
      %1733 = vmatprep.subr.mxu0 0.0
      %1734 = vmatpush1.msra.mxu0 0.0
      %1735 = vmatprep.subr.mxu0 0.0
      %1736 = vmatpush1.msra.mxu0 0.0
      %1737 = vmatprep.subr.mxu0 0.0
      %1738 = vmatpush1.msra.mxu0 0.0
      %1739 = vmatprep.subr.mxu0 0.0
      %1740 = vmatpush1.msra.mxu0 0.0
      %1741 = vmatprep.subr.mxu0 0.0
      %1742 = vmatpush1.msra.mxu0 0.0
      %1743 = vmatprep.mubr.f32.mxu0 0.0
      %1744 = vmatmul.mubr.f32.gmra.mrb[0].mxu0 %v1512
      %v1745 = vpop.f32.mrb[0].mxu0
      %v1746 = vadd.f32 0.0, %v1745
      %v1747 = vpop.f32.mrb[0].mxu0
      %1748 = vmatprep.mubr.f32.mxu0 0.0
      %1749 = vmatmul.mubr.f32.gmra.mrb[0].mxu0 %v1515
      %v1750 = vpop.f32.mrb[0].mxu0
      %v1751 = vadd.f32 0.0, %v1750
      %v1752 = vpop.f32.mrb[0].mxu0
      %1753 = vmatprep.mubr.f32.mxu0 0.0
      %1754 = vmatmul.mubr.f32.gmra.mrb[0].mxu0 %v1518
      %v1755 = vpop.f32.mrb[0].mxu0
      %v1756 = vadd.f32 0.0, %v1755
      %v1757 = vpop.f32.mrb[0].mxu0
      %1758 = vmatprep.mubr.f32.mxu0 0.0
      %1759 = vmatmul.mubr.f32.gmra.mrb[0].mxu0 %v1521
      %v1760 = vpop.f32.mrb[0].mxu0
      %v1761 = vadd.f32 0.0, %v1760
      %v1762 = vpop.f32.mrb[0].mxu0
      %1763 = vmatprep.mubr.f32.mxu0 0.0
      %1764 = vmatmul.mubr.f32.gmra.mrb[0].mxu0 %v1524
      %v1765 = vpop.f32.mrb[0].mxu0
      %v1766 = vadd.f32 0.0, %v1765
      %v1767 = vpop.f32.mrb[0].mxu0
      %1768 = vmatprep.mubr.f32.mxu0 0.0
      %1769 = vmatmul.mubr.f32.gmra.mrb[0].mxu0 %v1527
      %v1770 = vpop.f32.mrb[0].mxu0
      %v1771 = vadd.f32 0.0, %v1770
      %v1772 = vpop.f32.mrb[0].mxu0
      %1773 = vmatprep.mubr.f32.mxu0 0.0
      %1774 = vmatmul.mubr.f32.gmra.mrb[0].mxu0 %v1530
      %v1775 = vpop.f32.mrb[0].mxu0
      %v1776 = vadd.f32 0.0, %v1775
      %v1777 = vpop.f32.mrb[0].mxu0
      %1778 = vmatprep.mubr.f32.mxu0 0.0
      %1779 = vmatmul.mubr.f32.gmra.mrb[0].mxu0 %v1533
      %v1780 = vpop.f32.mrb[0].mxu0
      %v1781 = vadd.f32 0.0, %v1780
      %v1782 = vpop.f32.mrb[0].mxu0
      %1783 = vmatprep.mubr.f32.mxu0 0.0
      %1784 = vmatmul.mubr.f32.gmra.mrb[0].mxu0 %v1536
      %v1785 = vpop.f32.mrb[0].mxu0
      %v1786 = vadd.f32 0.0, %v1785
      %v1787 = vpop.f32.mrb[0].mxu0
      %1788 = vmatprep.mubr.f32.mxu0 0.0
      %1789 = vmatmul.mubr.f32.gmra.mrb[0].mxu0 %v1539
      %v1790 = vpop.f32.mrb[0].mxu0
      %v1791 = vadd.f32 0.0, %v1790
      %v1792 = vpop.f32.mrb[0].mxu0
      %1793 = vmatprep.mubr.f32.mxu0 0.0
      %1794 = vmatmul.mubr.f32.gmra.mrb[0].mxu0 %v1542
      %v1795 = vpop.f32.mrb[0].mxu0
      %v1796 = vadd.f32 0.0, %v1795
      %v1797 = vpop.f32.mrb[0].mxu0
      %1798 = vmatprep.mubr.f32.mxu0 0.0
      %1799 = vmatmul.mubr.f32.gmra.mrb[0].mxu0 %v1545
      %v1800 = vpop.f32.mrb[0].mxu0
      %v1801 = vadd.f32 0.0, %v1800
      %v1802 = vpop.f32.mrb[0].mxu0
      %1803 = vmatprep.mubr.f32.mxu0 0.0
      %1804 = vmatmul.mubr.f32.gmra.mrb[0].mxu0 %v1548
      %v1805 = vpop.f32.mrb[0].mxu0
      %v1806 = vadd.f32 0.0, %v1805
      %v1807 = vpop.f32.mrb[0].mxu0
      %1808 = vmatprep.mubr.f32.mxu0 0.0
      %1809 = vmatmul.mubr.f32.gmra.mrb[0].mxu0 %v1551
      %v1810 = vpop.f32.mrb[0].mxu0
      %v1811 = vadd.f32 0.0, %v1810
      %v1812 = vpop.f32.mrb[0].mxu0
      %1813 = vmatprep.mubr.f32.mxu0 0.0
      %1814 = vmatmul.mubr.f32.gmra.mrb[0].mxu0 %v1554
      %v1815 = vpop.f32.mrb[0].mxu0
      %v1816 = vadd.f32 0.0, %v1815
      %v1817 = vpop.f32.mrb[0].mxu0
      %1818 = vmatprep.mubr.f32.mxu0 0.0
      %1819 = vmatmul.mubr.f32.gmra.mrb[0].mxu0 %v1557
      %v1820 = vpop.f32.mrb[0].mxu0
      %v1821 = vadd.f32 0.0, %v1820
      %v1822 = vpop.f32.mrb[0].mxu0
      %1823 = vmatprep.mubr.f32.mxu0 0.0
      %1824 = vmatmul.mubr.f32.gmra.mrb[0].mxu0 %v1560
      %v1825 = vpop.f32.mrb[0].mxu0
      %v1826 = vadd.f32 0.0, %v1825
      %v1827 = vpop.f32.mrb[0].mxu0
      %1828 = vmatprep.mubr.f32.mxu0 0.0
      %1829 = vmatmul.mubr.f32.gmra.mrb[0].mxu0 %v1563
      %v1830 = vpop.f32.mrb[0].mxu0
      %v1831 = vadd.f32 0.0, %v1830
      %v1832 = vpop.f32.mrb[0].mxu0
      %1833 = vmatprep.mubr.f32.mxu0 0.0
      %1834 = vmatmul.mubr.f32.gmra.mrb[0].mxu0 %v1566
      %v1835 = vpop.f32.mrb[0].mxu0
      %v1836 = vadd.f32 0.0, %v1835
      %v1837 = vpop.f32.mrb[0].mxu0
      %1838 = vmatprep.mubr.f32.mxu0 0.0
      %1839 = vmatmul.mubr.f32.gmra.mrb[0].mxu0 %v1569
      %v1840 = vpop.f32.mrb[0].mxu0
      %v1841 = vadd.f32 0.0, %v1840
      %v1842 = vpop.f32.mrb[0].mxu0
      %1843 = vmatprep.mubr.f32.mxu0 0.0
      %1844 = vmatmul.mubr.f32.gmra.mrb[0].mxu0 %v1572
      %v1845 = vpop.f32.mrb[0].mxu0
      %v1846 = vadd.f32 0.0, %v1845
      %v1847 = vpop.f32.mrb[0].mxu0
      %1848 = vmatprep.mubr.f32.mxu0 0.0
      %1849 = vmatmul.mubr.f32.gmra.mrb[0].mxu0 %v1575
      %v1850 = vpop.f32.mrb[0].mxu0
      %v1851 = vadd.f32 0.0, %v1850
      %v1852 = vpop.f32.mrb[0].mxu0
      %1853 = vmatprep.mubr.f32.mxu0 0.0
      %1854 = vmatmul.mubr.f32.gmra.mrb[0].mxu0 %v1578
      %v1855 = vpop.f32.mrb[0].mxu0
      %v1856 = vadd.f32 0.0, %v1855
      %v1857 = vpop.f32.mrb[0].mxu0
      %1858 = vmatprep.mubr.f32.mxu0 0.0
      %1859 = vmatmul.mubr.f32.gmra.mrb[0].mxu0 %v1581
      %v1860 = vpop.f32.mrb[0].mxu0
      %v1861 = vadd.f32 0.0, %v1860
      %v1862 = vpop.f32.mrb[0].mxu0
      %1863 = vmatprep.mubr.f32.mxu0 0.0
      %1864 = vmatmul.mubr.f32.gmra.mrb[0].mxu0 %v1584
      %v1865 = vpop.f32.mrb[0].mxu0
      %v1866 = vadd.f32 0.0, %v1865
      %v1867 = vpop.f32.mrb[0].mxu0
      %1868 = vmatprep.mubr.f32.mxu0 0.0
      %1869 = vmatmul.mubr.f32.gmra.mrb[0].mxu0 %v1587
      %v1870 = vpop.f32.mrb[0].mxu0
      %v1871 = vadd.f32 0.0, %v1870
      %v1872 = vpop.f32.mrb[0].mxu0
      %1873 = vmatprep.mubr.f32.mxu0 0.0
      %1874 = vmatmul.mubr.f32.gmra.mrb[0].mxu0 %v1590
      %v1875 = vpop.f32.mrb[0].mxu0
      %v1876 = vadd.f32 0.0, %v1875
      %v1877 = vpop.f32.mrb[0].mxu0
      %1878 = vmatprep.mubr.f32.mxu0 0.0
      %1879 = vmatmul.mubr.f32.gmra.mrb[0].mxu0 %v1593
      %v1880 = vpop.f32.mrb[0].mxu0
      %v1881 = vadd.f32 0.0, %v1880
      %v1882 = vpop.f32.mrb[0].mxu0
      %1883 = vmatprep.mubr.f32.mxu0 0.0
      %1884 = vmatmul.mubr.f32.gmra.mrb[0].mxu0 %v1596
      %v1885 = vpop.f32.mrb[0].mxu0
      %v1886 = vadd.f32 0.0, %v1885
      %v1887 = vpop.f32.mrb[0].mxu0
      %1888 = vmatprep.mubr.f32.mxu0 0.0
      %1889 = vmatmul.mubr.f32.gmra.mrb[0].mxu0 %v1599
      %v1890 = vpop.f32.mrb[0].mxu0
      %v1891 = vadd.f32 0.0, %v1890
      %v1892 = vpop.f32.mrb[0].mxu0
      %1893 = vmatprep.mubr.f32.mxu0 0.0
      %1894 = vmatmul.mubr.f32.gmra.mrb[0].mxu0 %v1602
      %v1895 = vpop.f32.mrb[0].mxu0
      %v1896 = vadd.f32 0.0, %v1895
      %v1897 = vpop.f32.mrb[0].mxu0
      %1898 = vmatprep.mubr.f32.mxu0 0.0
      %1899 = vmatmul.mubr.f32.gmra.mrb[0].mxu0 %v1605
      %v1900 = vpop.f32.mrb[0].mxu0
      %v1901 = vadd.f32 0.0, %v1900
      %v1902 = vpop.f32.mrb[0].mxu0
      %1903 = vmatprep.mubr.f32.mxu0 0.0
      %1904 = vmatmul.mubr.f32.gmra.mrb[0].mxu0 %v1608
      %v1905 = vpop.f32.mrb[0].mxu0
      %v1906 = vadd.f32 0.0, %v1905
      %v1907 = vpop.f32.mrb[0].mxu0
      %1908 = vmatprep.mubr.f32.mxu0 0.0
      %1909 = vmatmul.mubr.f32.gmra.mrb[0].mxu0 %v1611
      %v1910 = vpop.f32.mrb[0].mxu0
      %v1911 = vadd.f32 0.0, %v1910
      %v1912 = vpop.f32.mrb[0].mxu0
      %1913 = vmatprep.mubr.f32.mxu0 0.0
      %1914 = vmatmul.mubr.f32.gmra.mrb[0].mxu0 %v1614
      %v1915 = vpop.f32.mrb[0].mxu0
      %v1916 = vadd.f32 0.0, %v1915
      %v1917 = vpop.f32.mrb[0].mxu0
      %1918 = vmatprep.mubr.f32.mxu0 0.0
      %1919 = vmatmul.mubr.f32.gmra.mrb[0].mxu0 %v1617
      %v1920 = vpop.f32.mrb[0].mxu0
      %v1921 = vadd.f32 0.0, %v1920
      %v1922 = vpop.f32.mrb[0].mxu0
      %1923 = vmatprep.mubr.f32.mxu0 0.0
      %1924 = vmatmul.mubr.f32.gmra.mrb[0].mxu0 %v1620
      %v1925 = vpop.f32.mrb[0].mxu0
      %v1926 = vadd.f32 0.0, %v1925
      %v1927 = vpop.f32.mrb[0].mxu0
      %1928 = vmatprep.mubr.f32.mxu0 0.0
      %1929 = vmatmul.mubr.f32.gmra.mrb[0].mxu0 %v1623
      %v1930 = vpop.f32.mrb[0].mxu0
      %v1931 = vadd.f32 0.0, %v1930
      %v1932 = vpop.f32.mrb[0].mxu0
      %1933 = vmatprep.mubr.f32.mxu0 0.0
      %1934 = vmatmul.mubr.f32.gmra.mrb[0].mxu0 %v1626
      %v1935 = vpop.f32.mrb[0].mxu0
      %v1936 = vadd.f32 0.0, %v1935
      %v1937 = vpop.f32.mrb[0].mxu0
      %1938 = vmatprep.mubr.f32.mxu0 0.0
      %1939 = vmatmul.mubr.f32.gmra.mrb[0].mxu0 %v1629
      %v1940 = vpop.f32.mrb[0].mxu0
      %v1941 = vadd.f32 0.0, %v1940
      %v1942 = vpop.f32.mrb[0].mxu0
      %1943 = vmatprep.mubr.f32.mxu0 0.0
      %1944 = vmatmul.mubr.f32.gmra.mrb[0].mxu0 %v1632
      %v1945 = vpop.f32.mrb[0].mxu0
      %v1946 = vadd.f32 0.0, %v1945
      %v1947 = vpop.f32.mrb[0].mxu0
      %1948 = vmatprep.mubr.f32.mxu0 0.0
      %1949 = vmatmul.mubr.f32.gmra.mrb[0].mxu0 %v1635
      %v1950 = vpop.f32.mrb[0].mxu0
      %v1951 = vadd.f32 0.0, %v1950
      %v1952 = vpop.f32.mrb[0].mxu0
      %1953 = vmatprep.mubr.f32.mxu0 0.0
      %1954 = vmatmul.mubr.f32.gmra.mrb[0].mxu0 %v1638
      %v1955 = vpop.f32.mrb[0].mxu0
      %v1956 = vadd.f32 0.0, %v1955
      %v1957 = vpop.f32.mrb[0].mxu0
      %1958 = vmatprep.mubr.f32.mxu0 0.0
      %1959 = vmatmul.mubr.f32.gmra.mrb[0].mxu0 %v1641
      %v1960 = vpop.f32.mrb[0].mxu0
      %v1961 = vadd.f32 0.0, %v1960
      %v1962 = vpop.f32.mrb[0].mxu0
      %1963 = vmatprep.mubr.f32.mxu0 0.0
      %1964 = vmatmul.mubr.f32.gmra.mrb[0].mxu0 %v1644
      %v1965 = vpop.f32.mrb[0].mxu0
      %v1966 = vadd.f32 0.0, %v1965
      %v1967 = vpop.f32.mrb[0].mxu0
      %1968 = vmatprep.mubr.f32.mxu0 0.0
      %1969 = vmatmul.mubr.f32.gmra.mrb[0].mxu0 %v1647
      %v1970 = vpop.f32.mrb[0].mxu0
      %v1971 = vadd.f32 0.0, %v1970
      %v1972 = vpop.f32.mrb[0].mxu0
      %1973 = vmatprep.mubr.f32.mxu0 0.0
      %1974 = vmatmul.mubr.f32.gmra.mrb[0].mxu0 %v1650
      %v1975 = vpop.f32.mrb[0].mxu0
      %v1976 = vadd.f32 0.0, %v1975
      %v1977 = vpop.f32.mrb[0].mxu0
      %1978 = vmatprep.mubr.f32.mxu0 0.0
      %1979 = vmatmul.mubr.f32.gmra.mrb[0].mxu0 %v1653
      %v1980 = vpop.f32.mrb[0].mxu0
      %v1981 = vadd.f32 0.0, %v1980
      %v1982 = vpop.f32.mrb[0].mxu0
      %1983 = vmatprep.mubr.f32.mxu0 0.0
      %1984 = vmatmul.mubr.f32.gmra.mrb[0].mxu0 %v1656
      %v1985 = vpop.f32.mrb[0].mxu0
      %v1986 = vadd.f32 0.0, %v1985
      %v1987 = vpop.f32.mrb[0].mxu0
      %1988 = vmatprep.mubr.f32.mxu0 0.0
      %1989 = vmatmul.mubr.f32.gmra.mrb[0].mxu0 %v1659
      %v1990 = vpop.f32.mrb[0].mxu0
      %v1991 = vadd.f32 0.0, %v1990
      %v1992 = vpop.f32.mrb[0].mxu0
      %1993 = vmatprep.mubr.f32.mxu0 0.0
      %1994 = vmatmul.mubr.f32.gmra.mrb[0].mxu0 %v1662
      %v1995 = vpop.f32.mrb[0].mxu0
      %v1996 = vadd.f32 0.0, %v1995
      %v1997 = vpop.f32.mrb[0].mxu0
      %1998 = vmatprep.mubr.f32.mxu0 0.0
      %1999 = vmatmul.mubr.f32.gmra.mrb[0].mxu0 %v1665
      %v2000 = vpop.f32.mrb[0].mxu0
      %v2001 = vadd.f32 0.0, %v2000
      %v2002 = vpop.f32.mrb[0].mxu0
      %2003 = vmatprep.mubr.f32.mxu0 0.0
      %2004 = vmatmul.mubr.f32.gmra.mrb[0].mxu0 %v1668
      %v2005 = vpop.f32.mrb[0].mxu0
      %v2006 = vadd.f32 0.0, %v2005
      %v2007 = vpop.f32.mrb[0].mxu0
      %2008 = vmatprep.mubr.f32.mxu0 0.0
      %2009 = vmatmul.mubr.f32.gmra.mrb[0].mxu0 %v1671
      %v2010 = vpop.f32.mrb[0].mxu0
      %v2011 = vadd.f32 0.0, %v2010
      %v2012 = vpop.f32.mrb[0].mxu0
      %2013 = vmatprep.mubr.f32.mxu0 0.0
      %2014 = vmatmul.mubr.f32.gmra.mrb[0].mxu0 %v1674
      %v2015 = vpop.f32.mrb[0].mxu0
      %v2016 = vadd.f32 0.0, %v2015
      %v2017 = vpop.f32.mrb[0].mxu0
      %2018 = vmatprep.mubr.f32.mxu0 0.0
      %2019 = vmatmul.mubr.f32.gmra.mrb[0].mxu0 %v1677
      %v2020 = vpop.f32.mrb[0].mxu0
      %v2021 = vadd.f32 0.0, %v2020
      %v2022 = vpop.f32.mrb[0].mxu0
      %2023 = vdwg.mxu0
      %v2024 = vld [vmem:[%s306] sm:$0xff]
      %v2025 = vld [vmem:[%s306 + $0x8] sm:$0xff]
      %v2026 = vld [vmem:[%s306 + $0x10] sm:$0xff]
      %v2027 = vld [vmem:[%s306 + $0x18] sm:$0xff]
      %v2028 = vld [vmem:[%s306 + $0x20] sm:$0xff]
      %v2029 = vld [vmem:[%s306 + $0x28] sm:$0xff]
      %v2030 = vld [vmem:[%s306 + $0x30] sm:$0xff]
      %v2031 = vld [vmem:[%s306 + $0x38] sm:$0xff]
      %v2032 = vld [vmem:[%s306 + $0x40] sm:$0xff]
      %v2033 = vld [vmem:[%s306 + $0x48] sm:$0xff]
      %v2034 = vld [vmem:[%s306 + $0x50] sm:$0xff]
      %v2035 = vld [vmem:[%s306 + $0x58] sm:$0xff]
      %v2036 = vld [vmem:[%s306 + $0x60] sm:$0xff]
      %v2037 = vld [vmem:[%s306 + $0x68] sm:$0xff]
      %v2038 = vld [vmem:[%s306 + $0x70] sm:$0xff]
      %v2039 = vld [vmem:[%s306 + $0x78] sm:$0xff]
      %v2040 = vld [vmem:[%s306 + $0x80] sm:$0xff]
      %v2041 = vld [vmem:[%s306 + $0x88] sm:$0xff]
      %v2042 = vld [vmem:[%s306 + $0x90] sm:$0xff]
      %v2043 = vld [vmem:[%s306 + $0x98] sm:$0xff]
      %v2044 = vld [vmem:[%s306 + $0xa0] sm:$0xff]
      %v2045 = vld [vmem:[%s306 + $0xa8] sm:$0xff]
      %v2046 = vld [vmem:[%s306 + $0xb0] sm:$0xff]
      %v2047 = vld [vmem:[%s306 + $0xb8] sm:$0xff]
      %v2048 = vld [vmem:[%s306 + $0xc0] sm:$0xff]
      %v2049 = vld [vmem:[%s306 + $0xc8] sm:$0xff]
      %v2050 = vld [vmem:[%s306 + $0xd0] sm:$0xff]
      %v2051 = vld [vmem:[%s306 + $0xd8] sm:$0xff]
      %v2052 = vld [vmem:[%s306 + $0xe0] sm:$0xff]
      %v2053 = vld [vmem:[%s306 + $0xe8] sm:$0xff]
      %v2054 = vld [vmem:[%s306 + $0xf0] sm:$0xff]
      %v2055 = vld [vmem:[%s306 + $0xf8] sm:$0xff]
      %v2056 = vld [vmem:[%s306 + $0x100] sm:$0xff]
      %v2057 = vld [vmem:[%s306 + $0x108] sm:$0xff]
      %v2058 = vld [vmem:[%s306 + $0x110] sm:$0xff]
      %v2059 = vld [vmem:[%s306 + $0x118] sm:$0xff]
      %v2060 = vld [vmem:[%s306 + $0x120] sm:$0xff]
      %v2061 = vld [vmem:[%s306 + $0x128] sm:$0xff]
      %v2062 = vld [vmem:[%s306 + $0x130] sm:$0xff]
      %v2063 = vld [vmem:[%s306 + $0x138] sm:$0xff]
      %v2064 = vld [vmem:[%s306 + $0x140] sm:$0xff]
      %v2065 = vld [vmem:[%s306 + $0x148] sm:$0xff]
      %v2066 = vld [vmem:[%s306 + $0x150] sm:$0xff]
      %v2067 = vld [vmem:[%s306 + $0x158] sm:$0xff]
      %v2068 = vld [vmem:[%s306 + $0x160] sm:$0xff]
      %v2069 = vld [vmem:[%s306 + $0x168] sm:$0xff]
      %v2070 = vld [vmem:[%s306 + $0x170] sm:$0xff]
      %v2071 = vld [vmem:[%s306 + $0x178] sm:$0xff]
      %v2072 = vld [vmem:[%s306 + $0x180] sm:$0xff]
      %v2073 = vld [vmem:[%s306 + $0x188] sm:$0xff]
      %v2074 = vld [vmem:[%s306 + $0x190] sm:$0xff]
      %v2075 = vld [vmem:[%s306 + $0x198] sm:$0xff]
      %v2076 = vld [vmem:[%s306 + $0x1a0] sm:$0xff]
      %v2077 = vld [vmem:[%s306 + $0x1a8] sm:$0xff]
      %v2078 = vld [vmem:[%s306 + $0x1b0] sm:$0xff]
      %v2079 = vld [vmem:[%s306 + $0x1b8] sm:$0x1]
      %v2081 = vsel %vm372, %v2024, 0
      %v2084 = vsel %vm372, %v2025, 0
      %v2087 = vsel %vm372, %v2026, 0
      %v2090 = vsel %vm372, %v2027, 0
      %v2093 = vsel %vm372, %v2028, 0
      %v2096 = vsel %vm372, %v2029, 0
      %v2099 = vsel %vm372, %v2030, 0
      %v2102 = vsel %vm372, %v2031, 0
      %v2105 = vsel %vm372, %v2032, 0
      %v2108 = vsel %vm372, %v2033, 0
      %v2111 = vsel %vm372, %v2034, 0
      %v2114 = vsel %vm372, %v2035, 0
      %v2117 = vsel %vm372, %v2036, 0
      %v2120 = vsel %vm372, %v2037, 0
      %v2123 = vsel %vm372, %v2038, 0
      %v2126 = vsel %vm372, %v2039, 0
      %v2129 = vsel %vm372, %v2040, 0
      %v2132 = vsel %vm372, %v2041, 0
      %v2135 = vsel %vm372, %v2042, 0
      %v2138 = vsel %vm372, %v2043, 0
      %v2141 = vsel %vm372, %v2044, 0
      %v2144 = vsel %vm372, %v2045, 0
      %v2147 = vsel %vm372, %v2046, 0
      %v2150 = vsel %vm372, %v2047, 0
      %v2153 = vsel %vm372, %v2048, 0
      %v2156 = vsel %vm372, %v2049, 0
      %v2159 = vsel %vm372, %v2050, 0
      %v2162 = vsel %vm372, %v2051, 0
      %v2165 = vsel %vm372, %v2052, 0
      %v2168 = vsel %vm372, %v2053, 0
      %v2171 = vsel %vm372, %v2054, 0
      %v2174 = vsel %vm372, %v2055, 0
      %v2177 = vsel %vm372, %v2056, 0
      %v2180 = vsel %vm372, %v2057, 0
      %v2183 = vsel %vm372, %v2058, 0
      %v2186 = vsel %vm372, %v2059, 0
      %v2189 = vsel %vm372, %v2060, 0
      %v2192 = vsel %vm372, %v2061, 0
      %v2195 = vsel %vm372, %v2062, 0
      %v2198 = vsel %vm372, %v2063, 0
      %v2201 = vsel %vm372, %v2064, 0
      %v2204 = vsel %vm372, %v2065, 0
      %v2207 = vsel %vm372, %v2066, 0
      %v2210 = vsel %vm372, %v2067, 0
      %v2213 = vsel %vm372, %v2068, 0
      %v2216 = vsel %vm372, %v2069, 0
      %v2219 = vsel %vm372, %v2070, 0
      %v2222 = vsel %vm372, %v2071, 0
      %v2225 = vsel %vm372, %v2072, 0
      %v2228 = vsel %vm372, %v2073, 0
      %v2231 = vsel %vm372, %v2074, 0
      %v2234 = vsel %vm372, %v2075, 0
      %v2237 = vsel %vm372, %v2076, 0
      %v2240 = vsel %vm372, %v2077, 0
      %v2243 = vsel %vm372, %v2078, 0
      %v2246 = vsel %vm372, %v2079, 0
      %2248 = vmatprep.subr.mxu0 0.0
      %2249 = vmatpush1.msra.mxu0 %v312
      %2250 = vmatprep.subr.mxu0 0.0
      %2251 = vmatpush1.msra.mxu0 %v313
      %2252 = vmatprep.subr.mxu0 0.0
      %2253 = vmatpush1.msra.mxu0 %v314
      %2254 = vmatprep.subr.mxu0 0.0
      %2255 = vmatpush1.msra.mxu0 %v315
      %2256 = vmatprep.subr.mxu0 0.0
      %2257 = vmatpush1.msra.mxu0 0.0
      %2258 = vmatprep.subr.mxu0 0.0
      %2259 = vmatpush1.msra.mxu0 0.0
      %2260 = vmatprep.subr.mxu0 0.0
      %2261 = vmatpush1.msra.mxu0 0.0
      %2262 = vmatprep.subr.mxu0 0.0
      %2263 = vmatpush1.msra.mxu0 0.0
      %2264 = vmatprep.subr.mxu0 0.0
      %2265 = vmatpush1.msra.mxu0 0.0
      %2266 = vmatprep.subr.mxu0 0.0
      %2267 = vmatpush1.msra.mxu0 0.0
      %2268 = vmatprep.subr.mxu0 0.0
      %2269 = vmatpush1.msra.mxu0 0.0
      %2270 = vmatprep.subr.mxu0 0.0
      %2271 = vmatpush1.msra.mxu0 0.0
      %2272 = vmatprep.subr.mxu0 0.0
      %2273 = vmatpush1.msra.mxu0 0.0
      %2274 = vmatprep.subr.mxu0 0.0
      %2275 = vmatpush1.msra.mxu0 0.0
      %2276 = vmatprep.subr.mxu0 0.0
      %2277 = vmatpush1.msra.mxu0 0.0
      %2278 = vmatprep.subr.mxu0 0.0
      %2279 = vmatpush1.msra.mxu0 0.0
      %2280 = vmatprep.subr.mxu0 0.0
      %2281 = vmatpush1.msra.mxu0 0.0
      %2282 = vmatprep.subr.mxu0 0.0
      %2283 = vmatpush1.msra.mxu0 0.0
      %2284 = vmatprep.subr.mxu0 0.0
      %2285 = vmatpush1.msra.mxu0 0.0
      %2286 = vmatprep.subr.mxu0 0.0
      %2287 = vmatpush1.msra.mxu0 0.0
      %2288 = vmatprep.subr.mxu0 0.0
      %2289 = vmatpush1.msra.mxu0 0.0
      %2290 = vmatprep.subr.mxu0 0.0
      %2291 = vmatpush1.msra.mxu0 0.0
      %2292 = vmatprep.subr.mxu0 0.0
      %2293 = vmatpush1.msra.mxu0 0.0
      %2294 = vmatprep.subr.mxu0 0.0
      %2295 = vmatpush1.msra.mxu0 0.0
      %2296 = vmatprep.subr.mxu0 0.0
      %2297 = vmatpush1.msra.mxu0 0.0
      %2298 = vmatprep.subr.mxu0 0.0
      %2299 = vmatpush1.msra.mxu0 0.0
      %2300 = vmatprep.subr.mxu0 0.0
      %2301 = vmatpush1.msra.mxu0 0.0
      %2302 = vmatprep.subr.mxu0 0.0
      %2303 = vmatpush1.msra.mxu0 0.0
      %2304 = vmatprep.subr.mxu0 0.0
      %2305 = vmatpush1.msra.mxu0 0.0
      %2306 = vmatprep.subr.mxu0 0.0
      %2307 = vmatpush1.msra.mxu0 0.0
      %2308 = vmatprep.subr.mxu0 0.0
      %2309 = vmatpush1.msra.mxu0 0.0
      %2310 = vmatprep.subr.mxu0 0.0
      %2311 = vmatpush1.msra.mxu0 0.0
      %2312 = vmatprep.mubr.f32.mxu0 0.0
      %2313 = vmatmul.mubr.f32.gmra.mrb[0].mxu0 %v2081
      %v2314 = vpop.f32.mrb[0].mxu0
      %v2315 = vadd.f32 0.0, %v2314
      %v2316 = vpop.f32.mrb[0].mxu0
      %2317 = vmatprep.mubr.f32.mxu0 0.0
      %2318 = vmatmul.mubr.f32.gmra.mrb[0].mxu0 %v2084
      %v2319 = vpop.f32.mrb[0].mxu0
      %v2320 = vadd.f32 0.0, %v2319
      %v2321 = vpop.f32.mrb[0].mxu0
      %2322 = vmatprep.mubr.f32.mxu0 0.0
      %2323 = vmatmul.mubr.f32.gmra.mrb[0].mxu0 %v2087
      %v2324 = vpop.f32.mrb[0].mxu0
      %v2325 = vadd.f32 0.0, %v2324
      %v2326 = vpop.f32.mrb[0].mxu0
      %2327 = vmatprep.mubr.f32.mxu0 0.0
      %2328 = vmatmul.mubr.f32.gmra.mrb[0].mxu0 %v2090
      %v2329 = vpop.f32.mrb[0].mxu0
      %v2330 = vadd.f32 0.0, %v2329
      %v2331 = vpop.f32.mrb[0].mxu0
      %2332 = vmatprep.mubr.f32.mxu0 0.0
      %2333 = vmatmul.mubr.f32.gmra.mrb[0].mxu0 %v2093
      %v2334 = vpop.f32.mrb[0].mxu0
      %v2335 = vadd.f32 0.0, %v2334
      %v2336 = vpop.f32.mrb[0].mxu0
      %2337 = vmatprep.mubr.f32.mxu0 0.0
      %2338 = vmatmul.mubr.f32.gmra.mrb[0].mxu0 %v2096
      %v2339 = vpop.f32.mrb[0].mxu0
      %v2340 = vadd.f32 0.0, %v2339
      %v2341 = vpop.f32.mrb[0].mxu0
      %2342 = vmatprep.mubr.f32.mxu0 0.0
      %2343 = vmatmul.mubr.f32.gmra.mrb[0].mxu0 %v2099
      %v2344 = vpop.f32.mrb[0].mxu0
      %v2345 = vadd.f32 0.0, %v2344
      %v2346 = vpop.f32.mrb[0].mxu0
      %2347 = vmatprep.mubr.f32.mxu0 0.0
      %2348 = vmatmul.mubr.f32.gmra.mrb[0].mxu0 %v2102
      %v2349 = vpop.f32.mrb[0].mxu0
      %v2350 = vadd.f32 0.0, %v2349
      %v2351 = vpop.f32.mrb[0].mxu0
      %2352 = vmatprep.mubr.f32.mxu0 0.0
      %2353 = vmatmul.mubr.f32.gmra.mrb[0].mxu0 %v2105
      %v2354 = vpop.f32.mrb[0].mxu0
      %v2355 = vadd.f32 0.0, %v2354
      %v2356 = vpop.f32.mrb[0].mxu0
      %2357 = vmatprep.mubr.f32.mxu0 0.0
      %2358 = vmatmul.mubr.f32.gmra.mrb[0].mxu0 %v2108
      %v2359 = vpop.f32.mrb[0].mxu0
      %v2360 = vadd.f32 0.0, %v2359
      %v2361 = vpop.f32.mrb[0].mxu0
      %2362 = vmatprep.mubr.f32.mxu0 0.0
      %2363 = vmatmul.mubr.f32.gmra.mrb[0].mxu0 %v2111
      %v2364 = vpop.f32.mrb[0].mxu0
      %v2365 = vadd.f32 0.0, %v2364
      %v2366 = vpop.f32.mrb[0].mxu0
      %2367 = vmatprep.mubr.f32.mxu0 0.0
      %2368 = vmatmul.mubr.f32.gmra.mrb[0].mxu0 %v2114
      %v2369 = vpop.f32.mrb[0].mxu0
      %v2370 = vadd.f32 0.0, %v2369
      %v2371 = vpop.f32.mrb[0].mxu0
      %2372 = vmatprep.mubr.f32.mxu0 0.0
      %2373 = vmatmul.mubr.f32.gmra.mrb[0].mxu0 %v2117
      %v2374 = vpop.f32.mrb[0].mxu0
      %v2375 = vadd.f32 0.0, %v2374
      %v2376 = vpop.f32.mrb[0].mxu0
      %2377 = vmatprep.mubr.f32.mxu0 0.0
      %2378 = vmatmul.mubr.f32.gmra.mrb[0].mxu0 %v2120
      %v2379 = vpop.f32.mrb[0].mxu0
      %v2380 = vadd.f32 0.0, %v2379
      %v2381 = vpop.f32.mrb[0].mxu0
      %2382 = vmatprep.mubr.f32.mxu0 0.0
      %2383 = vmatmul.mubr.f32.gmra.mrb[0].mxu0 %v2123
      %v2384 = vpop.f32.mrb[0].mxu0
      %v2385 = vadd.f32 0.0, %v2384
      %v2386 = vpop.f32.mrb[0].mxu0
      %2387 = vmatprep.mubr.f32.mxu0 0.0
      %2388 = vmatmul.mubr.f32.gmra.mrb[0].mxu0 %v2126
      %v2389 = vpop.f32.mrb[0].mxu0
      %v2390 = vadd.f32 0.0, %v2389
      %v2391 = vpop.f32.mrb[0].mxu0
      %2392 = vmatprep.mubr.f32.mxu0 0.0
      %2393 = vmatmul.mubr.f32.gmra.mrb[0].mxu0 %v2129
      %v2394 = vpop.f32.mrb[0].mxu0
      %v2395 = vadd.f32 0.0, %v2394
      %v2396 = vpop.f32.mrb[0].mxu0
      %2397 = vmatprep.mubr.f32.mxu0 0.0
      %2398 = vmatmul.mubr.f32.gmra.mrb[0].mxu0 %v2132
      %v2399 = vpop.f32.mrb[0].mxu0
      %v2400 = vadd.f32 0.0, %v2399
      %v2401 = vpop.f32.mrb[0].mxu0
      %2402 = vmatprep.mubr.f32.mxu0 0.0
      %2403 = vmatmul.mubr.f32.gmra.mrb[0].mxu0 %v2135
      %v2404 = vpop.f32.mrb[0].mxu0
      %v2405 = vadd.f32 0.0, %v2404
      %v2406 = vpop.f32.mrb[0].mxu0
      %2407 = vmatprep.mubr.f32.mxu0 0.0
      %2408 = vmatmul.mubr.f32.gmra.mrb[0].mxu0 %v2138
      %v2409 = vpop.f32.mrb[0].mxu0
      %v2410 = vadd.f32 0.0, %v2409
      %v2411 = vpop.f32.mrb[0].mxu0
      %2412 = vmatprep.mubr.f32.mxu0 0.0
      %2413 = vmatmul.mubr.f32.gmra.mrb[0].mxu0 %v2141
      %v2414 = vpop.f32.mrb[0].mxu0
      %v2415 = vadd.f32 0.0, %v2414
      %v2416 = vpop.f32.mrb[0].mxu0
      %2417 = vmatprep.mubr.f32.mxu0 0.0
      %2418 = vmatmul.mubr.f32.gmra.mrb[0].mxu0 %v2144
      %v2419 = vpop.f32.mrb[0].mxu0
      %v2420 = vadd.f32 0.0, %v2419
      %v2421 = vpop.f32.mrb[0].mxu0
      %2422 = vmatprep.mubr.f32.mxu0 0.0
      %2423 = vmatmul.mubr.f32.gmra.mrb[0].mxu0 %v2147
      %v2424 = vpop.f32.mrb[0].mxu0
      %v2425 = vadd.f32 0.0, %v2424
      %v2426 = vpop.f32.mrb[0].mxu0
      %2427 = vmatprep.mubr.f32.mxu0 0.0
      %2428 = vmatmul.mubr.f32.gmra.mrb[0].mxu0 %v2150
      %v2429 = vpop.f32.mrb[0].mxu0
      %v2430 = vadd.f32 0.0, %v2429
      %v2431 = vpop.f32.mrb[0].mxu0
      %2432 = vmatprep.mubr.f32.mxu0 0.0
      %2433 = vmatmul.mubr.f32.gmra.mrb[0].mxu0 %v2153
      %v2434 = vpop.f32.mrb[0].mxu0
      %v2435 = vadd.f32 0.0, %v2434
      %v2436 = vpop.f32.mrb[0].mxu0
      %2437 = vmatprep.mubr.f32.mxu0 0.0
      %2438 = vmatmul.mubr.f32.gmra.mrb[0].mxu0 %v2156
      %v2439 = vpop.f32.mrb[0].mxu0
      %v2440 = vadd.f32 0.0, %v2439
      %v2441 = vpop.f32.mrb[0].mxu0
      %2442 = vmatprep.mubr.f32.mxu0 0.0
      %2443 = vmatmul.mubr.f32.gmra.mrb[0].mxu0 %v2159
      %v2444 = vpop.f32.mrb[0].mxu0
      %v2445 = vadd.f32 0.0, %v2444
      %v2446 = vpop.f32.mrb[0].mxu0
      %2447 = vmatprep.mubr.f32.mxu0 0.0
      %2448 = vmatmul.mubr.f32.gmra.mrb[0].mxu0 %v2162
      %v2449 = vpop.f32.mrb[0].mxu0
      %v2450 = vadd.f32 0.0, %v2449
      %v2451 = vpop.f32.mrb[0].mxu0
      %2452 = vmatprep.mubr.f32.mxu0 0.0
      %2453 = vmatmul.mubr.f32.gmra.mrb[0].mxu0 %v2165
      %v2454 = vpop.f32.mrb[0].mxu0
      %v2455 = vadd.f32 0.0, %v2454
      %v2456 = vpop.f32.mrb[0].mxu0
      %2457 = vmatprep.mubr.f32.mxu0 0.0
      %2458 = vmatmul.mubr.f32.gmra.mrb[0].mxu0 %v2168
      %v2459 = vpop.f32.mrb[0].mxu0
      %v2460 = vadd.f32 0.0, %v2459
      %v2461 = vpop.f32.mrb[0].mxu0
      %2462 = vmatprep.mubr.f32.mxu0 0.0
      %2463 = vmatmul.mubr.f32.gmra.mrb[0].mxu0 %v2171
      %v2464 = vpop.f32.mrb[0].mxu0
      %v2465 = vadd.f32 0.0, %v2464
      %v2466 = vpop.f32.mrb[0].mxu0
      %2467 = vmatprep.mubr.f32.mxu0 0.0
      %2468 = vmatmul.mubr.f32.gmra.mrb[0].mxu0 %v2174
      %v2469 = vpop.f32.mrb[0].mxu0
      %v2470 = vadd.f32 0.0, %v2469
      %v2471 = vpop.f32.mrb[0].mxu0
      %2472 = vmatprep.mubr.f32.mxu0 0.0
      %2473 = vmatmul.mubr.f32.gmra.mrb[0].mxu0 %v2177
      %v2474 = vpop.f32.mrb[0].mxu0
      %v2475 = vadd.f32 0.0, %v2474
      %v2476 = vpop.f32.mrb[0].mxu0
      %2477 = vmatprep.mubr.f32.mxu0 0.0
      %2478 = vmatmul.mubr.f32.gmra.mrb[0].mxu0 %v2180
      %v2479 = vpop.f32.mrb[0].mxu0
      %v2480 = vadd.f32 0.0, %v2479
      %v2481 = vpop.f32.mrb[0].mxu0
      %2482 = vmatprep.mubr.f32.mxu0 0.0
      %2483 = vmatmul.mubr.f32.gmra.mrb[0].mxu0 %v2183
      %v2484 = vpop.f32.mrb[0].mxu0
      %v2485 = vadd.f32 0.0, %v2484
      %v2486 = vpop.f32.mrb[0].mxu0
      %2487 = vmatprep.mubr.f32.mxu0 0.0
      %2488 = vmatmul.mubr.f32.gmra.mrb[0].mxu0 %v2186
      %v2489 = vpop.f32.mrb[0].mxu0
      %v2490 = vadd.f32 0.0, %v2489
      %v2491 = vpop.f32.mrb[0].mxu0
      %2492 = vmatprep.mubr.f32.mxu0 0.0
      %2493 = vmatmul.mubr.f32.gmra.mrb[0].mxu0 %v2189
      %v2494 = vpop.f32.mrb[0].mxu0
      %v2495 = vadd.f32 0.0, %v2494
      %v2496 = vpop.f32.mrb[0].mxu0
      %2497 = vmatprep.mubr.f32.mxu0 0.0
      %2498 = vmatmul.mubr.f32.gmra.mrb[0].mxu0 %v2192
      %v2499 = vpop.f32.mrb[0].mxu0
      %v2500 = vadd.f32 0.0, %v2499
      %v2501 = vpop.f32.mrb[0].mxu0
      %2502 = vmatprep.mubr.f32.mxu0 0.0
      %2503 = vmatmul.mubr.f32.gmra.mrb[0].mxu0 %v2195
      %v2504 = vpop.f32.mrb[0].mxu0
      %v2505 = vadd.f32 0.0, %v2504
      %v2506 = vpop.f32.mrb[0].mxu0
      %2507 = vmatprep.mubr.f32.mxu0 0.0
      %2508 = vmatmul.mubr.f32.gmra.mrb[0].mxu0 %v2198
      %v2509 = vpop.f32.mrb[0].mxu0
      %v2510 = vadd.f32 0.0, %v2509
      %v2511 = vpop.f32.mrb[0].mxu0
      %2512 = vmatprep.mubr.f32.mxu0 0.0
      %2513 = vmatmul.mubr.f32.gmra.mrb[0].mxu0 %v2201
      %v2514 = vpop.f32.mrb[0].mxu0
      %v2515 = vadd.f32 0.0, %v2514
      %v2516 = vpop.f32.mrb[0].mxu0
      %2517 = vmatprep.mubr.f32.mxu0 0.0
      %2518 = vmatmul.mubr.f32.gmra.mrb[0].mxu0 %v2204
      %v2519 = vpop.f32.mrb[0].mxu0
      %v2520 = vadd.f32 0.0, %v2519
      %v2521 = vpop.f32.mrb[0].mxu0
      %2522 = vmatprep.mubr.f32.mxu0 0.0
      %2523 = vmatmul.mubr.f32.gmra.mrb[0].mxu0 %v2207
      %v2524 = vpop.f32.mrb[0].mxu0
      %v2525 = vadd.f32 0.0, %v2524
      %v2526 = vpop.f32.mrb[0].mxu0
      %2527 = vmatprep.mubr.f32.mxu0 0.0
      %2528 = vmatmul.mubr.f32.gmra.mrb[0].mxu0 %v2210
      %v2529 = vpop.f32.mrb[0].mxu0
      %v2530 = vadd.f32 0.0, %v2529
      %v2531 = vpop.f32.mrb[0].mxu0
      %2532 = vmatprep.mubr.f32.mxu0 0.0
      %2533 = vmatmul.mubr.f32.gmra.mrb[0].mxu0 %v2213
      %v2534 = vpop.f32.mrb[0].mxu0
      %v2535 = vadd.f32 0.0, %v2534
      %v2536 = vpop.f32.mrb[0].mxu0
      %2537 = vmatprep.mubr.f32.mxu0 0.0
      %2538 = vmatmul.mubr.f32.gmra.mrb[0].mxu0 %v2216
      %v2539 = vpop.f32.mrb[0].mxu0
      %v2540 = vadd.f32 0.0, %v2539
      %v2541 = vpop.f32.mrb[0].mxu0
      %2542 = vmatprep.mubr.f32.mxu0 0.0
      %2543 = vmatmul.mubr.f32.gmra.mrb[0].mxu0 %v2219
      %v2544 = vpop.f32.mrb[0].mxu0
      %v2545 = vadd.f32 0.0, %v2544
      %v2546 = vpop.f32.mrb[0].mxu0
      %2547 = vmatprep.mubr.f32.mxu0 0.0
      %2548 = vmatmul.mubr.f32.gmra.mrb[0].mxu0 %v2222
      %v2549 = vpop.f32.mrb[0].mxu0
      %v2550 = vadd.f32 0.0, %v2549
      %v2551 = vpop.f32.mrb[0].mxu0
      %2552 = vmatprep.mubr.f32.mxu0 0.0
      %2553 = vmatmul.mubr.f32.gmra.mrb[0].mxu0 %v2225
      %v2554 = vpop.f32.mrb[0].mxu0
      %v2555 = vadd.f32 0.0, %v2554
      %v2556 = vpop.f32.mrb[0].mxu0
      %2557 = vmatprep.mubr.f32.mxu0 0.0
      %2558 = vmatmul.mubr.f32.gmra.mrb[0].mxu0 %v2228
      %v2559 = vpop.f32.mrb[0].mxu0
      %v2560 = vadd.f32 0.0, %v2559
      %v2561 = vpop.f32.mrb[0].mxu0
      %2562 = vmatprep.mubr.f32.mxu0 0.0
      %2563 = vmatmul.mubr.f32.gmra.mrb[0].mxu0 %v2231
      %v2564 = vpop.f32.mrb[0].mxu0
      %v2565 = vadd.f32 0.0, %v2564
      %v2566 = vpop.f32.mrb[0].mxu0
      %2567 = vmatprep.mubr.f32.mxu0 0.0
      %2568 = vmatmul.mubr.f32.gmra.mrb[0].mxu0 %v2234
      %v2569 = vpop.f32.mrb[0].mxu0
      %v2570 = vadd.f32 0.0, %v2569
      %v2571 = vpop.f32.mrb[0].mxu0
      %2572 = vmatprep.mubr.f32.mxu0 0.0
      %2573 = vmatmul.mubr.f32.gmra.mrb[0].mxu0 %v2237
      %v2574 = vpop.f32.mrb[0].mxu0
      %v2575 = vadd.f32 0.0, %v2574
      %v2576 = vpop.f32.mrb[0].mxu0
      %2577 = vmatprep.mubr.f32.mxu0 0.0
      %2578 = vmatmul.mubr.f32.gmra.mrb[0].mxu0 %v2240
      %v2579 = vpop.f32.mrb[0].mxu0
      %v2580 = vadd.f32 0.0, %v2579
      %v2581 = vpop.f32.mrb[0].mxu0
      %2582 = vmatprep.mubr.f32.mxu0 0.0
      %2583 = vmatmul.mubr.f32.gmra.mrb[0].mxu0 %v2243
      %v2584 = vpop.f32.mrb[0].mxu0
      %v2585 = vadd.f32 0.0, %v2584
      %v2586 = vpop.f32.mrb[0].mxu0
      %2587 = vmatprep.mubr.f32.mxu0 0.0
      %2588 = vmatmul.mubr.f32.gmra.mrb[0].mxu0 %v2246
      %v2589 = vpop.f32.mrb[0].mxu0
      %v2590 = vadd.f32 0.0, %v2589
      %v2591 = vpop.f32.mrb[0].mxu0
      %2592 = vdwg.mxu0
      %v2593 = vmax.f32 %v608, %v1177
      %v2594 = vmax.f32 %v613, %v1182
      %v2595 = vmax.f32 %v618, %v1187
      %v2596 = vmax.f32 %v623, %v1192
      %v2597 = vmax.f32 %v628, %v1197
      %v2598 = vmax.f32 %v633, %v1202
      %v2599 = vmax.f32 %v638, %v1207
      %v2600 = vmax.f32 %v643, %v1212
      %v2601 = vmax.f32 %v648, %v1217
      %v2602 = vmax.f32 %v653, %v1222
      %v2603 = vmax.f32 %v658, %v1227
      %v2604 = vmax.f32 %v663, %v1232
      %v2605 = vmax.f32 %v668, %v1237
      %v2606 = vmax.f32 %v673, %v1242
      %v2607 = vmax.f32 %v678, %v1247
      %v2608 = vmax.f32 %v683, %v1252
      %v2609 = vmax.f32 %v688, %v1257
      %v2610 = vmax.f32 %v693, %v1262
      %v2611 = vmax.f32 %v698, %v1267
      %v2612 = vmax.f32 %v703, %v1272
      %v2613 = vmax.f32 %v708, %v1277
      %v2614 = vmax.f32 %v713, %v1282
      %v2615 = vmax.f32 %v718, %v1287
      %v2616 = vmax.f32 %v723, %v1292
      %v2617 = vmax.f32 %v728, %v1297
      %v2618 = vmax.f32 %v733, %v1302
      %v2619 = vmax.f32 %v738, %v1307
      %v2620 = vmax.f32 %v743, %v1312
      %v2621 = vmax.f32 %v748, %v1317
      %v2622 = vmax.f32 %v753, %v1322
      %v2623 = vmax.f32 %v758, %v1327
      %v2624 = vmax.f32 %v763, %v1332
      %v2625 = vmax.f32 %v768, %v1337
      %v2626 = vmax.f32 %v773, %v1342
      %v2627 = vmax.f32 %v778, %v1347
      %v2628 = vmax.f32 %v783, %v1352
      %v2629 = vmax.f32 %v788, %v1357
      %v2630 = vmax.f32 %v793, %v1362
      %v2631 = vmax.f32 %v798, %v1367
      %v2632 = vmax.f32 %v803, %v1372
      %v2633 = vmax.f32 %v808, %v1377
      %v2634 = vmax.f32 %v813, %v1382
      %v2635 = vmax.f32 %v818, %v1387
      %v2636 = vmax.f32 %v823, %v1392
      %v2637 = vmax.f32 %v828, %v1397
      %v2638 = vmax.f32 %v833, %v1402
      %v2639 = vmax.f32 %v838, %v1407
      %v2640 = vmax.f32 %v843, %v1412
      %v2641 = vmax.f32 %v848, %v1417
      %v2642 = vmax.f32 %v853, %v1422
      %v2643 = vmax.f32 %v858, %v1427
      %v2644 = vmax.f32 %v863, %v1432
      %v2645 = vmax.f32 %v868, %v1437
      %v2646 = vmax.f32 %v873, %v1442
      %v2647 = vmax.f32 %v878, %v1447
      %v2648 = vmax.f32 %v883, %v1452
      %v2649 = vmax.f32 %v1746, %v2315
      %v2650 = vmax.f32 %v1751, %v2320
      %v2651 = vmax.f32 %v1756, %v2325
      %v2652 = vmax.f32 %v1761, %v2330
      %v2653 = vmax.f32 %v1766, %v2335
      %v2654 = vmax.f32 %v1771, %v2340
      %v2655 = vmax.f32 %v1776, %v2345
      %v2656 = vmax.f32 %v1781, %v2350
      %v2657 = vmax.f32 %v1786, %v2355
      %v2658 = vmax.f32 %v1791, %v2360
      %v2659 = vmax.f32 %v1796, %v2365
      %v2660 = vmax.f32 %v1801, %v2370
      %v2661 = vmax.f32 %v1806, %v2375
      %v2662 = vmax.f32 %v1811, %v2380
      %v2663 = vmax.f32 %v1816, %v2385
      %v2664 = vmax.f32 %v1821, %v2390
      %v2665 = vmax.f32 %v1826, %v2395
      %v2666 = vmax.f32 %v1831, %v2400
      %v2667 = vmax.f32 %v1836, %v2405
      %v2668 = vmax.f32 %v1841, %v2410
      %v2669 = vmax.f32 %v1846, %v2415
      %v2670 = vmax.f32 %v1851, %v2420
      %v2671 = vmax.f32 %v1856, %v2425
      %v2672 = vmax.f32 %v1861, %v2430
      %v2673 = vmax.f32 %v1866, %v2435
      %v2674 = vmax.f32 %v1871, %v2440
      %v2675 = vmax.f32 %v1876, %v2445
      %v2676 = vmax.f32 %v1881, %v2450
      %v2677 = vmax.f32 %v1886, %v2455
      %v2678 = vmax.f32 %v1891, %v2460
      %v2679 = vmax.f32 %v1896, %v2465
      %v2680 = vmax.f32 %v1901, %v2470
      %v2681 = vmax.f32 %v1906, %v2475
      %v2682 = vmax.f32 %v1911, %v2480
      %v2683 = vmax.f32 %v1916, %v2485
      %v2684 = vmax.f32 %v1921, %v2490
      %v2685 = vmax.f32 %v1926, %v2495
      %v2686 = vmax.f32 %v1931, %v2500
      %v2687 = vmax.f32 %v1936, %v2505
      %v2688 = vmax.f32 %v1941, %v2510
      %v2689 = vmax.f32 %v1946, %v2515
      %v2690 = vmax.f32 %v1951, %v2520
      %v2691 = vmax.f32 %v1956, %v2525
      %v2692 = vmax.f32 %v1961, %v2530
      %v2693 = vmax.f32 %v1966, %v2535
      %v2694 = vmax.f32 %v1971, %v2540
      %v2695 = vmax.f32 %v1976, %v2545
      %v2696 = vmax.f32 %v1981, %v2550
      %v2697 = vmax.f32 %v1986, %v2555
      %v2698 = vmax.f32 %v1991, %v2560
      %v2699 = vmax.f32 %v1996, %v2565
      %v2700 = vmax.f32 %v2001, %v2570
      %v2701 = vmax.f32 %v2006, %v2575
      %v2702 = vmax.f32 %v2011, %v2580
      %v2703 = vmax.f32 %v2016, %v2585
      %v2704 = vmax.f32 %v2021, %v2590
      %v2705 = vmax.f32 %v2593, %v2649
      %v2706 = vmax.f32 %v2594, %v2650
      %v2707 = vmax.f32 %v2595, %v2651
      %v2708 = vmax.f32 %v2596, %v2652
      %v2709 = vmax.f32 %v2597, %v2653
      %v2710 = vmax.f32 %v2598, %v2654
      %v2711 = vmax.f32 %v2599, %v2655
      %v2712 = vmax.f32 %v2600, %v2656
      %v2713 = vmax.f32 %v2601, %v2657
      %v2714 = vmax.f32 %v2602, %v2658
      %v2715 = vmax.f32 %v2603, %v2659
      %v2716 = vmax.f32 %v2604, %v2660
      %v2717 = vmax.f32 %v2605, %v2661
      %v2718 = vmax.f32 %v2606, %v2662
      %v2719 = vmax.f32 %v2607, %v2663
      %v2720 = vmax.f32 %v2608, %v2664
      %v2721 = vmax.f32 %v2609, %v2665
      %v2722 = vmax.f32 %v2610, %v2666
      %v2723 = vmax.f32 %v2611, %v2667
      %v2724 = vmax.f32 %v2612, %v2668
      %v2725 = vmax.f32 %v2613, %v2669
      %v2726 = vmax.f32 %v2614, %v2670
      %v2727 = vmax.f32 %v2615, %v2671
      %v2728 = vmax.f32 %v2616, %v2672
      %v2729 = vmax.f32 %v2617, %v2673
      %v2730 = vmax.f32 %v2618, %v2674
      %v2731 = vmax.f32 %v2619, %v2675
      %v2732 = vmax.f32 %v2620, %v2676
      %v2733 = vmax.f32 %v2621, %v2677
      %v2734 = vmax.f32 %v2622, %v2678
      %v2735 = vmax.f32 %v2623, %v2679
      %v2736 = vmax.f32 %v2624, %v2680
      %v2737 = vmax.f32 %v2625, %v2681
      %v2738 = vmax.f32 %v2626, %v2682
      %v2739 = vmax.f32 %v2627, %v2683
      %v2740 = vmax.f32 %v2628, %v2684
      %v2741 = vmax.f32 %v2629, %v2685
      %v2742 = vmax.f32 %v2630, %v2686
      %v2743 = vmax.f32 %v2631, %v2687
      %v2744 = vmax.f32 %v2632, %v2688
      %v2745 = vmax.f32 %v2633, %v2689
      %v2746 = vmax.f32 %v2634, %v2690
      %v2747 = vmax.f32 %v2635, %v2691
      %v2748 = vmax.f32 %v2636, %v2692
      %v2749 = vmax.f32 %v2637, %v2693
      %v2750 = vmax.f32 %v2638, %v2694
      %v2751 = vmax.f32 %v2639, %v2695
      %v2752 = vmax.f32 %v2640, %v2696
      %v2753 = vmax.f32 %v2641, %v2697
      %v2754 = vmax.f32 %v2642, %v2698
      %v2755 = vmax.f32 %v2643, %v2699
      %v2756 = vmax.f32 %v2644, %v2700
      %v2757 = vmax.f32 %v2645, %v2701
      %v2758 = vmax.f32 %v2646, %v2702
      %v2759 = vmax.f32 %v2647, %v2703
      %v2760 = vmax.f32 %v2648, %v2704
      %v2761 = vld [vmem:[%s5] sm:$0x1]
      %v2763 = vlaneseq
      %v2764 = vshrl.u32 %v2763, 7
      %v2765 = vsub.s32 0, %v2764
      %v2766 = vrot.slane %v2761, %v2765
      %v2768 = vadd.f32 %v2705, %v2766
      %v2769 = vadd.f32 %v2706, %v2766
      %v2770 = vadd.f32 %v2707, %v2766
      %v2771 = vadd.f32 %v2708, %v2766
      %v2772 = vadd.f32 %v2709, %v2766
      %v2773 = vadd.f32 %v2710, %v2766
      %v2774 = vadd.f32 %v2711, %v2766
      %v2775 = vadd.f32 %v2712, %v2766
      %v2776 = vadd.f32 %v2713, %v2766
      %v2777 = vadd.f32 %v2714, %v2766
      %v2778 = vadd.f32 %v2715, %v2766
      %v2779 = vadd.f32 %v2716, %v2766
      %v2780 = vadd.f32 %v2717, %v2766
      %v2781 = vadd.f32 %v2718, %v2766
      %v2782 = vadd.f32 %v2719, %v2766
      %v2783 = vadd.f32 %v2720, %v2766
      %v2784 = vadd.f32 %v2721, %v2766
      %v2785 = vadd.f32 %v2722, %v2766
      %v2786 = vadd.f32 %v2723, %v2766
      %v2787 = vadd.f32 %v2724, %v2766
      %v2788 = vadd.f32 %v2725, %v2766
      %v2789 = vadd.f32 %v2726, %v2766
      %v2790 = vadd.f32 %v2727, %v2766
      %v2791 = vadd.f32 %v2728, %v2766
      %v2792 = vadd.f32 %v2729, %v2766
      %v2793 = vadd.f32 %v2730, %v2766
      %v2794 = vadd.f32 %v2731, %v2766
      %v2795 = vadd.f32 %v2732, %v2766
      %v2796 = vadd.f32 %v2733, %v2766
      %v2797 = vadd.f32 %v2734, %v2766
      %v2798 = vadd.f32 %v2735, %v2766
      %v2799 = vadd.f32 %v2736, %v2766
      %v2800 = vadd.f32 %v2737, %v2766
      %v2801 = vadd.f32 %v2738, %v2766
      %v2802 = vadd.f32 %v2739, %v2766
      %v2803 = vadd.f32 %v2740, %v2766
      %v2804 = vadd.f32 %v2741, %v2766
      %v2805 = vadd.f32 %v2742, %v2766
      %v2806 = vadd.f32 %v2743, %v2766
      %v2807 = vadd.f32 %v2744, %v2766
      %v2808 = vadd.f32 %v2745, %v2766
      %v2809 = vadd.f32 %v2746, %v2766
      %v2810 = vadd.f32 %v2747, %v2766
      %v2811 = vadd.f32 %v2748, %v2766
      %v2812 = vadd.f32 %v2749, %v2766
      %v2813 = vadd.f32 %v2750, %v2766
      %v2814 = vadd.f32 %v2751, %v2766
      %v2815 = vadd.f32 %v2752, %v2766
      %v2816 = vadd.f32 %v2753, %v2766
      %v2817 = vadd.f32 %v2754, %v2766
      %v2818 = vadd.f32 %v2755, %v2766
      %v2819 = vadd.f32 %v2756, %v2766
      %v2820 = vadd.f32 %v2757, %v2766
      %v2821 = vadd.f32 %v2758, %v2766
      %v2822 = vadd.f32 %v2759, %v2766
      %v2823 = vadd.f32 %v2760, %v2766
      %v2824 = vmax.f32 %v2768, 0.0
      %v2825 = vmax.f32 %v2769, 0.0
      %v2826 = vmax.f32 %v2770, 0.0
      %v2827 = vmax.f32 %v2771, 0.0
      %v2828 = vmax.f32 %v2772, 0.0
      %v2829 = vmax.f32 %v2773, 0.0
      %v2830 = vmax.f32 %v2774, 0.0
      %v2831 = vmax.f32 %v2775, 0.0
      %v2832 = vmax.f32 %v2776, 0.0
      %v2833 = vmax.f32 %v2777, 0.0
      %v2834 = vmax.f32 %v2778, 0.0
      %v2835 = vmax.f32 %v2779, 0.0
      %v2836 = vmax.f32 %v2780, 0.0
      %v2837 = vmax.f32 %v2781, 0.0
      %v2838 = vmax.f32 %v2782, 0.0
      %v2839 = vmax.f32 %v2783, 0.0
      %v2840 = vmax.f32 %v2784, 0.0
      %v2841 = vmax.f32 %v2785, 0.0
      %v2842 = vmax.f32 %v2786, 0.0
      %v2843 = vmax.f32 %v2787, 0.0
      %v2844 = vmax.f32 %v2788, 0.0
      %v2845 = vmax.f32 %v2789, 0.0
      %v2846 = vmax.f32 %v2790, 0.0
      %v2847 = vmax.f32 %v2791, 0.0
      %v2848 = vmax.f32 %v2792, 0.0
      %v2849 = vmax.f32 %v2793, 0.0
      %v2850 = vmax.f32 %v2794, 0.0
      %v2851 = vmax.f32 %v2795, 0.0
      %v2852 = vmax.f32 %v2796, 0.0
      %v2853 = vmax.f32 %v2797, 0.0
      %v2854 = vmax.f32 %v2798, 0.0
      %v2855 = vmax.f32 %v2799, 0.0
      %v2856 = vmax.f32 %v2800, 0.0
      %v2857 = vmax.f32 %v2801, 0.0
      %v2858 = vmax.f32 %v2802, 0.0
      %v2859 = vmax.f32 %v2803, 0.0
      %v2860 = vmax.f32 %v2804, 0.0
      %v2861 = vmax.f32 %v2805, 0.0
      %v2862 = vmax.f32 %v2806, 0.0
      %v2863 = vmax.f32 %v2807, 0.0
      %v2864 = vmax.f32 %v2808, 0.0
      %v2865 = vmax.f32 %v2809, 0.0
      %v2866 = vmax.f32 %v2810, 0.0
      %v2867 = vmax.f32 %v2811, 0.0
      %v2868 = vmax.f32 %v2812, 0.0
      %v2869 = vmax.f32 %v2813, 0.0
      %v2870 = vmax.f32 %v2814, 0.0
      %v2871 = vmax.f32 %v2815, 0.0
      %v2872 = vmax.f32 %v2816, 0.0
      %v2873 = vmax.f32 %v2817, 0.0
      %v2874 = vmax.f32 %v2818, 0.0
      %v2875 = vmax.f32 %v2819, 0.0
      %v2876 = vmax.f32 %v2820, 0.0
      %v2877 = vmax.f32 %v2821, 0.0
      %v2878 = vmax.f32 %v2822, 0.0
      %v2879 = vmax.f32 %v2823, 0.0
      %v2880 = vpack.c.bf16 %v2825, %v2824
      %v2881 = vpack.c.bf16 %v2827, %v2826
      %v2882 = vpack.c.bf16 %v2829, %v2828
      %v2883 = vpack.c.bf16 %v2831, %v2830
      %v2884 = vpack.c.bf16 %v2833, %v2832
      %v2885 = vpack.c.bf16 %v2835, %v2834
      %v2886 = vpack.c.bf16 %v2837, %v2836
      %v2887 = vpack.c.bf16 %v2839, %v2838
      %v2888 = vpack.c.bf16 %v2841, %v2840
      %v2889 = vpack.c.bf16 %v2843, %v2842
      %v2890 = vpack.c.bf16 %v2845, %v2844
      %v2891 = vpack.c.bf16 %v2847, %v2846
      %v2892 = vpack.c.bf16 %v2849, %v2848
      %v2893 = vpack.c.bf16 %v2851, %v2850
      %v2894 = vpack.c.bf16 %v2853, %v2852
      %v2895 = vpack.c.bf16 %v2855, %v2854
      %v2896 = vpack.c.bf16 %v2857, %v2856
      %v2897 = vpack.c.bf16 %v2859, %v2858
      %v2898 = vpack.c.bf16 %v2861, %v2860
      %v2899 = vpack.c.bf16 %v2863, %v2862
      %v2900 = vpack.c.bf16 %v2865, %v2864
      %v2901 = vpack.c.bf16 %v2867, %v2866
      %v2902 = vpack.c.bf16 %v2869, %v2868
      %v2903 = vpack.c.bf16 %v2871, %v2870
      %v2904 = vpack.c.bf16 %v2873, %v2872
      %v2905 = vpack.c.bf16 %v2875, %v2874
      %v2906 = vpack.c.bf16 %v2877, %v2876
      %v2907 = vpack.c.bf16 %v2879, %v2878
      %v2936 = vunpack.c.l.b16 %v2880
      %v2937 = vunpack.c.h.b16 %v2880
      %v2938 = vunpack.c.l.b16 %v2881
      %v2939 = vunpack.c.h.b16 %v2881
      %v2940 = vunpack.c.l.b16 %v2882
      %v2941 = vunpack.c.h.b16 %v2882
      %v2942 = vunpack.c.l.b16 %v2883
      %v2943 = vunpack.c.h.b16 %v2883
      %v2944 = vunpack.c.l.b16 %v2884
      %v2945 = vunpack.c.h.b16 %v2884
      %v2946 = vunpack.c.l.b16 %v2885
      %v2947 = vunpack.c.h.b16 %v2885
      %v2948 = vunpack.c.l.b16 %v2886
      %v2949 = vunpack.c.h.b16 %v2886
      %v2950 = vunpack.c.l.b16 %v2887
      %v2951 = vunpack.c.h.b16 %v2887
      %v2952 = vunpack.c.l.b16 %v2888
      %v2953 = vunpack.c.h.b16 %v2888
      %v2954 = vunpack.c.l.b16 %v2889
      %v2955 = vunpack.c.h.b16 %v2889
      %v2956 = vunpack.c.l.b16 %v2890
      %v2957 = vunpack.c.h.b16 %v2890
      %v2958 = vunpack.c.l.b16 %v2891
      %v2959 = vunpack.c.h.b16 %v2891
      %v2960 = vunpack.c.l.b16 %v2892
      %v2961 = vunpack.c.h.b16 %v2892
      %v2962 = vunpack.c.l.b16 %v2893
      %v2963 = vunpack.c.h.b16 %v2893
      %v2964 = vunpack.c.l.b16 %v2894
      %v2965 = vunpack.c.h.b16 %v2894
      %v2966 = vunpack.c.l.b16 %v2895
      %v2967 = vunpack.c.h.b16 %v2895
      %v2968 = vunpack.c.l.b16 %v2896
      %v2969 = vunpack.c.h.b16 %v2896
      %v2970 = vunpack.c.l.b16 %v2897
      %v2971 = vunpack.c.h.b16 %v2897
      %v2972 = vunpack.c.l.b16 %v2898
      %v2973 = vunpack.c.h.b16 %v2898
      %v2974 = vunpack.c.l.b16 %v2899
      %v2975 = vunpack.c.h.b16 %v2899
      %v2976 = vunpack.c.l.b16 %v2900
      %v2977 = vunpack.c.h.b16 %v2900
      %v2978 = vunpack.c.l.b16 %v2901
      %v2979 = vunpack.c.h.b16 %v2901
      %v2980 = vunpack.c.l.b16 %v2902
      %v2981 = vunpack.c.h.b16 %v2902
      %v2982 = vunpack.c.l.b16 %v2903
      %v2983 = vunpack.c.h.b16 %v2903
      %v2984 = vunpack.c.l.b16 %v2904
      %v2985 = vunpack.c.h.b16 %v2904
      %v2986 = vunpack.c.l.b16 %v2905
      %v2987 = vunpack.c.h.b16 %v2905
      %v2988 = vunpack.c.l.b16 %v2906
      %v2989 = vunpack.c.h.b16 %v2906
      %v2990 = vunpack.c.l.b16 %v2907
      %v2991 = vunpack.c.h.b16 %v2907
      %v2992 = vpack.c.b16 %v2936, %v2936
      %v2993 = vpack.c.b16 %v2937, %v2937
      %v2994 = vpack.c.b16 %v2938, %v2938
      %v2995 = vpack.c.b16 %v2939, %v2939
      %v2996 = vpack.c.b16 %v2940, %v2940
      %v2997 = vpack.c.b16 %v2941, %v2941
      %v2998 = vpack.c.b16 %v2942, %v2942
      %v2999 = vpack.c.b16 %v2943, %v2943
      %v3000 = vpack.c.b16 %v2944, %v2944
      %v3001 = vpack.c.b16 %v2945, %v2945
      %v3002 = vpack.c.b16 %v2946, %v2946
      %v3003 = vpack.c.b16 %v2947, %v2947
      %v3004 = vpack.c.b16 %v2948, %v2948
      %v3005 = vpack.c.b16 %v2949, %v2949
      %v3006 = vpack.c.b16 %v2950, %v2950
      %v3007 = vpack.c.b16 %v2951, %v2951
      %v3008 = vpack.c.b16 %v2952, %v2952
      %v3009 = vpack.c.b16 %v2953, %v2953
      %v3010 = vpack.c.b16 %v2954, %v2954
      %v3011 = vpack.c.b16 %v2955, %v2955
      %v3012 = vpack.c.b16 %v2956, %v2956
      %v3013 = vpack.c.b16 %v2957, %v2957
      %v3014 = vpack.c.b16 %v2958, %v2958
      %v3015 = vpack.c.b16 %v2959, %v2959
      %v3016 = vpack.c.b16 %v2960, %v2960
      %v3017 = vpack.c.b16 %v2961, %v2961
      %v3018 = vpack.c.b16 %v2962, %v2962
      %v3019 = vpack.c.b16 %v2963, %v2963
      %v3020 = vpack.c.b16 %v2964, %v2964
      %v3021 = vpack.c.b16 %v2965, %v2965
      %v3022 = vpack.c.b16 %v2966, %v2966
      %v3023 = vpack.c.b16 %v2967, %v2967
      %v3024 = vpack.c.b16 %v2968, %v2968
      %v3025 = vpack.c.b16 %v2969, %v2969
      %v3026 = vpack.c.b16 %v2970, %v2970
      %v3027 = vpack.c.b16 %v2971, %v2971
      %v3028 = vpack.c.b16 %v2972, %v2972
      %v3029 = vpack.c.b16 %v2973, %v2973
      %v3030 = vpack.c.b16 %v2974, %v2974
      %v3031 = vpack.c.b16 %v2975, %v2975
      %v3032 = vpack.c.b16 %v2976, %v2976
      %v3033 = vpack.c.b16 %v2977, %v2977
      %v3034 = vpack.c.b16 %v2978, %v2978
      %v3035 = vpack.c.b16 %v2979, %v2979
      %v3036 = vpack.c.b16 %v2980, %v2980
      %v3037 = vpack.c.b16 %v2981, %v2981
      %v3038 = vpack.c.b16 %v2982, %v2982
      %v3039 = vpack.c.b16 %v2983, %v2983
      %v3040 = vpack.c.b16 %v2984, %v2984
      %v3041 = vpack.c.b16 %v2985, %v2985
      %v3042 = vpack.c.b16 %v2986, %v2986
      %v3043 = vpack.c.b16 %v2987, %v2987
      %v3044 = vpack.c.b16 %v2988, %v2988
      %v3045 = vpack.c.b16 %v2989, %v2989
      %v3046 = vpack.c.b16 %v2990, %v2990
      %v3047 = vpack.c.b16 %v2991, %v2991
      %vm3104 = vcmask 257024
      %3105 = vst.msk [vmem:[%s311] sm:$0xf] %vm3104, %v2992
      %3106 = vst.msk [vmem:[%s311 + $0x4] sm:$0xf] %vm3104, %v2993
      %3107 = vst.msk [vmem:[%s311 + $0x8] sm:$0xf] %vm3104, %v2994
      %3108 = vst.msk [vmem:[%s311 + $0xc] sm:$0xf] %vm3104, %v2995
      %3109 = vst.msk [vmem:[%s311 + $0x10] sm:$0xf] %vm3104, %v2996
      %3110 = vst.msk [vmem:[%s311 + $0x14] sm:$0xf] %vm3104, %v2997
      %3111 = vst.msk [vmem:[%s311 + $0x18] sm:$0xf] %vm3104, %v2998
      %3112 = vst.msk [vmem:[%s311 + $0x1c] sm:$0xf] %vm3104, %v2999
      %3113 = vst.msk [vmem:[%s311 + $0x20] sm:$0xf] %vm3104, %v3000
      %3114 = vst.msk [vmem:[%s311 + $0x24] sm:$0xf] %vm3104, %v3001
      %3115 = vst.msk [vmem:[%s311 + $0x28] sm:$0xf] %vm3104, %v3002
      %3116 = vst.msk [vmem:[%s311 + $0x2c] sm:$0xf] %vm3104, %v3003
      %3117 = vst.msk [vmem:[%s311 + $0x30] sm:$0xf] %vm3104, %v3004
      %3118 = vst.msk [vmem:[%s311 + $0x34] sm:$0xf] %vm3104, %v3005
      %3119 = vst.msk [vmem:[%s311 + $0x38] sm:$0xf] %vm3104, %v3006
      %3120 = vst.msk [vmem:[%s311 + $0x3c] sm:$0xf] %vm3104, %v3007
      %3121 = vst.msk [vmem:[%s311 + $0x40] sm:$0xf] %vm3104, %v3008
      %3122 = vst.msk [vmem:[%s311 + $0x44] sm:$0xf] %vm3104, %v3009
      %3123 = vst.msk [vmem:[%s311 + $0x48] sm:$0xf] %vm3104, %v3010
      %3124 = vst.msk [vmem:[%s311 + $0x4c] sm:$0xf] %vm3104, %v3011
      %3125 = vst.msk [vmem:[%s311 + $0x50] sm:$0xf] %vm3104, %v3012
      %3126 = vst.msk [vmem:[%s311 + $0x54] sm:$0xf] %vm3104, %v3013
      %3127 = vst.msk [vmem:[%s311 + $0x58] sm:$0xf] %vm3104, %v3014
      %3128 = vst.msk [vmem:[%s311 + $0x5c] sm:$0xf] %vm3104, %v3015
      %3129 = vst.msk [vmem:[%s311 + $0x60] sm:$0xf] %vm3104, %v3016
      %3130 = vst.msk [vmem:[%s311 + $0x64] sm:$0xf] %vm3104, %v3017
      %3131 = vst.msk [vmem:[%s311 + $0x68] sm:$0xf] %vm3104, %v3018
      %3132 = vst.msk [vmem:[%s311 + $0x6c] sm:$0xf] %vm3104, %v3019
      %3133 = vst.msk [vmem:[%s311 + $0x70] sm:$0xf] %vm3104, %v3020
      %3134 = vst.msk [vmem:[%s311 + $0x74] sm:$0xf] %vm3104, %v3021
      %3135 = vst.msk [vmem:[%s311 + $0x78] sm:$0xf] %vm3104, %v3022
      %3136 = vst.msk [vmem:[%s311 + $0x7c] sm:$0xf] %vm3104, %v3023
      %3137 = vst.msk [vmem:[%s311 + $0x80] sm:$0xf] %vm3104, %v3024
      %3138 = vst.msk [vmem:[%s311 + $0x84] sm:$0xf] %vm3104, %v3025
      %3139 = vst.msk [vmem:[%s311 + $0x88] sm:$0xf] %vm3104, %v3026
      %3140 = vst.msk [vmem:[%s311 + $0x8c] sm:$0xf] %vm3104, %v3027
      %3141 = vst.msk [vmem:[%s311 + $0x90] sm:$0xf] %vm3104, %v3028
      %3142 = vst.msk [vmem:[%s311 + $0x94] sm:$0xf] %vm3104, %v3029
      %3143 = vst.msk [vmem:[%s311 + $0x98] sm:$0xf] %vm3104, %v3030
      %3144 = vst.msk [vmem:[%s311 + $0x9c] sm:$0xf] %vm3104, %v3031
      %3145 = vst.msk [vmem:[%s311 + $0xa0] sm:$0xf] %vm3104, %v3032
      %3146 = vst.msk [vmem:[%s311 + $0xa4] sm:$0xf] %vm3104, %v3033
      %3147 = vst.msk [vmem:[%s311 + $0xa8] sm:$0xf] %vm3104, %v3034
      %3148 = vst.msk [vmem:[%s311 + $0xac] sm:$0xf] %vm3104, %v3035
      %3149 = vst.msk [vmem:[%s311 + $0xb0] sm:$0xf] %vm3104, %v3036
      %3150 = vst.msk [vmem:[%s311 + $0xb4] sm:$0xf] %vm3104, %v3037
      %3151 = vst.msk [vmem:[%s311 + $0xb8] sm:$0xf] %vm3104, %v3038
      %3152 = vst.msk [vmem:[%s311 + $0xbc] sm:$0xf] %vm3104, %v3039
      %3153 = vst.msk [vmem:[%s311 + $0xc0] sm:$0xf] %vm3104, %v3040
      %3154 = vst.msk [vmem:[%s311 + $0xc4] sm:$0xf] %vm3104, %v3041
      %3155 = vst.msk [vmem:[%s311 + $0xc8] sm:$0xf] %vm3104, %v3042
      %3156 = vst.msk [vmem:[%s311 + $0xcc] sm:$0xf] %vm3104, %v3043
      %3157 = vst.msk [vmem:[%s311 + $0xd0] sm:$0xf] %vm3104, %v3044
      %3158 = vst.msk [vmem:[%s311 + $0xd4] sm:$0xf] %vm3104, %v3045
      %3159 = vst.msk [vmem:[%s311 + $0xd8] sm:$0xf] %vm3104, %v3046
      %vm3160 = vcmask 253952
      %vm3161 = vsmask.f32 256
      %vm3162 = vmand %vm3160, %vm3161
      %v3163 = vld [vmem:[%s311 + $0xdc] sm:$0x1]
      %v3164 = vsel %vm3162, %v3047, %v3163
      %3165 = vst [vmem:[%s311 + $0xdc] sm:$0x1] %v3164
      %p3166 = scmp.lt.s32.totalorder %s17, 1
      %s3167 = scalar_select %p3166, %s17, 1
      %s3168 = smul.addr %s3167, 56
      %s3169 = smul.addr %s3168, 4
      %s3170 = scalar_lea.vmem %s6, %s3169
      // Predicated region
      $region45: #{example_net_forward.2} parent=43 // pred_check
        %p3171 = pneg %p181
      $region46: #{example_net_forward.2} parent=43 // pred_check_branch
        %3173 = sbr.rel (%p3171) target = $region48
      $region47: #{example_net_forward.2} parent=43 // pred_region
        _
      $region48: #{example_net_forward.2} parent=43 // pred_fallthru
        _
    $region44: #{example_net_forward.2} parent=5 // pred_fallthru
      _
    %p3174 = scmp.le.s32.totalorder 2, %s12
    // Predicated region
    $region49: #{example_net_forward.2} parent=5 // pred_check
      %p3175 = pneg %p3174
    $region50: #{example_net_forward.2} parent=5 // pred_check_branch
      %3177 = sbr.rel (%p3175) target = $region52
    $region51: #{example_net_forward.2} parent=5 // pred_region
      %s3178 = ssub.s32 %s12, 2
      // Predicated region
      $region53: #{example_net_forward.2} parent=51 // pred_check
        %p3179 = pneg %p187
      $region54: #{example_net_forward.2} parent=51 // pred_check_branch
        %3181 = sbr.rel (%p3179) target = $region56
      $region55: #{example_net_forward.2} parent=51 // pred_region
        %p3182 = scmp.lt.s32.totalorder %s18, 1
        %s3183 = scalar_select %p3182, %s18, 1
        %s3184 = smul.addr %s3183, 56
        %s3185 = smul.addr %s3184, 4
        %s3186 = scalar_lea.vmem %s6, %s3185
      $region56: #{example_net_forward.2} parent=51 // pred_fallthru
        _
    $region52: #{example_net_forward.2} parent=5 // pred_fallthru
      _
  $region6: #{example_net_forward.2} parent=0 // loop_footer
    %s16 = sadd.s32 1, %s12
  $region7: #{example_net_forward.2} parent=0 // loop_footer_branch
    %11 = sbr.rel target = $region3
  $region8: #{example_net_forward.2} parent=0 // loop_exit
    _

// kernel: example_net_forward.3
$region0: #{example_net_forward.3}
  #allocation0 [shape = 'u32[]', space=smem, size = 0x4, offset = 0x4, fixed_abs, tag = 'smem constant byte address 0x4 - core index']
  #allocation1 [shape = 'u32[144,128]{1,0:T(1,128)}', space=vmem, size = 0x12000, scoped, tag = 'internal scratch']
  %s0 = inlined_call_operand.vmem [shape: bf16[2,2,7168], index: 0, kind: input, shape index: {}]
  %s1 = inlined_call_operand.vmem [shape: s8[2,14336,512], index: 1, kind: input, shape index: {}]
  %s2 = inlined_call_operand.vmem [shape: f32[2,1,512], index: 2, kind: input, shape index: {}]
  %s3 = inlined_call_operand.vmem [shape: f32[2,1,512], index: 3, kind: input, shape index: {}]
  %s4 = inlined_call_operand.hbm [shape: f32[2,1024], index: 4, kind: output, shape index: {}]
  %s5 = sld [smem:[#allocation0]]
  $region57: #{example_net_forward.3} parent=0
    _
  %s7 = ssub.s32 1, %s5
  %s8 = scalar_select 0, %s7, %s5
  $region1: #{example_net_forward.3} parent=0
    #allocation2 [shape = 'u8[8192]{0}', space=vmem, size = 0x2000, scoped, tag = 'output window, operand 0']
    #allocation3 [shape = 's32[2]{0}', space=sflag, size = 0x8, scoped, tag = 'scoped memory for example_net_forward.3']
    %9 = vsyncpa [#allocation3], 0
    %s10 = scalar_lea.sflag [#allocation3], 1
    %11 = vsyncpa %s10, 0
    loop: start=0, step=1, limit=6
    $region2: #{example_net_forward.3} parent=1 // loop_pre_header
      _
    $region3: #{example_net_forward.3} parent=1 // loop_header
      %s13 = sphi 0, %s17
      %p14 = scmp.ge.s32.totalorder %s13, 6
      %s20 = sphi 0, %s32
      %s21 = sphi 0, %s28
      %s22 = sphi 0, %s20
      %s23 = sphi 0, %s21
      %s24 = sphi 0, %s22
      %s25 = sphi 0, %s23
      %s33 = sphi 0, %s33
      %s35 = sphi 0, %s33
      %s36 = sphi 0, %s35
      %s50 = sphi 0, %s36
      %s58 = sphi 0, %s60
      %s61 = sphi 0, %s58
      %s62 = sphi 0, %s61
      %s78 = sphi 0, %s62
      %s84 = sphi 0, %s86
      %s87 = sphi 0, %s84
      %s88 = sphi 0, %s87
      %s104 = sphi 0, %s88
      %s110 = sphi 0, %s112
      %s113 = sphi 0, %s110
      %s114 = sphi 0, %s113
      %s130 = sphi 0, %s114
      %s136 = sphi 0, %s138
      %s139 = sphi 0, %s136
      %s140 = sphi 0, %s139
      %s156 = sphi 0, %s140
    $region4: #{example_net_forward.3} parent=1 // loop_header_branch
      %16 = sbr.rel (%p14) target = $region8
    $region5: #{example_net_forward.3} parent=1 // loop_body
      %s18 = ssub.s32 %s13, 1
      %s19 = ssub.s32 %s13, 2
      %s26 = sadd.s32 1, %s21
      %p27 = scmp.ge.s32.totalorder %s26, 2
      %s28 = scalar_select %p27, 0, %s26
      %s29 = sadd.s32 1, %s20
      %s30 = scalar_select %p27, %s29, %s20
      %p31 = scmp.ge.s32.totalorder %s30, 2
      %s32 = scalar_select %p31, 0, %s30
      %s34 = sadd.s32 %s33, 1
      %p37 = scmp.eq.s32.totalorder %s13, 3
      %p38 = scmp.ne.s32.totalorder %s33, %s35
      %p39 = scmp.eq.s32.totalorder %s13, 0
      %p40 = por %p38, %p39
      %p41 = scmp.ne.s32.totalorder %s33, %s35
      %p42 = scmp.eq.s32.totalorder %s18, 3
      %p43 = por %p41, %p42
      %p44 = scmp.ne.s32.totalorder %s35, %s36
      %p45 = scmp.eq.s32.totalorder %s18, 0
      %p46 = por %p44, %p45
      %p47 = scmp.ne.s32.totalorder %s35, %s36
      %p48 = scmp.eq.s32.totalorder %s19, 3
      %p49 = por %p47, %p48
      %p51 = scmp.ne.s32.totalorder %s36, %s50
      %p52 = scmp.eq.s32.totalorder %s19, 0
      %p53 = por %p51, %p52
      %s54 = ssub.s32 %s20, %s32
      %s55 = ssub.s32 %s21, %s28
      %s56 = sor.u32 %s54, %s55
      %p57 = scmp.eq.s32.totalorder %s56, 0
      %s59 = sadd.s32 %s58, 1
      %s60 = scalar_select %p57, %s58, %s59
      %p63 = pneg %p57
      %p64 = scmp.eq.s32.totalorder %s13, 3
      %p65 = por %p63, %p64
      %p66 = scmp.ne.s32.totalorder %s58, %s61
      %p67 = scmp.eq.s32.totalorder %s13, 0
      %p68 = por %p66, %p67
      %p69 = scmp.ne.s32.totalorder %s58, %s61
      %p70 = scmp.eq.s32.totalorder %s18, 3
      %p71 = por %p69, %p70
      %p72 = scmp.ne.s32.totalorder %s61, %s62
      %p73 = scmp.eq.s32.totalorder %s18, 0
      %p74 = por %p72, %p73
      %p75 = scmp.ne.s32.totalorder %s61, %s62
      %p76 = scmp.eq.s32.totalorder %s19, 3
      %p77 = por %p75, %p76
      %p79 = scmp.ne.s32.totalorder %s62, %s78
      %p80 = scmp.eq.s32.totalorder %s19, 0
      %p81 = por %p79, %p80
      %s82 = ssub.s32 %s20, %s32
      %p83 = scmp.eq.s32.totalorder %s82, 0
      %s85 = sadd.s32 %s84, 1
      %s86 = scalar_select %p83, %s84, %s85
      %p89 = pneg %p83
      %p90 = scmp.eq.s32.totalorder %s13, 3
      %p91 = por %p89, %p90
      %p92 = scmp.ne.s32.totalorder %s84, %s87
      %p93 = scmp.eq.s32.totalorder %s13, 0
      %p94 = por %p92, %p93
      %p95 = scmp.ne.s32.totalorder %s84, %s87
      %p96 = scmp.eq.s32.totalorder %s18, 3
      %p97 = por %p95, %p96
      %p98 = scmp.ne.s32.totalorder %s87, %s88
      %p99 = scmp.eq.s32.totalorder %s18, 0
      %p100 = por %p98, %p99
      %p101 = scmp.ne.s32.totalorder %s87, %s88
      %p102 = scmp.eq.s32.totalorder %s19, 3
      %p103 = por %p101, %p102
      %p105 = scmp.ne.s32.totalorder %s88, %s104
      %p106 = scmp.eq.s32.totalorder %s19, 0
      %p107 = por %p105, %p106
      %s108 = ssub.s32 %s20, %s32
      %p109 = scmp.eq.s32.totalorder %s108, 0
      %s111 = sadd.s32 %s110, 1
      %s112 = scalar_select %p109, %s110, %s111
      %p115 = pneg %p109
      %p116 = scmp.eq.s32.totalorder %s13, 3
      %p117 = por %p115, %p116
      %p118 = scmp.ne.s32.totalorder %s110, %s113
      %p119 = scmp.eq.s32.totalorder %s13, 0
      %p120 = por %p118, %p119
      %p121 = scmp.ne.s32.totalorder %s110, %s113
      %p122 = scmp.eq.s32.totalorder %s18, 3
      %p123 = por %p121, %p122
      %p124 = scmp.ne.s32.totalorder %s113, %s114
      %p125 = scmp.eq.s32.totalorder %s18, 0
      %p126 = por %p124, %p125
      %p127 = scmp.ne.s32.totalorder %s113, %s114
      %p128 = scmp.eq.s32.totalorder %s19, 3
      %p129 = por %p127, %p128
      %p131 = scmp.ne.s32.totalorder %s114, %s130
      %p132 = scmp.eq.s32.totalorder %s19, 0
      %p133 = por %p131, %p132
      %s134 = ssub.s32 %s20, %s32
      %p135 = scmp.eq.s32.totalorder %s134, 0
      %s137 = sadd.s32 %s136, 1
      %s138 = scalar_select %p135, %s136, %s137
      %p141 = pneg %p135
      %p142 = scmp.eq.s32.totalorder %s13, 3
      %p143 = por %p141, %p142
      %p144 = scmp.ne.s32.totalorder %s136, %s139
      %p145 = scmp.eq.s32.totalorder %s13, 0
      %p146 = por %p144, %p145
      %p147 = scmp.ne.s32.totalorder %s136, %s139
      %p148 = scmp.eq.s32.totalorder %s18, 3
      %p149 = por %p147, %p148
      %p150 = scmp.ne.s32.totalorder %s139, %s140
      %p151 = scmp.eq.s32.totalorder %s18, 0
      %p152 = por %p150, %p151
      %p153 = scmp.ne.s32.totalorder %s139, %s140
      %p154 = scmp.eq.s32.totalorder %s19, 3
      %p155 = por %p153, %p154
      %p157 = scmp.ne.s32.totalorder %s140, %s156
      %p158 = scmp.eq.s32.totalorder %s19, 0
      %p159 = por %p157, %p158
      %p160 = scmp.le.s32.totalorder 1, %s13
      %p161 = scmp.lt.s32.totalorder %s13, 5
      %p162 = pnand %p160, %p161
      %p163 = pneg %p162
      // Predicated region
      $region9: #{example_net_forward.3} parent=5 // pred_check
        _
      $region10: #{example_net_forward.3} parent=5 // pred_check_branch
        %165 = sbr.rel (%p162) target = $region12
      $region11: #{example_net_forward.3} parent=5 // pred_region
        %s166 = ssub.s32 %s13, 1
        // Predicated region
        $region13: #{example_net_forward.3} parent=11 // pred_check
          %p167 = pneg %p46
        $region14: #{example_net_forward.3} parent=11 // pred_check_branch
          %169 = sbr.rel (%p167) target = $region16
        $region15: #{example_net_forward.3} parent=11 // pred_region
          _
        $region16: #{example_net_forward.3} parent=11 // pred_fallthru
          _
      $region12: #{example_net_forward.3} parent=5 // pred_fallthru
        _
      %p170 = scmp.lt.s32.totalorder %s13, 4
      // Predicated region
      $region17: #{example_net_forward.3} parent=5 // pred_check
        %p171 = pneg %p170
      $region18: #{example_net_forward.3} parent=5 // pred_check_branch
        %173 = sbr.rel (%p171) target = $region20
      $region19: #{example_net_forward.3} parent=5 // pred_region
        // Predicated region
        $region21: #{example_net_forward.3} parent=19 // pred_check
          %p174 = pneg %p68
        $region22: #{example_net_forward.3} parent=19 // pred_check_branch
          %176 = sbr.rel (%p174) target = $region24
        $region23: #{example_net_forward.3} parent=19 // pred_region
          %s177 = smul.u32 224, %s21
          %p178 = scmp.lt.s32.totalorder %s20, 1
          %s179 = scalar_select %p178, %s20, 1
          %p180 = scmp.lt.s32.totalorder %s177, 447
          %s181 = scalar_select %p180, %s177, 447
          %s182 = smul.addr %s181, 4
          %s183 = smul.addr %s179, 1792
          %s184 = sadd.s32 %s182, %s183
          %s185 = smul.addr %s184, 8
          %s186 = scalar_lea.vmem %s1, %s185
          %s187 = smul.u32 224, %s21
        $region24: #{example_net_forward.3} parent=19 // pred_fallthru
          _
        // Predicated region
        $region25: #{example_net_forward.3} parent=19 // pred_check
          %p188 = pneg %p94
        $region26: #{example_net_forward.3} parent=19 // pred_check_branch
          %190 = sbr.rel (%p188) target = $region28
        $region27: #{example_net_forward.3} parent=19 // pred_region
          %p191 = scmp.lt.s32.totalorder %s20, 1
          %s192 = scalar_select %p191, %s20, 1
          %s193 = smul.addr %s192, 4
          %s194 = scalar_lea.vmem %s2, %s193
        $region28: #{example_net_forward.3} parent=19 // pred_fallthru
          _
        // Predicated region
        $region29: #{example_net_forward.3} parent=19 // pred_check
          %p195 = pneg %p120
        $region30: #{example_net_forward.3} parent=19 // pred_check_branch
          %197 = sbr.rel (%p195) target = $region32
        $region31: #{example_net_forward.3} parent=19 // pred_region
          %p198 = scmp.lt.s32.totalorder %s20, 1
          %s199 = scalar_select %p198, %s20, 1
          %s200 = smul.addr %s199, 4
          %s201 = scalar_lea.vmem %s3, %s200
        $region32: #{example_net_forward.3} parent=19 // pred_fallthru
          _
      $region20: #{example_net_forward.3} parent=5 // pred_fallthru
        _
      %p202 = scmp.le.s32.totalorder 1, %s13
      %p203 = scmp.lt.s32.totalorder %s13, 5
      %p204 = pnand %p202, %p203
      %p205 = pneg %p204
      // Predicated region
      $region33: #{example_net_forward.3} parent=5 // pred_check
        _
      $region34: #{example_net_forward.3} parent=5 // pred_check_branch
        %207 = sbr.rel (%p204) target = $region36
      $region35: #{example_net_forward.3} parent=5 // pred_region
        %s208 = ssub.s32 %s13, 1
        %p209 = pneg %p46
        %p210 = pneg %p43
        %s211 = smul.u32 224, %s23
        %p212 = scmp.lt.s32.totalorder %s22, 1
        %s213 = scalar_select %p212, %s22, 1
        %p214 = scmp.lt.s32.totalorder %s211, 447
        %s215 = scalar_select %p214, %s211, 447
        %s216 = smul.addr %s215, 4
        %s217 = smul.addr %s213, 1792
        %s218 = sadd.s32 %s216, %s217
        %s219 = smul.addr %s218, 8
        %s220 = scalar_lea.vmem %s1, %s219
        %p221 = pneg %p74
        %p222 = pneg %p71
        %p223 = scmp.lt.s32.totalorder %s22, 1
        %s224 = scalar_select %p223, %s22, 1
        %s225 = smul.addr %s224, 4
        %s226 = scalar_lea.vmem %s2, %s225
        %p227 = pneg %p100
        %p228 = pneg %p97
        %p229 = scmp.lt.s32.totalorder %s22, 1
        %s230 = scalar_select %p229, %s22, 1
        %s231 = smul.addr %s230, 4
        %s232 = scalar_lea.vmem %s3, %s231
        %p233 = pneg %p126
        %p234 = pneg %p123
        %p235 = pneg %p152
        %p236 = pneg %p149
        %s237 = sand.u32 %s139, 1
        %s238 = scalar_lea.sflag [#allocation3], %s237
        %s239 = sand.u32 %s139, 1
        %s240 = smul.addr %s239, 8
        %s241 = scalar_lea.vmem [#allocation2], %s240
        %s242 = smul.u32 224, %s23
        %p243 = scmp.lt.s32.totalorder %s22, 1
        %s244 = scalar_select %p243, %s22, 1
        %p245 = scmp.lt.s32.totalorder %s242, 447
        %s246 = scalar_select %p245, %s242, 447
        %s247 = smul.addr %s246, 4
        %s248 = smul.addr %s244, 1792
        %s249 = sadd.s32 %s247, %s248
        %s250 = smul.addr %s249, 8
        %s251 = scalar_lea.vmem %s1, %s250
        %s252 = smul.u32 224, %s23
        %p253 = scmp.lt.s32.totalorder %s22, 1
        %s254 = scalar_select %p253, %s22, 1
        %s255 = smul.addr %s254, 4
        %s256 = scalar_lea.vmem %s2, %s255
        %p257 = scmp.lt.s32.totalorder %s22, 1
        %s258 = scalar_select %p257, %s22, 1
        %s259 = smul.addr %s258, 4
        %s260 = scalar_lea.vmem %s3, %s259
        %s261 = smul.u32 4, %s22
        %p262 = scmp.eq.s32.totalorder %s23, 0
        // Predicated region
        $region37: #{example_net_forward.3} parent=35 // pred_check
          %p263 = pneg %p262
        $region38: #{example_net_forward.3} parent=35 // pred_check_branch
          %265 = sbr.rel (%p263) target = $region40
        $region39: #{example_net_forward.3} parent=35 // pred_region
          %266 = vst [vmem:[%s241] sm:$0xff] 0.0
        $region40: #{example_net_forward.3} parent=35 // pred_fallthru
          _
        %s267 = smul.u32 %s23, 56
        %s268 = scalar_lea.vmem %s0, %s267
        %v269 = vld [vmem:[%s268] sm:$0xff]
        %v270 = vld [vmem:[%s268 + $0x8] sm:$0xff]
        %v271 = vld [vmem:[%s268 + $0x10] sm:$0xff]
        %v272 = vld [vmem:[%s268 + $0x18] sm:$0xff]
        %v273 = vld [vmem:[%s268 + $0x20] sm:$0xff]
        %v274 = vld [vmem:[%s268 + $0x28] sm:$0xff]
        %v275 = vld [vmem:[%s268 + $0x30] sm:$0xff]
        %v276 = vld [vmem:[%s251] sm:$0xff]
        %v277 = vld [vmem:[%s251 + $0x8] sm:$0xff]
        %v278 = vld [vmem:[%s251 + $0x10] sm:$0xff]
        %v279 = vld [vmem:[%s251 + $0x18] sm:$0xff]
        %v280 = vld [vmem:[%s251 + $0x20] sm:$0xff]
        %v281 = vld [vmem:[%s251 + $0x28] sm:$0xff]
        %v282 = vld [vmem:[%s251 + $0x30] sm:$0xff]
        %v283 = vld [vmem:[%s251 + $0x38] sm:$0xff]
        %v284 = vld [vmem:[%s251 + $0x40] sm:$0xff]
        %v285 = vld [vmem:[%s251 + $0x48] sm:$0xff]
        %v286 = vld [vmem:[%s251 + $0x50] sm:$0xff]
        %v287 = vld [vmem:[%s251 + $0x58] sm:$0xff]
        %v288 = vld [vmem:[%s251 + $0x60] sm:$0xff]
        %v289 = vld [vmem:[%s251 + $0x68] sm:$0xff]
        %v290 = vld [vmem:[%s251 + $0x70] sm:$0xff]
        %v291 = vld [vmem:[%s251 + $0x78] sm:$0xff]
        %v292 = vld [vmem:[%s251 + $0x80] sm:$0xff]
        %v293 = vld [vmem:[%s251 + $0x88] sm:$0xff]
        %v294 = vld [vmem:[%s251 + $0x90] sm:$0xff]
        %v295 = vld [vmem:[%s251 + $0x98] sm:$0xff]
        %v296 = vld [vmem:[%s251 + $0xa0] sm:$0xff]
        %v297 = vld [vmem:[%s251 + $0xa8] sm:$0xff]
        %v298 = vld [vmem:[%s251 + $0xb0] sm:$0xff]
        %v299 = vld [vmem:[%s251 + $0xb8] sm:$0xff]
        %v300 = vld [vmem:[%s251 + $0xc0] sm:$0xff]
        %v301 = vld [vmem:[%s251 + $0xc8] sm:$0xff]
        %v302 = vld [vmem:[%s251 + $0xd0] sm:$0xff]
        %v303 = vld [vmem:[%s251 + $0xd8] sm:$0xff]
        %v304 = vld [vmem:[%s251 + $0xe0] sm:$0xff]
        %v305 = vld [vmem:[%s251 + $0xe8] sm:$0xff]
        %v306 = vld [vmem:[%s251 + $0xf0] sm:$0xff]
        %v307 = vld [vmem:[%s251 + $0xf8] sm:$0xff]
        %v308 = vld [vmem:[%s251 + $0x100] sm:$0xff]
        %v309 = vld [vmem:[%s251 + $0x108] sm:$0xff]
        %v310 = vld [vmem:[%s251 + $0x110] sm:$0xff]
        %v311 = vld [vmem:[%s251 + $0x118] sm:$0xff]
        %v312 = vld [vmem:[%s251 + $0x120] sm:$0xff]
        %v313 = vld [vmem:[%s251 + $0x128] sm:$0xff]
        %v314 = vld [vmem:[%s251 + $0x130] sm:$0xff]
        %v315 = vld [vmem:[%s251 + $0x138] sm:$0xff]
        %v316 = vld [vmem:[%s251 + $0x140] sm:$0xff]
        %v317 = vld [vmem:[%s251 + $0x148] sm:$0xff]
        %v318 = vld [vmem:[%s251 + $0x150] sm:$0xff]
        %v319 = vld [vmem:[%s251 + $0x158] sm:$0xff]
        %v320 = vld [vmem:[%s251 + $0x160] sm:$0xff]
        %v321 = vld [vmem:[%s251 + $0x168] sm:$0xff]
        %v322 = vld [vmem:[%s251 + $0x170] sm:$0xff]
        %v323 = vld [vmem:[%s251 + $0x178] sm:$0xff]
        %v324 = vld [vmem:[%s251 + $0x180] sm:$0xff]
        %v325 = vld [vmem:[%s251 + $0x188] sm:$0xff]
        %v326 = vld [vmem:[%s251 + $0x190] sm:$0xff]
        %v327 = vld [vmem:[%s251 + $0x198] sm:$0xff]
        %v328 = vld [vmem:[%s251 + $0x1a0] sm:$0xff]
        %v329 = vld [vmem:[%s251 + $0x1a8] sm:$0xff]
        %v330 = vld [vmem:[%s251 + $0x1b0] sm:$0xff]
        %v331 = vld [vmem:[%s251 + $0x1b8] sm:$0xff]
        %v332 = vld [vmem:[%s251 + $0x1c0] sm:$0xff]
        %v333 = vld [vmem:[%s251 + $0x1c8] sm:$0xff]
        %v334 = vld [vmem:[%s251 + $0x1d0] sm:$0xff]
        %v335 = vld [vmem:[%s251 + $0x1d8] sm:$0xff]
        %v336 = vld [vmem:[%s251 + $0x1e0] sm:$0xff]
        %v337 = vld [vmem:[%s251 + $0x1e8] sm:$0xff]
        %v338 = vld [vmem:[%s251 + $0x1f0] sm:$0xff]
        %v339 = vld [vmem:[%s251 + $0x1f8] sm:$0xff]
        %v340 = vld [vmem:[%s251 + $0x200] sm:$0xff]
        %v341 = vld [vmem:[%s251 + $0x208] sm:$0xff]
        %v342 = vld [vmem:[%s251 + $0x210] sm:$0xff]
        %v343 = vld [vmem:[%s251 + $0x218] sm:$0xff]
        %v344 = vld [vmem:[%s251 + $0x220] sm:$0xff]
        %v345 = vld [vmem:[%s251 + $0x228] sm:$0xff]
        %v346 = vld [vmem:[%s251 + $0x230] sm:$0xff]
        %v347 = vld [vmem:[%s251 + $0x238] sm:$0xff]
        %v348 = vld [vmem:[%s251 + $0x240] sm:$0xff]
        %v349 = vld [vmem:[%s251 + $0x248] sm:$0xff]
        %v350 = vld [vmem:[%s251 + $0x250] sm:$0xff]
        %v351 = vld [vmem:[%s251 + $0x258] sm:$0xff]
        %v352 = vld [vmem:[%s251 + $0x260] sm:$0xff]
        %v353 = vld [vmem:[%s251 + $0x268] sm:$0xff]
        %v354 = vld [vmem:[%s251 + $0x270] sm:$0xff]
        %v355 = vld [vmem:[%s251 + $0x278] sm:$0xff]
        %v356 = vld [vmem:[%s251 + $0x280] sm:$0xff]
        %v357 = vld [vmem:[%s251 + $0x288] sm:$0xff]
        %v358 = vld [vmem:[%s251 + $0x290] sm:$0xff]
        %v359 = vld [vmem:[%s251 + $0x298] sm:$0xff]
        %v360 = vld [vmem:[%s251 + $0x2a0] sm:$0xff]
        %v361 = vld [vmem:[%s251 + $0x2a8] sm:$0xff]
        %v362 = vld [vmem:[%s251 + $0x2b0] sm:$0xff]
        %v363 = vld [vmem:[%s251 + $0x2b8] sm:$0xff]
        %v364 = vld [vmem:[%s251 + $0x2c0] sm:$0xff]
        %v365 = vld [vmem:[%s251 + $0x2c8] sm:$0xff]
        %v366 = vld [vmem:[%s251 + $0x2d0] sm:$0xff]
        %v367 = vld [vmem:[%s251 + $0x2d8] sm:$0xff]
        %v368 = vld [vmem:[%s251 + $0x2e0] sm:$0xff]
        %v369 = vld [vmem:[%s251 + $0x2e8] sm:$0xff]
        %v370 = vld [vmem:[%s251 + $0x2f0] sm:$0xff]
        %v371 = vld [vmem:[%s251 + $0x2f8] sm:$0xff]
        %v372 = vld [vmem:[%s251 + $0x300] sm:$0xff]
        %v373 = vld [vmem:[%s251 + $0x308] sm:$0xff]
        %v374 = vld [vmem:[%s251 + $0x310] sm:$0xff]
        %v375 = vld [vmem:[%s251 + $0x318] sm:$0xff]
        %v376 = vld [vmem:[%s251 + $0x320] sm:$0xff]
        %v377 = vld [vmem:[%s251 + $0x328] sm:$0xff]
        %v378 = vld [vmem:[%s251 + $0x330] sm:$0xff]
        %v379 = vld [vmem:[%s251 + $0x338] sm:$0xff]
        %v380 = vld [vmem:[%s251 + $0x340] sm:$0xff]
        %v381 = vld [vmem:[%s251 + $0x348] sm:$0xff]
        %v382 = vld [vmem:[%s251 + $0x350] sm:$0xff]
        %v383 = vld [vmem:[%s251 + $0x358] sm:$0xff]
        %v384 = vld [vmem:[%s251 + $0x360] sm:$0xff]
        %v385 = vld [vmem:[%s251 + $0x368] sm:$0xff]
        %v386 = vld [vmem:[%s251 + $0x370] sm:$0xff]
        %v387 = vld [vmem:[%s251 + $0x378] sm:$0xff]
        %v388 = vld [vmem:[%s251 + $0x380] sm:$0xff]
        %v389 = vld [vmem:[%s251 + $0x388] sm:$0xff]
        %v390 = vld [vmem:[%s251 + $0x390] sm:$0xff]
        %v391 = vld [vmem:[%s251 + $0x398] sm:$0xff]
        %v392 = vld [vmem:[%s251 + $0x3a0] sm:$0xff]
        %v393 = vld [vmem:[%s251 + $0x3a8] sm:$0xff]
        %v394 = vld [vmem:[%s251 + $0x3b0] sm:$0xff]
        %v395 = vld [vmem:[%s251 + $0x3b8] sm:$0xff]
        %v396 = vld [vmem:[%s251 + $0x3c0] sm:$0xff]
        %v397 = vld [vmem:[%s251 + $0x3c8] sm:$0xff]
        %v398 = vld [vmem:[%s251 + $0x3d0] sm:$0xff]
        %v399 = vld [vmem:[%s251 + $0x3d8] sm:$0xff]
        %v400 = vld [vmem:[%s251 + $0x3e0] sm:$0xff]
        %v401 = vld [vmem:[%s251 + $0x3e8] sm:$0xff]
        %v402 = vld [vmem:[%s251 + $0x3f0] sm:$0xff]
        %v403 = vld [vmem:[%s251 + $0x3f8] sm:$0xff]
        %v404 = vld [vmem:[%s251 + $0x400] sm:$0xff]
        %v405 = vld [vmem:[%s251 + $0x408] sm:$0xff]
        %v406 = vld [vmem:[%s251 + $0x410] sm:$0xff]
        %v407 = vld [vmem:[%s251 + $0x418] sm:$0xff]
        %v408 = vld [vmem:[%s251 + $0x420] sm:$0xff]
        %v409 = vld [vmem:[%s251 + $0x428] sm:$0xff]
        %v410 = vld [vmem:[%s251 + $0x430] sm:$0xff]
        %v411 = vld [vmem:[%s251 + $0x438] sm:$0xff]
        %v412 = vld [vmem:[%s251 + $0x440] sm:$0xff]
        %v413 = vld [vmem:[%s251 + $0x448] sm:$0xff]
        %v414 = vld [vmem:[%s251 + $0x450] sm:$0xff]
        %v415 = vld [vmem:[%s251 + $0x458] sm:$0xff]
        %v416 = vld [vmem:[%s251 + $0x460] sm:$0xff]
        %v417 = vld [vmem:[%s251 + $0x468] sm:$0xff]
        %v418 = vld [vmem:[%s251 + $0x470] sm:$0xff]
        %v419 = vld [vmem:[%s251 + $0x478] sm:$0xff]
        %v420 = vld [vmem:[%s251 + $0x480] sm:$0xff]
        %v421 = vld [vmem:[%s251 + $0x488] sm:$0xff]
        %v422 = vld [vmem:[%s251 + $0x490] sm:$0xff]
        %v423 = vld [vmem:[%s251 + $0x498] sm:$0xff]
        %v424 = vld [vmem:[%s251 + $0x4a0] sm:$0xff]
        %v425 = vld [vmem:[%s251 + $0x4a8] sm:$0xff]
        %v426 = vld [vmem:[%s251 + $0x4b0] sm:$0xff]
        %v427 = vld [vmem:[%s251 + $0x4b8] sm:$0xff]
        %v428 = vld [vmem:[%s251 + $0x4c0] sm:$0xff]
        %v429 = vld [vmem:[%s251 + $0x4c8] sm:$0xff]
        %v430 = vld [vmem:[%s251 + $0x4d0] sm:$0xff]
        %v431 = vld [vmem:[%s251 + $0x4d8] sm:$0xff]
        %v432 = vld [vmem:[%s251 + $0x4e0] sm:$0xff]
        %v433 = vld [vmem:[%s251 + $0x4e8] sm:$0xff]
        %v434 = vld [vmem:[%s251 + $0x4f0] sm:$0xff]
        %v435 = vld [vmem:[%s251 + $0x4f8] sm:$0xff]
        %v436 = vld [vmem:[%s251 + $0x500] sm:$0xff]
        %v437 = vld [vmem:[%s251 + $0x508] sm:$0xff]
        %v438 = vld [vmem:[%s251 + $0x510] sm:$0xff]
        %v439 = vld [vmem:[%s251 + $0x518] sm:$0xff]
        %v440 = vld [vmem:[%s251 + $0x520] sm:$0xff]
        %v441 = vld [vmem:[%s251 + $0x528] sm:$0xff]
        %v442 = vld [vmem:[%s251 + $0x530] sm:$0xff]
        %v443 = vld [vmem:[%s251 + $0x538] sm:$0xff]
        %v444 = vld [vmem:[%s251 + $0x540] sm:$0xff]
        %v445 = vld [vmem:[%s251 + $0x548] sm:$0xff]
        %v446 = vld [vmem:[%s251 + $0x550] sm:$0xff]
        %v447 = vld [vmem:[%s251 + $0x558] sm:$0xff]
        %v448 = vld [vmem:[%s251 + $0x560] sm:$0xff]
        %v449 = vld [vmem:[%s251 + $0x568] sm:$0xff]
        %v450 = vld [vmem:[%s251 + $0x570] sm:$0xff]
        %v451 = vld [vmem:[%s251 + $0x578] sm:$0xff]
        %v452 = vld [vmem:[%s251 + $0x580] sm:$0xff]
        %v453 = vld [vmem:[%s251 + $0x588] sm:$0xff]
        %v454 = vld [vmem:[%s251 + $0x590] sm:$0xff]
        %v455 = vld [vmem:[%s251 + $0x598] sm:$0xff]
        %v456 = vld [vmem:[%s251 + $0x5a0] sm:$0xff]
        %v457 = vld [vmem:[%s251 + $0x5a8] sm:$0xff]
        %v458 = vld [vmem:[%s251 + $0x5b0] sm:$0xff]
        %v459 = vld [vmem:[%s251 + $0x5b8] sm:$0xff]
        %v460 = vld [vmem:[%s251 + $0x5c0] sm:$0xff]
        %v461 = vld [vmem:[%s251 + $0x5c8] sm:$0xff]
        %v462 = vld [vmem:[%s251 + $0x5d0] sm:$0xff]
        %v463 = vld [vmem:[%s251 + $0x5d8] sm:$0xff]
        %v464 = vld [vmem:[%s251 + $0x5e0] sm:$0xff]
        %v465 = vld [vmem:[%s251 + $0x5e8] sm:$0xff]
        %v466 = vld [vmem:[%s251 + $0x5f0] sm:$0xff]
        %v467 = vld [vmem:[%s251 + $0x5f8] sm:$0xff]
        %v468 = vld [vmem:[%s251 + $0x600] sm:$0xff]
        %v469 = vld [vmem:[%s251 + $0x608] sm:$0xff]
        %v470 = vld [vmem:[%s251 + $0x610] sm:$0xff]
        %v471 = vld [vmem:[%s251 + $0x618] sm:$0xff]
        %v472 = vld [vmem:[%s251 + $0x620] sm:$0xff]
        %v473 = vld [vmem:[%s251 + $0x628] sm:$0xff]
        %v474 = vld [vmem:[%s251 + $0x630] sm:$0xff]
        %v475 = vld [vmem:[%s251 + $0x638] sm:$0xff]
        %v476 = vld [vmem:[%s251 + $0x640] sm:$0xff]
        %v477 = vld [vmem:[%s251 + $0x648] sm:$0xff]
        %v478 = vld [vmem:[%s251 + $0x650] sm:$0xff]
        %v479 = vld [vmem:[%s251 + $0x658] sm:$0xff]
        %v480 = vld [vmem:[%s251 + $0x660] sm:$0xff]
        %v481 = vld [vmem:[%s251 + $0x668] sm:$0xff]
        %v482 = vld [vmem:[%s251 + $0x670] sm:$0xff]
        %v483 = vld [vmem:[%s251 + $0x678] sm:$0xff]
        %v484 = vld [vmem:[%s251 + $0x680] sm:$0xff]
        %v485 = vld [vmem:[%s251 + $0x688] sm:$0xff]
        %v486 = vld [vmem:[%s251 + $0x690] sm:$0xff]
        %v487 = vld [vmem:[%s251 + $0x698] sm:$0xff]
        %v488 = vld [vmem:[%s251 + $0x6a0] sm:$0xff]
        %v489 = vld [vmem:[%s251 + $0x6a8] sm:$0xff]
        %v490 = vld [vmem:[%s251 + $0x6b0] sm:$0xff]
        %v491 = vld [vmem:[%s251 + $0x6b8] sm:$0xff]
        %v492 = vld [vmem:[%s251 + $0x6c0] sm:$0xff]
        %v493 = vld [vmem:[%s251 + $0x6c8] sm:$0xff]
        %v494 = vld [vmem:[%s251 + $0x6d0] sm:$0xff]
        %v495 = vld [vmem:[%s251 + $0x6d8] sm:$0xff]
        %v496 = vld [vmem:[%s251 + $0x6e0] sm:$0xff]
        %v497 = vld [vmem:[%s251 + $0x6e8] sm:$0xff]
        %v498 = vld [vmem:[%s251 + $0x6f0] sm:$0xff]
        %v499 = vld [vmem:[%s251 + $0x6f8] sm:$0xff]
        %v500 = vld [vmem:[%s251 + $0x700] sm:$0xff]
        %v501 = vld [vmem:[%s251 + $0x708] sm:$0xff]
        %v502 = vld [vmem:[%s251 + $0x710] sm:$0xff]
        %v503 = vld [vmem:[%s251 + $0x718] sm:$0xff]
        %v504 = vld [vmem:[%s251 + $0x720] sm:$0xff]
        %v505 = vld [vmem:[%s251 + $0x728] sm:$0xff]
        %v506 = vld [vmem:[%s251 + $0x730] sm:$0xff]
        %v507 = vld [vmem:[%s251 + $0x738] sm:$0xff]
        %v508 = vld [vmem:[%s251 + $0x740] sm:$0xff]
        %v509 = vld [vmem:[%s251 + $0x748] sm:$0xff]
        %v510 = vld [vmem:[%s251 + $0x750] sm:$0xff]
        %v511 = vld [vmem:[%s251 + $0x758] sm:$0xff]
        %v512 = vld [vmem:[%s251 + $0x760] sm:$0xff]
        %v513 = vld [vmem:[%s251 + $0x768] sm:$0xff]
        %v514 = vld [vmem:[%s251 + $0x770] sm:$0xff]
        %v515 = vld [vmem:[%s251 + $0x778] sm:$0xff]
        %v516 = vld [vmem:[%s251 + $0x780] sm:$0xff]
        %v517 = vld [vmem:[%s251 + $0x788] sm:$0xff]
        %v518 = vld [vmem:[%s251 + $0x790] sm:$0xff]
        %v519 = vld [vmem:[%s251 + $0x798] sm:$0xff]
        %v520 = vld [vmem:[%s251 + $0x7a0] sm:$0xff]
        %v521 = vld [vmem:[%s251 + $0x7a8] sm:$0xff]
        %v522 = vld [vmem:[%s251 + $0x7b0] sm:$0xff]
        %v523 = vld [vmem:[%s251 + $0x7b8] sm:$0xff]
        %v524 = vld [vmem:[%s251 + $0x7c0] sm:$0xff]
        %v525 = vld [vmem:[%s251 + $0x7c8] sm:$0xff]
        %v526 = vld [vmem:[%s251 + $0x7d0] sm:$0xff]
        %v527 = vld [vmem:[%s251 + $0x7d8] sm:$0xff]
        %v528 = vld [vmem:[%s251 + $0x7e0] sm:$0xff]
        %v529 = vld [vmem:[%s251 + $0x7e8] sm:$0xff]
        %v530 = vld [vmem:[%s251 + $0x7f0] sm:$0xff]
        %v531 = vld [vmem:[%s251 + $0x7f8] sm:$0xff]
        %v532 = vld [vmem:[%s251 + $0x800] sm:$0xff]
        %v533 = vld [vmem:[%s251 + $0x808] sm:$0xff]
        %v534 = vld [vmem:[%s251 + $0x810] sm:$0xff]
        %v535 = vld [vmem:[%s251 + $0x818] sm:$0xff]
        %v536 = vld [vmem:[%s251 + $0x820] sm:$0xff]
        %v537 = vld [vmem:[%s251 + $0x828] sm:$0xff]
        %v538 = vld [vmem:[%s251 + $0x830] sm:$0xff]
        %v539 = vld [vmem:[%s251 + $0x838] sm:$0xff]
        %v540 = vld [vmem:[%s251 + $0x840] sm:$0xff]
        %v541 = vld [vmem:[%s251 + $0x848] sm:$0xff]
        %v542 = vld [vmem:[%s251 + $0x850] sm:$0xff]
        %v543 = vld [vmem:[%s251 + $0x858] sm:$0xff]
        %v544 = vld [vmem:[%s251 + $0x860] sm:$0xff]
        %v545 = vld [vmem:[%s251 + $0x868] sm:$0xff]
        %v546 = vld [vmem:[%s251 + $0x870] sm:$0xff]
        %v547 = vld [vmem:[%s251 + $0x878] sm:$0xff]
        %v548 = vld [vmem:[%s251 + $0x880] sm:$0xff]
        %v549 = vld [vmem:[%s251 + $0x888] sm:$0xff]
        %v550 = vld [vmem:[%s251 + $0x890] sm:$0xff]
        %v551 = vld [vmem:[%s251 + $0x898] sm:$0xff]
        %v552 = vld [vmem:[%s251 + $0x8a0] sm:$0xff]
        %v553 = vld [vmem:[%s251 + $0x8a8] sm:$0xff]
        %v554 = vld [vmem:[%s251 + $0x8b0] sm:$0xff]
        %v555 = vld [vmem:[%s251 + $0x8b8] sm:$0xff]
        %v556 = vld [vmem:[%s251 + $0x8c0] sm:$0xff]
        %v557 = vld [vmem:[%s251 + $0x8c8] sm:$0xff]
        %v558 = vld [vmem:[%s251 + $0x8d0] sm:$0xff]
        %v559 = vld [vmem:[%s251 + $0x8d8] sm:$0xff]
        %v560 = vld [vmem:[%s251 + $0x8e0] sm:$0xff]
        %v561 = vld [vmem:[%s251 + $0x8e8] sm:$0xff]
        %v562 = vld [vmem:[%s251 + $0x8f0] sm:$0xff]
        %v563 = vld [vmem:[%s251 + $0x8f8] sm:$0xff]
        %v564 = vld [vmem:[%s251 + $0x900] sm:$0xff]
        %v565 = vld [vmem:[%s251 + $0x908] sm:$0xff]
        %v566 = vld [vmem:[%s251 + $0x910] sm:$0xff]
        %v567 = vld [vmem:[%s251 + $0x918] sm:$0xff]
        %v568 = vld [vmem:[%s251 + $0x920] sm:$0xff]
        %v569 = vld [vmem:[%s251 + $0x928] sm:$0xff]
        %v570 = vld [vmem:[%s251 + $0x930] sm:$0xff]
        %v571 = vld [vmem:[%s251 + $0x938] sm:$0xff]
        %v572 = vld [vmem:[%s251 + $0x940] sm:$0xff]
        %v573 = vld [vmem:[%s251 + $0x948] sm:$0xff]
        %v574 = vld [vmem:[%s251 + $0x950] sm:$0xff]
        %v575 = vld [vmem:[%s251 + $0x958] sm:$0xff]
        %v576 = vld [vmem:[%s251 + $0x960] sm:$0xff]
        %v577 = vld [vmem:[%s251 + $0x968] sm:$0xff]
        %v578 = vld [vmem:[%s251 + $0x970] sm:$0xff]
        %v579 = vld [vmem:[%s251 + $0x978] sm:$0xff]
        %v580 = vld [vmem:[%s251 + $0x980] sm:$0xff]
        %v581 = vld [vmem:[%s251 + $0x988] sm:$0xff]
        %v582 = vld [vmem:[%s251 + $0x990] sm:$0xff]
        %v583 = vld [vmem:[%s251 + $0x998] sm:$0xff]
        %v584 = vld [vmem:[%s251 + $0x9a0] sm:$0xff]
        %v585 = vld [vmem:[%s251 + $0x9a8] sm:$0xff]
        %v586 = vld [vmem:[%s251 + $0x9b0] sm:$0xff]
        %v587 = vld [vmem:[%s251 + $0x9b8] sm:$0xff]
        %v588 = vld [vmem:[%s251 + $0x9c0] sm:$0xff]
        %v589 = vld [vmem:[%s251 + $0x9c8] sm:$0xff]
        %v590 = vld [vmem:[%s251 + $0x9d0] sm:$0xff]
        %v591 = vld [vmem:[%s251 + $0x9d8] sm:$0xff]
        %v592 = vld [vmem:[%s251 + $0x9e0] sm:$0xff]
        %v593 = vld [vmem:[%s251 + $0x9e8] sm:$0xff]
        %v594 = vld [vmem:[%s251 + $0x9f0] sm:$0xff]
        %v595 = vld [vmem:[%s251 + $0x9f8] sm:$0xff]
        %v596 = vld [vmem:[%s251 + $0xa00] sm:$0xff]
        %v597 = vld [vmem:[%s251 + $0xa08] sm:$0xff]
        %v598 = vld [vmem:[%s251 + $0xa10] sm:$0xff]
        %v599 = vld [vmem:[%s251 + $0xa18] sm:$0xff]
        %v600 = vld [vmem:[%s251 + $0xa20] sm:$0xff]
        %v601 = vld [vmem:[%s251 + $0xa28] sm:$0xff]
        %v602 = vld [vmem:[%s251 + $0xa30] sm:$0xff]
        %v603 = vld [vmem:[%s251 + $0xa38] sm:$0xff]
        %v604 = vld [vmem:[%s251 + $0xa40] sm:$0xff]
        %v605 = vld [vmem:[%s251 + $0xa48] sm:$0xff]
        %v606 = vld [vmem:[%s251 + $0xa50] sm:$0xff]
        %v607 = vld [vmem:[%s251 + $0xa58] sm:$0xff]
        %v608 = vld [vmem:[%s251 + $0xa60] sm:$0xff]
        %v609 = vld [vmem:[%s251 + $0xa68] sm:$0xff]
        %v610 = vld [vmem:[%s251 + $0xa70] sm:$0xff]
        %v611 = vld [vmem:[%s251 + $0xa78] sm:$0xff]
        %v612 = vld [vmem:[%s251 + $0xa80] sm:$0xff]
        %v613 = vld [vmem:[%s251 + $0xa88] sm:$0xff]
        %v614 = vld [vmem:[%s251 + $0xa90] sm:$0xff]
        %v615 = vld [vmem:[%s251 + $0xa98] sm:$0xff]
        %v616 = vld [vmem:[%s251 + $0xaa0] sm:$0xff]
        %v617 = vld [vmem:[%s251 + $0xaa8] sm:$0xff]
        %v618 = vld [vmem:[%s251 + $0xab0] sm:$0xff]
        %v619 = vld [vmem:[%s251 + $0xab8] sm:$0xff]
        %v620 = vld [vmem:[%s251 + $0xac0] sm:$0xff]
        %v621 = vld [vmem:[%s251 + $0xac8] sm:$0xff]
        %v622 = vld [vmem:[%s251 + $0xad0] sm:$0xff]
        %v623 = vld [vmem:[%s251 + $0xad8] sm:$0xff]
        %v624 = vld [vmem:[%s251 + $0xae0] sm:$0xff]
        %v625 = vld [vmem:[%s251 + $0xae8] sm:$0xff]
        %v626 = vld [vmem:[%s251 + $0xaf0] sm:$0xff]
        %v627 = vld [vmem:[%s251 + $0xaf8] sm:$0xff]
        %v628 = vld [vmem:[%s251 + $0xb00] sm:$0xff]
        %v629 = vld [vmem:[%s251 + $0xb08] sm:$0xff]
        %v630 = vld [vmem:[%s251 + $0xb10] sm:$0xff]
        %v631 = vld [vmem:[%s251 + $0xb18] sm:$0xff]
        %v632 = vld [vmem:[%s251 + $0xb20] sm:$0xff]
        %v633 = vld [vmem:[%s251 + $0xb28] sm:$0xff]
        %v634 = vld [vmem:[%s251 + $0xb30] sm:$0xff]
        %v635 = vld [vmem:[%s251 + $0xb38] sm:$0xff]
        %v636 = vld [vmem:[%s251 + $0xb40] sm:$0xff]
        %v637 = vld [vmem:[%s251 + $0xb48] sm:$0xff]
        %v638 = vld [vmem:[%s251 + $0xb50] sm:$0xff]
        %v639 = vld [vmem:[%s251 + $0xb58] sm:$0xff]
        %v640 = vld [vmem:[%s251 + $0xb60] sm:$0xff]
        %v641 = vld [vmem:[%s251 + $0xb68] sm:$0xff]
        %v642 = vld [vmem:[%s251 + $0xb70] sm:$0xff]
        %v643 = vld [vmem:[%s251 + $0xb78] sm:$0xff]
        %v644 = vld [vmem:[%s251 + $0xb80] sm:$0xff]
        %v645 = vld [vmem:[%s251 + $0xb88] sm:$0xff]
        %v646 = vld [vmem:[%s251 + $0xb90] sm:$0xff]
        %v647 = vld [vmem:[%s251 + $0xb98] sm:$0xff]
        %v648 = vld [vmem:[%s251 + $0xba0] sm:$0xff]
        %v649 = vld [vmem:[%s251 + $0xba8] sm:$0xff]
        %v650 = vld [vmem:[%s251 + $0xbb0] sm:$0xff]
        %v651 = vld [vmem:[%s251 + $0xbb8] sm:$0xff]
        %v652 = vld [vmem:[%s251 + $0xbc0] sm:$0xff]
        %v653 = vld [vmem:[%s251 + $0xbc8] sm:$0xff]
        %v654 = vld [vmem:[%s251 + $0xbd0] sm:$0xff]
        %v655 = vld [vmem:[%s251 + $0xbd8] sm:$0xff]
        %v656 = vld [vmem:[%s251 + $0xbe0] sm:$0xff]
        %v657 = vld [vmem:[%s251 + $0xbe8] sm:$0xff]
        %v658 = vld [vmem:[%s251 + $0xbf0] sm:$0xff]
        %v659 = vld [vmem:[%s251 + $0xbf8] sm:$0xff]
        %v660 = vld [vmem:[%s251 + $0xc00] sm:$0xff]
        %v661 = vld [vmem:[%s251 + $0xc08] sm:$0xff]
        %v662 = vld [vmem:[%s251 + $0xc10] sm:$0xff]
        %v663 = vld [vmem:[%s251 + $0xc18] sm:$0xff]
        %v664 = vld [vmem:[%s251 + $0xc20] sm:$0xff]
        %v665 = vld [vmem:[%s251 + $0xc28] sm:$0xff]
        %v666 = vld [vmem:[%s251 + $0xc30] sm:$0xff]
        %v667 = vld [vmem:[%s251 + $0xc38] sm:$0xff]
        %v668 = vld [vmem:[%s251 + $0xc40] sm:$0xff]
        %v669 = vld [vmem:[%s251 + $0xc48] sm:$0xff]
        %v670 = vld [vmem:[%s251 + $0xc50] sm:$0xff]
        %v671 = vld [vmem:[%s251 + $0xc58] sm:$0xff]
        %v672 = vld [vmem:[%s251 + $0xc60] sm:$0xff]
        %v673 = vld [vmem:[%s251 + $0xc68] sm:$0xff]
        %v674 = vld [vmem:[%s251 + $0xc70] sm:$0xff]
        %v675 = vld [vmem:[%s251 + $0xc78] sm:$0xff]
        %v676 = vld [vmem:[%s251 + $0xc80] sm:$0xff]
        %v677 = vld [vmem:[%s251 + $0xc88] sm:$0xff]
        %v678 = vld [vmem:[%s251 + $0xc90] sm:$0xff]
        %v679 = vld [vmem:[%s251 + $0xc98] sm:$0xff]
        %v680 = vld [vmem:[%s251 + $0xca0] sm:$0xff]
        %v681 = vld [vmem:[%s251 + $0xca8] sm:$0xff]
        %v682 = vld [vmem:[%s251 + $0xcb0] sm:$0xff]
        %v683 = vld [vmem:[%s251 + $0xcb8] sm:$0xff]
        %v684 = vld [vmem:[%s251 + $0xcc0] sm:$0xff]
        %v685 = vld [vmem:[%s251 + $0xcc8] sm:$0xff]
        %v686 = vld [vmem:[%s251 + $0xcd0] sm:$0xff]
        %v687 = vld [vmem:[%s251 + $0xcd8] sm:$0xff]
        %v688 = vld [vmem:[%s251 + $0xce0] sm:$0xff]
        %v689 = vld [vmem:[%s251 + $0xce8] sm:$0xff]
        %v690 = vld [vmem:[%s251 + $0xcf0] sm:$0xff]
        %v691 = vld [vmem:[%s251 + $0xcf8] sm:$0xff]
        %v692 = vld [vmem:[%s251 + $0xd00] sm:$0xff]
        %v693 = vld [vmem:[%s251 + $0xd08] sm:$0xff]
        %v694 = vld [vmem:[%s251 + $0xd10] sm:$0xff]
        %v695 = vld [vmem:[%s251 + $0xd18] sm:$0xff]
        %v696 = vld [vmem:[%s251 + $0xd20] sm:$0xff]
        %v697 = vld [vmem:[%s251 + $0xd28] sm:$0xff]
        %v698 = vld [vmem:[%s251 + $0xd30] sm:$0xff]
        %v699 = vld [vmem:[%s251 + $0xd38] sm:$0xff]
        %v700 = vld [vmem:[%s251 + $0xd40] sm:$0xff]
        %v701 = vld [vmem:[%s251 + $0xd48] sm:$0xff]
        %v702 = vld [vmem:[%s251 + $0xd50] sm:$0xff]
        %v703 = vld [vmem:[%s251 + $0xd58] sm:$0xff]
        %v704 = vld [vmem:[%s251 + $0xd60] sm:$0xff]
        %v705 = vld [vmem:[%s251 + $0xd68] sm:$0xff]
        %v706 = vld [vmem:[%s251 + $0xd70] sm:$0xff]
        %v707 = vld [vmem:[%s251 + $0xd78] sm:$0xff]
        %v708 = vld [vmem:[%s251 + $0xd80] sm:$0xff]
        %v709 = vld [vmem:[%s251 + $0xd88] sm:$0xff]
        %v710 = vld [vmem:[%s251 + $0xd90] sm:$0xff]
        %v711 = vld [vmem:[%s251 + $0xd98] sm:$0xff]
        %v712 = vld [vmem:[%s251 + $0xda0] sm:$0xff]
        %v713 = vld [vmem:[%s251 + $0xda8] sm:$0xff]
        %v714 = vld [vmem:[%s251 + $0xdb0] sm:$0xff]
        %v715 = vld [vmem:[%s251 + $0xdb8] sm:$0xff]
        %v716 = vld [vmem:[%s251 + $0xdc0] sm:$0xff]
        %v717 = vld [vmem:[%s251 + $0xdc8] sm:$0xff]
        %v718 = vld [vmem:[%s251 + $0xdd0] sm:$0xff]
        %v719 = vld [vmem:[%s251 + $0xdd8] sm:$0xff]
        %v720 = vld [vmem:[%s251 + $0xde0] sm:$0xff]
        %v721 = vld [vmem:[%s251 + $0xde8] sm:$0xff]
        %v722 = vld [vmem:[%s251 + $0xdf0] sm:$0xff]
        %v723 = vld [vmem:[%s251 + $0xdf8] sm:$0xff]
        %v724 = vld [vmem:[%s251 + $0xe00] sm:$0xff]
        %v725 = vld [vmem:[%s251 + $0xe08] sm:$0xff]
        %v726 = vld [vmem:[%s251 + $0xe10] sm:$0xff]
        %v727 = vld [vmem:[%s251 + $0xe18] sm:$0xff]
        %v728 = vld [vmem:[%s251 + $0xe20] sm:$0xff]
        %v729 = vld [vmem:[%s251 + $0xe28] sm:$0xff]
        %v730 = vld [vmem:[%s251 + $0xe30] sm:$0xff]
        %v731 = vld [vmem:[%s251 + $0xe38] sm:$0xff]
        %v732 = vld [vmem:[%s251 + $0xe40] sm:$0xff]
        %v733 = vld [vmem:[%s251 + $0xe48] sm:$0xff]
        %v734 = vld [vmem:[%s251 + $0xe50] sm:$0xff]
        %v735 = vld [vmem:[%s251 + $0xe58] sm:$0xff]
        %v736 = vld [vmem:[%s251 + $0xe60] sm:$0xff]
        %v737 = vld [vmem:[%s251 + $0xe68] sm:$0xff]
        %v738 = vld [vmem:[%s251 + $0xe70] sm:$0xff]
        %v739 = vld [vmem:[%s251 + $0xe78] sm:$0xff]
        %v740 = vld [vmem:[%s251 + $0xe80] sm:$0xff]
        %v741 = vld [vmem:[%s251 + $0xe88] sm:$0xff]
        %v742 = vld [vmem:[%s251 + $0xe90] sm:$0xff]
        %v743 = vld [vmem:[%s251 + $0xe98] sm:$0xff]
        %v744 = vld [vmem:[%s251 + $0xea0] sm:$0xff]
        %v745 = vld [vmem:[%s251 + $0xea8] sm:$0xff]
        %v746 = vld [vmem:[%s251 + $0xeb0] sm:$0xff]
        %v747 = vld [vmem:[%s251 + $0xeb8] sm:$0xff]
        %v748 = vld [vmem:[%s251 + $0xec0] sm:$0xff]
        %v749 = vld [vmem:[%s251 + $0xec8] sm:$0xff]
        %v750 = vld [vmem:[%s251 + $0xed0] sm:$0xff]
        %v751 = vld [vmem:[%s251 + $0xed8] sm:$0xff]
        %v752 = vld [vmem:[%s251 + $0xee0] sm:$0xff]
        %v753 = vld [vmem:[%s251 + $0xee8] sm:$0xff]
        %v754 = vld [vmem:[%s251 + $0xef0] sm:$0xff]
        %v755 = vld [vmem:[%s251 + $0xef8] sm:$0xff]
        %v756 = vld [vmem:[%s251 + $0xf00] sm:$0xff]
        %v757 = vld [vmem:[%s251 + $0xf08] sm:$0xff]
        %v758 = vld [vmem:[%s251 + $0xf10] sm:$0xff]
        %v759 = vld [vmem:[%s251 + $0xf18] sm:$0xff]
        %v760 = vld [vmem:[%s251 + $0xf20] sm:$0xff]
        %v761 = vld [vmem:[%s251 + $0xf28] sm:$0xff]
        %v762 = vld [vmem:[%s251 + $0xf30] sm:$0xff]
        %v763 = vld [vmem:[%s251 + $0xf38] sm:$0xff]
        %v764 = vld [vmem:[%s251 + $0xf40] sm:$0xff]
        %v765 = vld [vmem:[%s251 + $0xf48] sm:$0xff]
        %v766 = vld [vmem:[%s251 + $0xf50] sm:$0xff]
        %v767 = vld [vmem:[%s251 + $0xf58] sm:$0xff]
        %v768 = vld [vmem:[%s251 + $0xf60] sm:$0xff]
        %v769 = vld [vmem:[%s251 + $0xf68] sm:$0xff]
        %v770 = vld [vmem:[%s251 + $0xf70] sm:$0xff]
        %v771 = vld [vmem:[%s251 + $0xf78] sm:$0xff]
        %v772 = vld [vmem:[%s251 + $0xf80] sm:$0xff]
        %v773 = vld [vmem:[%s251 + $0xf88] sm:$0xff]
        %v774 = vld [vmem:[%s251 + $0xf90] sm:$0xff]
        %v775 = vld [vmem:[%s251 + $0xf98] sm:$0xff]
        %v776 = vld [vmem:[%s251 + $0xfa0] sm:$0xff]
        %v777 = vld [vmem:[%s251 + $0xfa8] sm:$0xff]
        %v778 = vld [vmem:[%s251 + $0xfb0] sm:$0xff]
        %v779 = vld [vmem:[%s251 + $0xfb8] sm:$0xff]
        %v780 = vld [vmem:[%s251 + $0xfc0] sm:$0xff]
        %v781 = vld [vmem:[%s251 + $0xfc8] sm:$0xff]
        %v782 = vld [vmem:[%s251 + $0xfd0] sm:$0xff]
        %v783 = vld [vmem:[%s251 + $0xfd8] sm:$0xff]
        %v784 = vld [vmem:[%s251 + $0xfe0] sm:$0xff]
        %v785 = vld [vmem:[%s251 + $0xfe8] sm:$0xff]
        %v786 = vld [vmem:[%s251 + $0xff0] sm:$0xff]
        %v787 = vld [vmem:[%s251 + $0xff8] sm:$0xff]
        %v788 = vld [vmem:[%s251 + $0x1000] sm:$0xff]
        %v789 = vld [vmem:[%s251 + $0x1008] sm:$0xff]
        %v790 = vld [vmem:[%s251 + $0x1010] sm:$0xff]
        %v791 = vld [vmem:[%s251 + $0x1018] sm:$0xff]
        %v792 = vld [vmem:[%s251 + $0x1020] sm:$0xff]
        %v793 = vld [vmem:[%s251 + $0x1028] sm:$0xff]
        %v794 = vld [vmem:[%s251 + $0x1030] sm:$0xff]
        %v795 = vld [vmem:[%s251 + $0x1038] sm:$0xff]
        %v796 = vld [vmem:[%s251 + $0x1040] sm:$0xff]
        %v797 = vld [vmem:[%s251 + $0x1048] sm:$0xff]
        %v798 = vld [vmem:[%s251 + $0x1050] sm:$0xff]
        %v799 = vld [vmem:[%s251 + $0x1058] sm:$0xff]
        %v800 = vld [vmem:[%s251 + $0x1060] sm:$0xff]
        %v801 = vld [vmem:[%s251 + $0x1068] sm:$0xff]
        %v802 = vld [vmem:[%s251 + $0x1070] sm:$0xff]
        %v803 = vld [vmem:[%s251 + $0x1078] sm:$0xff]
        %v804 = vld [vmem:[%s251 + $0x1080] sm:$0xff]
        %v805 = vld [vmem:[%s251 + $0x1088] sm:$0xff]
        %v806 = vld [vmem:[%s251 + $0x1090] sm:$0xff]
        %v807 = vld [vmem:[%s251 + $0x1098] sm:$0xff]
        %v808 = vld [vmem:[%s251 + $0x10a0] sm:$0xff]
        %v809 = vld [vmem:[%s251 + $0x10a8] sm:$0xff]
        %v810 = vld [vmem:[%s251 + $0x10b0] sm:$0xff]
        %v811 = vld [vmem:[%s251 + $0x10b8] sm:$0xff]
        %v812 = vld [vmem:[%s251 + $0x10c0] sm:$0xff]
        %v813 = vld [vmem:[%s251 + $0x10c8] sm:$0xff]
        %v814 = vld [vmem:[%s251 + $0x10d0] sm:$0xff]
        %v815 = vld [vmem:[%s251 + $0x10d8] sm:$0xff]
        %v816 = vld [vmem:[%s251 + $0x10e0] sm:$0xff]
        %v817 = vld [vmem:[%s251 + $0x10e8] sm:$0xff]
        %v818 = vld [vmem:[%s251 + $0x10f0] sm:$0xff]
        %v819 = vld [vmem:[%s251 + $0x10f8] sm:$0xff]
        %v820 = vld [vmem:[%s251 + $0x1100] sm:$0xff]
        %v821 = vld [vmem:[%s251 + $0x1108] sm:$0xff]
        %v822 = vld [vmem:[%s251 + $0x1110] sm:$0xff]
        %v823 = vld [vmem:[%s251 + $0x1118] sm:$0xff]
        %v824 = vld [vmem:[%s251 + $0x1120] sm:$0xff]
        %v825 = vld [vmem:[%s251 + $0x1128] sm:$0xff]
        %v826 = vld [vmem:[%s251 + $0x1130] sm:$0xff]
        %v827 = vld [vmem:[%s251 + $0x1138] sm:$0xff]
        %v828 = vld [vmem:[%s251 + $0x1140] sm:$0xff]
        %v829 = vld [vmem:[%s251 + $0x1148] sm:$0xff]
        %v830 = vld [vmem:[%s251 + $0x1150] sm:$0xff]
        %v831 = vld [vmem:[%s251 + $0x1158] sm:$0xff]
        %v832 = vld [vmem:[%s251 + $0x1160] sm:$0xff]
        %v833 = vld [vmem:[%s251 + $0x1168] sm:$0xff]
        %v834 = vld [vmem:[%s251 + $0x1170] sm:$0xff]
        %v835 = vld [vmem:[%s251 + $0x1178] sm:$0xff]
        %v836 = vld [vmem:[%s251 + $0x1180] sm:$0xff]
        %v837 = vld [vmem:[%s251 + $0x1188] sm:$0xff]
        %v838 = vld [vmem:[%s251 + $0x1190] sm:$0xff]
        %v839 = vld [vmem:[%s251 + $0x1198] sm:$0xff]
        %v840 = vld [vmem:[%s251 + $0x11a0] sm:$0xff]
        %v841 = vld [vmem:[%s251 + $0x11a8] sm:$0xff]
        %v842 = vld [vmem:[%s251 + $0x11b0] sm:$0xff]
        %v843 = vld [vmem:[%s251 + $0x11b8] sm:$0xff]
        %v844 = vld [vmem:[%s251 + $0x11c0] sm:$0xff]
        %v845 = vld [vmem:[%s251 + $0x11c8] sm:$0xff]
        %v846 = vld [vmem:[%s251 + $0x11d0] sm:$0xff]
        %v847 = vld [vmem:[%s251 + $0x11d8] sm:$0xff]
        %v848 = vld [vmem:[%s251 + $0x11e0] sm:$0xff]
        %v849 = vld [vmem:[%s251 + $0x11e8] sm:$0xff]
        %v850 = vld [vmem:[%s251 + $0x11f0] sm:$0xff]
        %v851 = vld [vmem:[%s251 + $0x11f8] sm:$0xff]
        %v852 = vld [vmem:[%s251 + $0x1200] sm:$0xff]
        %v853 = vld [vmem:[%s251 + $0x1208] sm:$0xff]
        %v854 = vld [vmem:[%s251 + $0x1210] sm:$0xff]
        %v855 = vld [vmem:[%s251 + $0x1218] sm:$0xff]
        %v856 = vld [vmem:[%s251 + $0x1220] sm:$0xff]
        %v857 = vld [vmem:[%s251 + $0x1228] sm:$0xff]
        %v858 = vld [vmem:[%s251 + $0x1230] sm:$0xff]
        %v859 = vld [vmem:[%s251 + $0x1238] sm:$0xff]
        %v860 = vld [vmem:[%s251 + $0x1240] sm:$0xff]
        %v861 = vld [vmem:[%s251 + $0x1248] sm:$0xff]
        %v862 = vld [vmem:[%s251 + $0x1250] sm:$0xff]
        %v863 = vld [vmem:[%s251 + $0x1258] sm:$0xff]
        %v864 = vld [vmem:[%s251 + $0x1260] sm:$0xff]
        %v865 = vld [vmem:[%s251 + $0x1268] sm:$0xff]
        %v866 = vld [vmem:[%s251 + $0x1270] sm:$0xff]
        %v867 = vld [vmem:[%s251 + $0x1278] sm:$0xff]
        %v868 = vld [vmem:[%s251 + $0x1280] sm:$0xff]
        %v869 = vld [vmem:[%s251 + $0x1288] sm:$0xff]
        %v870 = vld [vmem:[%s251 + $0x1290] sm:$0xff]
        %v871 = vld [vmem:[%s251 + $0x1298] sm:$0xff]
        %v872 = vld [vmem:[%s251 + $0x12a0] sm:$0xff]
        %v873 = vld [vmem:[%s251 + $0x12a8] sm:$0xff]
        %v874 = vld [vmem:[%s251 + $0x12b0] sm:$0xff]
        %v875 = vld [vmem:[%s251 + $0x12b8] sm:$0xff]
        %v876 = vld [vmem:[%s251 + $0x12c0] sm:$0xff]
        %v877 = vld [vmem:[%s251 + $0x12c8] sm:$0xff]
        %v878 = vld [vmem:[%s251 + $0x12d0] sm:$0xff]
        %v879 = vld [vmem:[%s251 + $0x12d8] sm:$0xff]
        %v880 = vld [vmem:[%s251 + $0x12e0] sm:$0xff]
        %v881 = vld [vmem:[%s251 + $0x12e8] sm:$0xff]
        %v882 = vld [vmem:[%s251 + $0x12f0] sm:$0xff]
        %v883 = vld [vmem:[%s251 + $0x12f8] sm:$0xff]
        %v884 = vld [vmem:[%s251 + $0x1300] sm:$0xff]
        %v885 = vld [vmem:[%s251 + $0x1308] sm:$0xff]
        %v886 = vld [vmem:[%s251 + $0x1310] sm:$0xff]
        %v887 = vld [vmem:[%s251 + $0x1318] sm:$0xff]
        %v888 = vld [vmem:[%s251 + $0x1320] sm:$0xff]
        %v889 = vld [vmem:[%s251 + $0x1328] sm:$0xff]
        %v890 = vld [vmem:[%s251 + $0x1330] sm:$0xff]
        %v891 = vld [vmem:[%s251 + $0x1338] sm:$0xff]
        %v892 = vld [vmem:[%s251 + $0x1340] sm:$0xff]
        %v893 = vld [vmem:[%s251 + $0x1348] sm:$0xff]
        %v894 = vld [vmem:[%s251 + $0x1350] sm:$0xff]
        %v895 = vld [vmem:[%s251 + $0x1358] sm:$0xff]
        %v896 = vld [vmem:[%s251 + $0x1360] sm:$0xff]
        %v897 = vld [vmem:[%s251 + $0x1368] sm:$0xff]
        %v898 = vld [vmem:[%s251 + $0x1370] sm:$0xff]
        %v899 = vld [vmem:[%s251 + $0x1378] sm:$0xff]
        %v900 = vld [vmem:[%s251 + $0x1380] sm:$0xff]
        %v901 = vld [vmem:[%s251 + $0x1388] sm:$0xff]
        %v902 = vld [vmem:[%s251 + $0x1390] sm:$0xff]
        %v903 = vld [vmem:[%s251 + $0x1398] sm:$0xff]
        %v904 = vld [vmem:[%s251 + $0x13a0] sm:$0xff]
        %v905 = vld [vmem:[%s251 + $0x13a8] sm:$0xff]
        %v906 = vld [vmem:[%s251 + $0x13b0] sm:$0xff]
        %v907 = vld [vmem:[%s251 + $0x13b8] sm:$0xff]
        %v908 = vld [vmem:[%s251 + $0x13c0] sm:$0xff]
        %v909 = vld [vmem:[%s251 + $0x13c8] sm:$0xff]
        %v910 = vld [vmem:[%s251 + $0x13d0] sm:$0xff]
        %v911 = vld [vmem:[%s251 + $0x13d8] sm:$0xff]
        %v912 = vld [vmem:[%s251 + $0x13e0] sm:$0xff]
        %v913 = vld [vmem:[%s251 + $0x13e8] sm:$0xff]
        %v914 = vld [vmem:[%s251 + $0x13f0] sm:$0xff]
        %v915 = vld [vmem:[%s251 + $0x13f8] sm:$0xff]
        %v916 = vld [vmem:[%s251 + $0x1400] sm:$0xff]
        %v917 = vld [vmem:[%s251 + $0x1408] sm:$0xff]
        %v918 = vld [vmem:[%s251 + $0x1410] sm:$0xff]
        %v919 = vld [vmem:[%s251 + $0x1418] sm:$0xff]
        %v920 = vld [vmem:[%s251 + $0x1420] sm:$0xff]
        %v921 = vld [vmem:[%s251 + $0x1428] sm:$0xff]
        %v922 = vld [vmem:[%s251 + $0x1430] sm:$0xff]
        %v923 = vld [vmem:[%s251 + $0x1438] sm:$0xff]
        %v924 = vld [vmem:[%s251 + $0x1440] sm:$0xff]
        %v925 = vld [vmem:[%s251 + $0x1448] sm:$0xff]
        %v926 = vld [vmem:[%s251 + $0x1450] sm:$0xff]
        %v927 = vld [vmem:[%s251 + $0x1458] sm:$0xff]
        %v928 = vld [vmem:[%s251 + $0x1460] sm:$0xff]
        %v929 = vld [vmem:[%s251 + $0x1468] sm:$0xff]
        %v930 = vld [vmem:[%s251 + $0x1470] sm:$0xff]
        %v931 = vld [vmem:[%s251 + $0x1478] sm:$0xff]
        %v932 = vld [vmem:[%s251 + $0x1480] sm:$0xff]
        %v933 = vld [vmem:[%s251 + $0x1488] sm:$0xff]
        %v934 = vld [vmem:[%s251 + $0x1490] sm:$0xff]
        %v935 = vld [vmem:[%s251 + $0x1498] sm:$0xff]
        %v936 = vld [vmem:[%s251 + $0x14a0] sm:$0xff]
        %v937 = vld [vmem:[%s251 + $0x14a8] sm:$0xff]
        %v938 = vld [vmem:[%s251 + $0x14b0] sm:$0xff]
        %v939 = vld [vmem:[%s251 + $0x14b8] sm:$0xff]
        %v940 = vld [vmem:[%s251 + $0x14c0] sm:$0xff]
        %v941 = vld [vmem:[%s251 + $0x14c8] sm:$0xff]
        %v942 = vld [vmem:[%s251 + $0x14d0] sm:$0xff]
        %v943 = vld [vmem:[%s251 + $0x14d8] sm:$0xff]
        %v944 = vld [vmem:[%s251 + $0x14e0] sm:$0xff]
        %v945 = vld [vmem:[%s251 + $0x14e8] sm:$0xff]
        %v946 = vld [vmem:[%s251 + $0x14f0] sm:$0xff]
        %v947 = vld [vmem:[%s251 + $0x14f8] sm:$0xff]
        %v948 = vld [vmem:[%s251 + $0x1500] sm:$0xff]
        %v949 = vld [vmem:[%s251 + $0x1508] sm:$0xff]
        %v950 = vld [vmem:[%s251 + $0x1510] sm:$0xff]
        %v951 = vld [vmem:[%s251 + $0x1518] sm:$0xff]
        %v952 = vld [vmem:[%s251 + $0x1520] sm:$0xff]
        %v953 = vld [vmem:[%s251 + $0x1528] sm:$0xff]
        %v954 = vld [vmem:[%s251 + $0x1530] sm:$0xff]
        %v955 = vld [vmem:[%s251 + $0x1538] sm:$0xff]
        %v956 = vld [vmem:[%s251 + $0x1540] sm:$0xff]
        %v957 = vld [vmem:[%s251 + $0x1548] sm:$0xff]
        %v958 = vld [vmem:[%s251 + $0x1550] sm:$0xff]
        %v959 = vld [vmem:[%s251 + $0x1558] sm:$0xff]
        %v960 = vld [vmem:[%s251 + $0x1560] sm:$0xff]
        %v961 = vld [vmem:[%s251 + $0x1568] sm:$0xff]
        %v962 = vld [vmem:[%s251 + $0x1570] sm:$0xff]
        %v963 = vld [vmem:[%s251 + $0x1578] sm:$0xff]
        %v964 = vld [vmem:[%s251 + $0x1580] sm:$0xff]
        %v965 = vld [vmem:[%s251 + $0x1588] sm:$0xff]
        %v966 = vld [vmem:[%s251 + $0x1590] sm:$0xff]
        %v967 = vld [vmem:[%s251 + $0x1598] sm:$0xff]
        %v968 = vld [vmem:[%s251 + $0x15a0] sm:$0xff]
        %v969 = vld [vmem:[%s251 + $0x15a8] sm:$0xff]
        %v970 = vld [vmem:[%s251 + $0x15b0] sm:$0xff]
        %v971 = vld [vmem:[%s251 + $0x15b8] sm:$0xff]
        %v972 = vld [vmem:[%s251 + $0x15c0] sm:$0xff]
        %v973 = vld [vmem:[%s251 + $0x15c8] sm:$0xff]
        %v974 = vld [vmem:[%s251 + $0x15d0] sm:$0xff]
        %v975 = vld [vmem:[%s251 + $0x15d8] sm:$0xff]
        %v976 = vld [vmem:[%s251 + $0x15e0] sm:$0xff]
        %v977 = vld [vmem:[%s251 + $0x15e8] sm:$0xff]
        %v978 = vld [vmem:[%s251 + $0x15f0] sm:$0xff]
        %v979 = vld [vmem:[%s251 + $0x15f8] sm:$0xff]
        %v980 = vld [vmem:[%s251 + $0x1600] sm:$0xff]
        %v981 = vld [vmem:[%s251 + $0x1608] sm:$0xff]
        %v982 = vld [vmem:[%s251 + $0x1610] sm:$0xff]
        %v983 = vld [vmem:[%s251 + $0x1618] sm:$0xff]
        %v984 = vld [vmem:[%s251 + $0x1620] sm:$0xff]
        %v985 = vld [vmem:[%s251 + $0x1628] sm:$0xff]
        %v986 = vld [vmem:[%s251 + $0x1630] sm:$0xff]
        %v987 = vld [vmem:[%s251 + $0x1638] sm:$0xff]
        %v988 = vld [vmem:[%s251 + $0x1640] sm:$0xff]
        %v989 = vld [vmem:[%s251 + $0x1648] sm:$0xff]
        %v990 = vld [vmem:[%s251 + $0x1650] sm:$0xff]
        %v991 = vld [vmem:[%s251 + $0x1658] sm:$0xff]
        %v992 = vld [vmem:[%s251 + $0x1660] sm:$0xff]
        %v993 = vld [vmem:[%s251 + $0x1668] sm:$0xff]
        %v994 = vld [vmem:[%s251 + $0x1670] sm:$0xff]
        %v995 = vld [vmem:[%s251 + $0x1678] sm:$0xff]
        %v996 = vld [vmem:[%s251 + $0x1680] sm:$0xff]
        %v997 = vld [vmem:[%s251 + $0x1688] sm:$0xff]
        %v998 = vld [vmem:[%s251 + $0x1690] sm:$0xff]
        %v999 = vld [vmem:[%s251 + $0x1698] sm:$0xff]
        %v1000 = vld [vmem:[%s251 + $0x16a0] sm:$0xff]
        %v1001 = vld [vmem:[%s251 + $0x16a8] sm:$0xff]
        %v1002 = vld [vmem:[%s251 + $0x16b0] sm:$0xff]
        %v1003 = vld [vmem:[%s251 + $0x16b8] sm:$0xff]
        %v1004 = vld [vmem:[%s251 + $0x16c0] sm:$0xff]
        %v1005 = vld [vmem:[%s251 + $0x16c8] sm:$0xff]
        %v1006 = vld [vmem:[%s251 + $0x16d0] sm:$0xff]
        %v1007 = vld [vmem:[%s251 + $0x16d8] sm:$0xff]
        %v1008 = vld [vmem:[%s251 + $0x16e0] sm:$0xff]
        %v1009 = vld [vmem:[%s251 + $0x16e8] sm:$0xff]
        %v1010 = vld [vmem:[%s251 + $0x16f0] sm:$0xff]
        %v1011 = vld [vmem:[%s251 + $0x16f8] sm:$0xff]
        %v1012 = vld [vmem:[%s251 + $0x1700] sm:$0xff]
        %v1013 = vld [vmem:[%s251 + $0x1708] sm:$0xff]
        %v1014 = vld [vmem:[%s251 + $0x1710] sm:$0xff]
        %v1015 = vld [vmem:[%s251 + $0x1718] sm:$0xff]
        %v1016 = vld [vmem:[%s251 + $0x1720] sm:$0xff]
        %v1017 = vld [vmem:[%s251 + $0x1728] sm:$0xff]
        %v1018 = vld [vmem:[%s251 + $0x1730] sm:$0xff]
        %v1019 = vld [vmem:[%s251 + $0x1738] sm:$0xff]
        %v1020 = vld [vmem:[%s251 + $0x1740] sm:$0xff]
        %v1021 = vld [vmem:[%s251 + $0x1748] sm:$0xff]
        %v1022 = vld [vmem:[%s251 + $0x1750] sm:$0xff]
        %v1023 = vld [vmem:[%s251 + $0x1758] sm:$0xff]
        %v1024 = vld [vmem:[%s251 + $0x1760] sm:$0xff]
        %v1025 = vld [vmem:[%s251 + $0x1768] sm:$0xff]
        %v1026 = vld [vmem:[%s251 + $0x1770] sm:$0xff]
        %v1027 = vld [vmem:[%s251 + $0x1778] sm:$0xff]
        %v1028 = vld [vmem:[%s251 + $0x1780] sm:$0xff]
        %v1029 = vld [vmem:[%s251 + $0x1788] sm:$0xff]
        %v1030 = vld [vmem:[%s251 + $0x1790] sm:$0xff]
        %v1031 = vld [vmem:[%s251 + $0x1798] sm:$0xff]
        %v1032 = vld [vmem:[%s251 + $0x17a0] sm:$0xff]
        %v1033 = vld [vmem:[%s251 + $0x17a8] sm:$0xff]
        %v1034 = vld [vmem:[%s251 + $0x17b0] sm:$0xff]
        %v1035 = vld [vmem:[%s251 + $0x17b8] sm:$0xff]
        %v1036 = vld [vmem:[%s251 + $0x17c0] sm:$0xff]
        %v1037 = vld [vmem:[%s251 + $0x17c8] sm:$0xff]
        %v1038 = vld [vmem:[%s251 + $0x17d0] sm:$0xff]
        %v1039 = vld [vmem:[%s251 + $0x17d8] sm:$0xff]
        %v1040 = vld [vmem:[%s251 + $0x17e0] sm:$0xff]
        %v1041 = vld [vmem:[%s251 + $0x17e8] sm:$0xff]
        %v1042 = vld [vmem:[%s251 + $0x17f0] sm:$0xff]
        %v1043 = vld [vmem:[%s251 + $0x17f8] sm:$0xff]
        %v1044 = vld [vmem:[%s251 + $0x1800] sm:$0xff]
        %v1045 = vld [vmem:[%s251 + $0x1808] sm:$0xff]
        %v1046 = vld [vmem:[%s251 + $0x1810] sm:$0xff]
        %v1047 = vld [vmem:[%s251 + $0x1818] sm:$0xff]
        %v1048 = vld [vmem:[%s251 + $0x1820] sm:$0xff]
        %v1049 = vld [vmem:[%s251 + $0x1828] sm:$0xff]
        %v1050 = vld [vmem:[%s251 + $0x1830] sm:$0xff]
        %v1051 = vld [vmem:[%s251 + $0x1838] sm:$0xff]
        %v1052 = vld [vmem:[%s251 + $0x1840] sm:$0xff]
        %v1053 = vld [vmem:[%s251 + $0x1848] sm:$0xff]
        %v1054 = vld [vmem:[%s251 + $0x1850] sm:$0xff]
        %v1055 = vld [vmem:[%s251 + $0x1858] sm:$0xff]
        %v1056 = vld [vmem:[%s251 + $0x1860] sm:$0xff]
        %v1057 = vld [vmem:[%s251 + $0x1868] sm:$0xff]
        %v1058 = vld [vmem:[%s251 + $0x1870] sm:$0xff]
        %v1059 = vld [vmem:[%s251 + $0x1878] sm:$0xff]
        %v1060 = vld [vmem:[%s251 + $0x1880] sm:$0xff]
        %v1061 = vld [vmem:[%s251 + $0x1888] sm:$0xff]
        %v1062 = vld [vmem:[%s251 + $0x1890] sm:$0xff]
        %v1063 = vld [vmem:[%s251 + $0x1898] sm:$0xff]
        %v1064 = vld [vmem:[%s251 + $0x18a0] sm:$0xff]
        %v1065 = vld [vmem:[%s251 + $0x18a8] sm:$0xff]
        %v1066 = vld [vmem:[%s251 + $0x18b0] sm:$0xff]
        %v1067 = vld [vmem:[%s251 + $0x18b8] sm:$0xff]
        %v1068 = vld [vmem:[%s251 + $0x18c0] sm:$0xff]
        %v1069 = vld [vmem:[%s251 + $0x18c8] sm:$0xff]
        %v1070 = vld [vmem:[%s251 + $0x18d0] sm:$0xff]
        %v1071 = vld [vmem:[%s251 + $0x18d8] sm:$0xff]
        %v1072 = vld [vmem:[%s251 + $0x18e0] sm:$0xff]
        %v1073 = vld [vmem:[%s251 + $0x18e8] sm:$0xff]
        %v1074 = vld [vmem:[%s251 + $0x18f0] sm:$0xff]
        %v1075 = vld [vmem:[%s251 + $0x18f8] sm:$0xff]
        %v1076 = vld [vmem:[%s251 + $0x1900] sm:$0xff]
        %v1077 = vld [vmem:[%s251 + $0x1908] sm:$0xff]
        %v1078 = vld [vmem:[%s251 + $0x1910] sm:$0xff]
        %v1079 = vld [vmem:[%s251 + $0x1918] sm:$0xff]
        %v1080 = vld [vmem:[%s251 + $0x1920] sm:$0xff]
        %v1081 = vld [vmem:[%s251 + $0x1928] sm:$0xff]
        %v1082 = vld [vmem:[%s251 + $0x1930] sm:$0xff]
        %v1083 = vld [vmem:[%s251 + $0x1938] sm:$0xff]
        %v1084 = vld [vmem:[%s251 + $0x1940] sm:$0xff]
        %v1085 = vld [vmem:[%s251 + $0x1948] sm:$0xff]
        %v1086 = vld [vmem:[%s251 + $0x1950] sm:$0xff]
        %v1087 = vld [vmem:[%s251 + $0x1958] sm:$0xff]
        %v1088 = vld [vmem:[%s251 + $0x1960] sm:$0xff]
        %v1089 = vld [vmem:[%s251 + $0x1968] sm:$0xff]
        %v1090 = vld [vmem:[%s251 + $0x1970] sm:$0xff]
        %v1091 = vld [vmem:[%s251 + $0x1978] sm:$0xff]
        %v1092 = vld [vmem:[%s251 + $0x1980] sm:$0xff]
        %v1093 = vld [vmem:[%s251 + $0x1988] sm:$0xff]
        %v1094 = vld [vmem:[%s251 + $0x1990] sm:$0xff]
        %v1095 = vld [vmem:[%s251 + $0x1998] sm:$0xff]
        %v1096 = vld [vmem:[%s251 + $0x19a0] sm:$0xff]
        %v1097 = vld [vmem:[%s251 + $0x19a8] sm:$0xff]
        %v1098 = vld [vmem:[%s251 + $0x19b0] sm:$0xff]
        %v1099 = vld [vmem:[%s251 + $0x19b8] sm:$0xff]
        %v1100 = vld [vmem:[%s251 + $0x19c0] sm:$0xff]
        %v1101 = vld [vmem:[%s251 + $0x19c8] sm:$0xff]
        %v1102 = vld [vmem:[%s251 + $0x19d0] sm:$0xff]
        %v1103 = vld [vmem:[%s251 + $0x19d8] sm:$0xff]
        %v1104 = vld [vmem:[%s251 + $0x19e0] sm:$0xff]
        %v1105 = vld [vmem:[%s251 + $0x19e8] sm:$0xff]
        %v1106 = vld [vmem:[%s251 + $0x19f0] sm:$0xff]
        %v1107 = vld [vmem:[%s251 + $0x19f8] sm:$0xff]
        %v1108 = vld [vmem:[%s251 + $0x1a00] sm:$0xff]
        %v1109 = vld [vmem:[%s251 + $0x1a08] sm:$0xff]
        %v1110 = vld [vmem:[%s251 + $0x1a10] sm:$0xff]
        %v1111 = vld [vmem:[%s251 + $0x1a18] sm:$0xff]
        %v1112 = vld [vmem:[%s251 + $0x1a20] sm:$0xff]
        %v1113 = vld [vmem:[%s251 + $0x1a28] sm:$0xff]
        %v1114 = vld [vmem:[%s251 + $0x1a30] sm:$0xff]
        %v1115 = vld [vmem:[%s251 + $0x1a38] sm:$0xff]
        %v1116 = vld [vmem:[%s251 + $0x1a40] sm:$0xff]
        %v1117 = vld [vmem:[%s251 + $0x1a48] sm:$0xff]
        %v1118 = vld [vmem:[%s251 + $0x1a50] sm:$0xff]
        %v1119 = vld [vmem:[%s251 + $0x1a58] sm:$0xff]
        %v1120 = vld [vmem:[%s251 + $0x1a60] sm:$0xff]
        %v1121 = vld [vmem:[%s251 + $0x1a68] sm:$0xff]
        %v1122 = vld [vmem:[%s251 + $0x1a70] sm:$0xff]
        %v1123 = vld [vmem:[%s251 + $0x1a78] sm:$0xff]
        %v1124 = vld [vmem:[%s251 + $0x1a80] sm:$0xff]
        %v1125 = vld [vmem:[%s251 + $0x1a88] sm:$0xff]
        %v1126 = vld [vmem:[%s251 + $0x1a90] sm:$0xff]
        %v1127 = vld [vmem:[%s251 + $0x1a98] sm:$0xff]
        %v1128 = vld [vmem:[%s251 + $0x1aa0] sm:$0xff]
        %v1129 = vld [vmem:[%s251 + $0x1aa8] sm:$0xff]
        %v1130 = vld [vmem:[%s251 + $0x1ab0] sm:$0xff]
        %v1131 = vld [vmem:[%s251 + $0x1ab8] sm:$0xff]
        %v1132 = vld [vmem:[%s251 + $0x1ac0] sm:$0xff]
        %v1133 = vld [vmem:[%s251 + $0x1ac8] sm:$0xff]
        %v1134 = vld [vmem:[%s251 + $0x1ad0] sm:$0xff]
        %v1135 = vld [vmem:[%s251 + $0x1ad8] sm:$0xff]
        %v1136 = vld [vmem:[%s251 + $0x1ae0] sm:$0xff]
        %v1137 = vld [vmem:[%s251 + $0x1ae8] sm:$0xff]
        %v1138 = vld [vmem:[%s251 + $0x1af0] sm:$0xff]
        %v1139 = vld [vmem:[%s251 + $0x1af8] sm:$0xff]
        %v1140 = vld [vmem:[%s251 + $0x1b00] sm:$0xff]
        %v1141 = vld [vmem:[%s251 + $0x1b08] sm:$0xff]
        %v1142 = vld [vmem:[%s251 + $0x1b10] sm:$0xff]
        %v1143 = vld [vmem:[%s251 + $0x1b18] sm:$0xff]
        %v1144 = vld [vmem:[%s251 + $0x1b20] sm:$0xff]
        %v1145 = vld [vmem:[%s251 + $0x1b28] sm:$0xff]
        %v1146 = vld [vmem:[%s251 + $0x1b30] sm:$0xff]
        %v1147 = vld [vmem:[%s251 + $0x1b38] sm:$0xff]
        %v1148 = vld [vmem:[%s251 + $0x1b40] sm:$0xff]
        %v1149 = vld [vmem:[%s251 + $0x1b48] sm:$0xff]
        %v1150 = vld [vmem:[%s251 + $0x1b50] sm:$0xff]
        %v1151 = vld [vmem:[%s251 + $0x1b58] sm:$0xff]
        %v1152 = vld [vmem:[%s251 + $0x1b60] sm:$0xff]
        %v1153 = vld [vmem:[%s251 + $0x1b68] sm:$0xff]
        %v1154 = vld [vmem:[%s251 + $0x1b70] sm:$0xff]
        %v1155 = vld [vmem:[%s251 + $0x1b78] sm:$0xff]
        %v1156 = vld [vmem:[%s251 + $0x1b80] sm:$0xff]
        %v1157 = vld [vmem:[%s251 + $0x1b88] sm:$0xff]
        %v1158 = vld [vmem:[%s251 + $0x1b90] sm:$0xff]
        %v1159 = vld [vmem:[%s251 + $0x1b98] sm:$0xff]
        %v1160 = vld [vmem:[%s251 + $0x1ba0] sm:$0xff]
        %v1161 = vld [vmem:[%s251 + $0x1ba8] sm:$0xff]
        %v1162 = vld [vmem:[%s251 + $0x1bb0] sm:$0xff]
        %v1163 = vld [vmem:[%s251 + $0x1bb8] sm:$0xff]
        %v1164 = vld [vmem:[%s251 + $0x1bc0] sm:$0xff]
        %v1165 = vld [vmem:[%s251 + $0x1bc8] sm:$0xff]
        %v1166 = vld [vmem:[%s251 + $0x1bd0] sm:$0xff]
        %v1167 = vld [vmem:[%s251 + $0x1bd8] sm:$0xff]
        %v1168 = vld [vmem:[%s251 + $0x1be0] sm:$0xff]
        %v1169 = vld [vmem:[%s251 + $0x1be8] sm:$0xff]
        %v1170 = vld [vmem:[%s251 + $0x1bf0] sm:$0xff]
        %v1171 = vld [vmem:[%s251 + $0x1bf8] sm:$0xff]
        %v1172 = vunpack.c.l.s8.bf16 %v276
        %v1173 = vunpack.c.l.s8.bf16 %v277
        %v1174 = vunpack.c.l.s8.bf16 %v278
        %v1175 = vunpack.c.l.s8.bf16 %v279
        %v1176 = vunpack.c.h.s8.bf16 %v276
        %v1177 = vunpack.c.h.s8.bf16 %v277
        %v1178 = vunpack.c.h.s8.bf16 %v278
        %v1179 = vunpack.c.h.s8.bf16 %v279
        %v1180 = vunpack.c.l.s8.bf16 %v280
        %v1181 = vunpack.c.l.s8.bf16 %v281
        %v1182 = vunpack.c.l.s8.bf16 %v282
        %v1183 = vunpack.c.l.s8.bf16 %v283
        %v1184 = vunpack.c.h.s8.bf16 %v280
        %v1185 = vunpack.c.h.s8.bf16 %v281
        %v1186 = vunpack.c.h.s8.bf16 %v282
        %v1187 = vunpack.c.h.s8.bf16 %v283
        %v1188 = vunpack.c.l.s8.bf16 %v284
        %v1189 = vunpack.c.l.s8.bf16 %v285
        %v1190 = vunpack.c.l.s8.bf16 %v286
        %v1191 = vunpack.c.l.s8.bf16 %v287
        %v1192 = vunpack.c.h.s8.bf16 %v284
        %v1193 = vunpack.c.h.s8.bf16 %v285
        %v1194 = vunpack.c.h.s8.bf16 %v286
        %v1195 = vunpack.c.h.s8.bf16 %v287
        %v1196 = vunpack.c.l.s8.bf16 %v288
        %v1197 = vunpack.c.l.s8.bf16 %v289
        %v1198 = vunpack.c.l.s8.bf16 %v290
        %v1199 = vunpack.c.l.s8.bf16 %v291
        %v1200 = vunpack.c.h.s8.bf16 %v288
        %v1201 = vunpack.c.h.s8.bf16 %v289
        %v1202 = vunpack.c.h.s8.bf16 %v290
        %v1203 = vunpack.c.h.s8.bf16 %v291
        %v1204 = vunpack.c.l.s8.bf16 %v292
        %v1205 = vunpack.c.l.s8.bf16 %v293
        %v1206 = vunpack.c.l.s8.bf16 %v294
        %v1207 = vunpack.c.l.s8.bf16 %v295
        %v1208 = vunpack.c.h.s8.bf16 %v292
        %v1209 = vunpack.c.h.s8.bf16 %v293
        %v1210 = vunpack.c.h.s8.bf16 %v294
        %v1211 = vunpack.c.h.s8.bf16 %v295
        %v1212 = vunpack.c.l.s8.bf16 %v296
        %v1213 = vunpack.c.l.s8.bf16 %v297
        %v1214 = vunpack.c.l.s8.bf16 %v298
        %v1215 = vunpack.c.l.s8.bf16 %v299
        %v1216 = vunpack.c.h.s8.bf16 %v296
        %v1217 = vunpack.c.h.s8.bf16 %v297
        %v1218 = vunpack.c.h.s8.bf16 %v298
        %v1219 = vunpack.c.h.s8.bf16 %v299
        %v1220 = vunpack.c.l.s8.bf16 %v300
        %v1221 = vunpack.c.l.s8.bf16 %v301
        %v1222 = vunpack.c.l.s8.bf16 %v302
        %v1223 = vunpack.c.l.s8.bf16 %v303
        %v1224 = vunpack.c.h.s8.bf16 %v300
        %v1225 = vunpack.c.h.s8.bf16 %v301
        %v1226 = vunpack.c.h.s8.bf16 %v302
        %v1227 = vunpack.c.h.s8.bf16 %v303
        %v1228 = vunpack.c.l.s8.bf16 %v304
        %v1229 = vunpack.c.l.s8.bf16 %v305
        %v1230 = vunpack.c.l.s8.bf16 %v306
        %v1231 = vunpack.c.l.s8.bf16 %v307
        %v1232 = vunpack.c.h.s8.bf16 %v304
        %v1233 = vunpack.c.h.s8.bf16 %v305
        %v1234 = vunpack.c.h.s8.bf16 %v306
        %v1235 = vunpack.c.h.s8.bf16 %v307
        %v1236 = vunpack.c.l.s8.bf16 %v308
        %v1237 = vunpack.c.l.s8.bf16 %v309
        %v1238 = vunpack.c.l.s8.bf16 %v310
        %v1239 = vunpack.c.l.s8.bf16 %v311
        %v1240 = vunpack.c.h.s8.bf16 %v308
        %v1241 = vunpack.c.h.s8.bf16 %v309
        %v1242 = vunpack.c.h.s8.bf16 %v310
        %v1243 = vunpack.c.h.s8.bf16 %v311
        %v1244 = vunpack.c.l.s8.bf16 %v312
        %v1245 = vunpack.c.l.s8.bf16 %v313
        %v1246 = vunpack.c.l.s8.bf16 %v314
        %v1247 = vunpack.c.l.s8.bf16 %v315
        %v1248 = vunpack.c.h.s8.bf16 %v312
        %v1249 = vunpack.c.h.s8.bf16 %v313
        %v1250 = vunpack.c.h.s8.bf16 %v314
        %v1251 = vunpack.c.h.s8.bf16 %v315
        %v1252 = vunpack.c.l.s8.bf16 %v316
        %v1253 = vunpack.c.l.s8.bf16 %v317
        %v1254 = vunpack.c.l.s8.bf16 %v318
        %v1255 = vunpack.c.l.s8.bf16 %v319
        %v1256 = vunpack.c.h.s8.bf16 %v316
        %v1257 = vunpack.c.h.s8.bf16 %v317
        %v1258 = vunpack.c.h.s8.bf16 %v318
        %v1259 = vunpack.c.h.s8.bf16 %v319
        %v1260 = vunpack.c.l.s8.bf16 %v320
        %v1261 = vunpack.c.l.s8.bf16 %v321
        %v1262 = vunpack.c.l.s8.bf16 %v322
        %v1263 = vunpack.c.l.s8.bf16 %v323
        %v1264 = vunpack.c.h.s8.bf16 %v320
        %v1265 = vunpack.c.h.s8.bf16 %v321
        %v1266 = vunpack.c.h.s8.bf16 %v322
        %v1267 = vunpack.c.h.s8.bf16 %v323
        %v1268 = vunpack.c.l.s8.bf16 %v324
        %v1269 = vunpack.c.l.s8.bf16 %v325
        %v1270 = vunpack.c.l.s8.bf16 %v326
        %v1271 = vunpack.c.l.s8.bf16 %v327
        %v1272 = vunpack.c.h.s8.bf16 %v324
        %v1273 = vunpack.c.h.s8.bf16 %v325
        %v1274 = vunpack.c.h.s8.bf16 %v326
        %v1275 = vunpack.c.h.s8.bf16 %v327
        %v1276 = vunpack.c.l.s8.bf16 %v328
        %v1277 = vunpack.c.l.s8.bf16 %v329
        %v1278 = vunpack.c.l.s8.bf16 %v330
        %v1279 = vunpack.c.l.s8.bf16 %v331
        %v1280 = vunpack.c.h.s8.bf16 %v328
        %v1281 = vunpack.c.h.s8.bf16 %v329
        %v1282 = vunpack.c.h.s8.bf16 %v330
        %v1283 = vunpack.c.h.s8.bf16 %v331
        %v1284 = vunpack.c.l.s8.bf16 %v332
        %v1285 = vunpack.c.l.s8.bf16 %v333
        %v1286 = vunpack.c.l.s8.bf16 %v334
        %v1287 = vunpack.c.l.s8.bf16 %v335
        %v1288 = vunpack.c.h.s8.bf16 %v332
        %v1289 = vunpack.c.h.s8.bf16 %v333
        %v1290 = vunpack.c.h.s8.bf16 %v334
        %v1291 = vunpack.c.h.s8.bf16 %v335
        %v1292 = vunpack.c.l.s8.bf16 %v336
        %v1293 = vunpack.c.l.s8.bf16 %v337
        %v1294 = vunpack.c.l.s8.bf16 %v338
        %v1295 = vunpack.c.l.s8.bf16 %v339
        %v1296 = vunpack.c.h.s8.bf16 %v336
        %v1297 = vunpack.c.h.s8.bf16 %v337
        %v1298 = vunpack.c.h.s8.bf16 %v338
        %v1299 = vunpack.c.h.s8.bf16 %v339
        %v1300 = vunpack.c.l.s8.bf16 %v340
        %v1301 = vunpack.c.l.s8.bf16 %v341
        %v1302 = vunpack.c.l.s8.bf16 %v342
        %v1303 = vunpack.c.l.s8.bf16 %v343
        %v1304 = vunpack.c.h.s8.bf16 %v340
        %v1305 = vunpack.c.h.s8.bf16 %v341
        %v1306 = vunpack.c.h.s8.bf16 %v342
        %v1307 = vunpack.c.h.s8.bf16 %v343
        %v1308 = vunpack.c.l.s8.bf16 %v344
        %v1309 = vunpack.c.l.s8.bf16 %v345
        %v1310 = vunpack.c.l.s8.bf16 %v346
        %v1311 = vunpack.c.l.s8.bf16 %v347
        %v1312 = vunpack.c.h.s8.bf16 %v344
        %v1313 = vunpack.c.h.s8.bf16 %v345
        %v1314 = vunpack.c.h.s8.bf16 %v346
        %v1315 = vunpack.c.h.s8.bf16 %v347
        %v1316 = vunpack.c.l.s8.bf16 %v348
        %v1317 = vunpack.c.l.s8.bf16 %v349
        %v1318 = vunpack.c.l.s8.bf16 %v350
        %v1319 = vunpack.c.l.s8.bf16 %v351
        %v1320 = vunpack.c.h.s8.bf16 %v348
        %v1321 = vunpack.c.h.s8.bf16 %v349
        %v1322 = vunpack.c.h.s8.bf16 %v350
        %v1323 = vunpack.c.h.s8.bf16 %v351
        %v1324 = vunpack.c.l.s8.bf16 %v352
        %v1325 = vunpack.c.l.s8.bf16 %v353
        %v1326 = vunpack.c.l.s8.bf16 %v354
        %v1327 = vunpack.c.l.s8.bf16 %v355
        %v1328 = vunpack.c.h.s8.bf16 %v352
        %v1329 = vunpack.c.h.s8.bf16 %v353
        %v1330 = vunpack.c.h.s8.bf16 %v354
        %v1331 = vunpack.c.h.s8.bf16 %v355
        %v1332 = vunpack.c.l.s8.bf16 %v356
        %v1333 = vunpack.c.l.s8.bf16 %v357
        %v1334 = vunpack.c.l.s8.bf16 %v358
        %v1335 = vunpack.c.l.s8.bf16 %v359
        %v1336 = vunpack.c.h.s8.bf16 %v356
        %v1337 = vunpack.c.h.s8.bf16 %v357
        %v1338 = vunpack.c.h.s8.bf16 %v358
        %v1339 = vunpack.c.h.s8.bf16 %v359
        %v1340 = vunpack.c.l.s8.bf16 %v360
        %v1341 = vunpack.c.l.s8.bf16 %v361
        %v1342 = vunpack.c.l.s8.bf16 %v362
        %v1343 = vunpack.c.l.s8.bf16 %v363
        %v1344 = vunpack.c.h.s8.bf16 %v360
        %v1345 = vunpack.c.h.s8.bf16 %v361
        %v1346 = vunpack.c.h.s8.bf16 %v362
        %v1347 = vunpack.c.h.s8.bf16 %v363
        %v1348 = vunpack.c.l.s8.bf16 %v364
        %v1349 = vunpack.c.l.s8.bf16 %v365
        %v1350 = vunpack.c.l.s8.bf16 %v366
        %v1351 = vunpack.c.l.s8.bf16 %v367
        %v1352 = vunpack.c.h.s8.bf16 %v364
        %v1353 = vunpack.c.h.s8.bf16 %v365
        %v1354 = vunpack.c.h.s8.bf16 %v366
        %v1355 = vunpack.c.h.s8.bf16 %v367
        %v1356 = vunpack.c.l.s8.bf16 %v368
        %v1357 = vunpack.c.l.s8.bf16 %v369
        %v1358 = vunpack.c.l.s8.bf16 %v370
        %v1359 = vunpack.c.l.s8.bf16 %v371
        %v1360 = vunpack.c.h.s8.bf16 %v368
        %v1361 = vunpack.c.h.s8.bf16 %v369
        %v1362 = vunpack.c.h.s8.bf16 %v370
        %v1363 = vunpack.c.h.s8.bf16 %v371
        %v1364 = vunpack.c.l.s8.bf16 %v372
        %v1365 = vunpack.c.l.s8.bf16 %v373
        %v1366 = vunpack.c.l.s8.bf16 %v374
        %v1367 = vunpack.c.l.s8.bf16 %v375
        %v1368 = vunpack.c.h.s8.bf16 %v372
        %v1369 = vunpack.c.h.s8.bf16 %v373
        %v1370 = vunpack.c.h.s8.bf16 %v374
        %v1371 = vunpack.c.h.s8.bf16 %v375
        %v1372 = vunpack.c.l.s8.bf16 %v376
        %v1373 = vunpack.c.l.s8.bf16 %v377
        %v1374 = vunpack.c.l.s8.bf16 %v378
        %v1375 = vunpack.c.l.s8.bf16 %v379
        %v1376 = vunpack.c.h.s8.bf16 %v376
        %v1377 = vunpack.c.h.s8.bf16 %v377
        %v1378 = vunpack.c.h.s8.bf16 %v378
        %v1379 = vunpack.c.h.s8.bf16 %v379
        %v1380 = vunpack.c.l.s8.bf16 %v380
        %v1381 = vunpack.c.l.s8.bf16 %v381
        %v1382 = vunpack.c.l.s8.bf16 %v382
        %v1383 = vunpack.c.l.s8.bf16 %v383
        %v1384 = vunpack.c.h.s8.bf16 %v380
        %v1385 = vunpack.c.h.s8.bf16 %v381
        %v1386 = vunpack.c.h.s8.bf16 %v382
        %v1387 = vunpack.c.h.s8.bf16 %v383
        %v1388 = vunpack.c.l.s8.bf16 %v384
        %v1389 = vunpack.c.l.s8.bf16 %v385
        %v1390 = vunpack.c.l.s8.bf16 %v386
        %v1391 = vunpack.c.l.s8.bf16 %v387
        %v1392 = vunpack.c.h.s8.bf16 %v384
        %v1393 = vunpack.c.h.s8.bf16 %v385
        %v1394 = vunpack.c.h.s8.bf16 %v386
        %v1395 = vunpack.c.h.s8.bf16 %v387
        %v1396 = vunpack.c.l.s8.bf16 %v388
        %v1397 = vunpack.c.l.s8.bf16 %v389
        %v1398 = vunpack.c.l.s8.bf16 %v390
        %v1399 = vunpack.c.l.s8.bf16 %v391
        %v1400 = vunpack.c.h.s8.bf16 %v388
        %v1401 = vunpack.c.h.s8.bf16 %v389
        %v1402 = vunpack.c.h.s8.bf16 %v390
        %v1403 = vunpack.c.h.s8.bf16 %v391
        %v1404 = vunpack.c.l.s8.bf16 %v392
        %v1405 = vunpack.c.l.s8.bf16 %v393
        %v1406 = vunpack.c.l.s8.bf16 %v394
        %v1407 = vunpack.c.l.s8.bf16 %v395
        %v1408 = vunpack.c.h.s8.bf16 %v392
        %v1409 = vunpack.c.h.s8.bf16 %v393
        %v1410 = vunpack.c.h.s8.bf16 %v394
        %v1411 = vunpack.c.h.s8.bf16 %v395
        %v1412 = vunpack.c.l.s8.bf16 %v396
        %v1413 = vunpack.c.l.s8.bf16 %v397
        %v1414 = vunpack.c.l.s8.bf16 %v398
        %v1415 = vunpack.c.l.s8.bf16 %v399
        %v1416 = vunpack.c.h.s8.bf16 %v396
        %v1417 = vunpack.c.h.s8.bf16 %v397
        %v1418 = vunpack.c.h.s8.bf16 %v398
        %v1419 = vunpack.c.h.s8.bf16 %v399
        %v1420 = vunpack.c.l.s8.bf16 %v400
        %v1421 = vunpack.c.l.s8.bf16 %v401
        %v1422 = vunpack.c.l.s8.bf16 %v402
        %v1423 = vunpack.c.l.s8.bf16 %v403
        %v1424 = vunpack.c.h.s8.bf16 %v400
        %v1425 = vunpack.c.h.s8.bf16 %v401
        %v1426 = vunpack.c.h.s8.bf16 %v402
        %v1427 = vunpack.c.h.s8.bf16 %v403
        %v1428 = vunpack.c.l.s8.bf16 %v404
        %v1429 = vunpack.c.l.s8.bf16 %v405
        %v1430 = vunpack.c.l.s8.bf16 %v406
        %v1431 = vunpack.c.l.s8.bf16 %v407
        %v1432 = vunpack.c.h.s8.bf16 %v404
        %v1433 = vunpack.c.h.s8.bf16 %v405
        %v1434 = vunpack.c.h.s8.bf16 %v406
        %v1435 = vunpack.c.h.s8.bf16 %v407
        %v1436 = vunpack.c.l.s8.bf16 %v408
        %v1437 = vunpack.c.l.s8.bf16 %v409
        %v1438 = vunpack.c.l.s8.bf16 %v410
        %v1439 = vunpack.c.l.s8.bf16 %v411
        %v1440 = vunpack.c.h.s8.bf16 %v408
        %v1441 = vunpack.c.h.s8.bf16 %v409
        %v1442 = vunpack.c.h.s8.bf16 %v410
        %v1443 = vunpack.c.h.s8.bf16 %v411
        %v1444 = vunpack.c.l.s8.bf16 %v412
        %v1445 = vunpack.c.l.s8.bf16 %v413
        %v1446 = vunpack.c.l.s8.bf16 %v414
        %v1447 = vunpack.c.l.s8.bf16 %v415
        %v1448 = vunpack.c.h.s8.bf16 %v412
        %v1449 = vunpack.c.h.s8.bf16 %v413
        %v1450 = vunpack.c.h.s8.bf16 %v414
        %v1451 = vunpack.c.h.s8.bf16 %v415
        %v1452 = vunpack.c.l.s8.bf16 %v416
        %v1453 = vunpack.c.l.s8.bf16 %v417
        %v1454 = vunpack.c.l.s8.bf16 %v418
        %v1455 = vunpack.c.l.s8.bf16 %v419
        %v1456 = vunpack.c.h.s8.bf16 %v416
        %v1457 = vunpack.c.h.s8.bf16 %v417
        %v1458 = vunpack.c.h.s8.bf16 %v418
        %v1459 = vunpack.c.h.s8.bf16 %v419
        %v1460 = vunpack.c.l.s8.bf16 %v420
        %v1461 = vunpack.c.l.s8.bf16 %v421
        %v1462 = vunpack.c.l.s8.bf16 %v422
        %v1463 = vunpack.c.l.s8.bf16 %v423
        %v1464 = vunpack.c.h.s8.bf16 %v420
        %v1465 = vunpack.c.h.s8.bf16 %v421
        %v1466 = vunpack.c.h.s8.bf16 %v422
        %v1467 = vunpack.c.h.s8.bf16 %v423
        %v1468 = vunpack.c.l.s8.bf16 %v424
        %v1469 = vunpack.c.l.s8.bf16 %v425
        %v1470 = vunpack.c.l.s8.bf16 %v426
        %v1471 = vunpack.c.l.s8.bf16 %v427
        %v1472 = vunpack.c.h.s8.bf16 %v424
        %v1473 = vunpack.c.h.s8.bf16 %v425
        %v1474 = vunpack.c.h.s8.bf16 %v426
        %v1475 = vunpack.c.h.s8.bf16 %v427
        %v1476 = vunpack.c.l.s8.bf16 %v428
        %v1477 = vunpack.c.l.s8.bf16 %v429
        %v1478 = vunpack.c.l.s8.bf16 %v430
        %v1479 = vunpack.c.l.s8.bf16 %v431
        %v1480 = vunpack.c.h.s8.bf16 %v428
        %v1481 = vunpack.c.h.s8.bf16 %v429
        %v1482 = vunpack.c.h.s8.bf16 %v430
        %v1483 = vunpack.c.h.s8.bf16 %v431
        %v1484 = vunpack.c.l.s8.bf16 %v432
        %v1485 = vunpack.c.l.s8.bf16 %v433
        %v1486 = vunpack.c.l.s8.bf16 %v434
        %v1487 = vunpack.c.l.s8.bf16 %v435
        %v1488 = vunpack.c.h.s8.bf16 %v432
        %v1489 = vunpack.c.h.s8.bf16 %v433
        %v1490 = vunpack.c.h.s8.bf16 %v434
        %v1491 = vunpack.c.h.s8.bf16 %v435
        %v1492 = vunpack.c.l.s8.bf16 %v436
        %v1493 = vunpack.c.l.s8.bf16 %v437
        %v1494 = vunpack.c.l.s8.bf16 %v438
        %v1495 = vunpack.c.l.s8.bf16 %v439
        %v1496 = vunpack.c.h.s8.bf16 %v436
        %v1497 = vunpack.c.h.s8.bf16 %v437
        %v1498 = vunpack.c.h.s8.bf16 %v438
        %v1499 = vunpack.c.h.s8.bf16 %v439
        %v1500 = vunpack.c.l.s8.bf16 %v440
        %v1501 = vunpack.c.l.s8.bf16 %v441
        %v1502 = vunpack.c.l.s8.bf16 %v442
        %v1503 = vunpack.c.l.s8.bf16 %v443
        %v1504 = vunpack.c.h.s8.bf16 %v440
        %v1505 = vunpack.c.h.s8.bf16 %v441
        %v1506 = vunpack.c.h.s8.bf16 %v442
        %v1507 = vunpack.c.h.s8.bf16 %v443
        %v1508 = vunpack.c.l.s8.bf16 %v444
        %v1509 = vunpack.c.l.s8.bf16 %v445
        %v1510 = vunpack.c.l.s8.bf16 %v446
        %v1511 = vunpack.c.l.s8.bf16 %v447
        %v1512 = vunpack.c.h.s8.bf16 %v444
        %v1513 = vunpack.c.h.s8.bf16 %v445
        %v1514 = vunpack.c.h.s8.bf16 %v446
        %v1515 = vunpack.c.h.s8.bf16 %v447
        %v1516 = vunpack.c.l.s8.bf16 %v448
        %v1517 = vunpack.c.l.s8.bf16 %v449
        %v1518 = vunpack.c.l.s8.bf16 %v450
        %v1519 = vunpack.c.l.s8.bf16 %v451
        %v1520 = vunpack.c.h.s8.bf16 %v448
        %v1521 = vunpack.c.h.s8.bf16 %v449
        %v1522 = vunpack.c.h.s8.bf16 %v450
        %v1523 = vunpack.c.h.s8.bf16 %v451
        %v1524 = vunpack.c.l.s8.bf16 %v452
        %v1525 = vunpack.c.l.s8.bf16 %v453
        %v1526 = vunpack.c.l.s8.bf16 %v454
        %v1527 = vunpack.c.l.s8.bf16 %v455
        %v1528 = vunpack.c.h.s8.bf16 %v452
        %v1529 = vunpack.c.h.s8.bf16 %v453
        %v1530 = vunpack.c.h.s8.bf16 %v454
        %v1531 = vunpack.c.h.s8.bf16 %v455
        %v1532 = vunpack.c.l.s8.bf16 %v456
        %v1533 = vunpack.c.l.s8.bf16 %v457
        %v1534 = vunpack.c.l.s8.bf16 %v458
        %v1535 = vunpack.c.l.s8.bf16 %v459
        %v1536 = vunpack.c.h.s8.bf16 %v456
        %v1537 = vunpack.c.h.s8.bf16 %v457
        %v1538 = vunpack.c.h.s8.bf16 %v458
        %v1539 = vunpack.c.h.s8.bf16 %v459
        %v1540 = vunpack.c.l.s8.bf16 %v460
        %v1541 = vunpack.c.l.s8.bf16 %v461
        %v1542 = vunpack.c.l.s8.bf16 %v462
        %v1543 = vunpack.c.l.s8.bf16 %v463
        %v1544 = vunpack.c.h.s8.bf16 %v460
        %v1545 = vunpack.c.h.s8.bf16 %v461
        %v1546 = vunpack.c.h.s8.bf16 %v462
        %v1547 = vunpack.c.h.s8.bf16 %v463
        %v1548 = vunpack.c.l.s8.bf16 %v464
        %v1549 = vunpack.c.l.s8.bf16 %v465
        %v1550 = vunpack.c.l.s8.bf16 %v466
        %v1551 = vunpack.c.l.s8.bf16 %v467
        %v1552 = vunpack.c.h.s8.bf16 %v464
        %v1553 = vunpack.c.h.s8.bf16 %v465
        %v1554 = vunpack.c.h.s8.bf16 %v466
        %v1555 = vunpack.c.h.s8.bf16 %v467
        %v1556 = vunpack.c.l.s8.bf16 %v468
        %v1557 = vunpack.c.l.s8.bf16 %v469
        %v1558 = vunpack.c.l.s8.bf16 %v470
        %v1559 = vunpack.c.l.s8.bf16 %v471
        %v1560 = vunpack.c.h.s8.bf16 %v468
        %v1561 = vunpack.c.h.s8.bf16 %v469
        %v1562 = vunpack.c.h.s8.bf16 %v470
        %v1563 = vunpack.c.h.s8.bf16 %v471
        %v1564 = vunpack.c.l.s8.bf16 %v472
        %v1565 = vunpack.c.l.s8.bf16 %v473
        %v1566 = vunpack.c.l.s8.bf16 %v474
        %v1567 = vunpack.c.l.s8.bf16 %v475
        %v1568 = vunpack.c.h.s8.bf16 %v472
        %v1569 = vunpack.c.h.s8.bf16 %v473
        %v1570 = vunpack.c.h.s8.bf16 %v474
        %v1571 = vunpack.c.h.s8.bf16 %v475
        %v1572 = vunpack.c.l.s8.bf16 %v476
        %v1573 = vunpack.c.l.s8.bf16 %v477
        %v1574 = vunpack.c.l.s8.bf16 %v478
        %v1575 = vunpack.c.l.s8.bf16 %v479
        %v1576 = vunpack.c.h.s8.bf16 %v476
        %v1577 = vunpack.c.h.s8.bf16 %v477
        %v1578 = vunpack.c.h.s8.bf16 %v478
        %v1579 = vunpack.c.h.s8.bf16 %v479
        %v1580 = vunpack.c.l.s8.bf16 %v480
        %v1581 = vunpack.c.l.s8.bf16 %v481
        %v1582 = vunpack.c.l.s8.bf16 %v482
        %v1583 = vunpack.c.l.s8.bf16 %v483
        %v1584 = vunpack.c.h.s8.bf16 %v480
        %v1585 = vunpack.c.h.s8.bf16 %v481
        %v1586 = vunpack.c.h.s8.bf16 %v482
        %v1587 = vunpack.c.h.s8.bf16 %v483
        %v1588 = vunpack.c.l.s8.bf16 %v484
        %v1589 = vunpack.c.l.s8.bf16 %v485
        %v1590 = vunpack.c.l.s8.bf16 %v486
        %v1591 = vunpack.c.l.s8.bf16 %v487
        %v1592 = vunpack.c.h.s8.bf16 %v484
        %v1593 = vunpack.c.h.s8.bf16 %v485
        %v1594 = vunpack.c.h.s8.bf16 %v486
        %v1595 = vunpack.c.h.s8.bf16 %v487
        %v1596 = vunpack.c.l.s8.bf16 %v488
        %v1597 = vunpack.c.l.s8.bf16 %v489
        %v1598 = vunpack.c.l.s8.bf16 %v490
        %v1599 = vunpack.c.l.s8.bf16 %v491
        %v1600 = vunpack.c.h.s8.bf16 %v488
        %v1601 = vunpack.c.h.s8.bf16 %v489
        %v1602 = vunpack.c.h.s8.bf16 %v490
        %v1603 = vunpack.c.h.s8.bf16 %v491
        %v1604 = vunpack.c.l.s8.bf16 %v492
        %v1605 = vunpack.c.l.s8.bf16 %v493
        %v1606 = vunpack.c.l.s8.bf16 %v494
        %v1607 = vunpack.c.l.s8.bf16 %v495
        %v1608 = vunpack.c.h.s8.bf16 %v492
        %v1609 = vunpack.c.h.s8.bf16 %v493
        %v1610 = vunpack.c.h.s8.bf16 %v494
        %v1611 = vunpack.c.h.s8.bf16 %v495
        %v1612 = vunpack.c.l.s8.bf16 %v496
        %v1613 = vunpack.c.l.s8.bf16 %v497
        %v1614 = vunpack.c.l.s8.bf16 %v498
        %v1615 = vunpack.c.l.s8.bf16 %v499
        %v1616 = vunpack.c.h.s8.bf16 %v496
        %v1617 = vunpack.c.h.s8.bf16 %v497
        %v1618 = vunpack.c.h.s8.bf16 %v498
        %v1619 = vunpack.c.h.s8.bf16 %v499
        %v1620 = vunpack.c.l.s8.bf16 %v500
        %v1621 = vunpack.c.l.s8.bf16 %v501
        %v1622 = vunpack.c.l.s8.bf16 %v502
        %v1623 = vunpack.c.l.s8.bf16 %v503
        %v1624 = vunpack.c.h.s8.bf16 %v500
        %v1625 = vunpack.c.h.s8.bf16 %v501
        %v1626 = vunpack.c.h.s8.bf16 %v502
        %v1627 = vunpack.c.h.s8.bf16 %v503
        %v1628 = vunpack.c.l.s8.bf16 %v504
        %v1629 = vunpack.c.l.s8.bf16 %v505
        %v1630 = vunpack.c.l.s8.bf16 %v506
        %v1631 = vunpack.c.l.s8.bf16 %v507
        %v1632 = vunpack.c.h.s8.bf16 %v504
        %v1633 = vunpack.c.h.s8.bf16 %v505
        %v1634 = vunpack.c.h.s8.bf16 %v506
        %v1635 = vunpack.c.h.s8.bf16 %v507
        %v1636 = vunpack.c.l.s8.bf16 %v508
        %v1637 = vunpack.c.l.s8.bf16 %v509
        %v1638 = vunpack.c.l.s8.bf16 %v510
        %v1639 = vunpack.c.l.s8.bf16 %v511
        %v1640 = vunpack.c.h.s8.bf16 %v508
        %v1641 = vunpack.c.h.s8.bf16 %v509
        %v1642 = vunpack.c.h.s8.bf16 %v510
        %v1643 = vunpack.c.h.s8.bf16 %v511
        %v1644 = vunpack.c.l.s8.bf16 %v512
        %v1645 = vunpack.c.l.s8.bf16 %v513
        %v1646 = vunpack.c.l.s8.bf16 %v514
        %v1647 = vunpack.c.l.s8.bf16 %v515
        %v1648 = vunpack.c.h.s8.bf16 %v512
        %v1649 = vunpack.c.h.s8.bf16 %v513
        %v1650 = vunpack.c.h.s8.bf16 %v514
        %v1651 = vunpack.c.h.s8.bf16 %v515
        %v1652 = vunpack.c.l.s8.bf16 %v516
        %v1653 = vunpack.c.l.s8.bf16 %v517
        %v1654 = vunpack.c.l.s8.bf16 %v518
        %v1655 = vunpack.c.l.s8.bf16 %v519
        %v1656 = vunpack.c.h.s8.bf16 %v516
        %v1657 = vunpack.c.h.s8.bf16 %v517
        %v1658 = vunpack.c.h.s8.bf16 %v518
        %v1659 = vunpack.c.h.s8.bf16 %v519
        %v1660 = vunpack.c.l.s8.bf16 %v520
        %v1661 = vunpack.c.l.s8.bf16 %v521
        %v1662 = vunpack.c.l.s8.bf16 %v522
        %v1663 = vunpack.c.l.s8.bf16 %v523
        %v1664 = vunpack.c.h.s8.bf16 %v520
        %v1665 = vunpack.c.h.s8.bf16 %v521
        %v1666 = vunpack.c.h.s8.bf16 %v522
        %v1667 = vunpack.c.h.s8.bf16 %v523
        %v1668 = vunpack.c.l.s8.bf16 %v524
        %v1669 = vunpack.c.l.s8.bf16 %v525
        %v1670 = vunpack.c.l.s8.bf16 %v526
        %v1671 = vunpack.c.l.s8.bf16 %v527
        %v1672 = vunpack.c.h.s8.bf16 %v524
        %v1673 = vunpack.c.h.s8.bf16 %v525
        %v1674 = vunpack.c.h.s8.bf16 %v526
        %v1675 = vunpack.c.h.s8.bf16 %v527
        %v1676 = vunpack.c.l.s8.bf16 %v528
        %v1677 = vunpack.c.l.s8.bf16 %v529
        %v1678 = vunpack.c.l.s8.bf16 %v530
        %v1679 = vunpack.c.l.s8.bf16 %v531
        %v1680 = vunpack.c.h.s8.bf16 %v528
        %v1681 = vunpack.c.h.s8.bf16 %v529
        %v1682 = vunpack.c.h.s8.bf16 %v530
        %v1683 = vunpack.c.h.s8.bf16 %v531
        %v1684 = vunpack.c.l.s8.bf16 %v532
        %v1685 = vunpack.c.l.s8.bf16 %v533
        %v1686 = vunpack.c.l.s8.bf16 %v534
        %v1687 = vunpack.c.l.s8.bf16 %v535
        %v1688 = vunpack.c.h.s8.bf16 %v532
        %v1689 = vunpack.c.h.s8.bf16 %v533
        %v1690 = vunpack.c.h.s8.bf16 %v534
        %v1691 = vunpack.c.h.s8.bf16 %v535
        %v1692 = vunpack.c.l.s8.bf16 %v536
        %v1693 = vunpack.c.l.s8.bf16 %v537
        %v1694 = vunpack.c.l.s8.bf16 %v538
        %v1695 = vunpack.c.l.s8.bf16 %v539
        %v1696 = vunpack.c.h.s8.bf16 %v536
        %v1697 = vunpack.c.h.s8.bf16 %v537
        %v1698 = vunpack.c.h.s8.bf16 %v538
        %v1699 = vunpack.c.h.s8.bf16 %v539
        %v1700 = vunpack.c.l.s8.bf16 %v540
        %v1701 = vunpack.c.l.s8.bf16 %v541
        %v1702 = vunpack.c.l.s8.bf16 %v542
        %v1703 = vunpack.c.l.s8.bf16 %v543
        %v1704 = vunpack.c.h.s8.bf16 %v540
        %v1705 = vunpack.c.h.s8.bf16 %v541
        %v1706 = vunpack.c.h.s8.bf16 %v542
        %v1707 = vunpack.c.h.s8.bf16 %v543
        %v1708 = vunpack.c.l.s8.bf16 %v544
        %v1709 = vunpack.c.l.s8.bf16 %v545
        %v1710 = vunpack.c.l.s8.bf16 %v546
        %v1711 = vunpack.c.l.s8.bf16 %v547
        %v1712 = vunpack.c.h.s8.bf16 %v544
        %v1713 = vunpack.c.h.s8.bf16 %v545
        %v1714 = vunpack.c.h.s8.bf16 %v546
        %v1715 = vunpack.c.h.s8.bf16 %v547
        %v1716 = vunpack.c.l.s8.bf16 %v548
        %v1717 = vunpack.c.l.s8.bf16 %v549
        %v1718 = vunpack.c.l.s8.bf16 %v550
        %v1719 = vunpack.c.l.s8.bf16 %v551
        %v1720 = vunpack.c.h.s8.bf16 %v548
        %v1721 = vunpack.c.h.s8.bf16 %v549
        %v1722 = vunpack.c.h.s8.bf16 %v550
        %v1723 = vunpack.c.h.s8.bf16 %v551
        %v1724 = vunpack.c.l.s8.bf16 %v552
        %v1725 = vunpack.c.l.s8.bf16 %v553
        %v1726 = vunpack.c.l.s8.bf16 %v554
        %v1727 = vunpack.c.l.s8.bf16 %v555
        %v1728 = vunpack.c.h.s8.bf16 %v552
        %v1729 = vunpack.c.h.s8.bf16 %v553
        %v1730 = vunpack.c.h.s8.bf16 %v554
        %v1731 = vunpack.c.h.s8.bf16 %v555
        %v1732 = vunpack.c.l.s8.bf16 %v556
        %v1733 = vunpack.c.l.s8.bf16 %v557
        %v1734 = vunpack.c.l.s8.bf16 %v558
        %v1735 = vunpack.c.l.s8.bf16 %v559
        %v1736 = vunpack.c.h.s8.bf16 %v556
        %v1737 = vunpack.c.h.s8.bf16 %v557
        %v1738 = vunpack.c.h.s8.bf16 %v558
        %v1739 = vunpack.c.h.s8.bf16 %v559
        %v1740 = vunpack.c.l.s8.bf16 %v560
        %v1741 = vunpack.c.l.s8.bf16 %v561
        %v1742 = vunpack.c.l.s8.bf16 %v562
        %v1743 = vunpack.c.l.s8.bf16 %v563
        %v1744 = vunpack.c.h.s8.bf16 %v560
        %v1745 = vunpack.c.h.s8.bf16 %v561
        %v1746 = vunpack.c.h.s8.bf16 %v562
        %v1747 = vunpack.c.h.s8.bf16 %v563
        %v1748 = vunpack.c.l.s8.bf16 %v564
        %v1749 = vunpack.c.l.s8.bf16 %v565
        %v1750 = vunpack.c.l.s8.bf16 %v566
        %v1751 = vunpack.c.l.s8.bf16 %v567
        %v1752 = vunpack.c.h.s8.bf16 %v564
        %v1753 = vunpack.c.h.s8.bf16 %v565
        %v1754 = vunpack.c.h.s8.bf16 %v566
        %v1755 = vunpack.c.h.s8.bf16 %v567
        %v1756 = vunpack.c.l.s8.bf16 %v568
        %v1757 = vunpack.c.l.s8.bf16 %v569
        %v1758 = vunpack.c.l.s8.bf16 %v570
        %v1759 = vunpack.c.l.s8.bf16 %v571
        %v1760 = vunpack.c.h.s8.bf16 %v568
        %v1761 = vunpack.c.h.s8.bf16 %v569
        %v1762 = vunpack.c.h.s8.bf16 %v570
        %v1763 = vunpack.c.h.s8.bf16 %v571
        %v1764 = vunpack.c.l.s8.bf16 %v572
        %v1765 = vunpack.c.l.s8.bf16 %v573
        %v1766 = vunpack.c.l.s8.bf16 %v574
        %v1767 = vunpack.c.l.s8.bf16 %v575
        %v1768 = vunpack.c.h.s8.bf16 %v572
        %v1769 = vunpack.c.h.s8.bf16 %v573
        %v1770 = vunpack.c.h.s8.bf16 %v574
        %v1771 = vunpack.c.h.s8.bf16 %v575
        %v1772 = vunpack.c.l.s8.bf16 %v576
        %v1773 = vunpack.c.l.s8.bf16 %v577
        %v1774 = vunpack.c.l.s8.bf16 %v578
        %v1775 = vunpack.c.l.s8.bf16 %v579
        %v1776 = vunpack.c.h.s8.bf16 %v576
        %v1777 = vunpack.c.h.s8.bf16 %v577
        %v1778 = vunpack.c.h.s8.bf16 %v578
        %v1779 = vunpack.c.h.s8.bf16 %v579
        %v1780 = vunpack.c.l.s8.bf16 %v580
        %v1781 = vunpack.c.l.s8.bf16 %v581
        %v1782 = vunpack.c.l.s8.bf16 %v582
        %v1783 = vunpack.c.l.s8.bf16 %v583
        %v1784 = vunpack.c.h.s8.bf16 %v580
        %v1785 = vunpack.c.h.s8.bf16 %v581
        %v1786 = vunpack.c.h.s8.bf16 %v582
        %v1787 = vunpack.c.h.s8.bf16 %v583
        %v1788 = vunpack.c.l.s8.bf16 %v584
        %v1789 = vunpack.c.l.s8.bf16 %v585
        %v1790 = vunpack.c.l.s8.bf16 %v586
        %v1791 = vunpack.c.l.s8.bf16 %v587
        %v1792 = vunpack.c.h.s8.bf16 %v584
        %v1793 = vunpack.c.h.s8.bf16 %v585
        %v1794 = vunpack.c.h.s8.bf16 %v586
        %v1795 = vunpack.c.h.s8.bf16 %v587
        %v1796 = vunpack.c.l.s8.bf16 %v588
        %v1797 = vunpack.c.l.s8.bf16 %v589
        %v1798 = vunpack.c.l.s8.bf16 %v590
        %v1799 = vunpack.c.l.s8.bf16 %v591
        %v1800 = vunpack.c.h.s8.bf16 %v588
        %v1801 = vunpack.c.h.s8.bf16 %v589
        %v1802 = vunpack.c.h.s8.bf16 %v590
        %v1803 = vunpack.c.h.s8.bf16 %v591
        %v1804 = vunpack.c.l.s8.bf16 %v592
        %v1805 = vunpack.c.l.s8.bf16 %v593
        %v1806 = vunpack.c.l.s8.bf16 %v594
        %v1807 = vunpack.c.l.s8.bf16 %v595
        %v1808 = vunpack.c.h.s8.bf16 %v592
        %v1809 = vunpack.c.h.s8.bf16 %v593
        %v1810 = vunpack.c.h.s8.bf16 %v594
        %v1811 = vunpack.c.h.s8.bf16 %v595
        %v1812 = vunpack.c.l.s8.bf16 %v596
        %v1813 = vunpack.c.l.s8.bf16 %v597
        %v1814 = vunpack.c.l.s8.bf16 %v598
        %v1815 = vunpack.c.l.s8.bf16 %v599
        %v1816 = vunpack.c.h.s8.bf16 %v596
        %v1817 = vunpack.c.h.s8.bf16 %v597
        %v1818 = vunpack.c.h.s8.bf16 %v598
        %v1819 = vunpack.c.h.s8.bf16 %v599
        %v1820 = vunpack.c.l.s8.bf16 %v600
        %v1821 = vunpack.c.l.s8.bf16 %v601
        %v1822 = vunpack.c.l.s8.bf16 %v602
        %v1823 = vunpack.c.l.s8.bf16 %v603
        %v1824 = vunpack.c.h.s8.bf16 %v600
        %v1825 = vunpack.c.h.s8.bf16 %v601
        %v1826 = vunpack.c.h.s8.bf16 %v602
        %v1827 = vunpack.c.h.s8.bf16 %v603
        %v1828 = vunpack.c.l.s8.bf16 %v604
        %v1829 = vunpack.c.l.s8.bf16 %v605
        %v1830 = vunpack.c.l.s8.bf16 %v606
        %v1831 = vunpack.c.l.s8.bf16 %v607
        %v1832 = vunpack.c.h.s8.bf16 %v604
        %v1833 = vunpack.c.h.s8.bf16 %v605
        %v1834 = vunpack.c.h.s8.bf16 %v606
        %v1835 = vunpack.c.h.s8.bf16 %v607
        %v1836 = vunpack.c.l.s8.bf16 %v608
        %v1837 = vunpack.c.l.s8.bf16 %v609
        %v1838 = vunpack.c.l.s8.bf16 %v610
        %v1839 = vunpack.c.l.s8.bf16 %v611
        %v1840 = vunpack.c.h.s8.bf16 %v608
        %v1841 = vunpack.c.h.s8.bf16 %v609
        %v1842 = vunpack.c.h.s8.bf16 %v610
        %v1843 = vunpack.c.h.s8.bf16 %v611
        %v1844 = vunpack.c.l.s8.bf16 %v612
        %v1845 = vunpack.c.l.s8.bf16 %v613
        %v1846 = vunpack.c.l.s8.bf16 %v614
        %v1847 = vunpack.c.l.s8.bf16 %v615
        %v1848 = vunpack.c.h.s8.bf16 %v612
        %v1849 = vunpack.c.h.s8.bf16 %v613
        %v1850 = vunpack.c.h.s8.bf16 %v614
        %v1851 = vunpack.c.h.s8.bf16 %v615
        %v1852 = vunpack.c.l.s8.bf16 %v616
        %v1853 = vunpack.c.l.s8.bf16 %v617
        %v1854 = vunpack.c.l.s8.bf16 %v618
        %v1855 = vunpack.c.l.s8.bf16 %v619
        %v1856 = vunpack.c.h.s8.bf16 %v616
        %v1857 = vunpack.c.h.s8.bf16 %v617
        %v1858 = vunpack.c.h.s8.bf16 %v618
        %v1859 = vunpack.c.h.s8.bf16 %v619
        %v1860 = vunpack.c.l.s8.bf16 %v620
        %v1861 = vunpack.c.l.s8.bf16 %v621
        %v1862 = vunpack.c.l.s8.bf16 %v622
        %v1863 = vunpack.c.l.s8.bf16 %v623
        %v1864 = vunpack.c.h.s8.bf16 %v620
        %v1865 = vunpack.c.h.s8.bf16 %v621
        %v1866 = vunpack.c.h.s8.bf16 %v622
        %v1867 = vunpack.c.h.s8.bf16 %v623
        %v1868 = vunpack.c.l.s8.bf16 %v624
        %v1869 = vunpack.c.l.s8.bf16 %v625
        %v1870 = vunpack.c.l.s8.bf16 %v626
        %v1871 = vunpack.c.l.s8.bf16 %v627
        %v1872 = vunpack.c.h.s8.bf16 %v624
        %v1873 = vunpack.c.h.s8.bf16 %v625
        %v1874 = vunpack.c.h.s8.bf16 %v626
        %v1875 = vunpack.c.h.s8.bf16 %v627
        %v1876 = vunpack.c.l.s8.bf16 %v628
        %v1877 = vunpack.c.l.s8.bf16 %v629
        %v1878 = vunpack.c.l.s8.bf16 %v630
        %v1879 = vunpack.c.l.s8.bf16 %v631
        %v1880 = vunpack.c.h.s8.bf16 %v628
        %v1881 = vunpack.c.h.s8.bf16 %v629
        %v1882 = vunpack.c.h.s8.bf16 %v630
        %v1883 = vunpack.c.h.s8.bf16 %v631
        %v1884 = vunpack.c.l.s8.bf16 %v632
        %v1885 = vunpack.c.l.s8.bf16 %v633
        %v1886 = vunpack.c.l.s8.bf16 %v634
        %v1887 = vunpack.c.l.s8.bf16 %v635
        %v1888 = vunpack.c.h.s8.bf16 %v632
        %v1889 = vunpack.c.h.s8.bf16 %v633
        %v1890 = vunpack.c.h.s8.bf16 %v634
        %v1891 = vunpack.c.h.s8.bf16 %v635
        %v1892 = vunpack.c.l.s8.bf16 %v636
        %v1893 = vunpack.c.l.s8.bf16 %v637
        %v1894 = vunpack.c.l.s8.bf16 %v638
        %v1895 = vunpack.c.l.s8.bf16 %v639
        %v1896 = vunpack.c.h.s8.bf16 %v636
        %v1897 = vunpack.c.h.s8.bf16 %v637
        %v1898 = vunpack.c.h.s8.bf16 %v638
        %v1899 = vunpack.c.h.s8.bf16 %v639
        %v1900 = vunpack.c.l.s8.bf16 %v640
        %v1901 = vunpack.c.l.s8.bf16 %v641
        %v1902 = vunpack.c.l.s8.bf16 %v642
        %v1903 = vunpack.c.l.s8.bf16 %v643
        %v1904 = vunpack.c.h.s8.bf16 %v640
        %v1905 = vunpack.c.h.s8.bf16 %v641
        %v1906 = vunpack.c.h.s8.bf16 %v642
        %v1907 = vunpack.c.h.s8.bf16 %v643
        %v1908 = vunpack.c.l.s8.bf16 %v644
        %v1909 = vunpack.c.l.s8.bf16 %v645
        %v1910 = vunpack.c.l.s8.bf16 %v646
        %v1911 = vunpack.c.l.s8.bf16 %v647
        %v1912 = vunpack.c.h.s8.bf16 %v644
        %v1913 = vunpack.c.h.s8.bf16 %v645
        %v1914 = vunpack.c.h.s8.bf16 %v646
        %v1915 = vunpack.c.h.s8.bf16 %v647
        %v1916 = vunpack.c.l.s8.bf16 %v648
        %v1917 = vunpack.c.l.s8.bf16 %v649
        %v1918 = vunpack.c.l.s8.bf16 %v650
        %v1919 = vunpack.c.l.s8.bf16 %v651
        %v1920 = vunpack.c.h.s8.bf16 %v648
        %v1921 = vunpack.c.h.s8.bf16 %v649
        %v1922 = vunpack.c.h.s8.bf16 %v650
        %v1923 = vunpack.c.h.s8.bf16 %v651
        %v1924 = vunpack.c.l.s8.bf16 %v652
        %v1925 = vunpack.c.l.s8.bf16 %v653
        %v1926 = vunpack.c.l.s8.bf16 %v654
        %v1927 = vunpack.c.l.s8.bf16 %v655
        %v1928 = vunpack.c.h.s8.bf16 %v652
        %v1929 = vunpack.c.h.s8.bf16 %v653
        %v1930 = vunpack.c.h.s8.bf16 %v654
        %v1931 = vunpack.c.h.s8.bf16 %v655
        %v1932 = vunpack.c.l.s8.bf16 %v656
        %v1933 = vunpack.c.l.s8.bf16 %v657
        %v1934 = vunpack.c.l.s8.bf16 %v658
        %v1935 = vunpack.c.l.s8.bf16 %v659
        %v1936 = vunpack.c.h.s8.bf16 %v656
        %v1937 = vunpack.c.h.s8.bf16 %v657
        %v1938 = vunpack.c.h.s8.bf16 %v658
        %v1939 = vunpack.c.h.s8.bf16 %v659
        %v1940 = vunpack.c.l.s8.bf16 %v660
        %v1941 = vunpack.c.l.s8.bf16 %v661
        %v1942 = vunpack.c.l.s8.bf16 %v662
        %v1943 = vunpack.c.l.s8.bf16 %v663
        %v1944 = vunpack.c.h.s8.bf16 %v660
        %v1945 = vunpack.c.h.s8.bf16 %v661
        %v1946 = vunpack.c.h.s8.bf16 %v662
        %v1947 = vunpack.c.h.s8.bf16 %v663
        %v1948 = vunpack.c.l.s8.bf16 %v664
        %v1949 = vunpack.c.l.s8.bf16 %v665
        %v1950 = vunpack.c.l.s8.bf16 %v666
        %v1951 = vunpack.c.l.s8.bf16 %v667
        %v1952 = vunpack.c.h.s8.bf16 %v664
        %v1953 = vunpack.c.h.s8.bf16 %v665
        %v1954 = vunpack.c.h.s8.bf16 %v666
        %v1955 = vunpack.c.h.s8.bf16 %v667
        %v1956 = vunpack.c.l.s8.bf16 %v668
        %v1957 = vunpack.c.l.s8.bf16 %v669
        %v1958 = vunpack.c.l.s8.bf16 %v670
        %v1959 = vunpack.c.l.s8.bf16 %v671
        %v1960 = vunpack.c.h.s8.bf16 %v668
        %v1961 = vunpack.c.h.s8.bf16 %v669
        %v1962 = vunpack.c.h.s8.bf16 %v670
        %v1963 = vunpack.c.h.s8.bf16 %v671
        %v1964 = vunpack.c.l.s8.bf16 %v672
        %v1965 = vunpack.c.l.s8.bf16 %v673
        %v1966 = vunpack.c.l.s8.bf16 %v674
        %v1967 = vunpack.c.l.s8.bf16 %v675
        %v1968 = vunpack.c.h.s8.bf16 %v672
        %v1969 = vunpack.c.h.s8.bf16 %v673
        %v1970 = vunpack.c.h.s8.bf16 %v674
        %v1971 = vunpack.c.h.s8.bf16 %v675
        %v1972 = vunpack.c.l.s8.bf16 %v676
        %v1973 = vunpack.c.l.s8.bf16 %v677
        %v1974 = vunpack.c.l.s8.bf16 %v678
        %v1975 = vunpack.c.l.s8.bf16 %v679
        %v1976 = vunpack.c.h.s8.bf16 %v676
        %v1977 = vunpack.c.h.s8.bf16 %v677
        %v1978 = vunpack.c.h.s8.bf16 %v678
        %v1979 = vunpack.c.h.s8.bf16 %v679
        %v1980 = vunpack.c.l.s8.bf16 %v680
        %v1981 = vunpack.c.l.s8.bf16 %v681
        %v1982 = vunpack.c.l.s8.bf16 %v682
        %v1983 = vunpack.c.l.s8.bf16 %v683
        %v1984 = vunpack.c.h.s8.bf16 %v680
        %v1985 = vunpack.c.h.s8.bf16 %v681
        %v1986 = vunpack.c.h.s8.bf16 %v682
        %v1987 = vunpack.c.h.s8.bf16 %v683
        %v1988 = vunpack.c.l.s8.bf16 %v684
        %v1989 = vunpack.c.l.s8.bf16 %v685
        %v1990 = vunpack.c.l.s8.bf16 %v686
        %v1991 = vunpack.c.l.s8.bf16 %v687
        %v1992 = vunpack.c.h.s8.bf16 %v684
        %v1993 = vunpack.c.h.s8.bf16 %v685
        %v1994 = vunpack.c.h.s8.bf16 %v686
        %v1995 = vunpack.c.h.s8.bf16 %v687
        %v1996 = vunpack.c.l.s8.bf16 %v688
        %v1997 = vunpack.c.l.s8.bf16 %v689
        %v1998 = vunpack.c.l.s8.bf16 %v690
        %v1999 = vunpack.c.l.s8.bf16 %v691
        %v2000 = vunpack.c.h.s8.bf16 %v688
        %v2001 = vunpack.c.h.s8.bf16 %v689
        %v2002 = vunpack.c.h.s8.bf16 %v690
        %v2003 = vunpack.c.h.s8.bf16 %v691
        %v2004 = vunpack.c.l.s8.bf16 %v692
        %v2005 = vunpack.c.l.s8.bf16 %v693
        %v2006 = vunpack.c.l.s8.bf16 %v694
        %v2007 = vunpack.c.l.s8.bf16 %v695
        %v2008 = vunpack.c.h.s8.bf16 %v692
        %v2009 = vunpack.c.h.s8.bf16 %v693
        %v2010 = vunpack.c.h.s8.bf16 %v694
        %v2011 = vunpack.c.h.s8.bf16 %v695
        %v2012 = vunpack.c.l.s8.bf16 %v696
        %v2013 = vunpack.c.l.s8.bf16 %v697
        %v2014 = vunpack.c.l.s8.bf16 %v698
        %v2015 = vunpack.c.l.s8.bf16 %v699
        %v2016 = vunpack.c.h.s8.bf16 %v696
        %v2017 = vunpack.c.h.s8.bf16 %v697
        %v2018 = vunpack.c.h.s8.bf16 %v698
        %v2019 = vunpack.c.h.s8.bf16 %v699
        %v2020 = vunpack.c.l.s8.bf16 %v700
        %v2021 = vunpack.c.l.s8.bf16 %v701
        %v2022 = vunpack.c.l.s8.bf16 %v702
        %v2023 = vunpack.c.l.s8.bf16 %v703
        %v2024 = vunpack.c.h.s8.bf16 %v700
        %v2025 = vunpack.c.h.s8.bf16 %v701
        %v2026 = vunpack.c.h.s8.bf16 %v702
        %v2027 = vunpack.c.h.s8.bf16 %v703
        %v2028 = vunpack.c.l.s8.bf16 %v704
        %v2029 = vunpack.c.l.s8.bf16 %v705
        %v2030 = vunpack.c.l.s8.bf16 %v706
        %v2031 = vunpack.c.l.s8.bf16 %v707
        %v2032 = vunpack.c.h.s8.bf16 %v704
        %v2033 = vunpack.c.h.s8.bf16 %v705
        %v2034 = vunpack.c.h.s8.bf16 %v706
        %v2035 = vunpack.c.h.s8.bf16 %v707
        %v2036 = vunpack.c.l.s8.bf16 %v708
        %v2037 = vunpack.c.l.s8.bf16 %v709
        %v2038 = vunpack.c.l.s8.bf16 %v710
        %v2039 = vunpack.c.l.s8.bf16 %v711
        %v2040 = vunpack.c.h.s8.bf16 %v708
        %v2041 = vunpack.c.h.s8.bf16 %v709
        %v2042 = vunpack.c.h.s8.bf16 %v710
        %v2043 = vunpack.c.h.s8.bf16 %v711
        %v2044 = vunpack.c.l.s8.bf16 %v712
        %v2045 = vunpack.c.l.s8.bf16 %v713
        %v2046 = vunpack.c.l.s8.bf16 %v714
        %v2047 = vunpack.c.l.s8.bf16 %v715
        %v2048 = vunpack.c.h.s8.bf16 %v712
        %v2049 = vunpack.c.h.s8.bf16 %v713
        %v2050 = vunpack.c.h.s8.bf16 %v714
        %v2051 = vunpack.c.h.s8.bf16 %v715
        %v2052 = vunpack.c.l.s8.bf16 %v716
        %v2053 = vunpack.c.l.s8.bf16 %v717
        %v2054 = vunpack.c.l.s8.bf16 %v718
        %v2055 = vunpack.c.l.s8.bf16 %v719
        %v2056 = vunpack.c.h.s8.bf16 %v716
        %v2057 = vunpack.c.h.s8.bf16 %v717
        %v2058 = vunpack.c.h.s8.bf16 %v718
        %v2059 = vunpack.c.h.s8.bf16 %v719
        %v2060 = vunpack.c.l.s8.bf16 %v720
        %v2061 = vunpack.c.l.s8.bf16 %v721
        %v2062 = vunpack.c.l.s8.bf16 %v722
        %v2063 = vunpack.c.l.s8.bf16 %v723
        %v2064 = vunpack.c.h.s8.bf16 %v720
        %v2065 = vunpack.c.h.s8.bf16 %v721
        %v2066 = vunpack.c.h.s8.bf16 %v722
        %v2067 = vunpack.c.h.s8.bf16 %v723
        %v2068 = vunpack.c.l.s8.bf16 %v724
        %v2069 = vunpack.c.l.s8.bf16 %v725
        %v2070 = vunpack.c.l.s8.bf16 %v726
        %v2071 = vunpack.c.l.s8.bf16 %v727
        %v2072 = vunpack.c.h.s8.bf16 %v724
        %v2073 = vunpack.c.h.s8.bf16 %v725
        %v2074 = vunpack.c.h.s8.bf16 %v726
        %v2075 = vunpack.c.h.s8.bf16 %v727
        %v2076 = vunpack.c.l.s8.bf16 %v728
        %v2077 = vunpack.c.l.s8.bf16 %v729
        %v2078 = vunpack.c.l.s8.bf16 %v730
        %v2079 = vunpack.c.l.s8.bf16 %v731
        %v2080 = vunpack.c.h.s8.bf16 %v728
        %v2081 = vunpack.c.h.s8.bf16 %v729
        %v2082 = vunpack.c.h.s8.bf16 %v730
        %v2083 = vunpack.c.h.s8.bf16 %v731
        %v2084 = vunpack.c.l.s8.bf16 %v732
        %v2085 = vunpack.c.l.s8.bf16 %v733
        %v2086 = vunpack.c.l.s8.bf16 %v734
        %v2087 = vunpack.c.l.s8.bf16 %v735
        %v2088 = vunpack.c.h.s8.bf16 %v732
        %v2089 = vunpack.c.h.s8.bf16 %v733
        %v2090 = vunpack.c.h.s8.bf16 %v734
        %v2091 = vunpack.c.h.s8.bf16 %v735
        %v2092 = vunpack.c.l.s8.bf16 %v736
        %v2093 = vunpack.c.l.s8.bf16 %v737
        %v2094 = vunpack.c.l.s8.bf16 %v738
        %v2095 = vunpack.c.l.s8.bf16 %v739
        %v2096 = vunpack.c.h.s8.bf16 %v736
        %v2097 = vunpack.c.h.s8.bf16 %v737
        %v2098 = vunpack.c.h.s8.bf16 %v738
        %v2099 = vunpack.c.h.s8.bf16 %v739
        %v2100 = vunpack.c.l.s8.bf16 %v740
        %v2101 = vunpack.c.l.s8.bf16 %v741
        %v2102 = vunpack.c.l.s8.bf16 %v742
        %v2103 = vunpack.c.l.s8.bf16 %v743
        %v2104 = vunpack.c.h.s8.bf16 %v740
        %v2105 = vunpack.c.h.s8.bf16 %v741
        %v2106 = vunpack.c.h.s8.bf16 %v742
        %v2107 = vunpack.c.h.s8.bf16 %v743
        %v2108 = vunpack.c.l.s8.bf16 %v744
        %v2109 = vunpack.c.l.s8.bf16 %v745
        %v2110 = vunpack.c.l.s8.bf16 %v746
        %v2111 = vunpack.c.l.s8.bf16 %v747
        %v2112 = vunpack.c.h.s8.bf16 %v744
        %v2113 = vunpack.c.h.s8.bf16 %v745
        %v2114 = vunpack.c.h.s8.bf16 %v746
        %v2115 = vunpack.c.h.s8.bf16 %v747
        %v2116 = vunpack.c.l.s8.bf16 %v748
        %v2117 = vunpack.c.l.s8.bf16 %v749
        %v2118 = vunpack.c.l.s8.bf16 %v750
        %v2119 = vunpack.c.l.s8.bf16 %v751
        %v2120 = vunpack.c.h.s8.bf16 %v748
        %v2121 = vunpack.c.h.s8.bf16 %v749
        %v2122 = vunpack.c.h.s8.bf16 %v750
        %v2123 = vunpack.c.h.s8.bf16 %v751
        %v2124 = vunpack.c.l.s8.bf16 %v752
        %v2125 = vunpack.c.l.s8.bf16 %v753
        %v2126 = vunpack.c.l.s8.bf16 %v754
        %v2127 = vunpack.c.l.s8.bf16 %v755
        %v2128 = vunpack.c.h.s8.bf16 %v752
        %v2129 = vunpack.c.h.s8.bf16 %v753
        %v2130 = vunpack.c.h.s8.bf16 %v754
        %v2131 = vunpack.c.h.s8.bf16 %v755
        %v2132 = vunpack.c.l.s8.bf16 %v756
        %v2133 = vunpack.c.l.s8.bf16 %v757
        %v2134 = vunpack.c.l.s8.bf16 %v758
        %v2135 = vunpack.c.l.s8.bf16 %v759
        %v2136 = vunpack.c.h.s8.bf16 %v756
        %v2137 = vunpack.c.h.s8.bf16 %v757
        %v2138 = vunpack.c.h.s8.bf16 %v758
        %v2139 = vunpack.c.h.s8.bf16 %v759
        %v2140 = vunpack.c.l.s8.bf16 %v760
        %v2141 = vunpack.c.l.s8.bf16 %v761
        %v2142 = vunpack.c.l.s8.bf16 %v762
        %v2143 = vunpack.c.l.s8.bf16 %v763
        %v2144 = vunpack.c.h.s8.bf16 %v760
        %v2145 = vunpack.c.h.s8.bf16 %v761
        %v2146 = vunpack.c.h.s8.bf16 %v762
        %v2147 = vunpack.c.h.s8.bf16 %v763
        %v2148 = vunpack.c.l.s8.bf16 %v764
        %v2149 = vunpack.c.l.s8.bf16 %v765
        %v2150 = vunpack.c.l.s8.bf16 %v766
        %v2151 = vunpack.c.l.s8.bf16 %v767
        %v2152 = vunpack.c.h.s8.bf16 %v764
        %v2153 = vunpack.c.h.s8.bf16 %v765
        %v2154 = vunpack.c.h.s8.bf16 %v766
        %v2155 = vunpack.c.h.s8.bf16 %v767
        %v2156 = vunpack.c.l.s8.bf16 %v768
        %v2157 = vunpack.c.l.s8.bf16 %v769
        %v2158 = vunpack.c.l.s8.bf16 %v770
        %v2159 = vunpack.c.l.s8.bf16 %v771
        %v2160 = vunpack.c.h.s8.bf16 %v768
        %v2161 = vunpack.c.h.s8.bf16 %v769
        %v2162 = vunpack.c.h.s8.bf16 %v770
        %v2163 = vunpack.c.h.s8.bf16 %v771
        %v2164 = vunpack.c.l.s8.bf16 %v772
        %v2165 = vunpack.c.l.s8.bf16 %v773
        %v2166 = vunpack.c.l.s8.bf16 %v774
        %v2167 = vunpack.c.l.s8.bf16 %v775
        %v2168 = vunpack.c.h.s8.bf16 %v772
        %v2169 = vunpack.c.h.s8.bf16 %v773
        %v2170 = vunpack.c.h.s8.bf16 %v774
        %v2171 = vunpack.c.h.s8.bf16 %v775
        %v2172 = vunpack.c.l.s8.bf16 %v776
        %v2173 = vunpack.c.l.s8.bf16 %v777
        %v2174 = vunpack.c.l.s8.bf16 %v778
        %v2175 = vunpack.c.l.s8.bf16 %v779
        %v2176 = vunpack.c.h.s8.bf16 %v776
        %v2177 = vunpack.c.h.s8.bf16 %v777
        %v2178 = vunpack.c.h.s8.bf16 %v778
        %v2179 = vunpack.c.h.s8.bf16 %v779
        %v2180 = vunpack.c.l.s8.bf16 %v780
        %v2181 = vunpack.c.l.s8.bf16 %v781
        %v2182 = vunpack.c.l.s8.bf16 %v782
        %v2183 = vunpack.c.l.s8.bf16 %v783
        %v2184 = vunpack.c.h.s8.bf16 %v780
        %v2185 = vunpack.c.h.s8.bf16 %v781
        %v2186 = vunpack.c.h.s8.bf16 %v782
        %v2187 = vunpack.c.h.s8.bf16 %v783
        %v2188 = vunpack.c.l.s8.bf16 %v784
        %v2189 = vunpack.c.l.s8.bf16 %v785
        %v2190 = vunpack.c.l.s8.bf16 %v786
        %v2191 = vunpack.c.l.s8.bf16 %v787
        %v2192 = vunpack.c.h.s8.bf16 %v784
        %v2193 = vunpack.c.h.s8.bf16 %v785
        %v2194 = vunpack.c.h.s8.bf16 %v786
        %v2195 = vunpack.c.h.s8.bf16 %v787
        %v2196 = vunpack.c.l.s8.bf16 %v788
        %v2197 = vunpack.c.l.s8.bf16 %v789
        %v2198 = vunpack.c.l.s8.bf16 %v790
        %v2199 = vunpack.c.l.s8.bf16 %v791
        %v2200 = vunpack.c.h.s8.bf16 %v788
        %v2201 = vunpack.c.h.s8.bf16 %v789
        %v2202 = vunpack.c.h.s8.bf16 %v790
        %v2203 = vunpack.c.h.s8.bf16 %v791
        %v2204 = vunpack.c.l.s8.bf16 %v792
        %v2205 = vunpack.c.l.s8.bf16 %v793
        %v2206 = vunpack.c.l.s8.bf16 %v794
        %v2207 = vunpack.c.l.s8.bf16 %v795
        %v2208 = vunpack.c.h.s8.bf16 %v792
        %v2209 = vunpack.c.h.s8.bf16 %v793
        %v2210 = vunpack.c.h.s8.bf16 %v794
        %v2211 = vunpack.c.h.s8.bf16 %v795
        %v2212 = vunpack.c.l.s8.bf16 %v796
        %v2213 = vunpack.c.l.s8.bf16 %v797
        %v2214 = vunpack.c.l.s8.bf16 %v798
        %v2215 = vunpack.c.l.s8.bf16 %v799
        %v2216 = vunpack.c.h.s8.bf16 %v796
        %v2217 = vunpack.c.h.s8.bf16 %v797
        %v2218 = vunpack.c.h.s8.bf16 %v798
        %v2219 = vunpack.c.h.s8.bf16 %v799
        %v2220 = vunpack.c.l.s8.bf16 %v800
        %v2221 = vunpack.c.l.s8.bf16 %v801
        %v2222 = vunpack.c.l.s8.bf16 %v802
        %v2223 = vunpack.c.l.s8.bf16 %v803
        %v2224 = vunpack.c.h.s8.bf16 %v800
        %v2225 = vunpack.c.h.s8.bf16 %v801
        %v2226 = vunpack.c.h.s8.bf16 %v802
        %v2227 = vunpack.c.h.s8.bf16 %v803
        %v2228 = vunpack.c.l.s8.bf16 %v804
        %v2229 = vunpack.c.l.s8.bf16 %v805
        %v2230 = vunpack.c.l.s8.bf16 %v806
        %v2231 = vunpack.c.l.s8.bf16 %v807
        %v2232 = vunpack.c.h.s8.bf16 %v804
        %v2233 = vunpack.c.h.s8.bf16 %v805
        %v2234 = vunpack.c.h.s8.bf16 %v806
        %v2235 = vunpack.c.h.s8.bf16 %v807
        %v2236 = vunpack.c.l.s8.bf16 %v808
        %v2237 = vunpack.c.l.s8.bf16 %v809
        %v2238 = vunpack.c.l.s8.bf16 %v810
        %v2239 = vunpack.c.l.s8.bf16 %v811
        %v2240 = vunpack.c.h.s8.bf16 %v808
        %v2241 = vunpack.c.h.s8.bf16 %v809
        %v2242 = vunpack.c.h.s8.bf16 %v810
        %v2243 = vunpack.c.h.s8.bf16 %v811
        %v2244 = vunpack.c.l.s8.bf16 %v812
        %v2245 = vunpack.c.l.s8.bf16 %v813
        %v2246 = vunpack.c.l.s8.bf16 %v814
        %v2247 = vunpack.c.l.s8.bf16 %v815
        %v2248 = vunpack.c.h.s8.bf16 %v812
        %v2249 = vunpack.c.h.s8.bf16 %v813
        %v2250 = vunpack.c.h.s8.bf16 %v814
        %v2251 = vunpack.c.h.s8.bf16 %v815
        %v2252 = vunpack.c.l.s8.bf16 %v816
        %v2253 = vunpack.c.l.s8.bf16 %v817
        %v2254 = vunpack.c.l.s8.bf16 %v818
        %v2255 = vunpack.c.l.s8.bf16 %v819
        %v2256 = vunpack.c.h.s8.bf16 %v816
        %v2257 = vunpack.c.h.s8.bf16 %v817
        %v2258 = vunpack.c.h.s8.bf16 %v818
        %v2259 = vunpack.c.h.s8.bf16 %v819
        %v2260 = vunpack.c.l.s8.bf16 %v820
        %v2261 = vunpack.c.l.s8.bf16 %v821
        %v2262 = vunpack.c.l.s8.bf16 %v822
        %v2263 = vunpack.c.l.s8.bf16 %v823
        %v2264 = vunpack.c.h.s8.bf16 %v820
        %v2265 = vunpack.c.h.s8.bf16 %v821
        %v2266 = vunpack.c.h.s8.bf16 %v822
        %v2267 = vunpack.c.h.s8.bf16 %v823
        %v2268 = vunpack.c.l.s8.bf16 %v824
        %v2269 = vunpack.c.l.s8.bf16 %v825
        %v2270 = vunpack.c.l.s8.bf16 %v826
        %v2271 = vunpack.c.l.s8.bf16 %v827
        %v2272 = vunpack.c.h.s8.bf16 %v824
        %v2273 = vunpack.c.h.s8.bf16 %v825
        %v2274 = vunpack.c.h.s8.bf16 %v826
        %v2275 = vunpack.c.h.s8.bf16 %v827
        %v2276 = vunpack.c.l.s8.bf16 %v828
        %v2277 = vunpack.c.l.s8.bf16 %v829
        %v2278 = vunpack.c.l.s8.bf16 %v830
        %v2279 = vunpack.c.l.s8.bf16 %v831
        %v2280 = vunpack.c.h.s8.bf16 %v828
        %v2281 = vunpack.c.h.s8.bf16 %v829
        %v2282 = vunpack.c.h.s8.bf16 %v830
        %v2283 = vunpack.c.h.s8.bf16 %v831
        %v2284 = vunpack.c.l.s8.bf16 %v832
        %v2285 = vunpack.c.l.s8.bf16 %v833
        %v2286 = vunpack.c.l.s8.bf16 %v834
        %v2287 = vunpack.c.l.s8.bf16 %v835
        %v2288 = vunpack.c.h.s8.bf16 %v832
        %v2289 = vunpack.c.h.s8.bf16 %v833
        %v2290 = vunpack.c.h.s8.bf16 %v834
        %v2291 = vunpack.c.h.s8.bf16 %v835
        %v2292 = vunpack.c.l.s8.bf16 %v836
        %v2293 = vunpack.c.l.s8.bf16 %v837
        %v2294 = vunpack.c.l.s8.bf16 %v838
        %v2295 = vunpack.c.l.s8.bf16 %v839
        %v2296 = vunpack.c.h.s8.bf16 %v836
        %v2297 = vunpack.c.h.s8.bf16 %v837
        %v2298 = vunpack.c.h.s8.bf16 %v838
        %v2299 = vunpack.c.h.s8.bf16 %v839
        %v2300 = vunpack.c.l.s8.bf16 %v840
        %v2301 = vunpack.c.l.s8.bf16 %v841
        %v2302 = vunpack.c.l.s8.bf16 %v842
        %v2303 = vunpack.c.l.s8.bf16 %v843
        %v2304 = vunpack.c.h.s8.bf16 %v840
        %v2305 = vunpack.c.h.s8.bf16 %v841
        %v2306 = vunpack.c.h.s8.bf16 %v842
        %v2307 = vunpack.c.h.s8.bf16 %v843
        %v2308 = vunpack.c.l.s8.bf16 %v844
        %v2309 = vunpack.c.l.s8.bf16 %v845
        %v2310 = vunpack.c.l.s8.bf16 %v846
        %v2311 = vunpack.c.l.s8.bf16 %v847
        %v2312 = vunpack.c.h.s8.bf16 %v844
        %v2313 = vunpack.c.h.s8.bf16 %v845
        %v2314 = vunpack.c.h.s8.bf16 %v846
        %v2315 = vunpack.c.h.s8.bf16 %v847
        %v2316 = vunpack.c.l.s8.bf16 %v848
        %v2317 = vunpack.c.l.s8.bf16 %v849
        %v2318 = vunpack.c.l.s8.bf16 %v850
        %v2319 = vunpack.c.l.s8.bf16 %v851
        %v2320 = vunpack.c.h.s8.bf16 %v848
        %v2321 = vunpack.c.h.s8.bf16 %v849
        %v2322 = vunpack.c.h.s8.bf16 %v850
        %v2323 = vunpack.c.h.s8.bf16 %v851
        %v2324 = vunpack.c.l.s8.bf16 %v852
        %v2325 = vunpack.c.l.s8.bf16 %v853
        %v2326 = vunpack.c.l.s8.bf16 %v854
        %v2327 = vunpack.c.l.s8.bf16 %v855
        %v2328 = vunpack.c.h.s8.bf16 %v852
        %v2329 = vunpack.c.h.s8.bf16 %v853
        %v2330 = vunpack.c.h.s8.bf16 %v854
        %v2331 = vunpack.c.h.s8.bf16 %v855
        %v2332 = vunpack.c.l.s8.bf16 %v856
        %v2333 = vunpack.c.l.s8.bf16 %v857
        %v2334 = vunpack.c.l.s8.bf16 %v858
        %v2335 = vunpack.c.l.s8.bf16 %v859
        %v2336 = vunpack.c.h.s8.bf16 %v856
        %v2337 = vunpack.c.h.s8.bf16 %v857
        %v2338 = vunpack.c.h.s8.bf16 %v858
        %v2339 = vunpack.c.h.s8.bf16 %v859
        %v2340 = vunpack.c.l.s8.bf16 %v860
        %v2341 = vunpack.c.l.s8.bf16 %v861
        %v2342 = vunpack.c.l.s8.bf16 %v862
        %v2343 = vunpack.c.l.s8.bf16 %v863
        %v2344 = vunpack.c.h.s8.bf16 %v860
        %v2345 = vunpack.c.h.s8.bf16 %v861
        %v2346 = vunpack.c.h.s8.bf16 %v862
        %v2347 = vunpack.c.h.s8.bf16 %v863
        %v2348 = vunpack.c.l.s8.bf16 %v864
        %v2349 = vunpack.c.l.s8.bf16 %v865
        %v2350 = vunpack.c.l.s8.bf16 %v866
        %v2351 = vunpack.c.l.s8.bf16 %v867
        %v2352 = vunpack.c.h.s8.bf16 %v864
        %v2353 = vunpack.c.h.s8.bf16 %v865
        %v2354 = vunpack.c.h.s8.bf16 %v866
        %v2355 = vunpack.c.h.s8.bf16 %v867
        %v2356 = vunpack.c.l.s8.bf16 %v868
        %v2357 = vunpack.c.l.s8.bf16 %v869
        %v2358 = vunpack.c.l.s8.bf16 %v870
        %v2359 = vunpack.c.l.s8.bf16 %v871
        %v2360 = vunpack.c.h.s8.bf16 %v868
        %v2361 = vunpack.c.h.s8.bf16 %v869
        %v2362 = vunpack.c.h.s8.bf16 %v870
        %v2363 = vunpack.c.h.s8.bf16 %v871
        %v2364 = vunpack.c.l.s8.bf16 %v872
        %v2365 = vunpack.c.l.s8.bf16 %v873
        %v2366 = vunpack.c.l.s8.bf16 %v874
        %v2367 = vunpack.c.l.s8.bf16 %v875
        %v2368 = vunpack.c.h.s8.bf16 %v872
        %v2369 = vunpack.c.h.s8.bf16 %v873
        %v2370 = vunpack.c.h.s8.bf16 %v874
        %v2371 = vunpack.c.h.s8.bf16 %v875
        %v2372 = vunpack.c.l.s8.bf16 %v876
        %v2373 = vunpack.c.l.s8.bf16 %v877
        %v2374 = vunpack.c.l.s8.bf16 %v878
        %v2375 = vunpack.c.l.s8.bf16 %v879
        %v2376 = vunpack.c.h.s8.bf16 %v876
        %v2377 = vunpack.c.h.s8.bf16 %v877
        %v2378 = vunpack.c.h.s8.bf16 %v878
        %v2379 = vunpack.c.h.s8.bf16 %v879
        %v2380 = vunpack.c.l.s8.bf16 %v880
        %v2381 = vunpack.c.l.s8.bf16 %v881
        %v2382 = vunpack.c.l.s8.bf16 %v882
        %v2383 = vunpack.c.l.s8.bf16 %v883
        %v2384 = vunpack.c.h.s8.bf16 %v880
        %v2385 = vunpack.c.h.s8.bf16 %v881
        %v2386 = vunpack.c.h.s8.bf16 %v882
        %v2387 = vunpack.c.h.s8.bf16 %v883
        %v2388 = vunpack.c.l.s8.bf16 %v884
        %v2389 = vunpack.c.l.s8.bf16 %v885
        %v2390 = vunpack.c.l.s8.bf16 %v886
        %v2391 = vunpack.c.l.s8.bf16 %v887
        %v2392 = vunpack.c.h.s8.bf16 %v884
        %v2393 = vunpack.c.h.s8.bf16 %v885
        %v2394 = vunpack.c.h.s8.bf16 %v886
        %v2395 = vunpack.c.h.s8.bf16 %v887
        %v2396 = vunpack.c.l.s8.bf16 %v888
        %v2397 = vunpack.c.l.s8.bf16 %v889
        %v2398 = vunpack.c.l.s8.bf16 %v890
        %v2399 = vunpack.c.l.s8.bf16 %v891
        %v2400 = vunpack.c.h.s8.bf16 %v888
        %v2401 = vunpack.c.h.s8.bf16 %v889
        %v2402 = vunpack.c.h.s8.bf16 %v890
        %v2403 = vunpack.c.h.s8.bf16 %v891
        %v2404 = vunpack.c.l.s8.bf16 %v892
        %v2405 = vunpack.c.l.s8.bf16 %v893
        %v2406 = vunpack.c.l.s8.bf16 %v894
        %v2407 = vunpack.c.l.s8.bf16 %v895
        %v2408 = vunpack.c.h.s8.bf16 %v892
        %v2409 = vunpack.c.h.s8.bf16 %v893
        %v2410 = vunpack.c.h.s8.bf16 %v894
        %v2411 = vunpack.c.h.s8.bf16 %v895
        %v2412 = vunpack.c.l.s8.bf16 %v896
        %v2413 = vunpack.c.l.s8.bf16 %v897
        %v2414 = vunpack.c.l.s8.bf16 %v898
        %v2415 = vunpack.c.l.s8.bf16 %v899
        %v2416 = vunpack.c.h.s8.bf16 %v896
        %v2417 = vunpack.c.h.s8.bf16 %v897
        %v2418 = vunpack.c.h.s8.bf16 %v898
        %v2419 = vunpack.c.h.s8.bf16 %v899
        %v2420 = vunpack.c.l.s8.bf16 %v900
        %v2421 = vunpack.c.l.s8.bf16 %v901
        %v2422 = vunpack.c.l.s8.bf16 %v902
        %v2423 = vunpack.c.l.s8.bf16 %v903
        %v2424 = vunpack.c.h.s8.bf16 %v900
        %v2425 = vunpack.c.h.s8.bf16 %v901
        %v2426 = vunpack.c.h.s8.bf16 %v902
        %v2427 = vunpack.c.h.s8.bf16 %v903
        %v2428 = vunpack.c.l.s8.bf16 %v904
        %v2429 = vunpack.c.l.s8.bf16 %v905
        %v2430 = vunpack.c.l.s8.bf16 %v906
        %v2431 = vunpack.c.l.s8.bf16 %v907
        %v2432 = vunpack.c.h.s8.bf16 %v904
        %v2433 = vunpack.c.h.s8.bf16 %v905
        %v2434 = vunpack.c.h.s8.bf16 %v906
        %v2435 = vunpack.c.h.s8.bf16 %v907
        %v2436 = vunpack.c.l.s8.bf16 %v908
        %v2437 = vunpack.c.l.s8.bf16 %v909
        %v2438 = vunpack.c.l.s8.bf16 %v910
        %v2439 = vunpack.c.l.s8.bf16 %v911
        %v2440 = vunpack.c.h.s8.bf16 %v908
        %v2441 = vunpack.c.h.s8.bf16 %v909
        %v2442 = vunpack.c.h.s8.bf16 %v910
        %v2443 = vunpack.c.h.s8.bf16 %v911
        %v2444 = vunpack.c.l.s8.bf16 %v912
        %v2445 = vunpack.c.l.s8.bf16 %v913
        %v2446 = vunpack.c.l.s8.bf16 %v914
        %v2447 = vunpack.c.l.s8.bf16 %v915
        %v2448 = vunpack.c.h.s8.bf16 %v912
        %v2449 = vunpack.c.h.s8.bf16 %v913
        %v2450 = vunpack.c.h.s8.bf16 %v914
        %v2451 = vunpack.c.h.s8.bf16 %v915
        %v2452 = vunpack.c.l.s8.bf16 %v916
        %v2453 = vunpack.c.l.s8.bf16 %v917
        %v2454 = vunpack.c.l.s8.bf16 %v918
        %v2455 = vunpack.c.l.s8.bf16 %v919
        %v2456 = vunpack.c.h.s8.bf16 %v916
        %v2457 = vunpack.c.h.s8.bf16 %v917
        %v2458 = vunpack.c.h.s8.bf16 %v918
        %v2459 = vunpack.c.h.s8.bf16 %v919
        %v2460 = vunpack.c.l.s8.bf16 %v920
        %v2461 = vunpack.c.l.s8.bf16 %v921
        %v2462 = vunpack.c.l.s8.bf16 %v922
        %v2463 = vunpack.c.l.s8.bf16 %v923
        %v2464 = vunpack.c.h.s8.bf16 %v920
        %v2465 = vunpack.c.h.s8.bf16 %v921
        %v2466 = vunpack.c.h.s8.bf16 %v922
        %v2467 = vunpack.c.h.s8.bf16 %v923
        %v2468 = vunpack.c.l.s8.bf16 %v924
        %v2469 = vunpack.c.l.s8.bf16 %v925
        %v2470 = vunpack.c.l.s8.bf16 %v926
        %v2471 = vunpack.c.l.s8.bf16 %v927
        %v2472 = vunpack.c.h.s8.bf16 %v924
        %v2473 = vunpack.c.h.s8.bf16 %v925
        %v2474 = vunpack.c.h.s8.bf16 %v926
        %v2475 = vunpack.c.h.s8.bf16 %v927
        %v2476 = vunpack.c.l.s8.bf16 %v928
        %v2477 = vunpack.c.l.s8.bf16 %v929
        %v2478 = vunpack.c.l.s8.bf16 %v930
        %v2479 = vunpack.c.l.s8.bf16 %v931
        %v2480 = vunpack.c.h.s8.bf16 %v928
        %v2481 = vunpack.c.h.s8.bf16 %v929
        %v2482 = vunpack.c.h.s8.bf16 %v930
        %v2483 = vunpack.c.h.s8.bf16 %v931
        %v2484 = vunpack.c.l.s8.bf16 %v932
        %v2485 = vunpack.c.l.s8.bf16 %v933
        %v2486 = vunpack.c.l.s8.bf16 %v934
        %v2487 = vunpack.c.l.s8.bf16 %v935
        %v2488 = vunpack.c.h.s8.bf16 %v932
        %v2489 = vunpack.c.h.s8.bf16 %v933
        %v2490 = vunpack.c.h.s8.bf16 %v934
        %v2491 = vunpack.c.h.s8.bf16 %v935
        %v2492 = vunpack.c.l.s8.bf16 %v936
        %v2493 = vunpack.c.l.s8.bf16 %v937
        %v2494 = vunpack.c.l.s8.bf16 %v938
        %v2495 = vunpack.c.l.s8.bf16 %v939
        %v2496 = vunpack.c.h.s8.bf16 %v936
        %v2497 = vunpack.c.h.s8.bf16 %v937
        %v2498 = vunpack.c.h.s8.bf16 %v938
        %v2499 = vunpack.c.h.s8.bf16 %v939
        %v2500 = vunpack.c.l.s8.bf16 %v940
        %v2501 = vunpack.c.l.s8.bf16 %v941
        %v2502 = vunpack.c.l.s8.bf16 %v942
        %v2503 = vunpack.c.l.s8.bf16 %v943
        %v2504 = vunpack.c.h.s8.bf16 %v940
        %v2505 = vunpack.c.h.s8.bf16 %v941
        %v2506 = vunpack.c.h.s8.bf16 %v942
        %v2507 = vunpack.c.h.s8.bf16 %v943
        %v2508 = vunpack.c.l.s8.bf16 %v944
        %v2509 = vunpack.c.l.s8.bf16 %v945
        %v2510 = vunpack.c.l.s8.bf16 %v946
        %v2511 = vunpack.c.l.s8.bf16 %v947
        %v2512 = vunpack.c.h.s8.bf16 %v944
        %v2513 = vunpack.c.h.s8.bf16 %v945
        %v2514 = vunpack.c.h.s8.bf16 %v946
        %v2515 = vunpack.c.h.s8.bf16 %v947
        %v2516 = vunpack.c.l.s8.bf16 %v948
        %v2517 = vunpack.c.l.s8.bf16 %v949
        %v2518 = vunpack.c.l.s8.bf16 %v950
        %v2519 = vunpack.c.l.s8.bf16 %v951
        %v2520 = vunpack.c.h.s8.bf16 %v948
        %v2521 = vunpack.c.h.s8.bf16 %v949
        %v2522 = vunpack.c.h.s8.bf16 %v950
        %v2523 = vunpack.c.h.s8.bf16 %v951
        %v2524 = vunpack.c.l.s8.bf16 %v952
        %v2525 = vunpack.c.l.s8.bf16 %v953
        %v2526 = vunpack.c.l.s8.bf16 %v954
        %v2527 = vunpack.c.l.s8.bf16 %v955
        %v2528 = vunpack.c.h.s8.bf16 %v952
        %v2529 = vunpack.c.h.s8.bf16 %v953
        %v2530 = vunpack.c.h.s8.bf16 %v954
        %v2531 = vunpack.c.h.s8.bf16 %v955
        %v2532 = vunpack.c.l.s8.bf16 %v956
        %v2533 = vunpack.c.l.s8.bf16 %v957
        %v2534 = vunpack.c.l.s8.bf16 %v958
        %v2535 = vunpack.c.l.s8.bf16 %v959
        %v2536 = vunpack.c.h.s8.bf16 %v956
        %v2537 = vunpack.c.h.s8.bf16 %v957
        %v2538 = vunpack.c.h.s8.bf16 %v958
        %v2539 = vunpack.c.h.s8.bf16 %v959
        %v2540 = vunpack.c.l.s8.bf16 %v960
        %v2541 = vunpack.c.l.s8.bf16 %v961
        %v2542 = vunpack.c.l.s8.bf16 %v962
        %v2543 = vunpack.c.l.s8.bf16 %v963
        %v2544 = vunpack.c.h.s8.bf16 %v960
        %v2545 = vunpack.c.h.s8.bf16 %v961
        %v2546 = vunpack.c.h.s8.bf16 %v962
        %v2547 = vunpack.c.h.s8.bf16 %v963
        %v2548 = vunpack.c.l.s8.bf16 %v964
        %v2549 = vunpack.c.l.s8.bf16 %v965
        %v2550 = vunpack.c.l.s8.bf16 %v966
        %v2551 = vunpack.c.l.s8.bf16 %v967
        %v2552 = vunpack.c.h.s8.bf16 %v964
        %v2553 = vunpack.c.h.s8.bf16 %v965
        %v2554 = vunpack.c.h.s8.bf16 %v966
        %v2555 = vunpack.c.h.s8.bf16 %v967
        %v2556 = vunpack.c.l.s8.bf16 %v968
        %v2557 = vunpack.c.l.s8.bf16 %v969
        %v2558 = vunpack.c.l.s8.bf16 %v970
        %v2559 = vunpack.c.l.s8.bf16 %v971
        %v2560 = vunpack.c.h.s8.bf16 %v968
        %v2561 = vunpack.c.h.s8.bf16 %v969
        %v2562 = vunpack.c.h.s8.bf16 %v970
        %v2563 = vunpack.c.h.s8.bf16 %v971
        %v2564 = vunpack.c.l.s8.bf16 %v972
        %v2565 = vunpack.c.l.s8.bf16 %v973
        %v2566 = vunpack.c.l.s8.bf16 %v974
        %v2567 = vunpack.c.l.s8.bf16 %v975
        %v2568 = vunpack.c.h.s8.bf16 %v972
        %v2569 = vunpack.c.h.s8.bf16 %v973
        %v2570 = vunpack.c.h.s8.bf16 %v974
        %v2571 = vunpack.c.h.s8.bf16 %v975
        %v2572 = vunpack.c.l.s8.bf16 %v976
        %v2573 = vunpack.c.l.s8.bf16 %v977
        %v2574 = vunpack.c.l.s8.bf16 %v978
        %v2575 = vunpack.c.l.s8.bf16 %v979
        %v2576 = vunpack.c.h.s8.bf16 %v976
        %v2577 = vunpack.c.h.s8.bf16 %v977
        %v2578 = vunpack.c.h.s8.bf16 %v978
        %v2579 = vunpack.c.h.s8.bf16 %v979
        %v2580 = vunpack.c.l.s8.bf16 %v980
        %v2581 = vunpack.c.l.s8.bf16 %v981
        %v2582 = vunpack.c.l.s8.bf16 %v982
        %v2583 = vunpack.c.l.s8.bf16 %v983
        %v2584 = vunpack.c.h.s8.bf16 %v980
        %v2585 = vunpack.c.h.s8.bf16 %v981
        %v2586 = vunpack.c.h.s8.bf16 %v982
        %v2587 = vunpack.c.h.s8.bf16 %v983
        %v2588 = vunpack.c.l.s8.bf16 %v984
        %v2589 = vunpack.c.l.s8.bf16 %v985
        %v2590 = vunpack.c.l.s8.bf16 %v986
        %v2591 = vunpack.c.l.s8.bf16 %v987
        %v2592 = vunpack.c.h.s8.bf16 %v984
        %v2593 = vunpack.c.h.s8.bf16 %v985
        %v2594 = vunpack.c.h.s8.bf16 %v986
        %v2595 = vunpack.c.h.s8.bf16 %v987
        %v2596 = vunpack.c.l.s8.bf16 %v988
        %v2597 = vunpack.c.l.s8.bf16 %v989
        %v2598 = vunpack.c.l.s8.bf16 %v990
        %v2599 = vunpack.c.l.s8.bf16 %v991
        %v2600 = vunpack.c.h.s8.bf16 %v988
        %v2601 = vunpack.c.h.s8.bf16 %v989
        %v2602 = vunpack.c.h.s8.bf16 %v990
        %v2603 = vunpack.c.h.s8.bf16 %v991
        %v2604 = vunpack.c.l.s8.bf16 %v992
        %v2605 = vunpack.c.l.s8.bf16 %v993
        %v2606 = vunpack.c.l.s8.bf16 %v994
        %v2607 = vunpack.c.l.s8.bf16 %v995
        %v2608 = vunpack.c.h.s8.bf16 %v992
        %v2609 = vunpack.c.h.s8.bf16 %v993
        %v2610 = vunpack.c.h.s8.bf16 %v994
        %v2611 = vunpack.c.h.s8.bf16 %v995
        %v2612 = vunpack.c.l.s8.bf16 %v996
        %v2613 = vunpack.c.l.s8.bf16 %v997
        %v2614 = vunpack.c.l.s8.bf16 %v998
        %v2615 = vunpack.c.l.s8.bf16 %v999
        %v2616 = vunpack.c.h.s8.bf16 %v996
        %v2617 = vunpack.c.h.s8.bf16 %v997
        %v2618 = vunpack.c.h.s8.bf16 %v998
        %v2619 = vunpack.c.h.s8.bf16 %v999
        %v2620 = vunpack.c.l.s8.bf16 %v1000
        %v2621 = vunpack.c.l.s8.bf16 %v1001
        %v2622 = vunpack.c.l.s8.bf16 %v1002
        %v2623 = vunpack.c.l.s8.bf16 %v1003
        %v2624 = vunpack.c.h.s8.bf16 %v1000
        %v2625 = vunpack.c.h.s8.bf16 %v1001
        %v2626 = vunpack.c.h.s8.bf16 %v1002
        %v2627 = vunpack.c.h.s8.bf16 %v1003
        %v2628 = vunpack.c.l.s8.bf16 %v1004
        %v2629 = vunpack.c.l.s8.bf16 %v1005
        %v2630 = vunpack.c.l.s8.bf16 %v1006
        %v2631 = vunpack.c.l.s8.bf16 %v1007
        %v2632 = vunpack.c.h.s8.bf16 %v1004
        %v2633 = vunpack.c.h.s8.bf16 %v1005
        %v2634 = vunpack.c.h.s8.bf16 %v1006
        %v2635 = vunpack.c.h.s8.bf16 %v1007
        %v2636 = vunpack.c.l.s8.bf16 %v1008
        %v2637 = vunpack.c.l.s8.bf16 %v1009
        %v2638 = vunpack.c.l.s8.bf16 %v1010
        %v2639 = vunpack.c.l.s8.bf16 %v1011
        %v2640 = vunpack.c.h.s8.bf16 %v1008
        %v2641 = vunpack.c.h.s8.bf16 %v1009
        %v2642 = vunpack.c.h.s8.bf16 %v1010
        %v2643 = vunpack.c.h.s8.bf16 %v1011
        %v2644 = vunpack.c.l.s8.bf16 %v1012
        %v2645 = vunpack.c.l.s8.bf16 %v1013
        %v2646 = vunpack.c.l.s8.bf16 %v1014
        %v2647 = vunpack.c.l.s8.bf16 %v1015
        %v2648 = vunpack.c.h.s8.bf16 %v1012
        %v2649 = vunpack.c.h.s8.bf16 %v1013
        %v2650 = vunpack.c.h.s8.bf16 %v1014
        %v2651 = vunpack.c.h.s8.bf16 %v1015
        %v2652 = vunpack.c.l.s8.bf16 %v1016
        %v2653 = vunpack.c.l.s8.bf16 %v1017
        %v2654 = vunpack.c.l.s8.bf16 %v1018
        %v2655 = vunpack.c.l.s8.bf16 %v1019
        %v2656 = vunpack.c.h.s8.bf16 %v1016
        %v2657 = vunpack.c.h.s8.bf16 %v1017
        %v2658 = vunpack.c.h.s8.bf16 %v1018
        %v2659 = vunpack.c.h.s8.bf16 %v1019
        %v2660 = vunpack.c.l.s8.bf16 %v1020
        %v2661 = vunpack.c.l.s8.bf16 %v1021
        %v2662 = vunpack.c.l.s8.bf16 %v1022
        %v2663 = vunpack.c.l.s8.bf16 %v1023
        %v2664 = vunpack.c.h.s8.bf16 %v1020
        %v2665 = vunpack.c.h.s8.bf16 %v1021
        %v2666 = vunpack.c.h.s8.bf16 %v1022
        %v2667 = vunpack.c.h.s8.bf16 %v1023
        %v2668 = vunpack.c.l.s8.bf16 %v1024
        %v2669 = vunpack.c.l.s8.bf16 %v1025
        %v2670 = vunpack.c.l.s8.bf16 %v1026
        %v2671 = vunpack.c.l.s8.bf16 %v1027
        %v2672 = vunpack.c.h.s8.bf16 %v1024
        %v2673 = vunpack.c.h.s8.bf16 %v1025
        %v2674 = vunpack.c.h.s8.bf16 %v1026
        %v2675 = vunpack.c.h.s8.bf16 %v1027
        %v2676 = vunpack.c.l.s8.bf16 %v1028
        %v2677 = vunpack.c.l.s8.bf16 %v1029
        %v2678 = vunpack.c.l.s8.bf16 %v1030
        %v2679 = vunpack.c.l.s8.bf16 %v1031
        %v2680 = vunpack.c.h.s8.bf16 %v1028
        %v2681 = vunpack.c.h.s8.bf16 %v1029
        %v2682 = vunpack.c.h.s8.bf16 %v1030
        %v2683 = vunpack.c.h.s8.bf16 %v1031
        %v2684 = vunpack.c.l.s8.bf16 %v1032
        %v2685 = vunpack.c.l.s8.bf16 %v1033
        %v2686 = vunpack.c.l.s8.bf16 %v1034
        %v2687 = vunpack.c.l.s8.bf16 %v1035
        %v2688 = vunpack.c.h.s8.bf16 %v1032
        %v2689 = vunpack.c.h.s8.bf16 %v1033
        %v2690 = vunpack.c.h.s8.bf16 %v1034
        %v2691 = vunpack.c.h.s8.bf16 %v1035
        %v2692 = vunpack.c.l.s8.bf16 %v1036
        %v2693 = vunpack.c.l.s8.bf16 %v1037
        %v2694 = vunpack.c.l.s8.bf16 %v1038
        %v2695 = vunpack.c.l.s8.bf16 %v1039
        %v2696 = vunpack.c.h.s8.bf16 %v1036
        %v2697 = vunpack.c.h.s8.bf16 %v1037
        %v2698 = vunpack.c.h.s8.bf16 %v1038
        %v2699 = vunpack.c.h.s8.bf16 %v1039
        %v2700 = vunpack.c.l.s8.bf16 %v1040
        %v2701 = vunpack.c.l.s8.bf16 %v1041
        %v2702 = vunpack.c.l.s8.bf16 %v1042
        %v2703 = vunpack.c.l.s8.bf16 %v1043
        %v2704 = vunpack.c.h.s8.bf16 %v1040
        %v2705 = vunpack.c.h.s8.bf16 %v1041
        %v2706 = vunpack.c.h.s8.bf16 %v1042
        %v2707 = vunpack.c.h.s8.bf16 %v1043
        %v2708 = vunpack.c.l.s8.bf16 %v1044
        %v2709 = vunpack.c.l.s8.bf16 %v1045
        %v2710 = vunpack.c.l.s8.bf16 %v1046
        %v2711 = vunpack.c.l.s8.bf16 %v1047
        %v2712 = vunpack.c.h.s8.bf16 %v1044
        %v2713 = vunpack.c.h.s8.bf16 %v1045
        %v2714 = vunpack.c.h.s8.bf16 %v1046
        %v2715 = vunpack.c.h.s8.bf16 %v1047
        %v2716 = vunpack.c.l.s8.bf16 %v1048
        %v2717 = vunpack.c.l.s8.bf16 %v1049
        %v2718 = vunpack.c.l.s8.bf16 %v1050
        %v2719 = vunpack.c.l.s8.bf16 %v1051
        %v2720 = vunpack.c.h.s8.bf16 %v1048
        %v2721 = vunpack.c.h.s8.bf16 %v1049
        %v2722 = vunpack.c.h.s8.bf16 %v1050
        %v2723 = vunpack.c.h.s8.bf16 %v1051
        %v2724 = vunpack.c.l.s8.bf16 %v1052
        %v2725 = vunpack.c.l.s8.bf16 %v1053
        %v2726 = vunpack.c.l.s8.bf16 %v1054
        %v2727 = vunpack.c.l.s8.bf16 %v1055
        %v2728 = vunpack.c.h.s8.bf16 %v1052
        %v2729 = vunpack.c.h.s8.bf16 %v1053
        %v2730 = vunpack.c.h.s8.bf16 %v1054
        %v2731 = vunpack.c.h.s8.bf16 %v1055
        %v2732 = vunpack.c.l.s8.bf16 %v1056
        %v2733 = vunpack.c.l.s8.bf16 %v1057
        %v2734 = vunpack.c.l.s8.bf16 %v1058
        %v2735 = vunpack.c.l.s8.bf16 %v1059
        %v2736 = vunpack.c.h.s8.bf16 %v1056
        %v2737 = vunpack.c.h.s8.bf16 %v1057
        %v2738 = vunpack.c.h.s8.bf16 %v1058
        %v2739 = vunpack.c.h.s8.bf16 %v1059
        %v2740 = vunpack.c.l.s8.bf16 %v1060
        %v2741 = vunpack.c.l.s8.bf16 %v1061
        %v2742 = vunpack.c.l.s8.bf16 %v1062
        %v2743 = vunpack.c.l.s8.bf16 %v1063
        %v2744 = vunpack.c.h.s8.bf16 %v1060
        %v2745 = vunpack.c.h.s8.bf16 %v1061
        %v2746 = vunpack.c.h.s8.bf16 %v1062
        %v2747 = vunpack.c.h.s8.bf16 %v1063
        %v2748 = vunpack.c.l.s8.bf16 %v1064
        %v2749 = vunpack.c.l.s8.bf16 %v1065
        %v2750 = vunpack.c.l.s8.bf16 %v1066
        %v2751 = vunpack.c.l.s8.bf16 %v1067
        %v2752 = vunpack.c.h.s8.bf16 %v1064
        %v2753 = vunpack.c.h.s8.bf16 %v1065
        %v2754 = vunpack.c.h.s8.bf16 %v1066
        %v2755 = vunpack.c.h.s8.bf16 %v1067
        %v2756 = vunpack.c.l.s8.bf16 %v1068
        %v2757 = vunpack.c.l.s8.bf16 %v1069
        %v2758 = vunpack.c.l.s8.bf16 %v1070
        %v2759 = vunpack.c.l.s8.bf16 %v1071
        %v2760 = vunpack.c.h.s8.bf16 %v1068
        %v2761 = vunpack.c.h.s8.bf16 %v1069
        %v2762 = vunpack.c.h.s8.bf16 %v1070
        %v2763 = vunpack.c.h.s8.bf16 %v1071
        %v2764 = vunpack.c.l.s8.bf16 %v1072
        %v2765 = vunpack.c.l.s8.bf16 %v1073
        %v2766 = vunpack.c.l.s8.bf16 %v1074
        %v2767 = vunpack.c.l.s8.bf16 %v1075
        %v2768 = vunpack.c.h.s8.bf16 %v1072
        %v2769 = vunpack.c.h.s8.bf16 %v1073
        %v2770 = vunpack.c.h.s8.bf16 %v1074
        %v2771 = vunpack.c.h.s8.bf16 %v1075
        %v2772 = vunpack.c.l.s8.bf16 %v1076
        %v2773 = vunpack.c.l.s8.bf16 %v1077
        %v2774 = vunpack.c.l.s8.bf16 %v1078
        %v2775 = vunpack.c.l.s8.bf16 %v1079
        %v2776 = vunpack.c.h.s8.bf16 %v1076
        %v2777 = vunpack.c.h.s8.bf16 %v1077
        %v2778 = vunpack.c.h.s8.bf16 %v1078
        %v2779 = vunpack.c.h.s8.bf16 %v1079
        %v2780 = vunpack.c.l.s8.bf16 %v1080
        %v2781 = vunpack.c.l.s8.bf16 %v1081
        %v2782 = vunpack.c.l.s8.bf16 %v1082
        %v2783 = vunpack.c.l.s8.bf16 %v1083
        %v2784 = vunpack.c.h.s8.bf16 %v1080
        %v2785 = vunpack.c.h.s8.bf16 %v1081
        %v2786 = vunpack.c.h.s8.bf16 %v1082
        %v2787 = vunpack.c.h.s8.bf16 %v1083
        %v2788 = vunpack.c.l.s8.bf16 %v1084
        %v2789 = vunpack.c.l.s8.bf16 %v1085
        %v2790 = vunpack.c.l.s8.bf16 %v1086
        %v2791 = vunpack.c.l.s8.bf16 %v1087
        %v2792 = vunpack.c.h.s8.bf16 %v1084
        %v2793 = vunpack.c.h.s8.bf16 %v1085
        %v2794 = vunpack.c.h.s8.bf16 %v1086
        %v2795 = vunpack.c.h.s8.bf16 %v1087
        %v2796 = vunpack.c.l.s8.bf16 %v1088
        %v2797 = vunpack.c.l.s8.bf16 %v1089
        %v2798 = vunpack.c.l.s8.bf16 %v1090
        %v2799 = vunpack.c.l.s8.bf16 %v1091
        %v2800 = vunpack.c.h.s8.bf16 %v1088
        %v2801 = vunpack.c.h.s8.bf16 %v1089
        %v2802 = vunpack.c.h.s8.bf16 %v1090
        %v2803 = vunpack.c.h.s8.bf16 %v1091
        %v2804 = vunpack.c.l.s8.bf16 %v1092
        %v2805 = vunpack.c.l.s8.bf16 %v1093
        %v2806 = vunpack.c.l.s8.bf16 %v1094
        %v2807 = vunpack.c.l.s8.bf16 %v1095
        %v2808 = vunpack.c.h.s8.bf16 %v1092
        %v2809 = vunpack.c.h.s8.bf16 %v1093
        %v2810 = vunpack.c.h.s8.bf16 %v1094
        %v2811 = vunpack.c.h.s8.bf16 %v1095
        %v2812 = vunpack.c.l.s8.bf16 %v1096
        %v2813 = vunpack.c.l.s8.bf16 %v1097
        %v2814 = vunpack.c.l.s8.bf16 %v1098
        %v2815 = vunpack.c.l.s8.bf16 %v1099
        %v2816 = vunpack.c.h.s8.bf16 %v1096
        %v2817 = vunpack.c.h.s8.bf16 %v1097
        %v2818 = vunpack.c.h.s8.bf16 %v1098
        %v2819 = vunpack.c.h.s8.bf16 %v1099
        %v2820 = vunpack.c.l.s8.bf16 %v1100
        %v2821 = vunpack.c.l.s8.bf16 %v1101
        %v2822 = vunpack.c.l.s8.bf16 %v1102
        %v2823 = vunpack.c.l.s8.bf16 %v1103
        %v2824 = vunpack.c.h.s8.bf16 %v1100
        %v2825 = vunpack.c.h.s8.bf16 %v1101
        %v2826 = vunpack.c.h.s8.bf16 %v1102
        %v2827 = vunpack.c.h.s8.bf16 %v1103
        %v2828 = vunpack.c.l.s8.bf16 %v1104
        %v2829 = vunpack.c.l.s8.bf16 %v1105
        %v2830 = vunpack.c.l.s8.bf16 %v1106
        %v2831 = vunpack.c.l.s8.bf16 %v1107
        %v2832 = vunpack.c.h.s8.bf16 %v1104
        %v2833 = vunpack.c.h.s8.bf16 %v1105
        %v2834 = vunpack.c.h.s8.bf16 %v1106
        %v2835 = vunpack.c.h.s8.bf16 %v1107
        %v2836 = vunpack.c.l.s8.bf16 %v1108
        %v2837 = vunpack.c.l.s8.bf16 %v1109
        %v2838 = vunpack.c.l.s8.bf16 %v1110
        %v2839 = vunpack.c.l.s8.bf16 %v1111
        %v2840 = vunpack.c.h.s8.bf16 %v1108
        %v2841 = vunpack.c.h.s8.bf16 %v1109
        %v2842 = vunpack.c.h.s8.bf16 %v1110
        %v2843 = vunpack.c.h.s8.bf16 %v1111
        %v2844 = vunpack.c.l.s8.bf16 %v1112
        %v2845 = vunpack.c.l.s8.bf16 %v1113
        %v2846 = vunpack.c.l.s8.bf16 %v1114
        %v2847 = vunpack.c.l.s8.bf16 %v1115
        %v2848 = vunpack.c.h.s8.bf16 %v1112
        %v2849 = vunpack.c.h.s8.bf16 %v1113
        %v2850 = vunpack.c.h.s8.bf16 %v1114
        %v2851 = vunpack.c.h.s8.bf16 %v1115
        %v2852 = vunpack.c.l.s8.bf16 %v1116
        %v2853 = vunpack.c.l.s8.bf16 %v1117
        %v2854 = vunpack.c.l.s8.bf16 %v1118
        %v2855 = vunpack.c.l.s8.bf16 %v1119
        %v2856 = vunpack.c.h.s8.bf16 %v1116
        %v2857 = vunpack.c.h.s8.bf16 %v1117
        %v2858 = vunpack.c.h.s8.bf16 %v1118
        %v2859 = vunpack.c.h.s8.bf16 %v1119
        %v2860 = vunpack.c.l.s8.bf16 %v1120
        %v2861 = vunpack.c.l.s8.bf16 %v1121
        %v2862 = vunpack.c.l.s8.bf16 %v1122
        %v2863 = vunpack.c.l.s8.bf16 %v1123
        %v2864 = vunpack.c.h.s8.bf16 %v1120
        %v2865 = vunpack.c.h.s8.bf16 %v1121
        %v2866 = vunpack.c.h.s8.bf16 %v1122
        %v2867 = vunpack.c.h.s8.bf16 %v1123
        %v2868 = vunpack.c.l.s8.bf16 %v1124
        %v2869 = vunpack.c.l.s8.bf16 %v1125
        %v2870 = vunpack.c.l.s8.bf16 %v1126
        %v2871 = vunpack.c.l.s8.bf16 %v1127
        %v2872 = vunpack.c.h.s8.bf16 %v1124
        %v2873 = vunpack.c.h.s8.bf16 %v1125
        %v2874 = vunpack.c.h.s8.bf16 %v1126
        %v2875 = vunpack.c.h.s8.bf16 %v1127
        %v2876 = vunpack.c.l.s8.bf16 %v1128
        %v2877 = vunpack.c.l.s8.bf16 %v1129
        %v2878 = vunpack.c.l.s8.bf16 %v1130
        %v2879 = vunpack.c.l.s8.bf16 %v1131
        %v2880 = vunpack.c.h.s8.bf16 %v1128
        %v2881 = vunpack.c.h.s8.bf16 %v1129
        %v2882 = vunpack.c.h.s8.bf16 %v1130
        %v2883 = vunpack.c.h.s8.bf16 %v1131
        %v2884 = vunpack.c.l.s8.bf16 %v1132
        %v2885 = vunpack.c.l.s8.bf16 %v1133
        %v2886 = vunpack.c.l.s8.bf16 %v1134
        %v2887 = vunpack.c.l.s8.bf16 %v1135
        %v2888 = vunpack.c.h.s8.bf16 %v1132
        %v2889 = vunpack.c.h.s8.bf16 %v1133
        %v2890 = vunpack.c.h.s8.bf16 %v1134
        %v2891 = vunpack.c.h.s8.bf16 %v1135
        %v2892 = vunpack.c.l.s8.bf16 %v1136
        %v2893 = vunpack.c.l.s8.bf16 %v1137
        %v2894 = vunpack.c.l.s8.bf16 %v1138
        %v2895 = vunpack.c.l.s8.bf16 %v1139
        %v2896 = vunpack.c.h.s8.bf16 %v1136
        %v2897 = vunpack.c.h.s8.bf16 %v1137
        %v2898 = vunpack.c.h.s8.bf16 %v1138
        %v2899 = vunpack.c.h.s8.bf16 %v1139
        %v2900 = vunpack.c.l.s8.bf16 %v1140
        %v2901 = vunpack.c.l.s8.bf16 %v1141
        %v2902 = vunpack.c.l.s8.bf16 %v1142
        %v2903 = vunpack.c.l.s8.bf16 %v1143
        %v2904 = vunpack.c.h.s8.bf16 %v1140
        %v2905 = vunpack.c.h.s8.bf16 %v1141
        %v2906 = vunpack.c.h.s8.bf16 %v1142
        %v2907 = vunpack.c.h.s8.bf16 %v1143
        %v2908 = vunpack.c.l.s8.bf16 %v1144
        %v2909 = vunpack.c.l.s8.bf16 %v1145
        %v2910 = vunpack.c.l.s8.bf16 %v1146
        %v2911 = vunpack.c.l.s8.bf16 %v1147
        %v2912 = vunpack.c.h.s8.bf16 %v1144
        %v2913 = vunpack.c.h.s8.bf16 %v1145
        %v2914 = vunpack.c.h.s8.bf16 %v1146
        %v2915 = vunpack.c.h.s8.bf16 %v1147
        %v2916 = vunpack.c.l.s8.bf16 %v1148
        %v2917 = vunpack.c.l.s8.bf16 %v1149
        %v2918 = vunpack.c.l.s8.bf16 %v1150
        %v2919 = vunpack.c.l.s8.bf16 %v1151
        %v2920 = vunpack.c.h.s8.bf16 %v1148
        %v2921 = vunpack.c.h.s8.bf16 %v1149
        %v2922 = vunpack.c.h.s8.bf16 %v1150
        %v2923 = vunpack.c.h.s8.bf16 %v1151
        %v2924 = vunpack.c.l.s8.bf16 %v1152
        %v2925 = vunpack.c.l.s8.bf16 %v1153
        %v2926 = vunpack.c.l.s8.bf16 %v1154
        %v2927 = vunpack.c.l.s8.bf16 %v1155
        %v2928 = vunpack.c.h.s8.bf16 %v1152
        %v2929 = vunpack.c.h.s8.bf16 %v1153
        %v2930 = vunpack.c.h.s8.bf16 %v1154
        %v2931 = vunpack.c.h.s8.bf16 %v1155
        %v2932 = vunpack.c.l.s8.bf16 %v1156
        %v2933 = vunpack.c.l.s8.bf16 %v1157
        %v2934 = vunpack.c.l.s8.bf16 %v1158
        %v2935 = vunpack.c.l.s8.bf16 %v1159
        %v2936 = vunpack.c.h.s8.bf16 %v1156
        %v2937 = vunpack.c.h.s8.bf16 %v1157
        %v2938 = vunpack.c.h.s8.bf16 %v1158
        %v2939 = vunpack.c.h.s8.bf16 %v1159
        %v2940 = vunpack.c.l.s8.bf16 %v1160
        %v2941 = vunpack.c.l.s8.bf16 %v1161
        %v2942 = vunpack.c.l.s8.bf16 %v1162
        %v2943 = vunpack.c.l.s8.bf16 %v1163
        %v2944 = vunpack.c.h.s8.bf16 %v1160
        %v2945 = vunpack.c.h.s8.bf16 %v1161
        %v2946 = vunpack.c.h.s8.bf16 %v1162
        %v2947 = vunpack.c.h.s8.bf16 %v1163
        %v2948 = vunpack.c.l.s8.bf16 %v1164
        %v2949 = vunpack.c.l.s8.bf16 %v1165
        %v2950 = vunpack.c.l.s8.bf16 %v1166
        %v2951 = vunpack.c.l.s8.bf16 %v1167
        %v2952 = vunpack.c.h.s8.bf16 %v1164
        %v2953 = vunpack.c.h.s8.bf16 %v1165
        %v2954 = vunpack.c.h.s8.bf16 %v1166
        %v2955 = vunpack.c.h.s8.bf16 %v1167
        %v2956 = vunpack.c.l.s8.bf16 %v1168
        %v2957 = vunpack.c.l.s8.bf16 %v1169
        %v2958 = vunpack.c.l.s8.bf16 %v1170
        %v2959 = vunpack.c.l.s8.bf16 %v1171
        %v2960 = vunpack.c.h.s8.bf16 %v1168
        %v2961 = vunpack.c.h.s8.bf16 %v1169
        %v2962 = vunpack.c.h.s8.bf16 %v1170
        %v2963 = vunpack.c.h.s8.bf16 %v1171
        %v2964 = vld [vmem:[%s241] sm:$0xff]
        %v2972 = vcombine.high %v269, %v269
        %v2974 = vunpack.c.l.s4 1966171168
        %v2975 = vunpack.c.0.s8 %v2974
        %v2976 = vlaneseq
        %v2977 = vshrl.u32 %v2976, 7
        %v2978 = vsub.s32 %v2975, %v2977
        %v2979 = vrot.slane %v269, %v2978
        %v2981 = vunpack.c.l.s4 1966171168
        %v2982 = vunpack.c.0.s8 %v2981
        %v2983 = vlaneseq
        %v2984 = vshrl.u32 %v2983, 7
        %v2985 = vsub.s32 %v2982, %v2984
        %v2986 = vrot.slane %v2972, %v2985
        %v2987 = vcombine.high %v2979, %v2979
        %v2988 = vcombine.high %v2986, %v2986
        %v2990 = vunpack.c.l.s4 1966171168
        %v2991 = vunpack.c.0.s8 %v2990
        %v2992 = vlaneseq
        %v2993 = vshrl.u32 %v2992, 7
        %v2994 = vsub.s32 %v2991, %v2993
        %v2995 = vrot.slane %v2979, %v2994
        %v2997 = vunpack.c.l.s4 1966171168
        %v2998 = vunpack.c.0.s8 %v2997
        %v2999 = vlaneseq
        %v3000 = vshrl.u32 %v2999, 7
        %v3001 = vsub.s32 %v2998, %v3000
        %v3002 = vrot.slane %v2986, %v3001
        %v3004 = vunpack.c.l.s4 1966171168
        %v3005 = vunpack.c.0.s8 %v3004
        %v3006 = vlaneseq
        %v3007 = vshrl.u32 %v3006, 7
        %v3008 = vsub.s32 %v3005, %v3007
        %v3009 = vrot.slane %v2987, %v3008
        %v3011 = vunpack.c.l.s4 1966171168
        %v3012 = vunpack.c.0.s8 %v3011
        %v3013 = vlaneseq
        %v3014 = vshrl.u32 %v3013, 7
        %v3015 = vsub.s32 %v3012, %v3014
        %v3016 = vrot.slane %v2988, %v3015
        %v3017 = vcombine.high %v2995, %v2995
        %v3018 = vcombine.high %v3002, %v3002
        %v3019 = vcombine.high %v3009, %v3009
        %v3020 = vcombine.high %v3016, %v3016
        %v3021 = vcombine.high %v270, %v270
        %v3023 = vunpack.c.l.s4 1966171168
        %v3024 = vunpack.c.0.s8 %v3023
        %v3025 = vlaneseq
        %v3026 = vshrl.u32 %v3025, 7
        %v3027 = vsub.s32 %v3024, %v3026
        %v3028 = vrot.slane %v270, %v3027
        %v3030 = vunpack.c.l.s4 1966171168
        %v3031 = vunpack.c.0.s8 %v3030
        %v3032 = vlaneseq
        %v3033 = vshrl.u32 %v3032, 7
        %v3034 = vsub.s32 %v3031, %v3033
        %v3035 = vrot.slane %v3021, %v3034
        %v3036 = vcombine.high %v3028, %v3028
        %v3037 = vcombine.high %v3035, %v3035
        %v3039 = vunpack.c.l.s4 1966171168
        %v3040 = vunpack.c.0.s8 %v3039
        %v3041 = vlaneseq
        %v3042 = vshrl.u32 %v3041, 7
        %v3043 = vsub.s32 %v3040, %v3042
        %v3044 = vrot.slane %v3028, %v3043
        %v3046 = vunpack.c.l.s4 1966171168
        %v3047 = vunpack.c.0.s8 %v3046
        %v3048 = vlaneseq
        %v3049 = vshrl.u32 %v3048, 7
        %v3050 = vsub.s32 %v3047, %v3049
        %v3051 = vrot.slane %v3035, %v3050
        %v3053 = vunpack.c.l.s4 1966171168
        %v3054 = vunpack.c.0.s8 %v3053
        %v3055 = vlaneseq
        %v3056 = vshrl.u32 %v3055, 7
        %v3057 = vsub.s32 %v3054, %v3056
        %v3058 = vrot.slane %v3036, %v3057
        %v3060 = vunpack.c.l.s4 1966171168
        %v3061 = vunpack.c.0.s8 %v3060
        %v3062 = vlaneseq
        %v3063 = vshrl.u32 %v3062, 7
        %v3064 = vsub.s32 %v3061, %v3063
        %v3065 = vrot.slane %v3037, %v3064
        %v3066 = vcombine.high %v3044, %v3044
        %v3067 = vcombine.high %v3051, %v3051
        %v3068 = vcombine.high %v3058, %v3058
        %v3069 = vcombine.high %v3065, %v3065
        %v3070 = vcombine.high %v271, %v271
        %v3072 = vunpack.c.l.s4 1966171168
        %v3073 = vunpack.c.0.s8 %v3072
        %v3074 = vlaneseq
        %v3075 = vshrl.u32 %v3074, 7
        %v3076 = vsub.s32 %v3073, %v3075
        %v3077 = vrot.slane %v271, %v3076
        %v3079 = vunpack.c.l.s4 1966171168
        %v3080 = vunpack.c.0.s8 %v3079
        %v3081 = vlaneseq
        %v3082 = vshrl.u32 %v3081, 7
        %v3083 = vsub.s32 %v3080, %v3082
        %v3084 = vrot.slane %v3070, %v3083
        %v3085 = vcombine.high %v3077, %v3077
        %v3086 = vcombine.high %v3084, %v3084
        %v3088 = vunpack.c.l.s4 1966171168
        %v3089 = vunpack.c.0.s8 %v3088
        %v3090 = vlaneseq
        %v3091 = vshrl.u32 %v3090, 7
        %v3092 = vsub.s32 %v3089, %v3091
        %v3093 = vrot.slane %v3077, %v3092
        %v3095 = vunpack.c.l.s4 1966171168
        %v3096 = vunpack.c.0.s8 %v3095
        %v3097 = vlaneseq
        %v3098 = vshrl.u32 %v3097, 7
        %v3099 = vsub.s32 %v3096, %v3098
        %v3100 = vrot.slane %v3084, %v3099
        %v3102 = vunpack.c.l.s4 1966171168
        %v3103 = vunpack.c.0.s8 %v3102
        %v3104 = vlaneseq
        %v3105 = vshrl.u32 %v3104, 7
        %v3106 = vsub.s32 %v3103, %v3105
        %v3107 = vrot.slane %v3085, %v3106
        %v3109 = vunpack.c.l.s4 1966171168
        %v3110 = vunpack.c.0.s8 %v3109
        %v3111 = vlaneseq
        %v3112 = vshrl.u32 %v3111, 7
        %v3113 = vsub.s32 %v3110, %v3112
        %v3114 = vrot.slane %v3086, %v3113
        %v3115 = vcombine.high %v3093, %v3093
        %v3116 = vcombine.high %v3100, %v3100
        %v3117 = vcombine.high %v3107, %v3107
        %v3118 = vcombine.high %v3114, %v3114
        %v3119 = vcombine.high %v272, %v272
        %v3121 = vunpack.c.l.s4 1966171168
        %v3122 = vunpack.c.0.s8 %v3121
        %v3123 = vlaneseq
        %v3124 = vshrl.u32 %v3123, 7
        %v3125 = vsub.s32 %v3122, %v3124
        %v3126 = vrot.slane %v272, %v3125
        %v3128 = vunpack.c.l.s4 1966171168
        %v3129 = vunpack.c.0.s8 %v3128
        %v3130 = vlaneseq
        %v3131 = vshrl.u32 %v3130, 7
        %v3132 = vsub.s32 %v3129, %v3131
        %v3133 = vrot.slane %v3119, %v3132
        %v3134 = vcombine.high %v3126, %v3126
        %v3135 = vcombine.high %v3133, %v3133
        %v3137 = vunpack.c.l.s4 1966171168
        %v3138 = vunpack.c.0.s8 %v3137
        %v3139 = vlaneseq
        %v3140 = vshrl.u32 %v3139, 7
        %v3141 = vsub.s32 %v3138, %v3140
        %v3142 = vrot.slane %v3126, %v3141
        %v3144 = vunpack.c.l.s4 1966171168
        %v3145 = vunpack.c.0.s8 %v3144
        %v3146 = vlaneseq
        %v3147 = vshrl.u32 %v3146, 7
        %v3148 = vsub.s32 %v3145, %v3147
        %v3149 = vrot.slane %v3133, %v3148
        %v3151 = vunpack.c.l.s4 1966171168
        %v3152 = vunpack.c.0.s8 %v3151
        %v3153 = vlaneseq
        %v3154 = vshrl.u32 %v3153, 7
        %v3155 = vsub.s32 %v3152, %v3154
        %v3156 = vrot.slane %v3134, %v3155
        %v3158 = vunpack.c.l.s4 1966171168
        %v3159 = vunpack.c.0.s8 %v3158
        %v3160 = vlaneseq
        %v3161 = vshrl.u32 %v3160, 7
        %v3162 = vsub.s32 %v3159, %v3161
        %v3163 = vrot.slane %v3135, %v3162
        %v3164 = vcombine.high %v3142, %v3142
        %v3165 = vcombine.high %v3149, %v3149
        %v3166 = vcombine.high %v3156, %v3156
        %v3167 = vcombine.high %v3163, %v3163
        %v3168 = vcombine.high %v273, %v273
        %v3170 = vunpack.c.l.s4 1966171168
        %v3171 = vunpack.c.0.s8 %v3170
        %v3172 = vlaneseq
        %v3173 = vshrl.u32 %v3172, 7
        %v3174 = vsub.s32 %v3171, %v3173
        %v3175 = vrot.slane %v273, %v3174
        %v3177 = vunpack.c.l.s4 1966171168
        %v3178 = vunpack.c.0.s8 %v3177
        %v3179 = vlaneseq
        %v3180 = vshrl.u32 %v3179, 7
        %v3181 = vsub.s32 %v3178, %v3180
        %v3182 = vrot.slane %v3168, %v3181
        %v3183 = vcombine.high %v3175, %v3175
        %v3184 = vcombine.high %v3182, %v3182
        %v3186 = vunpack.c.l.s4 1966171168
        %v3187 = vunpack.c.0.s8 %v3186
        %v3188 = vlaneseq
        %v3189 = vshrl.u32 %v3188, 7
        %v3190 = vsub.s32 %v3187, %v3189
        %v3191 = vrot.slane %v3175, %v3190
        %v3193 = vunpack.c.l.s4 1966171168
        %v3194 = vunpack.c.0.s8 %v3193
        %v3195 = vlaneseq
        %v3196 = vshrl.u32 %v3195, 7
        %v3197 = vsub.s32 %v3194, %v3196
        %v3198 = vrot.slane %v3182, %v3197
        %v3200 = vunpack.c.l.s4 1966171168
        %v3201 = vunpack.c.0.s8 %v3200
        %v3202 = vlaneseq
        %v3203 = vshrl.u32 %v3202, 7
        %v3204 = vsub.s32 %v3201, %v3203
        %v3205 = vrot.slane %v3183, %v3204
        %v3207 = vunpack.c.l.s4 1966171168
        %v3208 = vunpack.c.0.s8 %v3207
        %v3209 = vlaneseq
        %v3210 = vshrl.u32 %v3209, 7
        %v3211 = vsub.s32 %v3208, %v3210
        %v3212 = vrot.slane %v3184, %v3211
        %v3213 = vcombine.high %v3191, %v3191
        %v3214 = vcombine.high %v3198, %v3198
        %v3215 = vcombine.high %v3205, %v3205
        %v3216 = vcombine.high %v3212, %v3212
        %v3217 = vcombine.high %v274, %v274
        %v3219 = vunpack.c.l.s4 1966171168
        %v3220 = vunpack.c.0.s8 %v3219
        %v3221 = vlaneseq
        %v3222 = vshrl.u32 %v3221, 7
        %v3223 = vsub.s32 %v3220, %v3222
        %v3224 = vrot.slane %v274, %v3223
        %v3226 = vunpack.c.l.s4 1966171168
        %v3227 = vunpack.c.0.s8 %v3226
        %v3228 = vlaneseq
        %v3229 = vshrl.u32 %v3228, 7
        %v3230 = vsub.s32 %v3227, %v3229
        %v3231 = vrot.slane %v3217, %v3230
        %v3232 = vcombine.high %v3224, %v3224
        %v3233 = vcombine.high %v3231, %v3231
        %v3235 = vunpack.c.l.s4 1966171168
        %v3236 = vunpack.c.0.s8 %v3235
        %v3237 = vlaneseq
        %v3238 = vshrl.u32 %v3237, 7
        %v3239 = vsub.s32 %v3236, %v3238
        %v3240 = vrot.slane %v3224, %v3239
        %v3242 = vunpack.c.l.s4 1966171168
        %v3243 = vunpack.c.0.s8 %v3242
        %v3244 = vlaneseq
        %v3245 = vshrl.u32 %v3244, 7
        %v3246 = vsub.s32 %v3243, %v3245
        %v3247 = vrot.slane %v3231, %v3246
        %v3249 = vunpack.c.l.s4 1966171168
        %v3250 = vunpack.c.0.s8 %v3249
        %v3251 = vlaneseq
        %v3252 = vshrl.u32 %v3251, 7
        %v3253 = vsub.s32 %v3250, %v3252
        %v3254 = vrot.slane %v3232, %v3253
        %v3256 = vunpack.c.l.s4 1966171168
        %v3257 = vunpack.c.0.s8 %v3256
        %v3258 = vlaneseq
        %v3259 = vshrl.u32 %v3258, 7
        %v3260 = vsub.s32 %v3257, %v3259
        %v3261 = vrot.slane %v3233, %v3260
        %v3262 = vcombine.high %v3240, %v3240
        %v3263 = vcombine.high %v3247, %v3247
        %v3264 = vcombine.high %v3254, %v3254
        %v3265 = vcombine.high %v3261, %v3261
        %v3266 = vcombine.high %v275, %v275
        %v3268 = vunpack.c.l.s4 1966171168
        %v3269 = vunpack.c.0.s8 %v3268
        %v3270 = vlaneseq
        %v3271 = vshrl.u32 %v3270, 7
        %v3272 = vsub.s32 %v3269, %v3271
        %v3273 = vrot.slane %v275, %v3272
        %v3275 = vunpack.c.l.s4 1966171168
        %v3276 = vunpack.c.0.s8 %v3275
        %v3277 = vlaneseq
        %v3278 = vshrl.u32 %v3277, 7
        %v3279 = vsub.s32 %v3276, %v3278
        %v3280 = vrot.slane %v3266, %v3279
        %v3281 = vcombine.high %v3273, %v3273
        %v3282 = vcombine.high %v3280, %v3280
        %v3284 = vunpack.c.l.s4 1966171168
        %v3285 = vunpack.c.0.s8 %v3284
        %v3286 = vlaneseq
        %v3287 = vshrl.u32 %v3286, 7
        %v3288 = vsub.s32 %v3285, %v3287
        %v3289 = vrot.slane %v3273, %v3288
        %v3291 = vunpack.c.l.s4 1966171168
        %v3292 = vunpack.c.0.s8 %v3291
        %v3293 = vlaneseq
        %v3294 = vshrl.u32 %v3293, 7
        %v3295 = vsub.s32 %v3292, %v3294
        %v3296 = vrot.slane %v3280, %v3295
        %v3298 = vunpack.c.l.s4 1966171168
        %v3299 = vunpack.c.0.s8 %v3298
        %v3300 = vlaneseq
        %v3301 = vshrl.u32 %v3300, 7
        %v3302 = vsub.s32 %v3299, %v3301
        %v3303 = vrot.slane %v3281, %v3302
        %v3305 = vunpack.c.l.s4 1966171168
        %v3306 = vunpack.c.0.s8 %v3305
        %v3307 = vlaneseq
        %v3308 = vshrl.u32 %v3307, 7
        %v3309 = vsub.s32 %v3306, %v3308
        %v3310 = vrot.slane %v3282, %v3309
        %v3311 = vcombine.high %v3289, %v3289
        %v3312 = vcombine.high %v3296, %v3296
        %v3313 = vcombine.high %v3303, %v3303
        %v3314 = vcombine.high %v3310, %v3310
        %3371 = vmatprep.subr.bf16.mxu0 %v1173
        %3372 = vmatpush1.bf16.msra.mxu0 %v1172
        %3373 = vmatprep.subr.bf16.mxu0 %v1177
        %3374 = vmatpush1.bf16.msra.mxu0 %v1176
        %3375 = vmatprep.subr.bf16.mxu0 %v1181
        %3376 = vmatpush1.bf16.msra.mxu0 %v1180
        %3377 = vmatprep.subr.bf16.mxu0 %v1185
        %3378 = vmatpush1.bf16.msra.mxu0 %v1184
        %3379 = vmatprep.subr.bf16.mxu0 %v1189
        %3380 = vmatpush1.bf16.msra.mxu0 %v1188
        %3381 = vmatprep.subr.bf16.mxu0 %v1193
        %3382 = vmatpush1.bf16.msra.mxu0 %v1192
        %3383 = vmatprep.subr.bf16.mxu0 %v1197
        %3384 = vmatpush1.bf16.msra.mxu0 %v1196
        %3385 = vmatprep.subr.bf16.mxu0 %v1201
        %3386 = vmatpush1.bf16.msra.mxu0 %v1200
        %3387 = vmatprep.subr.bf16.mxu0 %v1205
        %3388 = vmatpush1.bf16.msra.mxu0 %v1204
        %3389 = vmatprep.subr.bf16.mxu0 %v1209
        %3390 = vmatpush1.bf16.msra.mxu0 %v1208
        %3391 = vmatprep.subr.bf16.mxu0 %v1213
        %3392 = vmatpush1.bf16.msra.mxu0 %v1212
        %3393 = vmatprep.subr.bf16.mxu0 %v1217
        %3394 = vmatpush1.bf16.msra.mxu0 %v1216
        %3395 = vmatprep.subr.bf16.mxu0 %v1221
        %3396 = vmatpush1.bf16.msra.mxu0 %v1220
        %3397 = vmatprep.subr.bf16.mxu0 %v1225
        %3398 = vmatpush1.bf16.msra.mxu0 %v1224
        %3399 = vmatprep.subr.bf16.mxu0 %v1229
        %3400 = vmatpush1.bf16.msra.mxu0 %v1228
        %3401 = vmatprep.subr.bf16.mxu0 %v1233
        %3402 = vmatpush1.bf16.msra.mxu0 %v1232
        %3403 = vmatprep.mubr.bf16.mxu0 %v3009
        %3404 = vmatmul.mubr.bf16.gmra.mrb[0].mxu0 %v2995
        %v3405 = vpop.f32.mrb[0].mxu0
        %v3406 = vadd.f32 0.0, %v3405
        %v3407 = vpop.f32.mrb[0].mxu0
        %v3408 = vadd.f32 0.0, %v3407
        %v3409 = vpop.f32.mrb[0].mxu0
        %v3410 = vpop.f32.mrb[0].mxu0
        %3411 = vdwg.mxu0
        %3412 = vmatprep.subr.bf16.mxu0 %v1237
        %3413 = vmatpush1.bf16.msra.mxu0 %v1236
        %3414 = vmatprep.subr.bf16.mxu0 %v1241
        %3415 = vmatpush1.bf16.msra.mxu0 %v1240
        %3416 = vmatprep.subr.bf16.mxu0 %v1245
        %3417 = vmatpush1.bf16.msra.mxu0 %v1244
        %3418 = vmatprep.subr.bf16.mxu0 %v1249
        %3419 = vmatpush1.bf16.msra.mxu0 %v1248
        %3420 = vmatprep.subr.bf16.mxu0 %v1253
        %3421 = vmatpush1.bf16.msra.mxu0 %v1252
        %3422 = vmatprep.subr.bf16.mxu0 %v1257
        %3423 = vmatpush1.bf16.msra.mxu0 %v1256
        %3424 = vmatprep.subr.bf16.mxu0 %v1261
        %3425 = vmatpush1.bf16.msra.mxu0 %v1260
        %3426 = vmatprep.subr.bf16.mxu0 %v1265
        %3427 = vmatpush1.bf16.msra.mxu0 %v1264
        %3428 = vmatprep.subr.bf16.mxu0 %v1269
        %3429 = vmatpush1.bf16.msra.mxu0 %v1268
        %3430 = vmatprep.subr.bf16.mxu0 %v1273
        %3431 = vmatpush1.bf16.msra.mxu0 %v1272
        %3432 = vmatprep.subr.bf16.mxu0 %v1277
        %3433 = vmatpush1.bf16.msra.mxu0 %v1276
        %3434 = vmatprep.subr.bf16.mxu0 %v1281
        %3435 = vmatpush1.bf16.msra.mxu0 %v1280
        %3436 = vmatprep.subr.bf16.mxu0 %v1285
        %3437 = vmatpush1.bf16.msra.mxu0 %v1284
        %3438 = vmatprep.subr.bf16.mxu0 %v1289
        %3439 = vmatpush1.bf16.msra.mxu0 %v1288
        %3440 = vmatprep.subr.bf16.mxu0 %v1293
        %3441 = vmatpush1.bf16.msra.mxu0 %v1292
        %3442 = vmatprep.subr.bf16.mxu0 %v1297
        %3443 = vmatpush1.bf16.msra.mxu0 %v1296
        %3444 = vmatprep.mubr.bf16.mxu0 %v3019
        %3445 = vmatmul.mubr.bf16.gmra.mrb[0].mxu0 %v3017
        %v3446 = vpop.f32.mrb[0].mxu0
        %v3447 = vadd.f32 %v3406, %v3446
        %v3448 = vpop.f32.mrb[0].mxu0
        %v3449 = vadd.f32 %v3408, %v3448
        %v3450 = vpop.f32.mrb[0].mxu0
        %v3451 = vpop.f32.mrb[0].mxu0
        %3452 = vdwg.mxu0
        %3453 = vmatprep.subr.bf16.mxu0 %v1301
        %3454 = vmatpush1.bf16.msra.mxu0 %v1300
        %3455 = vmatprep.subr.bf16.mxu0 %v1305
        %3456 = vmatpush1.bf16.msra.mxu0 %v1304
        %3457 = vmatprep.subr.bf16.mxu0 %v1309
        %3458 = vmatpush1.bf16.msra.mxu0 %v1308
        %3459 = vmatprep.subr.bf16.mxu0 %v1313
        %3460 = vmatpush1.bf16.msra.mxu0 %v1312
        %3461 = vmatprep.subr.bf16.mxu0 %v1317
        %3462 = vmatpush1.bf16.msra.mxu0 %v1316
        %3463 = vmatprep.subr.bf16.mxu0 %v1321
        %3464 = vmatpush1.bf16.msra.mxu0 %v1320
        %3465 = vmatprep.subr.bf16.mxu0 %v1325
        %3466 = vmatpush1.bf16.msra.mxu0 %v1324
        %3467 = vmatprep.subr.bf16.mxu0 %v1329
        %3468 = vmatpush1.bf16.msra.mxu0 %v1328
        %3469 = vmatprep.subr.bf16.mxu0 %v1333
        %3470 = vmatpush1.bf16.msra.mxu0 %v1332
        %3471 = vmatprep.subr.bf16.mxu0 %v1337
        %3472 = vmatpush1.bf16.msra.mxu0 %v1336
        %3473 = vmatprep.subr.bf16.mxu0 %v1341
        %3474 = vmatpush1.bf16.msra.mxu0 %v1340
        %3475 = vmatprep.subr.bf16.mxu0 %v1345
        %3476 = vmatpush1.bf16.msra.mxu0 %v1344
        %3477 = vmatprep.subr.bf16.mxu0 %v1349
        %3478 = vmatpush1.bf16.msra.mxu0 %v1348
        %3479 = vmatprep.subr.bf16.mxu0 %v1353
        %3480 = vmatpush1.bf16.msra.mxu0 %v1352
        %3481 = vmatprep.subr.bf16.mxu0 %v1357
        %3482 = vmatpush1.bf16.msra.mxu0 %v1356
        %3483 = vmatprep.subr.bf16.mxu0 %v1361
        %3484 = vmatpush1.bf16.msra.mxu0 %v1360
        %3485 = vmatprep.mubr.bf16.mxu0 %v3016
        %3486 = vmatmul.mubr.bf16.gmra.mrb[0].mxu0 %v3002
        %v3487 = vpop.f32.mrb[0].mxu0
        %v3488 = vadd.f32 %v3447, %v3487
        %v3489 = vpop.f32.mrb[0].mxu0
        %v3490 = vadd.f32 %v3449, %v3489
        %v3491 = vpop.f32.mrb[0].mxu0
        %v3492 = vpop.f32.mrb[0].mxu0
        %3493 = vdwg.mxu0
        %3494 = vmatprep.subr.bf16.mxu0 %v1365
        %3495 = vmatpush1.bf16.msra.mxu0 %v1364
        %3496 = vmatprep.subr.bf16.mxu0 %v1369
        %3497 = vmatpush1.bf16.msra.mxu0 %v1368
        %3498 = vmatprep.subr.bf16.mxu0 %v1373
        %3499 = vmatpush1.bf16.msra.mxu0 %v1372
        %3500 = vmatprep.subr.bf16.mxu0 %v1377
        %3501 = vmatpush1.bf16.msra.mxu0 %v1376
        %3502 = vmatprep.subr.bf16.mxu0 %v1381
        %3503 = vmatpush1.bf16.msra.mxu0 %v1380
        %3504 = vmatprep.subr.bf16.mxu0 %v1385
        %3505 = vmatpush1.bf16.msra.mxu0 %v1384
        %3506 = vmatprep.subr.bf16.mxu0 %v1389
        %3507 = vmatpush1.bf16.msra.mxu0 %v1388
        %3508 = vmatprep.subr.bf16.mxu0 %v1393
        %3509 = vmatpush1.bf16.msra.mxu0 %v1392
        %3510 = vmatprep.subr.bf16.mxu0 %v1397
        %3511 = vmatpush1.bf16.msra.mxu0 %v1396
        %3512 = vmatprep.subr.bf16.mxu0 %v1401
        %3513 = vmatpush1.bf16.msra.mxu0 %v1400
        %3514 = vmatprep.subr.bf16.mxu0 %v1405
        %3515 = vmatpush1.bf16.msra.mxu0 %v1404
        %3516 = vmatprep.subr.bf16.mxu0 %v1409
        %3517 = vmatpush1.bf16.msra.mxu0 %v1408
        %3518 = vmatprep.subr.bf16.mxu0 %v1413
        %3519 = vmatpush1.bf16.msra.mxu0 %v1412
        %3520 = vmatprep.subr.bf16.mxu0 %v1417
        %3521 = vmatpush1.bf16.msra.mxu0 %v1416
        %3522 = vmatprep.subr.bf16.mxu0 %v1421
        %3523 = vmatpush1.bf16.msra.mxu0 %v1420
        %3524 = vmatprep.subr.bf16.mxu0 %v1425
        %3525 = vmatpush1.bf16.msra.mxu0 %v1424
        %3526 = vmatprep.mubr.bf16.mxu0 %v3020
        %3527 = vmatmul.mubr.bf16.gmra.mrb[0].mxu0 %v3018
        %v3528 = vpop.f32.mrb[0].mxu0
        %v3529 = vadd.f32 %v3488, %v3528
        %v3530 = vpop.f32.mrb[0].mxu0
        %v3531 = vadd.f32 %v3490, %v3530
        %v3532 = vpop.f32.mrb[0].mxu0
        %v3533 = vpop.f32.mrb[0].mxu0
        %3534 = vdwg.mxu0
        %3535 = vmatprep.subr.bf16.mxu0 %v1429
        %3536 = vmatpush1.bf16.msra.mxu0 %v1428
        %3537 = vmatprep.subr.bf16.mxu0 %v1433
        %3538 = vmatpush1.bf16.msra.mxu0 %v1432
        %3539 = vmatprep.subr.bf16.mxu0 %v1437
        %3540 = vmatpush1.bf16.msra.mxu0 %v1436
        %3541 = vmatprep.subr.bf16.mxu0 %v1441
        %3542 = vmatpush1.bf16.msra.mxu0 %v1440
        %3543 = vmatprep.subr.bf16.mxu0 %v1445
        %3544 = vmatpush1.bf16.msra.mxu0 %v1444
        %3545 = vmatprep.subr.bf16.mxu0 %v1449
        %3546 = vmatpush1.bf16.msra.mxu0 %v1448
        %3547 = vmatprep.subr.bf16.mxu0 %v1453
        %3548 = vmatpush1.bf16.msra.mxu0 %v1452
        %3549 = vmatprep.subr.bf16.mxu0 %v1457
        %3550 = vmatpush1.bf16.msra.mxu0 %v1456
        %3551 = vmatprep.subr.bf16.mxu0 %v1461
        %3552 = vmatpush1.bf16.msra.mxu0 %v1460
        %3553 = vmatprep.subr.bf16.mxu0 %v1465
        %3554 = vmatpush1.bf16.msra.mxu0 %v1464
        %3555 = vmatprep.subr.bf16.mxu0 %v1469
        %3556 = vmatpush1.bf16.msra.mxu0 %v1468
        %3557 = vmatprep.subr.bf16.mxu0 %v1473
        %3558 = vmatpush1.bf16.msra.mxu0 %v1472
        %3559 = vmatprep.subr.bf16.mxu0 %v1477
        %3560 = vmatpush1.bf16.msra.mxu0 %v1476
        %3561 = vmatprep.subr.bf16.mxu0 %v1481
        %3562 = vmatpush1.bf16.msra.mxu0 %v1480
        %3563 = vmatprep.subr.bf16.mxu0 %v1485
        %3564 = vmatpush1.bf16.msra.mxu0 %v1484
        %3565 = vmatprep.subr.bf16.mxu0 %v1489
        %3566 = vmatpush1.bf16.msra.mxu0 %v1488
        %3567 = vmatprep.mubr.bf16.mxu0 %v3058
        %3568 = vmatmul.mubr.bf16.gmra.mrb[0].mxu0 %v3044
        %v3569 = vpop.f32.mrb[0].mxu0
        %v3570 = vadd.f32 %v3529, %v3569
        %v3571 = vpop.f32.mrb[0].mxu0
        %v3572 = vadd.f32 %v3531, %v3571
        %v3573 = vpop.f32.mrb[0].mxu0
        %v3574 = vpop.f32.mrb[0].mxu0
        %3575 = vdwg.mxu0
        %3576 = vmatprep.subr.bf16.mxu0 %v1493
        %3577 = vmatpush1.bf16.msra.mxu0 %v1492
        %3578 = vmatprep.subr.bf16.mxu0 %v1497
        %3579 = vmatpush1.bf16.msra.mxu0 %v1496
        %3580 = vmatprep.subr.bf16.mxu0 %v1501
        %3581 = vmatpush1.bf16.msra.mxu0 %v1500
        %3582 = vmatprep.subr.bf16.mxu0 %v1505
        %3583 = vmatpush1.bf16.msra.mxu0 %v1504
        %3584 = vmatprep.subr.bf16.mxu0 %v1509
        %3585 = vmatpush1.bf16.msra.mxu0 %v1508
        %3586 = vmatprep.subr.bf16.mxu0 %v1513
        %3587 = vmatpush1.bf16.msra.mxu0 %v1512
        %3588 = vmatprep.subr.bf16.mxu0 %v1517
        %3589 = vmatpush1.bf16.msra.mxu0 %v1516
        %3590 = vmatprep.subr.bf16.mxu0 %v1521
        %3591 = vmatpush1.bf16.msra.mxu0 %v1520
        %3592 = vmatprep.subr.bf16.mxu0 %v1525
        %3593 = vmatpush1.bf16.msra.mxu0 %v1524
        %3594 = vmatprep.subr.bf16.mxu0 %v1529
        %3595 = vmatpush1.bf16.msra.mxu0 %v1528
        %3596 = vmatprep.subr.bf16.mxu0 %v1533
        %3597 = vmatpush1.bf16.msra.mxu0 %v1532
        %3598 = vmatprep.subr.bf16.mxu0 %v1537
        %3599 = vmatpush1.bf16.msra.mxu0 %v1536
        %3600 = vmatprep.subr.bf16.mxu0 %v1541
        %3601 = vmatpush1.bf16.msra.mxu0 %v1540
        %3602 = vmatprep.subr.bf16.mxu0 %v1545
        %3603 = vmatpush1.bf16.msra.mxu0 %v1544
        %3604 = vmatprep.subr.bf16.mxu0 %v1549
        %3605 = vmatpush1.bf16.msra.mxu0 %v1548
        %3606 = vmatprep.subr.bf16.mxu0 %v1553
        %3607 = vmatpush1.bf16.msra.mxu0 %v1552
        %3608 = vmatprep.mubr.bf16.mxu0 %v3068
        %3609 = vmatmul.mubr.bf16.gmra.mrb[0].mxu0 %v3066
        %v3610 = vpop.f32.mrb[0].mxu0
        %v3611 = vadd.f32 %v3570, %v3610
        %v3612 = vpop.f32.mrb[0].mxu0
        %v3613 = vadd.f32 %v3572, %v3612
        %v3614 = vpop.f32.mrb[0].mxu0
        %v3615 = vpop.f32.mrb[0].mxu0
        %3616 = vdwg.mxu0
        %3617 = vmatprep.subr.bf16.mxu0 %v1557
        %3618 = vmatpush1.bf16.msra.mxu0 %v1556
        %3619 = vmatprep.subr.bf16.mxu0 %v1561
        %3620 = vmatpush1.bf16.msra.mxu0 %v1560
        %3621 = vmatprep.subr.bf16.mxu0 %v1565
        %3622 = vmatpush1.bf16.msra.mxu0 %v1564
        %3623 = vmatprep.subr.bf16.mxu0 %v1569
        %3624 = vmatpush1.bf16.msra.mxu0 %v1568
        %3625 = vmatprep.subr.bf16.mxu0 %v1573
        %3626 = vmatpush1.bf16.msra.mxu0 %v1572
        %3627 = vmatprep.subr.bf16.mxu0 %v1577
        %3628 = vmatpush1.bf16.msra.mxu0 %v1576
        %3629 = vmatprep.subr.bf16.mxu0 %v1581
        %3630 = vmatpush1.bf16.msra.mxu0 %v1580
        %3631 = vmatprep.subr.bf16.mxu0 %v1585
        %3632 = vmatpush1.bf16.msra.mxu0 %v1584
        %3633 = vmatprep.subr.bf16.mxu0 %v1589
        %3634 = vmatpush1.bf16.msra.mxu0 %v1588
        %3635 = vmatprep.subr.bf16.mxu0 %v1593
        %3636 = vmatpush1.bf16.msra.mxu0 %v1592
        %3637 = vmatprep.subr.bf16.mxu0 %v1597
        %3638 = vmatpush1.bf16.msra.mxu0 %v1596
        %3639 = vmatprep.subr.bf16.mxu0 %v1601
        %3640 = vmatpush1.bf16.msra.mxu0 %v1600
        %3641 = vmatprep.subr.bf16.mxu0 %v1605
        %3642 = vmatpush1.bf16.msra.mxu0 %v1604
        %3643 = vmatprep.subr.bf16.mxu0 %v1609
        %3644 = vmatpush1.bf16.msra.mxu0 %v1608
        %3645 = vmatprep.subr.bf16.mxu0 %v1613
        %3646 = vmatpush1.bf16.msra.mxu0 %v1612
        %3647 = vmatprep.subr.bf16.mxu0 %v1617
        %3648 = vmatpush1.bf16.msra.mxu0 %v1616
        %3649 = vmatprep.mubr.bf16.mxu0 %v3065
        %3650 = vmatmul.mubr.bf16.gmra.mrb[0].mxu0 %v3051
        %v3651 = vpop.f32.mrb[0].mxu0
        %v3652 = vadd.f32 %v3611, %v3651
        %v3653 = vpop.f32.mrb[0].mxu0
        %v3654 = vadd.f32 %v3613, %v3653
        %v3655 = vpop.f32.mrb[0].mxu0
        %v3656 = vpop.f32.mrb[0].mxu0
        %3657 = vdwg.mxu0
        %3658 = vmatprep.subr.bf16.mxu0 %v1621
        %3659 = vmatpush1.bf16.msra.mxu0 %v1620
        %3660 = vmatprep.subr.bf16.mxu0 %v1625
        %3661 = vmatpush1.bf16.msra.mxu0 %v1624
        %3662 = vmatprep.subr.bf16.mxu0 %v1629
        %3663 = vmatpush1.bf16.msra.mxu0 %v1628
        %3664 = vmatprep.subr.bf16.mxu0 %v1633
        %3665 = vmatpush1.bf16.msra.mxu0 %v1632
        %3666 = vmatprep.subr.bf16.mxu0 %v1637
        %3667 = vmatpush1.bf16.msra.mxu0 %v1636
        %3668 = vmatprep.subr.bf16.mxu0 %v1641
        %3669 = vmatpush1.bf16.msra.mxu0 %v1640
        %3670 = vmatprep.subr.bf16.mxu0 %v1645
        %3671 = vmatpush1.bf16.msra.mxu0 %v1644
        %3672 = vmatprep.subr.bf16.mxu0 %v1649
        %3673 = vmatpush1.bf16.msra.mxu0 %v1648
        %3674 = vmatprep.subr.bf16.mxu0 %v1653
        %3675 = vmatpush1.bf16.msra.mxu0 %v1652
        %3676 = vmatprep.subr.bf16.mxu0 %v1657
        %3677 = vmatpush1.bf16.msra.mxu0 %v1656
        %3678 = vmatprep.subr.bf16.mxu0 %v1661
        %3679 = vmatpush1.bf16.msra.mxu0 %v1660
        %3680 = vmatprep.subr.bf16.mxu0 %v1665
        %3681 = vmatpush1.bf16.msra.mxu0 %v1664
        %3682 = vmatprep.subr.bf16.mxu0 %v1669
        %3683 = vmatpush1.bf16.msra.mxu0 %v1668
        %3684 = vmatprep.subr.bf16.mxu0 %v1673
        %3685 = vmatpush1.bf16.msra.mxu0 %v1672
        %3686 = vmatprep.subr.bf16.mxu0 %v1677
        %3687 = vmatpush1.bf16.msra.mxu0 %v1676
        %3688 = vmatprep.subr.bf16.mxu0 %v1681
        %3689 = vmatpush1.bf16.msra.mxu0 %v1680
        %3690 = vmatprep.mubr.bf16.mxu0 %v3069
        %3691 = vmatmul.mubr.bf16.gmra.mrb[0].mxu0 %v3067
        %v3692 = vpop.f32.mrb[0].mxu0
        %v3693 = vadd.f32 %v3652, %v3692
        %v3694 = vpop.f32.mrb[0].mxu0
        %v3695 = vadd.f32 %v3654, %v3694
        %v3696 = vpop.f32.mrb[0].mxu0
        %v3697 = vpop.f32.mrb[0].mxu0
        %3698 = vdwg.mxu0
        %3699 = vmatprep.subr.bf16.mxu0 %v1685
        %3700 = vmatpush1.bf16.msra.mxu0 %v1684
        %3701 = vmatprep.subr.bf16.mxu0 %v1689
        %3702 = vmatpush1.bf16.msra.mxu0 %v1688
        %3703 = vmatprep.subr.bf16.mxu0 %v1693
        %3704 = vmatpush1.bf16.msra.mxu0 %v1692
        %3705 = vmatprep.subr.bf16.mxu0 %v1697
        %3706 = vmatpush1.bf16.msra.mxu0 %v1696
        %3707 = vmatprep.subr.bf16.mxu0 %v1701
        %3708 = vmatpush1.bf16.msra.mxu0 %v1700
        %3709 = vmatprep.subr.bf16.mxu0 %v1705
        %3710 = vmatpush1.bf16.msra.mxu0 %v1704
        %3711 = vmatprep.subr.bf16.mxu0 %v1709
        %3712 = vmatpush1.bf16.msra.mxu0 %v1708
        %3713 = vmatprep.subr.bf16.mxu0 %v1713
        %3714 = vmatpush1.bf16.msra.mxu0 %v1712
        %3715 = vmatprep.subr.bf16.mxu0 %v1717
        %3716 = vmatpush1.bf16.msra.mxu0 %v1716
        %3717 = vmatprep.subr.bf16.mxu0 %v1721
        %3718 = vmatpush1.bf16.msra.mxu0 %v1720
        %3719 = vmatprep.subr.bf16.mxu0 %v1725
        %3720 = vmatpush1.bf16.msra.mxu0 %v1724
        %3721 = vmatprep.subr.bf16.mxu0 %v1729
        %3722 = vmatpush1.bf16.msra.mxu0 %v1728
        %3723 = vmatprep.subr.bf16.mxu0 %v1733
        %3724 = vmatpush1.bf16.msra.mxu0 %v1732
        %3725 = vmatprep.subr.bf16.mxu0 %v1737
        %3726 = vmatpush1.bf16.msra.mxu0 %v1736
        %3727 = vmatprep.subr.bf16.mxu0 %v1741
        %3728 = vmatpush1.bf16.msra.mxu0 %v1740
        %3729 = vmatprep.subr.bf16.mxu0 %v1745
        %3730 = vmatpush1.bf16.msra.mxu0 %v1744
        %3731 = vmatprep.mubr.bf16.mxu0 %v3107
        %3732 = vmatmul.mubr.bf16.gmra.mrb[0].mxu0 %v3093
        %v3733 = vpop.f32.mrb[0].mxu0
        %v3734 = vadd.f32 %v3693, %v3733
        %v3735 = vpop.f32.mrb[0].mxu0
        %v3736 = vadd.f32 %v3695, %v3735
        %v3737 = vpop.f32.mrb[0].mxu0
        %v3738 = vpop.f32.mrb[0].mxu0
        %3739 = vdwg.mxu0
        %3740 = vmatprep.subr.bf16.mxu0 %v1749
        %3741 = vmatpush1.bf16.msra.mxu0 %v1748
        %3742 = vmatprep.subr.bf16.mxu0 %v1753
        %3743 = vmatpush1.bf16.msra.mxu0 %v1752
        %3744 = vmatprep.subr.bf16.mxu0 %v1757
        %3745 = vmatpush1.bf16.msra.mxu0 %v1756
        %3746 = vmatprep.subr.bf16.mxu0 %v1761
        %3747 = vmatpush1.bf16.msra.mxu0 %v1760
        %3748 = vmatprep.subr.bf16.mxu0 %v1765
        %3749 = vmatpush1.bf16.msra.mxu0 %v1764
        %3750 = vmatprep.subr.bf16.mxu0 %v1769
        %3751 = vmatpush1.bf16.msra.mxu0 %v1768
        %3752 = vmatprep.subr.bf16.mxu0 %v1773
        %3753 = vmatpush1.bf16.msra.mxu0 %v1772
        %3754 = vmatprep.subr.bf16.mxu0 %v1777
        %3755 = vmatpush1.bf16.msra.mxu0 %v1776
        %3756 = vmatprep.subr.bf16.mxu0 %v1781
        %3757 = vmatpush1.bf16.msra.mxu0 %v1780
        %3758 = vmatprep.subr.bf16.mxu0 %v1785
        %3759 = vmatpush1.bf16.msra.mxu0 %v1784
        %3760 = vmatprep.subr.bf16.mxu0 %v1789
        %3761 = vmatpush1.bf16.msra.mxu0 %v1788
        %3762 = vmatprep.subr.bf16.mxu0 %v1793
        %3763 = vmatpush1.bf16.msra.mxu0 %v1792
        %3764 = vmatprep.subr.bf16.mxu0 %v1797
        %3765 = vmatpush1.bf16.msra.mxu0 %v1796
        %3766 = vmatprep.subr.bf16.mxu0 %v1801
        %3767 = vmatpush1.bf16.msra.mxu0 %v1800
        %3768 = vmatprep.subr.bf16.mxu0 %v1805
        %3769 = vmatpush1.bf16.msra.mxu0 %v1804
        %3770 = vmatprep.subr.bf16.mxu0 %v1809
        %3771 = vmatpush1.bf16.msra.mxu0 %v1808
        %3772 = vmatprep.mubr.bf16.mxu0 %v3117
        %3773 = vmatmul.mubr.bf16.gmra.mrb[0].mxu0 %v3115
        %v3774 = vpop.f32.mrb[0].mxu0
        %v3775 = vadd.f32 %v3734, %v3774
        %v3776 = vpop.f32.mrb[0].mxu0
        %v3777 = vadd.f32 %v3736, %v3776
        %v3778 = vpop.f32.mrb[0].mxu0
        %v3779 = vpop.f32.mrb[0].mxu0
        %3780 = vdwg.mxu0
        %3781 = vmatprep.subr.bf16.mxu0 %v1813
        %3782 = vmatpush1.bf16.msra.mxu0 %v1812
        %3783 = vmatprep.subr.bf16.mxu0 %v1817
        %3784 = vmatpush1.bf16.msra.mxu0 %v1816
        %3785 = vmatprep.subr.bf16.mxu0 %v1821
        %3786 = vmatpush1.bf16.msra.mxu0 %v1820
        %3787 = vmatprep.subr.bf16.mxu0 %v1825
        %3788 = vmatpush1.bf16.msra.mxu0 %v1824
        %3789 = vmatprep.subr.bf16.mxu0 %v1829
        %3790 = vmatpush1.bf16.msra.mxu0 %v1828
        %3791 = vmatprep.subr.bf16.mxu0 %v1833
        %3792 = vmatpush1.bf16.msra.mxu0 %v1832
        %3793 = vmatprep.subr.bf16.mxu0 %v1837
        %3794 = vmatpush1.bf16.msra.mxu0 %v1836
        %3795 = vmatprep.subr.bf16.mxu0 %v1841
        %3796 = vmatpush1.bf16.msra.mxu0 %v1840
        %3797 = vmatprep.subr.bf16.mxu0 %v1845
        %3798 = vmatpush1.bf16.msra.mxu0 %v1844
        %3799 = vmatprep.subr.bf16.mxu0 %v1849
        %3800 = vmatpush1.bf16.msra.mxu0 %v1848
        %3801 = vmatprep.subr.bf16.mxu0 %v1853
        %3802 = vmatpush1.bf16.msra.mxu0 %v1852
        %3803 = vmatprep.subr.bf16.mxu0 %v1857
        %3804 = vmatpush1.bf16.msra.mxu0 %v1856
        %3805 = vmatprep.subr.bf16.mxu0 %v1861
        %3806 = vmatpush1.bf16.msra.mxu0 %v1860
        %3807 = vmatprep.subr.bf16.mxu0 %v1865
        %3808 = vmatpush1.bf16.msra.mxu0 %v1864
        %3809 = vmatprep.subr.bf16.mxu0 %v1869
        %3810 = vmatpush1.bf16.msra.mxu0 %v1868
        %3811 = vmatprep.subr.bf16.mxu0 %v1873
        %3812 = vmatpush1.bf16.msra.mxu0 %v1872
        %3813 = vmatprep.mubr.bf16.mxu0 %v3114
        %3814 = vmatmul.mubr.bf16.gmra.mrb[0].mxu0 %v3100
        %v3815 = vpop.f32.mrb[0].mxu0
        %v3816 = vadd.f32 %v3775, %v3815
        %v3817 = vpop.f32.mrb[0].mxu0
        %v3818 = vadd.f32 %v3777, %v3817
        %v3819 = vpop.f32.mrb[0].mxu0
        %v3820 = vpop.f32.mrb[0].mxu0
        %3821 = vdwg.mxu0
        %3822 = vmatprep.subr.bf16.mxu0 %v1877
        %3823 = vmatpush1.bf16.msra.mxu0 %v1876
        %3824 = vmatprep.subr.bf16.mxu0 %v1881
        %3825 = vmatpush1.bf16.msra.mxu0 %v1880
        %3826 = vmatprep.subr.bf16.mxu0 %v1885
        %3827 = vmatpush1.bf16.msra.mxu0 %v1884
        %3828 = vmatprep.subr.bf16.mxu0 %v1889
        %3829 = vmatpush1.bf16.msra.mxu0 %v1888
        %3830 = vmatprep.subr.bf16.mxu0 %v1893
        %3831 = vmatpush1.bf16.msra.mxu0 %v1892
        %3832 = vmatprep.subr.bf16.mxu0 %v1897
        %3833 = vmatpush1.bf16.msra.mxu0 %v1896
        %3834 = vmatprep.subr.bf16.mxu0 %v1901
        %3835 = vmatpush1.bf16.msra.mxu0 %v1900
        %3836 = vmatprep.subr.bf16.mxu0 %v1905
        %3837 = vmatpush1.bf16.msra.mxu0 %v1904
        %3838 = vmatprep.subr.bf16.mxu0 %v1909
        %3839 = vmatpush1.bf16.msra.mxu0 %v1908
        %3840 = vmatprep.subr.bf16.mxu0 %v1913
        %3841 = vmatpush1.bf16.msra.mxu0 %v1912
        %3842 = vmatprep.subr.bf16.mxu0 %v1917
        %3843 = vmatpush1.bf16.msra.mxu0 %v1916
        %3844 = vmatprep.subr.bf16.mxu0 %v1921
        %3845 = vmatpush1.bf16.msra.mxu0 %v1920
        %3846 = vmatprep.subr.bf16.mxu0 %v1925
        %3847 = vmatpush1.bf16.msra.mxu0 %v1924
        %3848 = vmatprep.subr.bf16.mxu0 %v1929
        %3849 = vmatpush1.bf16.msra.mxu0 %v1928
        %3850 = vmatprep.subr.bf16.mxu0 %v1933
        %3851 = vmatpush1.bf16.msra.mxu0 %v1932
        %3852 = vmatprep.subr.bf16.mxu0 %v1937
        %3853 = vmatpush1.bf16.msra.mxu0 %v1936
        %3854 = vmatprep.mubr.bf16.mxu0 %v3118
        %3855 = vmatmul.mubr.bf16.gmra.mrb[0].mxu0 %v3116
        %v3856 = vpop.f32.mrb[0].mxu0
        %v3857 = vadd.f32 %v3816, %v3856
        %v3858 = vpop.f32.mrb[0].mxu0
        %v3859 = vadd.f32 %v3818, %v3858
        %v3860 = vpop.f32.mrb[0].mxu0
        %v3861 = vpop.f32.mrb[0].mxu0
        %3862 = vdwg.mxu0
        %3863 = vmatprep.subr.bf16.mxu0 %v1941
        %3864 = vmatpush1.bf16.msra.mxu0 %v1940
        %3865 = vmatprep.subr.bf16.mxu0 %v1945
        %3866 = vmatpush1.bf16.msra.mxu0 %v1944
        %3867 = vmatprep.subr.bf16.mxu0 %v1949
        %3868 = vmatpush1.bf16.msra.mxu0 %v1948
        %3869 = vmatprep.subr.bf16.mxu0 %v1953
        %3870 = vmatpush1.bf16.msra.mxu0 %v1952
        %3871 = vmatprep.subr.bf16.mxu0 %v1957
        %3872 = vmatpush1.bf16.msra.mxu0 %v1956
        %3873 = vmatprep.subr.bf16.mxu0 %v1961
        %3874 = vmatpush1.bf16.msra.mxu0 %v1960
        %3875 = vmatprep.subr.bf16.mxu0 %v1965
        %3876 = vmatpush1.bf16.msra.mxu0 %v1964
        %3877 = vmatprep.subr.bf16.mxu0 %v1969
        %3878 = vmatpush1.bf16.msra.mxu0 %v1968
        %3879 = vmatprep.subr.bf16.mxu0 %v1973
        %3880 = vmatpush1.bf16.msra.mxu0 %v1972
        %3881 = vmatprep.subr.bf16.mxu0 %v1977
        %3882 = vmatpush1.bf16.msra.mxu0 %v1976
        %3883 = vmatprep.subr.bf16.mxu0 %v1981
        %3884 = vmatpush1.bf16.msra.mxu0 %v1980
        %3885 = vmatprep.subr.bf16.mxu0 %v1985
        %3886 = vmatpush1.bf16.msra.mxu0 %v1984
        %3887 = vmatprep.subr.bf16.mxu0 %v1989
        %3888 = vmatpush1.bf16.msra.mxu0 %v1988
        %3889 = vmatprep.subr.bf16.mxu0 %v1993
        %3890 = vmatpush1.bf16.msra.mxu0 %v1992
        %3891 = vmatprep.subr.bf16.mxu0 %v1997
        %3892 = vmatpush1.bf16.msra.mxu0 %v1996
        %3893 = vmatprep.subr.bf16.mxu0 %v2001
        %3894 = vmatpush1.bf16.msra.mxu0 %v2000
        %3895 = vmatprep.mubr.bf16.mxu0 %v3156
        %3896 = vmatmul.mubr.bf16.gmra.mrb[0].mxu0 %v3142
        %v3897 = vpop.f32.mrb[0].mxu0
        %v3898 = vadd.f32 %v3857, %v3897
        %v3899 = vpop.f32.mrb[0].mxu0
        %v3900 = vadd.f32 %v3859, %v3899
        %v3901 = vpop.f32.mrb[0].mxu0
        %v3902 = vpop.f32.mrb[0].mxu0
        %3903 = vdwg.mxu0
        %3904 = vmatprep.subr.bf16.mxu0 %v2005
        %3905 = vmatpush1.bf16.msra.mxu0 %v2004
        %3906 = vmatprep.subr.bf16.mxu0 %v2009
        %3907 = vmatpush1.bf16.msra.mxu0 %v2008
        %3908 = vmatprep.subr.bf16.mxu0 %v2013
        %3909 = vmatpush1.bf16.msra.mxu0 %v2012
        %3910 = vmatprep.subr.bf16.mxu0 %v2017
        %3911 = vmatpush1.bf16.msra.mxu0 %v2016
        %3912 = vmatprep.subr.bf16.mxu0 %v2021
        %3913 = vmatpush1.bf16.msra.mxu0 %v2020
        %3914 = vmatprep.subr.bf16.mxu0 %v2025
        %3915 = vmatpush1.bf16.msra.mxu0 %v2024
        %3916 = vmatprep.subr.bf16.mxu0 %v2029
        %3917 = vmatpush1.bf16.msra.mxu0 %v2028
        %3918 = vmatprep.subr.bf16.mxu0 %v2033
        %3919 = vmatpush1.bf16.msra.mxu0 %v2032
        %3920 = vmatprep.subr.bf16.mxu0 %v2037
        %3921 = vmatpush1.bf16.msra.mxu0 %v2036
        %3922 = vmatprep.subr.bf16.mxu0 %v2041
        %3923 = vmatpush1.bf16.msra.mxu0 %v2040
        %3924 = vmatprep.subr.bf16.mxu0 %v2045
        %3925 = vmatpush1.bf16.msra.mxu0 %v2044
        %3926 = vmatprep.subr.bf16.mxu0 %v2049
        %3927 = vmatpush1.bf16.msra.mxu0 %v2048
        %3928 = vmatprep.subr.bf16.mxu0 %v2053
        %3929 = vmatpush1.bf16.msra.mxu0 %v2052
        %3930 = vmatprep.subr.bf16.mxu0 %v2057
        %3931 = vmatpush1.bf16.msra.mxu0 %v2056
        %3932 = vmatprep.subr.bf16.mxu0 %v2061
        %3933 = vmatpush1.bf16.msra.mxu0 %v2060
        %3934 = vmatprep.subr.bf16.mxu0 %v2065
        %3935 = vmatpush1.bf16.msra.mxu0 %v2064
        %3936 = vmatprep.mubr.bf16.mxu0 %v3166
        %3937 = vmatmul.mubr.bf16.gmra.mrb[0].mxu0 %v3164
        %v3938 = vpop.f32.mrb[0].mxu0
        %v3939 = vadd.f32 %v3898, %v3938
        %v3940 = vpop.f32.mrb[0].mxu0
        %v3941 = vadd.f32 %v3900, %v3940
        %v3942 = vpop.f32.mrb[0].mxu0
        %v3943 = vpop.f32.mrb[0].mxu0
        %3944 = vdwg.mxu0
        %3945 = vmatprep.subr.bf16.mxu0 %v2069
        %3946 = vmatpush1.bf16.msra.mxu0 %v2068
        %3947 = vmatprep.subr.bf16.mxu0 %v2073
        %3948 = vmatpush1.bf16.msra.mxu0 %v2072
        %3949 = vmatprep.subr.bf16.mxu0 %v2077
        %3950 = vmatpush1.bf16.msra.mxu0 %v2076
        %3951 = vmatprep.subr.bf16.mxu0 %v2081
        %3952 = vmatpush1.bf16.msra.mxu0 %v2080
        %3953 = vmatprep.subr.bf16.mxu0 %v2085
        %3954 = vmatpush1.bf16.msra.mxu0 %v2084
        %3955 = vmatprep.subr.bf16.mxu0 %v2089
        %3956 = vmatpush1.bf16.msra.mxu0 %v2088
        %3957 = vmatprep.subr.bf16.mxu0 %v2093
        %3958 = vmatpush1.bf16.msra.mxu0 %v2092
        %3959 = vmatprep.subr.bf16.mxu0 %v2097
        %3960 = vmatpush1.bf16.msra.mxu0 %v2096
        %3961 = vmatprep.subr.bf16.mxu0 %v2101
        %3962 = vmatpush1.bf16.msra.mxu0 %v2100
        %3963 = vmatprep.subr.bf16.mxu0 %v2105
        %3964 = vmatpush1.bf16.msra.mxu0 %v2104
        %3965 = vmatprep.subr.bf16.mxu0 %v2109
        %3966 = vmatpush1.bf16.msra.mxu0 %v2108
        %3967 = vmatprep.subr.bf16.mxu0 %v2113
        %3968 = vmatpush1.bf16.msra.mxu0 %v2112
        %3969 = vmatprep.subr.bf16.mxu0 %v2117
        %3970 = vmatpush1.bf16.msra.mxu0 %v2116
        %3971 = vmatprep.subr.bf16.mxu0 %v2121
        %3972 = vmatpush1.bf16.msra.mxu0 %v2120
        %3973 = vmatprep.subr.bf16.mxu0 %v2125
        %3974 = vmatpush1.bf16.msra.mxu0 %v2124
        %3975 = vmatprep.subr.bf16.mxu0 %v2129
        %3976 = vmatpush1.bf16.msra.mxu0 %v2128
        %3977 = vmatprep.mubr.bf16.mxu0 %v3163
        %3978 = vmatmul.mubr.bf16.gmra.mrb[0].mxu0 %v3149
        %v3979 = vpop.f32.mrb[0].mxu0
        %v3980 = vadd.f32 %v3939, %v3979
        %v3981 = vpop.f32.mrb[0].mxu0
        %v3982 = vadd.f32 %v3941, %v3981
        %v3983 = vpop.f32.mrb[0].mxu0
        %v3984 = vpop.f32.mrb[0].mxu0
        %3985 = vdwg.mxu0
        %3986 = vmatprep.subr.bf16.mxu0 %v2133
        %3987 = vmatpush1.bf16.msra.mxu0 %v2132
        %3988 = vmatprep.subr.bf16.mxu0 %v2137
        %3989 = vmatpush1.bf16.msra.mxu0 %v2136
        %3990 = vmatprep.subr.bf16.mxu0 %v2141
        %3991 = vmatpush1.bf16.msra.mxu0 %v2140
        %3992 = vmatprep.subr.bf16.mxu0 %v2145
        %3993 = vmatpush1.bf16.msra.mxu0 %v2144
        %3994 = vmatprep.subr.bf16.mxu0 %v2149
        %3995 = vmatpush1.bf16.msra.mxu0 %v2148
        %3996 = vmatprep.subr.bf16.mxu0 %v2153
        %3997 = vmatpush1.bf16.msra.mxu0 %v2152
        %3998 = vmatprep.subr.bf16.mxu0 %v2157
        %3999 = vmatpush1.bf16.msra.mxu0 %v2156
        %4000 = vmatprep.subr.bf16.mxu0 %v2161
        %4001 = vmatpush1.bf16.msra.mxu0 %v2160
        %4002 = vmatprep.subr.bf16.mxu0 %v2165
        %4003 = vmatpush1.bf16.msra.mxu0 %v2164
        %4004 = vmatprep.subr.bf16.mxu0 %v2169
        %4005 = vmatpush1.bf16.msra.mxu0 %v2168
        %4006 = vmatprep.subr.bf16.mxu0 %v2173
        %4007 = vmatpush1.bf16.msra.mxu0 %v2172
        %4008 = vmatprep.subr.bf16.mxu0 %v2177
        %4009 = vmatpush1.bf16.msra.mxu0 %v2176
        %4010 = vmatprep.subr.bf16.mxu0 %v2181
        %4011 = vmatpush1.bf16.msra.mxu0 %v2180
        %4012 = vmatprep.subr.bf16.mxu0 %v2185
        %4013 = vmatpush1.bf16.msra.mxu0 %v2184
        %4014 = vmatprep.subr.bf16.mxu0 %v2189
        %4015 = vmatpush1.bf16.msra.mxu0 %v2188
        %4016 = vmatprep.subr.bf16.mxu0 %v2193
        %4017 = vmatpush1.bf16.msra.mxu0 %v2192
        %4018 = vmatprep.mubr.bf16.mxu0 %v3167
        %4019 = vmatmul.mubr.bf16.gmra.mrb[0].mxu0 %v3165
        %v4020 = vpop.f32.mrb[0].mxu0
        %v4021 = vadd.f32 %v3980, %v4020
        %v4022 = vpop.f32.mrb[0].mxu0
        %v4023 = vadd.f32 %v3982, %v4022
        %v4024 = vpop.f32.mrb[0].mxu0
        %v4025 = vpop.f32.mrb[0].mxu0
        %4026 = vdwg.mxu0
        %4027 = vmatprep.subr.bf16.mxu0 %v2197
        %4028 = vmatpush1.bf16.msra.mxu0 %v2196
        %4029 = vmatprep.subr.bf16.mxu0 %v2201
        %4030 = vmatpush1.bf16.msra.mxu0 %v2200
        %4031 = vmatprep.subr.bf16.mxu0 %v2205
        %4032 = vmatpush1.bf16.msra.mxu0 %v2204
        %4033 = vmatprep.subr.bf16.mxu0 %v2209
        %4034 = vmatpush1.bf16.msra.mxu0 %v2208
        %4035 = vmatprep.subr.bf16.mxu0 %v2213
        %4036 = vmatpush1.bf16.msra.mxu0 %v2212
        %4037 = vmatprep.subr.bf16.mxu0 %v2217
        %4038 = vmatpush1.bf16.msra.mxu0 %v2216
        %4039 = vmatprep.subr.bf16.mxu0 %v2221
        %4040 = vmatpush1.bf16.msra.mxu0 %v2220
        %4041 = vmatprep.subr.bf16.mxu0 %v2225
        %4042 = vmatpush1.bf16.msra.mxu0 %v2224
        %4043 = vmatprep.subr.bf16.mxu0 %v2229
        %4044 = vmatpush1.bf16.msra.mxu0 %v2228
        %4045 = vmatprep.subr.bf16.mxu0 %v2233
        %4046 = vmatpush1.bf16.msra.mxu0 %v2232
        %4047 = vmatprep.subr.bf16.mxu0 %v2237
        %4048 = vmatpush1.bf16.msra.mxu0 %v2236
        %4049 = vmatprep.subr.bf16.mxu0 %v2241
        %4050 = vmatpush1.bf16.msra.mxu0 %v2240
        %4051 = vmatprep.subr.bf16.mxu0 %v2245
        %4052 = vmatpush1.bf16.msra.mxu0 %v2244
        %4053 = vmatprep.subr.bf16.mxu0 %v2249
        %4054 = vmatpush1.bf16.msra.mxu0 %v2248
        %4055 = vmatprep.subr.bf16.mxu0 %v2253
        %4056 = vmatpush1.bf16.msra.mxu0 %v2252
        %4057 = vmatprep.subr.bf16.mxu0 %v2257
        %4058 = vmatpush1.bf16.msra.mxu0 %v2256
        %4059 = vmatprep.mubr.bf16.mxu0 %v3205
        %4060 = vmatmul.mubr.bf16.gmra.mrb[0].mxu0 %v3191
        %v4061 = vpop.f32.mrb[0].mxu0
        %v4062 = vadd.f32 %v4021, %v4061
        %v4063 = vpop.f32.mrb[0].mxu0
        %v4064 = vadd.f32 %v4023, %v4063
        %v4065 = vpop.f32.mrb[0].mxu0
        %v4066 = vpop.f32.mrb[0].mxu0
        %4067 = vdwg.mxu0
        %4068 = vmatprep.subr.bf16.mxu0 %v2261
        %4069 = vmatpush1.bf16.msra.mxu0 %v2260
        %4070 = vmatprep.subr.bf16.mxu0 %v2265
        %4071 = vmatpush1.bf16.msra.mxu0 %v2264
        %4072 = vmatprep.subr.bf16.mxu0 %v2269
        %4073 = vmatpush1.bf16.msra.mxu0 %v2268
        %4074 = vmatprep.subr.bf16.mxu0 %v2273
        %4075 = vmatpush1.bf16.msra.mxu0 %v2272
        %4076 = vmatprep.subr.bf16.mxu0 %v2277
        %4077 = vmatpush1.bf16.msra.mxu0 %v2276
        %4078 = vmatprep.subr.bf16.mxu0 %v2281
        %4079 = vmatpush1.bf16.msra.mxu0 %v2280
        %4080 = vmatprep.subr.bf16.mxu0 %v2285
        %4081 = vmatpush1.bf16.msra.mxu0 %v2284
        %4082 = vmatprep.subr.bf16.mxu0 %v2289
        %4083 = vmatpush1.bf16.msra.mxu0 %v2288
        %4084 = vmatprep.subr.bf16.mxu0 %v2293
        %4085 = vmatpush1.bf16.msra.mxu0 %v2292
        %4086 = vmatprep.subr.bf16.mxu0 %v2297
        %4087 = vmatpush1.bf16.msra.mxu0 %v2296
        %4088 = vmatprep.subr.bf16.mxu0 %v2301
        %4089 = vmatpush1.bf16.msra.mxu0 %v2300
        %4090 = vmatprep.subr.bf16.mxu0 %v2305
        %4091 = vmatpush1.bf16.msra.mxu0 %v2304
        %4092 = vmatprep.subr.bf16.mxu0 %v2309
        %4093 = vmatpush1.bf16.msra.mxu0 %v2308
        %4094 = vmatprep.subr.bf16.mxu0 %v2313
        %4095 = vmatpush1.bf16.msra.mxu0 %v2312
        %4096 = vmatprep.subr.bf16.mxu0 %v2317
        %4097 = vmatpush1.bf16.msra.mxu0 %v2316
        %4098 = vmatprep.subr.bf16.mxu0 %v2321
        %4099 = vmatpush1.bf16.msra.mxu0 %v2320
        %4100 = vmatprep.mubr.bf16.mxu0 %v3215
        %4101 = vmatmul.mubr.bf16.gmra.mrb[0].mxu0 %v3213
        %v4102 = vpop.f32.mrb[0].mxu0
        %v4103 = vadd.f32 %v4062, %v4102
        %v4104 = vpop.f32.mrb[0].mxu0
        %v4105 = vadd.f32 %v4064, %v4104
        %v4106 = vpop.f32.mrb[0].mxu0
        %v4107 = vpop.f32.mrb[0].mxu0
        %4108 = vdwg.mxu0
        %4109 = vmatprep.subr.bf16.mxu0 %v2325
        %4110 = vmatpush1.bf16.msra.mxu0 %v2324
        %4111 = vmatprep.subr.bf16.mxu0 %v2329
        %4112 = vmatpush1.bf16.msra.mxu0 %v2328
        %4113 = vmatprep.subr.bf16.mxu0 %v2333
        %4114 = vmatpush1.bf16.msra.mxu0 %v2332
        %4115 = vmatprep.subr.bf16.mxu0 %v2337
        %4116 = vmatpush1.bf16.msra.mxu0 %v2336
        %4117 = vmatprep.subr.bf16.mxu0 %v2341
        %4118 = vmatpush1.bf16.msra.mxu0 %v2340
        %4119 = vmatprep.subr.bf16.mxu0 %v2345
        %4120 = vmatpush1.bf16.msra.mxu0 %v2344
        %4121 = vmatprep.subr.bf16.mxu0 %v2349
        %4122 = vmatpush1.bf16.msra.mxu0 %v2348
        %4123 = vmatprep.subr.bf16.mxu0 %v2353
        %4124 = vmatpush1.bf16.msra.mxu0 %v2352
        %4125 = vmatprep.subr.bf16.mxu0 %v2357
        %4126 = vmatpush1.bf16.msra.mxu0 %v2356
        %4127 = vmatprep.subr.bf16.mxu0 %v2361
        %4128 = vmatpush1.bf16.msra.mxu0 %v2360
        %4129 = vmatprep.subr.bf16.mxu0 %v2365
        %4130 = vmatpush1.bf16.msra.mxu0 %v2364
        %4131 = vmatprep.subr.bf16.mxu0 %v2369
        %4132 = vmatpush1.bf16.msra.mxu0 %v2368
        %4133 = vmatprep.subr.bf16.mxu0 %v2373
        %4134 = vmatpush1.bf16.msra.mxu0 %v2372
        %4135 = vmatprep.subr.bf16.mxu0 %v2377
        %4136 = vmatpush1.bf16.msra.mxu0 %v2376
        %4137 = vmatprep.subr.bf16.mxu0 %v2381
        %4138 = vmatpush1.bf16.msra.mxu0 %v2380
        %4139 = vmatprep.subr.bf16.mxu0 %v2385
        %4140 = vmatpush1.bf16.msra.mxu0 %v2384
        %4141 = vmatprep.mubr.bf16.mxu0 %v3212
        %4142 = vmatmul.mubr.bf16.gmra.mrb[0].mxu0 %v3198
        %v4143 = vpop.f32.mrb[0].mxu0
        %v4144 = vadd.f32 %v4103, %v4143
        %v4145 = vpop.f32.mrb[0].mxu0
        %v4146 = vadd.f32 %v4105, %v4145
        %v4147 = vpop.f32.mrb[0].mxu0
        %v4148 = vpop.f32.mrb[0].mxu0
        %4149 = vdwg.mxu0
        %4150 = vmatprep.subr.bf16.mxu0 %v2389
        %4151 = vmatpush1.bf16.msra.mxu0 %v2388
        %4152 = vmatprep.subr.bf16.mxu0 %v2393
        %4153 = vmatpush1.bf16.msra.mxu0 %v2392
        %4154 = vmatprep.subr.bf16.mxu0 %v2397
        %4155 = vmatpush1.bf16.msra.mxu0 %v2396
        %4156 = vmatprep.subr.bf16.mxu0 %v2401
        %4157 = vmatpush1.bf16.msra.mxu0 %v2400
        %4158 = vmatprep.subr.bf16.mxu0 %v2405
        %4159 = vmatpush1.bf16.msra.mxu0 %v2404
        %4160 = vmatprep.subr.bf16.mxu0 %v2409
        %4161 = vmatpush1.bf16.msra.mxu0 %v2408
        %4162 = vmatprep.subr.bf16.mxu0 %v2413
        %4163 = vmatpush1.bf16.msra.mxu0 %v2412
        %4164 = vmatprep.subr.bf16.mxu0 %v2417
        %4165 = vmatpush1.bf16.msra.mxu0 %v2416
        %4166 = vmatprep.subr.bf16.mxu0 %v2421
        %4167 = vmatpush1.bf16.msra.mxu0 %v2420
        %4168 = vmatprep.subr.bf16.mxu0 %v2425
        %4169 = vmatpush1.bf16.msra.mxu0 %v2424
        %4170 = vmatprep.subr.bf16.mxu0 %v2429
        %4171 = vmatpush1.bf16.msra.mxu0 %v2428
        %4172 = vmatprep.subr.bf16.mxu0 %v2433
        %4173 = vmatpush1.bf16.msra.mxu0 %v2432
        %4174 = vmatprep.subr.bf16.mxu0 %v2437
        %4175 = vmatpush1.bf16.msra.mxu0 %v2436
        %4176 = vmatprep.subr.bf16.mxu0 %v2441
        %4177 = vmatpush1.bf16.msra.mxu0 %v2440
        %4178 = vmatprep.subr.bf16.mxu0 %v2445
        %4179 = vmatpush1.bf16.msra.mxu0 %v2444
        %4180 = vmatprep.subr.bf16.mxu0 %v2449
        %4181 = vmatpush1.bf16.msra.mxu0 %v2448
        %4182 = vmatprep.mubr.bf16.mxu0 %v3216
        %4183 = vmatmul.mubr.bf16.gmra.mrb[0].mxu0 %v3214
        %v4184 = vpop.f32.mrb[0].mxu0
        %v4185 = vadd.f32 %v4144, %v4184
        %v4186 = vpop.f32.mrb[0].mxu0
        %v4187 = vadd.f32 %v4146, %v4186
        %v4188 = vpop.f32.mrb[0].mxu0
        %v4189 = vpop.f32.mrb[0].mxu0
        %4190 = vdwg.mxu0
        %4191 = vmatprep.subr.bf16.mxu0 %v2453
        %4192 = vmatpush1.bf16.msra.mxu0 %v2452
        %4193 = vmatprep.subr.bf16.mxu0 %v2457
        %4194 = vmatpush1.bf16.msra.mxu0 %v2456
        %4195 = vmatprep.subr.bf16.mxu0 %v2461
        %4196 = vmatpush1.bf16.msra.mxu0 %v2460
        %4197 = vmatprep.subr.bf16.mxu0 %v2465
        %4198 = vmatpush1.bf16.msra.mxu0 %v2464
        %4199 = vmatprep.subr.bf16.mxu0 %v2469
        %4200 = vmatpush1.bf16.msra.mxu0 %v2468
        %4201 = vmatprep.subr.bf16.mxu0 %v2473
        %4202 = vmatpush1.bf16.msra.mxu0 %v2472
        %4203 = vmatprep.subr.bf16.mxu0 %v2477
        %4204 = vmatpush1.bf16.msra.mxu0 %v2476
        %4205 = vmatprep.subr.bf16.mxu0 %v2481
        %4206 = vmatpush1.bf16.msra.mxu0 %v2480
        %4207 = vmatprep.subr.bf16.mxu0 %v2485
        %4208 = vmatpush1.bf16.msra.mxu0 %v2484
        %4209 = vmatprep.subr.bf16.mxu0 %v2489
        %4210 = vmatpush1.bf16.msra.mxu0 %v2488
        %4211 = vmatprep.subr.bf16.mxu0 %v2493
        %4212 = vmatpush1.bf16.msra.mxu0 %v2492
        %4213 = vmatprep.subr.bf16.mxu0 %v2497
        %4214 = vmatpush1.bf16.msra.mxu0 %v2496
        %4215 = vmatprep.subr.bf16.mxu0 %v2501
        %4216 = vmatpush1.bf16.msra.mxu0 %v2500
        %4217 = vmatprep.subr.bf16.mxu0 %v2505
        %4218 = vmatpush1.bf16.msra.mxu0 %v2504
        %4219 = vmatprep.subr.bf16.mxu0 %v2509
        %4220 = vmatpush1.bf16.msra.mxu0 %v2508
        %4221 = vmatprep.subr.bf16.mxu0 %v2513
        %4222 = vmatpush1.bf16.msra.mxu0 %v2512
        %4223 = vmatprep.mubr.bf16.mxu0 %v3254
        %4224 = vmatmul.mubr.bf16.gmra.mrb[0].mxu0 %v3240
        %v4225 = vpop.f32.mrb[0].mxu0
        %v4226 = vadd.f32 %v4185, %v4225
        %v4227 = vpop.f32.mrb[0].mxu0
        %v4228 = vadd.f32 %v4187, %v4227
        %v4229 = vpop.f32.mrb[0].mxu0
        %v4230 = vpop.f32.mrb[0].mxu0
        %4231 = vdwg.mxu0
        %4232 = vmatprep.subr.bf16.mxu0 %v2517
        %4233 = vmatpush1.bf16.msra.mxu0 %v2516
        %4234 = vmatprep.subr.bf16.mxu0 %v2521
        %4235 = vmatpush1.bf16.msra.mxu0 %v2520
        %4236 = vmatprep.subr.bf16.mxu0 %v2525
        %4237 = vmatpush1.bf16.msra.mxu0 %v2524
        %4238 = vmatprep.subr.bf16.mxu0 %v2529
        %4239 = vmatpush1.bf16.msra.mxu0 %v2528
        %4240 = vmatprep.subr.bf16.mxu0 %v2533
        %4241 = vmatpush1.bf16.msra.mxu0 %v2532
        %4242 = vmatprep.subr.bf16.mxu0 %v2537
        %4243 = vmatpush1.bf16.msra.mxu0 %v2536
        %4244 = vmatprep.subr.bf16.mxu0 %v2541
        %4245 = vmatpush1.bf16.msra.mxu0 %v2540
        %4246 = vmatprep.subr.bf16.mxu0 %v2545
        %4247 = vmatpush1.bf16.msra.mxu0 %v2544
        %4248 = vmatprep.subr.bf16.mxu0 %v2549
        %4249 = vmatpush1.bf16.msra.mxu0 %v2548
        %4250 = vmatprep.subr.bf16.mxu0 %v2553
        %4251 = vmatpush1.bf16.msra.mxu0 %v2552
        %4252 = vmatprep.subr.bf16.mxu0 %v2557
        %4253 = vmatpush1.bf16.msra.mxu0 %v2556
        %4254 = vmatprep.subr.bf16.mxu0 %v2561
        %4255 = vmatpush1.bf16.msra.mxu0 %v2560
        %4256 = vmatprep.subr.bf16.mxu0 %v2565
        %4257 = vmatpush1.bf16.msra.mxu0 %v2564
        %4258 = vmatprep.subr.bf16.mxu0 %v2569
        %4259 = vmatpush1.bf16.msra.mxu0 %v2568
        %4260 = vmatprep.subr.bf16.mxu0 %v2573
        %4261 = vmatpush1.bf16.msra.mxu0 %v2572
        %4262 = vmatprep.subr.bf16.mxu0 %v2577
        %4263 = vmatpush1.bf16.msra.mxu0 %v2576
        %4264 = vmatprep.mubr.bf16.mxu0 %v3264
        %4265 = vmatmul.mubr.bf16.gmra.mrb[0].mxu0 %v3262
        %v4266 = vpop.f32.mrb[0].mxu0
        %v4267 = vadd.f32 %v4226, %v4266
        %v4268 = vpop.f32.mrb[0].mxu0
        %v4269 = vadd.f32 %v4228, %v4268
        %v4270 = vpop.f32.mrb[0].mxu0
        %v4271 = vpop.f32.mrb[0].mxu0
        %4272 = vdwg.mxu0
        %4273 = vmatprep.subr.bf16.mxu0 %v2581
        %4274 = vmatpush1.bf16.msra.mxu0 %v2580
        %4275 = vmatprep.subr.bf16.mxu0 %v2585
        %4276 = vmatpush1.bf16.msra.mxu0 %v2584
        %4277 = vmatprep.subr.bf16.mxu0 %v2589
        %4278 = vmatpush1.bf16.msra.mxu0 %v2588
        %4279 = vmatprep.subr.bf16.mxu0 %v2593
        %4280 = vmatpush1.bf16.msra.mxu0 %v2592
        %4281 = vmatprep.subr.bf16.mxu0 %v2597
        %4282 = vmatpush1.bf16.msra.mxu0 %v2596
        %4283 = vmatprep.subr.bf16.mxu0 %v2601
        %4284 = vmatpush1.bf16.msra.mxu0 %v2600
        %4285 = vmatprep.subr.bf16.mxu0 %v2605
        %4286 = vmatpush1.bf16.msra.mxu0 %v2604
        %4287 = vmatprep.subr.bf16.mxu0 %v2609
        %4288 = vmatpush1.bf16.msra.mxu0 %v2608
        %4289 = vmatprep.subr.bf16.mxu0 %v2613
        %4290 = vmatpush1.bf16.msra.mxu0 %v2612
        %4291 = vmatprep.subr.bf16.mxu0 %v2617
        %4292 = vmatpush1.bf16.msra.mxu0 %v2616
        %4293 = vmatprep.subr.bf16.mxu0 %v2621
        %4294 = vmatpush1.bf16.msra.mxu0 %v2620
        %4295 = vmatprep.subr.bf16.mxu0 %v2625
        %4296 = vmatpush1.bf16.msra.mxu0 %v2624
        %4297 = vmatprep.subr.bf16.mxu0 %v2629
        %4298 = vmatpush1.bf16.msra.mxu0 %v2628
        %4299 = vmatprep.subr.bf16.mxu0 %v2633
        %4300 = vmatpush1.bf16.msra.mxu0 %v2632
        %4301 = vmatprep.subr.bf16.mxu0 %v2637
        %4302 = vmatpush1.bf16.msra.mxu0 %v2636
        %4303 = vmatprep.subr.bf16.mxu0 %v2641
        %4304 = vmatpush1.bf16.msra.mxu0 %v2640
        %4305 = vmatprep.mubr.bf16.mxu0 %v3261
        %4306 = vmatmul.mubr.bf16.gmra.mrb[0].mxu0 %v3247
        %v4307 = vpop.f32.mrb[0].mxu0
        %v4308 = vadd.f32 %v4267, %v4307
        %v4309 = vpop.f32.mrb[0].mxu0
        %v4310 = vadd.f32 %v4269, %v4309
        %v4311 = vpop.f32.mrb[0].mxu0
        %v4312 = vpop.f32.mrb[0].mxu0
        %4313 = vdwg.mxu0
        %4314 = vmatprep.subr.bf16.mxu0 %v2645
        %4315 = vmatpush1.bf16.msra.mxu0 %v2644
        %4316 = vmatprep.subr.bf16.mxu0 %v2649
        %4317 = vmatpush1.bf16.msra.mxu0 %v2648
        %4318 = vmatprep.subr.bf16.mxu0 %v2653
        %4319 = vmatpush1.bf16.msra.mxu0 %v2652
        %4320 = vmatprep.subr.bf16.mxu0 %v2657
        %4321 = vmatpush1.bf16.msra.mxu0 %v2656
        %4322 = vmatprep.subr.bf16.mxu0 %v2661
        %4323 = vmatpush1.bf16.msra.mxu0 %v2660
        %4324 = vmatprep.subr.bf16.mxu0 %v2665
        %4325 = vmatpush1.bf16.msra.mxu0 %v2664
        %4326 = vmatprep.subr.bf16.mxu0 %v2669
        %4327 = vmatpush1.bf16.msra.mxu0 %v2668
        %4328 = vmatprep.subr.bf16.mxu0 %v2673
        %4329 = vmatpush1.bf16.msra.mxu0 %v2672
        %4330 = vmatprep.subr.bf16.mxu0 %v2677
        %4331 = vmatpush1.bf16.msra.mxu0 %v2676
        %4332 = vmatprep.subr.bf16.mxu0 %v2681
        %4333 = vmatpush1.bf16.msra.mxu0 %v2680
        %4334 = vmatprep.subr.bf16.mxu0 %v2685
        %4335 = vmatpush1.bf16.msra.mxu0 %v2684
        %4336 = vmatprep.subr.bf16.mxu0 %v2689
        %4337 = vmatpush1.bf16.msra.mxu0 %v2688
        %4338 = vmatprep.subr.bf16.mxu0 %v2693
        %4339 = vmatpush1.bf16.msra.mxu0 %v2692
        %4340 = vmatprep.subr.bf16.mxu0 %v2697
        %4341 = vmatpush1.bf16.msra.mxu0 %v2696
        %4342 = vmatprep.subr.bf16.mxu0 %v2701
        %4343 = vmatpush1.bf16.msra.mxu0 %v2700
        %4344 = vmatprep.subr.bf16.mxu0 %v2705
        %4345 = vmatpush1.bf16.msra.mxu0 %v2704
        %4346 = vmatprep.mubr.bf16.mxu0 %v3265
        %4347 = vmatmul.mubr.bf16.gmra.mrb[0].mxu0 %v3263
        %v4348 = vpop.f32.mrb[0].mxu0
        %v4349 = vadd.f32 %v4308, %v4348
        %v4350 = vpop.f32.mrb[0].mxu0
        %v4351 = vadd.f32 %v4310, %v4350
        %v4352 = vpop.f32.mrb[0].mxu0
        %v4353 = vpop.f32.mrb[0].mxu0
        %4354 = vdwg.mxu0
        %4355 = vmatprep.subr.bf16.mxu0 %v2709
        %4356 = vmatpush1.bf16.msra.mxu0 %v2708
        %4357 = vmatprep.subr.bf16.mxu0 %v2713
        %4358 = vmatpush1.bf16.msra.mxu0 %v2712
        %4359 = vmatprep.subr.bf16.mxu0 %v2717
        %4360 = vmatpush1.bf16.msra.mxu0 %v2716
        %4361 = vmatprep.subr.bf16.mxu0 %v2721
        %4362 = vmatpush1.bf16.msra.mxu0 %v2720
        %4363 = vmatprep.subr.bf16.mxu0 %v2725
        %4364 = vmatpush1.bf16.msra.mxu0 %v2724
        %4365 = vmatprep.subr.bf16.mxu0 %v2729
        %4366 = vmatpush1.bf16.msra.mxu0 %v2728
        %4367 = vmatprep.subr.bf16.mxu0 %v2733
        %4368 = vmatpush1.bf16.msra.mxu0 %v2732
        %4369 = vmatprep.subr.bf16.mxu0 %v2737
        %4370 = vmatpush1.bf16.msra.mxu0 %v2736
        %4371 = vmatprep.subr.bf16.mxu0 %v2741
        %4372 = vmatpush1.bf16.msra.mxu0 %v2740
        %4373 = vmatprep.subr.bf16.mxu0 %v2745
        %4374 = vmatpush1.bf16.msra.mxu0 %v2744
        %4375 = vmatprep.subr.bf16.mxu0 %v2749
        %4376 = vmatpush1.bf16.msra.mxu0 %v2748
        %4377 = vmatprep.subr.bf16.mxu0 %v2753
        %4378 = vmatpush1.bf16.msra.mxu0 %v2752
        %4379 = vmatprep.subr.bf16.mxu0 %v2757
        %4380 = vmatpush1.bf16.msra.mxu0 %v2756
        %4381 = vmatprep.subr.bf16.mxu0 %v2761
        %4382 = vmatpush1.bf16.msra.mxu0 %v2760
        %4383 = vmatprep.subr.bf16.mxu0 %v2765
        %4384 = vmatpush1.bf16.msra.mxu0 %v2764
        %4385 = vmatprep.subr.bf16.mxu0 %v2769
        %4386 = vmatpush1.bf16.msra.mxu0 %v2768
        %4387 = vmatprep.mubr.bf16.mxu0 %v3303
        %4388 = vmatmul.mubr.bf16.gmra.mrb[0].mxu0 %v3289
        %v4389 = vpop.f32.mrb[0].mxu0
        %v4390 = vadd.f32 %v4349, %v4389
        %v4391 = vpop.f32.mrb[0].mxu0
        %v4392 = vadd.f32 %v4351, %v4391
        %v4393 = vpop.f32.mrb[0].mxu0
        %v4394 = vpop.f32.mrb[0].mxu0
        %4395 = vdwg.mxu0
        %4396 = vmatprep.subr.bf16.mxu0 %v2773
        %4397 = vmatpush1.bf16.msra.mxu0 %v2772
        %4398 = vmatprep.subr.bf16.mxu0 %v2777
        %4399 = vmatpush1.bf16.msra.mxu0 %v2776
        %4400 = vmatprep.subr.bf16.mxu0 %v2781
        %4401 = vmatpush1.bf16.msra.mxu0 %v2780
        %4402 = vmatprep.subr.bf16.mxu0 %v2785
        %4403 = vmatpush1.bf16.msra.mxu0 %v2784
        %4404 = vmatprep.subr.bf16.mxu0 %v2789
        %4405 = vmatpush1.bf16.msra.mxu0 %v2788
        %4406 = vmatprep.subr.bf16.mxu0 %v2793
        %4407 = vmatpush1.bf16.msra.mxu0 %v2792
        %4408 = vmatprep.subr.bf16.mxu0 %v2797
        %4409 = vmatpush1.bf16.msra.mxu0 %v2796
        %4410 = vmatprep.subr.bf16.mxu0 %v2801
        %4411 = vmatpush1.bf16.msra.mxu0 %v2800
        %4412 = vmatprep.subr.bf16.mxu0 %v2805
        %4413 = vmatpush1.bf16.msra.mxu0 %v2804
        %4414 = vmatprep.subr.bf16.mxu0 %v2809
        %4415 = vmatpush1.bf16.msra.mxu0 %v2808
        %4416 = vmatprep.subr.bf16.mxu0 %v2813
        %4417 = vmatpush1.bf16.msra.mxu0 %v2812
        %4418 = vmatprep.subr.bf16.mxu0 %v2817
        %4419 = vmatpush1.bf16.msra.mxu0 %v2816
        %4420 = vmatprep.subr.bf16.mxu0 %v2821
        %4421 = vmatpush1.bf16.msra.mxu0 %v2820
        %4422 = vmatprep.subr.bf16.mxu0 %v2825
        %4423 = vmatpush1.bf16.msra.mxu0 %v2824
        %4424 = vmatprep.subr.bf16.mxu0 %v2829
        %4425 = vmatpush1.bf16.msra.mxu0 %v2828
        %4426 = vmatprep.subr.bf16.mxu0 %v2833
        %4427 = vmatpush1.bf16.msra.mxu0 %v2832
        %4428 = vmatprep.mubr.bf16.mxu0 %v3313
        %4429 = vmatmul.mubr.bf16.gmra.mrb[0].mxu0 %v3311
        %v4430 = vpop.f32.mrb[0].mxu0
        %v4431 = vadd.f32 %v4390, %v4430
        %v4432 = vpop.f32.mrb[0].mxu0
        %v4433 = vadd.f32 %v4392, %v4432
        %v4434 = vpop.f32.mrb[0].mxu0
        %v4435 = vpop.f32.mrb[0].mxu0
        %4436 = vdwg.mxu0
        %4437 = vmatprep.subr.bf16.mxu0 %v2837
        %4438 = vmatpush1.bf16.msra.mxu0 %v2836
        %4439 = vmatprep.subr.bf16.mxu0 %v2841
        %4440 = vmatpush1.bf16.msra.mxu0 %v2840
        %4441 = vmatprep.subr.bf16.mxu0 %v2845
        %4442 = vmatpush1.bf16.msra.mxu0 %v2844
        %4443 = vmatprep.subr.bf16.mxu0 %v2849
        %4444 = vmatpush1.bf16.msra.mxu0 %v2848
        %4445 = vmatprep.subr.bf16.mxu0 %v2853
        %4446 = vmatpush1.bf16.msra.mxu0 %v2852
        %4447 = vmatprep.subr.bf16.mxu0 %v2857
        %4448 = vmatpush1.bf16.msra.mxu0 %v2856
        %4449 = vmatprep.subr.bf16.mxu0 %v2861
        %4450 = vmatpush1.bf16.msra.mxu0 %v2860
        %4451 = vmatprep.subr.bf16.mxu0 %v2865
        %4452 = vmatpush1.bf16.msra.mxu0 %v2864
        %4453 = vmatprep.subr.bf16.mxu0 %v2869
        %4454 = vmatpush1.bf16.msra.mxu0 %v2868
        %4455 = vmatprep.subr.bf16.mxu0 %v2873
        %4456 = vmatpush1.bf16.msra.mxu0 %v2872
        %4457 = vmatprep.subr.bf16.mxu0 %v2877
        %4458 = vmatpush1.bf16.msra.mxu0 %v2876
        %4459 = vmatprep.subr.bf16.mxu0 %v2881
        %4460 = vmatpush1.bf16.msra.mxu0 %v2880
        %4461 = vmatprep.subr.bf16.mxu0 %v2885
        %4462 = vmatpush1.bf16.msra.mxu0 %v2884
        %4463 = vmatprep.subr.bf16.mxu0 %v2889
        %4464 = vmatpush1.bf16.msra.mxu0 %v2888
        %4465 = vmatprep.subr.bf16.mxu0 %v2893
        %4466 = vmatpush1.bf16.msra.mxu0 %v2892
        %4467 = vmatprep.subr.bf16.mxu0 %v2897
        %4468 = vmatpush1.bf16.msra.mxu0 %v2896
        %4469 = vmatprep.mubr.bf16.mxu0 %v3310
        %4470 = vmatmul.mubr.bf16.gmra.mrb[0].mxu0 %v3296
        %v4471 = vpop.f32.mrb[0].mxu0
        %v4472 = vadd.f32 %v4431, %v4471
        %v4473 = vpop.f32.mrb[0].mxu0
        %v4474 = vadd.f32 %v4433, %v4473
        %v4475 = vpop.f32.mrb[0].mxu0
        %v4476 = vpop.f32.mrb[0].mxu0
        %4477 = vdwg.mxu0
        %4478 = vmatprep.subr.bf16.mxu0 %v2901
        %4479 = vmatpush1.bf16.msra.mxu0 %v2900
        %4480 = vmatprep.subr.bf16.mxu0 %v2905
        %4481 = vmatpush1.bf16.msra.mxu0 %v2904
        %4482 = vmatprep.subr.bf16.mxu0 %v2909
        %4483 = vmatpush1.bf16.msra.mxu0 %v2908
        %4484 = vmatprep.subr.bf16.mxu0 %v2913
        %4485 = vmatpush1.bf16.msra.mxu0 %v2912
        %4486 = vmatprep.subr.bf16.mxu0 %v2917
        %4487 = vmatpush1.bf16.msra.mxu0 %v2916
        %4488 = vmatprep.subr.bf16.mxu0 %v2921
        %4489 = vmatpush1.bf16.msra.mxu0 %v2920
        %4490 = vmatprep.subr.bf16.mxu0 %v2925
        %4491 = vmatpush1.bf16.msra.mxu0 %v2924
        %4492 = vmatprep.subr.bf16.mxu0 %v2929
        %4493 = vmatpush1.bf16.msra.mxu0 %v2928
        %4494 = vmatprep.subr.bf16.mxu0 %v2933
        %4495 = vmatpush1.bf16.msra.mxu0 %v2932
        %4496 = vmatprep.subr.bf16.mxu0 %v2937
        %4497 = vmatpush1.bf16.msra.mxu0 %v2936
        %4498 = vmatprep.subr.bf16.mxu0 %v2941
        %4499 = vmatpush1.bf16.msra.mxu0 %v2940
        %4500 = vmatprep.subr.bf16.mxu0 %v2945
        %4501 = vmatpush1.bf16.msra.mxu0 %v2944
        %4502 = vmatprep.subr.bf16.mxu0 %v2949
        %4503 = vmatpush1.bf16.msra.mxu0 %v2948
        %4504 = vmatprep.subr.bf16.mxu0 %v2953
        %4505 = vmatpush1.bf16.msra.mxu0 %v2952
        %4506 = vmatprep.subr.bf16.mxu0 %v2957
        %4507 = vmatpush1.bf16.msra.mxu0 %v2956
        %4508 = vmatprep.subr.bf16.mxu0 %v2961
        %4509 = vmatpush1.bf16.msra.mxu0 %v2960
        %4510 = vmatprep.mubr.bf16.mxu0 %v3314
        %4511 = vmatmul.mubr.bf16.gmra.mrb[0].mxu0 %v3312
        %v4512 = vpop.f32.mrb[0].mxu0
        %v4513 = vadd.f32 %v4472, %v4512
        %v4514 = vpop.f32.mrb[0].mxu0
        %v4515 = vadd.f32 %v4474, %v4514
        %v4516 = vpop.f32.mrb[0].mxu0
        %v4517 = vpop.f32.mrb[0].mxu0
        %4518 = vdwg.mxu0
        %4519 = vmatprep.subr.bf16.mxu0 %v1175
        %4520 = vmatpush1.bf16.msra.mxu0 %v1174
        %4521 = vmatprep.subr.bf16.mxu0 %v1179
        %4522 = vmatpush1.bf16.msra.mxu0 %v1178
        %4523 = vmatprep.subr.bf16.mxu0 %v1183
        %4524 = vmatpush1.bf16.msra.mxu0 %v1182
        %4525 = vmatprep.subr.bf16.mxu0 %v1187
        %4526 = vmatpush1.bf16.msra.mxu0 %v1186
        %4527 = vmatprep.subr.bf16.mxu0 %v1191
        %4528 = vmatpush1.bf16.msra.mxu0 %v1190
        %4529 = vmatprep.subr.bf16.mxu0 %v1195
        %4530 = vmatpush1.bf16.msra.mxu0 %v1194
        %4531 = vmatprep.subr.bf16.mxu0 %v1199
        %4532 = vmatpush1.bf16.msra.mxu0 %v1198
        %4533 = vmatprep.subr.bf16.mxu0 %v1203
        %4534 = vmatpush1.bf16.msra.mxu0 %v1202
        %4535 = vmatprep.subr.bf16.mxu0 %v1207
        %4536 = vmatpush1.bf16.msra.mxu0 %v1206
        %4537 = vmatprep.subr.bf16.mxu0 %v1211
        %4538 = vmatpush1.bf16.msra.mxu0 %v1210
        %4539 = vmatprep.subr.bf16.mxu0 %v1215
        %4540 = vmatpush1.bf16.msra.mxu0 %v1214
        %4541 = vmatprep.subr.bf16.mxu0 %v1219
        %4542 = vmatpush1.bf16.msra.mxu0 %v1218
        %4543 = vmatprep.subr.bf16.mxu0 %v1223
        %4544 = vmatpush1.bf16.msra.mxu0 %v1222
        %4545 = vmatprep.subr.bf16.mxu0 %v1227
        %4546 = vmatpush1.bf16.msra.mxu0 %v1226
        %4547 = vmatprep.subr.bf16.mxu0 %v1231
        %4548 = vmatpush1.bf16.msra.mxu0 %v1230
        %4549 = vmatprep.subr.bf16.mxu0 %v1235
        %4550 = vmatpush1.bf16.msra.mxu0 %v1234
        %4551 = vmatprep.mubr.bf16.mxu0 %v3009
        %4552 = vmatmul.mubr.bf16.gmra.mrb[0].mxu0 %v2995
        %v4553 = vpop.f32.mrb[0].mxu0
        %v4554 = vadd.f32 0.0, %v4553
        %v4555 = vpop.f32.mrb[0].mxu0
        %v4556 = vadd.f32 0.0, %v4555
        %v4557 = vpop.f32.mrb[0].mxu0
        %v4558 = vpop.f32.mrb[0].mxu0
        %4559 = vdwg.mxu0
        %4560 = vmatprep.subr.bf16.mxu0 %v1239
        %4561 = vmatpush1.bf16.msra.mxu0 %v1238
        %4562 = vmatprep.subr.bf16.mxu0 %v1243
        %4563 = vmatpush1.bf16.msra.mxu0 %v1242
        %4564 = vmatprep.subr.bf16.mxu0 %v1247
        %4565 = vmatpush1.bf16.msra.mxu0 %v1246
        %4566 = vmatprep.subr.bf16.mxu0 %v1251
        %4567 = vmatpush1.bf16.msra.mxu0 %v1250
        %4568 = vmatprep.subr.bf16.mxu0 %v1255
        %4569 = vmatpush1.bf16.msra.mxu0 %v1254
        %4570 = vmatprep.subr.bf16.mxu0 %v1259
        %4571 = vmatpush1.bf16.msra.mxu0 %v1258
        %4572 = vmatprep.subr.bf16.mxu0 %v1263
        %4573 = vmatpush1.bf16.msra.mxu0 %v1262
        %4574 = vmatprep.subr.bf16.mxu0 %v1267
        %4575 = vmatpush1.bf16.msra.mxu0 %v1266
        %4576 = vmatprep.subr.bf16.mxu0 %v1271
        %4577 = vmatpush1.bf16.msra.mxu0 %v1270
        %4578 = vmatprep.subr.bf16.mxu0 %v1275
        %4579 = vmatpush1.bf16.msra.mxu0 %v1274
        %4580 = vmatprep.subr.bf16.mxu0 %v1279
        %4581 = vmatpush1.bf16.msra.mxu0 %v1278
        %4582 = vmatprep.subr.bf16.mxu0 %v1283
        %4583 = vmatpush1.bf16.msra.mxu0 %v1282
        %4584 = vmatprep.subr.bf16.mxu0 %v1287
        %4585 = vmatpush1.bf16.msra.mxu0 %v1286
        %4586 = vmatprep.subr.bf16.mxu0 %v1291
        %4587 = vmatpush1.bf16.msra.mxu0 %v1290
        %4588 = vmatprep.subr.bf16.mxu0 %v1295
        %4589 = vmatpush1.bf16.msra.mxu0 %v1294
        %4590 = vmatprep.subr.bf16.mxu0 %v1299
        %4591 = vmatpush1.bf16.msra.mxu0 %v1298
        %4592 = vmatprep.mubr.bf16.mxu0 %v3019
        %4593 = vmatmul.mubr.bf16.gmra.mrb[0].mxu0 %v3017
        %v4594 = vpop.f32.mrb[0].mxu0
        %v4595 = vadd.f32 %v4554, %v4594
        %v4596 = vpop.f32.mrb[0].mxu0
        %v4597 = vadd.f32 %v4556, %v4596
        %v4598 = vpop.f32.mrb[0].mxu0
        %v4599 = vpop.f32.mrb[0].mxu0
        %4600 = vdwg.mxu0
        %4601 = vmatprep.subr.bf16.mxu0 %v1303
        %4602 = vmatpush1.bf16.msra.mxu0 %v1302
        %4603 = vmatprep.subr.bf16.mxu0 %v1307
        %4604 = vmatpush1.bf16.msra.mxu0 %v1306
        %4605 = vmatprep.subr.bf16.mxu0 %v1311
        %4606 = vmatpush1.bf16.msra.mxu0 %v1310
        %4607 = vmatprep.subr.bf16.mxu0 %v1315
        %4608 = vmatpush1.bf16.msra.mxu0 %v1314
        %4609 = vmatprep.subr.bf16.mxu0 %v1319
        %4610 = vmatpush1.bf16.msra.mxu0 %v1318
        %4611 = vmatprep.subr.bf16.mxu0 %v1323
        %4612 = vmatpush1.bf16.msra.mxu0 %v1322
        %4613 = vmatprep.subr.bf16.mxu0 %v1327
        %4614 = vmatpush1.bf16.msra.mxu0 %v1326
        %4615 = vmatprep.subr.bf16.mxu0 %v1331
        %4616 = vmatpush1.bf16.msra.mxu0 %v1330
        %4617 = vmatprep.subr.bf16.mxu0 %v1335
        %4618 = vmatpush1.bf16.msra.mxu0 %v1334
        %4619 = vmatprep.subr.bf16.mxu0 %v1339
        %4620 = vmatpush1.bf16.msra.mxu0 %v1338
        %4621 = vmatprep.subr.bf16.mxu0 %v1343
        %4622 = vmatpush1.bf16.msra.mxu0 %v1342
        %4623 = vmatprep.subr.bf16.mxu0 %v1347
        %4624 = vmatpush1.bf16.msra.mxu0 %v1346
        %4625 = vmatprep.subr.bf16.mxu0 %v1351
        %4626 = vmatpush1.bf16.msra.mxu0 %v1350
        %4627 = vmatprep.subr.bf16.mxu0 %v1355
        %4628 = vmatpush1.bf16.msra.mxu0 %v1354
        %4629 = vmatprep.subr.bf16.mxu0 %v1359
        %4630 = vmatpush1.bf16.msra.mxu0 %v1358
        %4631 = vmatprep.subr.bf16.mxu0 %v1363
        %4632 = vmatpush1.bf16.msra.mxu0 %v1362
        %4633 = vmatprep.mubr.bf16.mxu0 %v3016
        %4634 = vmatmul.mubr.bf16.gmra.mrb[0].mxu0 %v3002
        %v4635 = vpop.f32.mrb[0].mxu0
        %v4636 = vadd.f32 %v4595, %v4635
        %v4637 = vpop.f32.mrb[0].mxu0
        %v4638 = vadd.f32 %v4597, %v4637
        %v4639 = vpop.f32.mrb[0].mxu0
        %v4640 = vpop.f32.mrb[0].mxu0
        %4641 = vdwg.mxu0
        %4642 = vmatprep.subr.bf16.mxu0 %v1367
        %4643 = vmatpush1.bf16.msra.mxu0 %v1366
        %4644 = vmatprep.subr.bf16.mxu0 %v1371
        %4645 = vmatpush1.bf16.msra.mxu0 %v1370
        %4646 = vmatprep.subr.bf16.mxu0 %v1375
        %4647 = vmatpush1.bf16.msra.mxu0 %v1374
        %4648 = vmatprep.subr.bf16.mxu0 %v1379
        %4649 = vmatpush1.bf16.msra.mxu0 %v1378
        %4650 = vmatprep.subr.bf16.mxu0 %v1383
        %4651 = vmatpush1.bf16.msra.mxu0 %v1382
        %4652 = vmatprep.subr.bf16.mxu0 %v1387
        %4653 = vmatpush1.bf16.msra.mxu0 %v1386
        %4654 = vmatprep.subr.bf16.mxu0 %v1391
        %4655 = vmatpush1.bf16.msra.mxu0 %v1390
        %4656 = vmatprep.subr.bf16.mxu0 %v1395
        %4657 = vmatpush1.bf16.msra.mxu0 %v1394
        %4658 = vmatprep.subr.bf16.mxu0 %v1399
        %4659 = vmatpush1.bf16.msra.mxu0 %v1398
        %4660 = vmatprep.subr.bf16.mxu0 %v1403
        %4661 = vmatpush1.bf16.msra.mxu0 %v1402
        %4662 = vmatprep.subr.bf16.mxu0 %v1407
        %4663 = vmatpush1.bf16.msra.mxu0 %v1406
        %4664 = vmatprep.subr.bf16.mxu0 %v1411
        %4665 = vmatpush1.bf16.msra.mxu0 %v1410
        %4666 = vmatprep.subr.bf16.mxu0 %v1415
        %4667 = vmatpush1.bf16.msra.mxu0 %v1414
        %4668 = vmatprep.subr.bf16.mxu0 %v1419
        %4669 = vmatpush1.bf16.msra.mxu0 %v1418
        %4670 = vmatprep.subr.bf16.mxu0 %v1423
        %4671 = vmatpush1.bf16.msra.mxu0 %v1422
        %4672 = vmatprep.subr.bf16.mxu0 %v1427
        %4673 = vmatpush1.bf16.msra.mxu0 %v1426
        %4674 = vmatprep.mubr.bf16.mxu0 %v3020
        %4675 = vmatmul.mubr.bf16.gmra.mrb[0].mxu0 %v3018
        %v4676 = vpop.f32.mrb[0].mxu0
        %v4677 = vadd.f32 %v4636, %v4676
        %v4678 = vpop.f32.mrb[0].mxu0
        %v4679 = vadd.f32 %v4638, %v4678
        %v4680 = vpop.f32.mrb[0].mxu0
        %v4681 = vpop.f32.mrb[0].mxu0
        %4682 = vdwg.mxu0
        %4683 = vmatprep.subr.bf16.mxu0 %v1431
        %4684 = vmatpush1.bf16.msra.mxu0 %v1430
        %4685 = vmatprep.subr.bf16.mxu0 %v1435
        %4686 = vmatpush1.bf16.msra.mxu0 %v1434
        %4687 = vmatprep.subr.bf16.mxu0 %v1439
        %4688 = vmatpush1.bf16.msra.mxu0 %v1438
        %4689 = vmatprep.subr.bf16.mxu0 %v1443
        %4690 = vmatpush1.bf16.msra.mxu0 %v1442
        %4691 = vmatprep.subr.bf16.mxu0 %v1447
        %4692 = vmatpush1.bf16.msra.mxu0 %v1446
        %4693 = vmatprep.subr.bf16.mxu0 %v1451
        %4694 = vmatpush1.bf16.msra.mxu0 %v1450
        %4695 = vmatprep.subr.bf16.mxu0 %v1455
        %4696 = vmatpush1.bf16.msra.mxu0 %v1454
        %4697 = vmatprep.subr.bf16.mxu0 %v1459
        %4698 = vmatpush1.bf16.msra.mxu0 %v1458
        %4699 = vmatprep.subr.bf16.mxu0 %v1463
        %4700 = vmatpush1.bf16.msra.mxu0 %v1462
        %4701 = vmatprep.subr.bf16.mxu0 %v1467
        %4702 = vmatpush1.bf16.msra.mxu0 %v1466
        %4703 = vmatprep.subr.bf16.mxu0 %v1471
        %4704 = vmatpush1.bf16.msra.mxu0 %v1470
        %4705 = vmatprep.subr.bf16.mxu0 %v1475
        %4706 = vmatpush1.bf16.msra.mxu0 %v1474
        %4707 = vmatprep.subr.bf16.mxu0 %v1479
        %4708 = vmatpush1.bf16.msra.mxu0 %v1478
        %4709 = vmatprep.subr.bf16.mxu0 %v1483
        %4710 = vmatpush1.bf16.msra.mxu0 %v1482
        %4711 = vmatprep.subr.bf16.mxu0 %v1487
        %4712 = vmatpush1.bf16.msra.mxu0 %v1486
        %4713 = vmatprep.subr.bf16.mxu0 %v1491
        %4714 = vmatpush1.bf16.msra.mxu0 %v1490
        %4715 = vmatprep.mubr.bf16.mxu0 %v3058
        %4716 = vmatmul.mubr.bf16.gmra.mrb[0].mxu0 %v3044
        %v4717 = vpop.f32.mrb[0].mxu0
        %v4718 = vadd.f32 %v4677, %v4717
        %v4719 = vpop.f32.mrb[0].mxu0
        %v4720 = vadd.f32 %v4679, %v4719
        %v4721 = vpop.f32.mrb[0].mxu0
        %v4722 = vpop.f32.mrb[0].mxu0
        %4723 = vdwg.mxu0
        %4724 = vmatprep.subr.bf16.mxu0 %v1495
        %4725 = vmatpush1.bf16.msra.mxu0 %v1494
        %4726 = vmatprep.subr.bf16.mxu0 %v1499
        %4727 = vmatpush1.bf16.msra.mxu0 %v1498
        %4728 = vmatprep.subr.bf16.mxu0 %v1503
        %4729 = vmatpush1.bf16.msra.mxu0 %v1502
        %4730 = vmatprep.subr.bf16.mxu0 %v1507
        %4731 = vmatpush1.bf16.msra.mxu0 %v1506
        %4732 = vmatprep.subr.bf16.mxu0 %v1511
        %4733 = vmatpush1.bf16.msra.mxu0 %v1510
        %4734 = vmatprep.subr.bf16.mxu0 %v1515
        %4735 = vmatpush1.bf16.msra.mxu0 %v1514
        %4736 = vmatprep.subr.bf16.mxu0 %v1519
        %4737 = vmatpush1.bf16.msra.mxu0 %v1518
        %4738 = vmatprep.subr.bf16.mxu0 %v1523
        %4739 = vmatpush1.bf16.msra.mxu0 %v1522
        %4740 = vmatprep.subr.bf16.mxu0 %v1527
        %4741 = vmatpush1.bf16.msra.mxu0 %v1526
        %4742 = vmatprep.subr.bf16.mxu0 %v1531
        %4743 = vmatpush1.bf16.msra.mxu0 %v1530
        %4744 = vmatprep.subr.bf16.mxu0 %v1535
        %4745 = vmatpush1.bf16.msra.mxu0 %v1534
        %4746 = vmatprep.subr.bf16.mxu0 %v1539
        %4747 = vmatpush1.bf16.msra.mxu0 %v1538
        %4748 = vmatprep.subr.bf16.mxu0 %v1543
        %4749 = vmatpush1.bf16.msra.mxu0 %v1542
        %4750 = vmatprep.subr.bf16.mxu0 %v1547
        %4751 = vmatpush1.bf16.msra.mxu0 %v1546
        %4752 = vmatprep.subr.bf16.mxu0 %v1551
        %4753 = vmatpush1.bf16.msra.mxu0 %v1550
        %4754 = vmatprep.subr.bf16.mxu0 %v1555
        %4755 = vmatpush1.bf16.msra.mxu0 %v1554
        %4756 = vmatprep.mubr.bf16.mxu0 %v3068
        %4757 = vmatmul.mubr.bf16.gmra.mrb[0].mxu0 %v3066
        %v4758 = vpop.f32.mrb[0].mxu0
        %v4759 = vadd.f32 %v4718, %v4758
        %v4760 = vpop.f32.mrb[0].mxu0
        %v4761 = vadd.f32 %v4720, %v4760
        %v4762 = vpop.f32.mrb[0].mxu0
        %v4763 = vpop.f32.mrb[0].mxu0
        %4764 = vdwg.mxu0
        %4765 = vmatprep.subr.bf16.mxu0 %v1559
        %4766 = vmatpush1.bf16.msra.mxu0 %v1558
        %4767 = vmatprep.subr.bf16.mxu0 %v1563
        %4768 = vmatpush1.bf16.msra.mxu0 %v1562
        %4769 = vmatprep.subr.bf16.mxu0 %v1567
        %4770 = vmatpush1.bf16.msra.mxu0 %v1566
        %4771 = vmatprep.subr.bf16.mxu0 %v1571
        %4772 = vmatpush1.bf16.msra.mxu0 %v1570
        %4773 = vmatprep.subr.bf16.mxu0 %v1575
        %4774 = vmatpush1.bf16.msra.mxu0 %v1574
        %4775 = vmatprep.subr.bf16.mxu0 %v1579
        %4776 = vmatpush1.bf16.msra.mxu0 %v1578
        %4777 = vmatprep.subr.bf16.mxu0 %v1583
        %4778 = vmatpush1.bf16.msra.mxu0 %v1582
        %4779 = vmatprep.subr.bf16.mxu0 %v1587
        %4780 = vmatpush1.bf16.msra.mxu0 %v1586
        %4781 = vmatprep.subr.bf16.mxu0 %v1591
        %4782 = vmatpush1.bf16.msra.mxu0 %v1590
        %4783 = vmatprep.subr.bf16.mxu0 %v1595
        %4784 = vmatpush1.bf16.msra.mxu0 %v1594
        %4785 = vmatprep.subr.bf16.mxu0 %v1599
        %4786 = vmatpush1.bf16.msra.mxu0 %v1598
        %4787 = vmatprep.subr.bf16.mxu0 %v1603
        %4788 = vmatpush1.bf16.msra.mxu0 %v1602
        %4789 = vmatprep.subr.bf16.mxu0 %v1607
        %4790 = vmatpush1.bf16.msra.mxu0 %v1606
        %4791 = vmatprep.subr.bf16.mxu0 %v1611
        %4792 = vmatpush1.bf16.msra.mxu0 %v1610
        %4793 = vmatprep.subr.bf16.mxu0 %v1615
        %4794 = vmatpush1.bf16.msra.mxu0 %v1614
        %4795 = vmatprep.subr.bf16.mxu0 %v1619
        %4796 = vmatpush1.bf16.msra.mxu0 %v1618
        %4797 = vmatprep.mubr.bf16.mxu0 %v3065
        %4798 = vmatmul.mubr.bf16.gmra.mrb[0].mxu0 %v3051
        %v4799 = vpop.f32.mrb[0].mxu0
        %v4800 = vadd.f32 %v4759, %v4799
        %v4801 = vpop.f32.mrb[0].mxu0
        %v4802 = vadd.f32 %v4761, %v4801
        %v4803 = vpop.f32.mrb[0].mxu0
        %v4804 = vpop.f32.mrb[0].mxu0
        %4805 = vdwg.mxu0
        %4806 = vmatprep.subr.bf16.mxu0 %v1623
        %4807 = vmatpush1.bf16.msra.mxu0 %v1622
        %4808 = vmatprep.subr.bf16.mxu0 %v1627
        %4809 = vmatpush1.bf16.msra.mxu0 %v1626
        %4810 = vmatprep.subr.bf16.mxu0 %v1631
        %4811 = vmatpush1.bf16.msra.mxu0 %v1630
        %4812 = vmatprep.subr.bf16.mxu0 %v1635
        %4813 = vmatpush1.bf16.msra.mxu0 %v1634
        %4814 = vmatprep.subr.bf16.mxu0 %v1639
        %4815 = vmatpush1.bf16.msra.mxu0 %v1638
        %4816 = vmatprep.subr.bf16.mxu0 %v1643
        %4817 = vmatpush1.bf16.msra.mxu0 %v1642
        %4818 = vmatprep.subr.bf16.mxu0 %v1647
        %4819 = vmatpush1.bf16.msra.mxu0 %v1646
        %4820 = vmatprep.subr.bf16.mxu0 %v1651
        %4821 = vmatpush1.bf16.msra.mxu0 %v1650
        %4822 = vmatprep.subr.bf16.mxu0 %v1655
        %4823 = vmatpush1.bf16.msra.mxu0 %v1654
        %4824 = vmatprep.subr.bf16.mxu0 %v1659
        %4825 = vmatpush1.bf16.msra.mxu0 %v1658
        %4826 = vmatprep.subr.bf16.mxu0 %v1663
        %4827 = vmatpush1.bf16.msra.mxu0 %v1662
        %4828 = vmatprep.subr.bf16.mxu0 %v1667
        %4829 = vmatpush1.bf16.msra.mxu0 %v1666
        %4830 = vmatprep.subr.bf16.mxu0 %v1671
        %4831 = vmatpush1.bf16.msra.mxu0 %v1670
        %4832 = vmatprep.subr.bf16.mxu0 %v1675
        %4833 = vmatpush1.bf16.msra.mxu0 %v1674
        %4834 = vmatprep.subr.bf16.mxu0 %v1679
        %4835 = vmatpush1.bf16.msra.mxu0 %v1678
        %4836 = vmatprep.subr.bf16.mxu0 %v1683
        %4837 = vmatpush1.bf16.msra.mxu0 %v1682
        %4838 = vmatprep.mubr.bf16.mxu0 %v3069
        %4839 = vmatmul.mubr.bf16.gmra.mrb[0].mxu0 %v3067
        %v4840 = vpop.f32.mrb[0].mxu0
        %v4841 = vadd.f32 %v4800, %v4840
        %v4842 = vpop.f32.mrb[0].mxu0
        %v4843 = vadd.f32 %v4802, %v4842
        %v4844 = vpop.f32.mrb[0].mxu0
        %v4845 = vpop.f32.mrb[0].mxu0
        %4846 = vdwg.mxu0
        %4847 = vmatprep.subr.bf16.mxu0 %v1687
        %4848 = vmatpush1.bf16.msra.mxu0 %v1686
        %4849 = vmatprep.subr.bf16.mxu0 %v1691
        %4850 = vmatpush1.bf16.msra.mxu0 %v1690
        %4851 = vmatprep.subr.bf16.mxu0 %v1695
        %4852 = vmatpush1.bf16.msra.mxu0 %v1694
        %4853 = vmatprep.subr.bf16.mxu0 %v1699
        %4854 = vmatpush1.bf16.msra.mxu0 %v1698
        %4855 = vmatprep.subr.bf16.mxu0 %v1703
        %4856 = vmatpush1.bf16.msra.mxu0 %v1702
        %4857 = vmatprep.subr.bf16.mxu0 %v1707
        %4858 = vmatpush1.bf16.msra.mxu0 %v1706
        %4859 = vmatprep.subr.bf16.mxu0 %v1711
        %4860 = vmatpush1.bf16.msra.mxu0 %v1710
        %4861 = vmatprep.subr.bf16.mxu0 %v1715
        %4862 = vmatpush1.bf16.msra.mxu0 %v1714
        %4863 = vmatprep.subr.bf16.mxu0 %v1719
        %4864 = vmatpush1.bf16.msra.mxu0 %v1718
        %4865 = vmatprep.subr.bf16.mxu0 %v1723
        %4866 = vmatpush1.bf16.msra.mxu0 %v1722
        %4867 = vmatprep.subr.bf16.mxu0 %v1727
        %4868 = vmatpush1.bf16.msra.mxu0 %v1726
        %4869 = vmatprep.subr.bf16.mxu0 %v1731
        %4870 = vmatpush1.bf16.msra.mxu0 %v1730
        %4871 = vmatprep.subr.bf16.mxu0 %v1735
        %4872 = vmatpush1.bf16.msra.mxu0 %v1734
        %4873 = vmatprep.subr.bf16.mxu0 %v1739
        %4874 = vmatpush1.bf16.msra.mxu0 %v1738
        %4875 = vmatprep.subr.bf16.mxu0 %v1743
        %4876 = vmatpush1.bf16.msra.mxu0 %v1742
        %4877 = vmatprep.subr.bf16.mxu0 %v1747
        %4878 = vmatpush1.bf16.msra.mxu0 %v1746
        %4879 = vmatprep.mubr.bf16.mxu0 %v3107
        %4880 = vmatmul.mubr.bf16.gmra.mrb[0].mxu0 %v3093
        %v4881 = vpop.f32.mrb[0].mxu0
        %v4882 = vadd.f32 %v4841, %v4881
        %v4883 = vpop.f32.mrb[0].mxu0
        %v4884 = vadd.f32 %v4843, %v4883
        %v4885 = vpop.f32.mrb[0].mxu0
        %v4886 = vpop.f32.mrb[0].mxu0
        %4887 = vdwg.mxu0
        %4888 = vmatprep.subr.bf16.mxu0 %v1751
        %4889 = vmatpush1.bf16.msra.mxu0 %v1750
        %4890 = vmatprep.subr.bf16.mxu0 %v1755
        %4891 = vmatpush1.bf16.msra.mxu0 %v1754
        %4892 = vmatprep.subr.bf16.mxu0 %v1759
        %4893 = vmatpush1.bf16.msra.mxu0 %v1758
        %4894 = vmatprep.subr.bf16.mxu0 %v1763
        %4895 = vmatpush1.bf16.msra.mxu0 %v1762
        %4896 = vmatprep.subr.bf16.mxu0 %v1767
        %4897 = vmatpush1.bf16.msra.mxu0 %v1766
        %4898 = vmatprep.subr.bf16.mxu0 %v1771
        %4899 = vmatpush1.bf16.msra.mxu0 %v1770
        %4900 = vmatprep.subr.bf16.mxu0 %v1775
        %4901 = vmatpush1.bf16.msra.mxu0 %v1774
        %4902 = vmatprep.subr.bf16.mxu0 %v1779
        %4903 = vmatpush1.bf16.msra.mxu0 %v1778
        %4904 = vmatprep.subr.bf16.mxu0 %v1783
        %4905 = vmatpush1.bf16.msra.mxu0 %v1782
        %4906 = vmatprep.subr.bf16.mxu0 %v1787
        %4907 = vmatpush1.bf16.msra.mxu0 %v1786
        %4908 = vmatprep.subr.bf16.mxu0 %v1791
        %4909 = vmatpush1.bf16.msra.mxu0 %v1790
        %4910 = vmatprep.subr.bf16.mxu0 %v1795
        %4911 = vmatpush1.bf16.msra.mxu0 %v1794
        %4912 = vmatprep.subr.bf16.mxu0 %v1799
        %4913 = vmatpush1.bf16.msra.mxu0 %v1798
        %4914 = vmatprep.subr.bf16.mxu0 %v1803
        %4915 = vmatpush1.bf16.msra.mxu0 %v1802
        %4916 = vmatprep.subr.bf16.mxu0 %v1807
        %4917 = vmatpush1.bf16.msra.mxu0 %v1806
        %4918 = vmatprep.subr.bf16.mxu0 %v1811
        %4919 = vmatpush1.bf16.msra.mxu0 %v1810
        %4920 = vmatprep.mubr.bf16.mxu0 %v3117
        %4921 = vmatmul.mubr.bf16.gmra.mrb[0].mxu0 %v3115
        %v4922 = vpop.f32.mrb[0].mxu0
        %v4923 = vadd.f32 %v4882, %v4922
        %v4924 = vpop.f32.mrb[0].mxu0
        %v4925 = vadd.f32 %v4884, %v4924
        %v4926 = vpop.f32.mrb[0].mxu0
        %v4927 = vpop.f32.mrb[0].mxu0
        %4928 = vdwg.mxu0
        %4929 = vmatprep.subr.bf16.mxu0 %v1815
        %4930 = vmatpush1.bf16.msra.mxu0 %v1814
        %4931 = vmatprep.subr.bf16.mxu0 %v1819
        %4932 = vmatpush1.bf16.msra.mxu0 %v1818
        %4933 = vmatprep.subr.bf16.mxu0 %v1823
        %4934 = vmatpush1.bf16.msra.mxu0 %v1822
        %4935 = vmatprep.subr.bf16.mxu0 %v1827
        %4936 = vmatpush1.bf16.msra.mxu0 %v1826
        %4937 = vmatprep.subr.bf16.mxu0 %v1831
        %4938 = vmatpush1.bf16.msra.mxu0 %v1830
        %4939 = vmatprep.subr.bf16.mxu0 %v1835
        %4940 = vmatpush1.bf16.msra.mxu0 %v1834
        %4941 = vmatprep.subr.bf16.mxu0 %v1839
        %4942 = vmatpush1.bf16.msra.mxu0 %v1838
        %4943 = vmatprep.subr.bf16.mxu0 %v1843
        %4944 = vmatpush1.bf16.msra.mxu0 %v1842
        %4945 = vmatprep.subr.bf16.mxu0 %v1847
        %4946 = vmatpush1.bf16.msra.mxu0 %v1846
        %4947 = vmatprep.subr.bf16.mxu0 %v1851
        %4948 = vmatpush1.bf16.msra.mxu0 %v1850
        %4949 = vmatprep.subr.bf16.mxu0 %v1855
        %4950 = vmatpush1.bf16.msra.mxu0 %v1854
        %4951 = vmatprep.subr.bf16.mxu0 %v1859
        %4952 = vmatpush1.bf16.msra.mxu0 %v1858
        %4953 = vmatprep.subr.bf16.mxu0 %v1863
        %4954 = vmatpush1.bf16.msra.mxu0 %v1862
        %4955 = vmatprep.subr.bf16.mxu0 %v1867
        %4956 = vmatpush1.bf16.msra.mxu0 %v1866
        %4957 = vmatprep.subr.bf16.mxu0 %v1871
        %4958 = vmatpush1.bf16.msra.mxu0 %v1870
        %4959 = vmatprep.subr.bf16.mxu0 %v1875
        %4960 = vmatpush1.bf16.msra.mxu0 %v1874
        %4961 = vmatprep.mubr.bf16.mxu0 %v3114
        %4962 = vmatmul.mubr.bf16.gmra.mrb[0].mxu0 %v3100
        %v4963 = vpop.f32.mrb[0].mxu0
        %v4964 = vadd.f32 %v4923, %v4963
        %v4965 = vpop.f32.mrb[0].mxu0
        %v4966 = vadd.f32 %v4925, %v4965
        %v4967 = vpop.f32.mrb[0].mxu0
        %v4968 = vpop.f32.mrb[0].mxu0
        %4969 = vdwg.mxu0
        %4970 = vmatprep.subr.bf16.mxu0 %v1879
        %4971 = vmatpush1.bf16.msra.mxu0 %v1878
        %4972 = vmatprep.subr.bf16.mxu0 %v1883
        %4973 = vmatpush1.bf16.msra.mxu0 %v1882
        %4974 = vmatprep.subr.bf16.mxu0 %v1887
        %4975 = vmatpush1.bf16.msra.mxu0 %v1886
        %4976 = vmatprep.subr.bf16.mxu0 %v1891
        %4977 = vmatpush1.bf16.msra.mxu0 %v1890
        %4978 = vmatprep.subr.bf16.mxu0 %v1895
        %4979 = vmatpush1.bf16.msra.mxu0 %v1894
        %4980 = vmatprep.subr.bf16.mxu0 %v1899
        %4981 = vmatpush1.bf16.msra.mxu0 %v1898
        %4982 = vmatprep.subr.bf16.mxu0 %v1903
        %4983 = vmatpush1.bf16.msra.mxu0 %v1902
        %4984 = vmatprep.subr.bf16.mxu0 %v1907
        %4985 = vmatpush1.bf16.msra.mxu0 %v1906
        %4986 = vmatprep.subr.bf16.mxu0 %v1911
        %4987 = vmatpush1.bf16.msra.mxu0 %v1910
        %4988 = vmatprep.subr.bf16.mxu0 %v1915
        %4989 = vmatpush1.bf16.msra.mxu0 %v1914
        %4990 = vmatprep.subr.bf16.mxu0 %v1919
        %4991 = vmatpush1.bf16.msra.mxu0 %v1918
        %4992 = vmatprep.subr.bf16.mxu0 %v1923
        %4993 = vmatpush1.bf16.msra.mxu0 %v1922
        %4994 = vmatprep.subr.bf16.mxu0 %v1927
        %4995 = vmatpush1.bf16.msra.mxu0 %v1926
        %4996 = vmatprep.subr.bf16.mxu0 %v1931
        %4997 = vmatpush1.bf16.msra.mxu0 %v1930
        %4998 = vmatprep.subr.bf16.mxu0 %v1935
        %4999 = vmatpush1.bf16.msra.mxu0 %v1934
        %5000 = vmatprep.subr.bf16.mxu0 %v1939
        %5001 = vmatpush1.bf16.msra.mxu0 %v1938
        %5002 = vmatprep.mubr.bf16.mxu0 %v3118
        %5003 = vmatmul.mubr.bf16.gmra.mrb[0].mxu0 %v3116
        %v5004 = vpop.f32.mrb[0].mxu0
        %v5005 = vadd.f32 %v4964, %v5004
        %v5006 = vpop.f32.mrb[0].mxu0
        %v5007 = vadd.f32 %v4966, %v5006
        %v5008 = vpop.f32.mrb[0].mxu0
        %v5009 = vpop.f32.mrb[0].mxu0
        %5010 = vdwg.mxu0
        %5011 = vmatprep.subr.bf16.mxu0 %v1943
        %5012 = vmatpush1.bf16.msra.mxu0 %v1942
        %5013 = vmatprep.subr.bf16.mxu0 %v1947
        %5014 = vmatpush1.bf16.msra.mxu0 %v1946
        %5015 = vmatprep.subr.bf16.mxu0 %v1951
        %5016 = vmatpush1.bf16.msra.mxu0 %v1950
        %5017 = vmatprep.subr.bf16.mxu0 %v1955
        %5018 = vmatpush1.bf16.msra.mxu0 %v1954
        %5019 = vmatprep.subr.bf16.mxu0 %v1959
        %5020 = vmatpush1.bf16.msra.mxu0 %v1958
        %5021 = vmatprep.subr.bf16.mxu0 %v1963
        %5022 = vmatpush1.bf16.msra.mxu0 %v1962
        %5023 = vmatprep.subr.bf16.mxu0 %v1967
        %5024 = vmatpush1.bf16.msra.mxu0 %v1966
        %5025 = vmatprep.subr.bf16.mxu0 %v1971
        %5026 = vmatpush1.bf16.msra.mxu0 %v1970
        %5027 = vmatprep.subr.bf16.mxu0 %v1975
        %5028 = vmatpush1.bf16.msra.mxu0 %v1974
        %5029 = vmatprep.subr.bf16.mxu0 %v1979
        %5030 = vmatpush1.bf16.msra.mxu0 %v1978
        %5031 = vmatprep.subr.bf16.mxu0 %v1983
        %5032 = vmatpush1.bf16.msra.mxu0 %v1982
        %5033 = vmatprep.subr.bf16.mxu0 %v1987
        %5034 = vmatpush1.bf16.msra.mxu0 %v1986
        %5035 = vmatprep.subr.bf16.mxu0 %v1991
        %5036 = vmatpush1.bf16.msra.mxu0 %v1990
        %5037 = vmatprep.subr.bf16.mxu0 %v1995
        %5038 = vmatpush1.bf16.msra.mxu0 %v1994
        %5039 = vmatprep.subr.bf16.mxu0 %v1999
        %5040 = vmatpush1.bf16.msra.mxu0 %v1998
        %5041 = vmatprep.subr.bf16.mxu0 %v2003
        %5042 = vmatpush1.bf16.msra.mxu0 %v2002
        %5043 = vmatprep.mubr.bf16.mxu0 %v3156
        %5044 = vmatmul.mubr.bf16.gmra.mrb[0].mxu0 %v3142
        %v5045 = vpop.f32.mrb[0].mxu0
        %v5046 = vadd.f32 %v5005, %v5045
        %v5047 = vpop.f32.mrb[0].mxu0
        %v5048 = vadd.f32 %v5007, %v5047
        %v5049 = vpop.f32.mrb[0].mxu0
        %v5050 = vpop.f32.mrb[0].mxu0
        %5051 = vdwg.mxu0
        %5052 = vmatprep.subr.bf16.mxu0 %v2007
        %5053 = vmatpush1.bf16.msra.mxu0 %v2006
        %5054 = vmatprep.subr.bf16.mxu0 %v2011
        %5055 = vmatpush1.bf16.msra.mxu0 %v2010
        %5056 = vmatprep.subr.bf16.mxu0 %v2015
        %5057 = vmatpush1.bf16.msra.mxu0 %v2014
        %5058 = vmatprep.subr.bf16.mxu0 %v2019
        %5059 = vmatpush1.bf16.msra.mxu0 %v2018
        %5060 = vmatprep.subr.bf16.mxu0 %v2023
        %5061 = vmatpush1.bf16.msra.mxu0 %v2022
        %5062 = vmatprep.subr.bf16.mxu0 %v2027
        %5063 = vmatpush1.bf16.msra.mxu0 %v2026
        %5064 = vmatprep.subr.bf16.mxu0 %v2031
        %5065 = vmatpush1.bf16.msra.mxu0 %v2030
        %5066 = vmatprep.subr.bf16.mxu0 %v2035
        %5067 = vmatpush1.bf16.msra.mxu0 %v2034
        %5068 = vmatprep.subr.bf16.mxu0 %v2039
        %5069 = vmatpush1.bf16.msra.mxu0 %v2038
        %5070 = vmatprep.subr.bf16.mxu0 %v2043
        %5071 = vmatpush1.bf16.msra.mxu0 %v2042
        %5072 = vmatprep.subr.bf16.mxu0 %v2047
        %5073 = vmatpush1.bf16.msra.mxu0 %v2046
        %5074 = vmatprep.subr.bf16.mxu0 %v2051
        %5075 = vmatpush1.bf16.msra.mxu0 %v2050
        %5076 = vmatprep.subr.bf16.mxu0 %v2055
        %5077 = vmatpush1.bf16.msra.mxu0 %v2054
        %5078 = vmatprep.subr.bf16.mxu0 %v2059
        %5079 = vmatpush1.bf16.msra.mxu0 %v2058
        %5080 = vmatprep.subr.bf16.mxu0 %v2063
        %5081 = vmatpush1.bf16.msra.mxu0 %v2062
        %5082 = vmatprep.subr.bf16.mxu0 %v2067
        %5083 = vmatpush1.bf16.msra.mxu0 %v2066
        %5084 = vmatprep.mubr.bf16.mxu0 %v3166
        %5085 = vmatmul.mubr.bf16.gmra.mrb[0].mxu0 %v3164
        %v5086 = vpop.f32.mrb[0].mxu0
        %v5087 = vadd.f32 %v5046, %v5086
        %v5088 = vpop.f32.mrb[0].mxu0
        %v5089 = vadd.f32 %v5048, %v5088
        %v5090 = vpop.f32.mrb[0].mxu0
        %v5091 = vpop.f32.mrb[0].mxu0
        %5092 = vdwg.mxu0
        %5093 = vmatprep.subr.bf16.mxu0 %v2071
        %5094 = vmatpush1.bf16.msra.mxu0 %v2070
        %5095 = vmatprep.subr.bf16.mxu0 %v2075
        %5096 = vmatpush1.bf16.msra.mxu0 %v2074
        %5097 = vmatprep.subr.bf16.mxu0 %v2079
        %5098 = vmatpush1.bf16.msra.mxu0 %v2078
        %5099 = vmatprep.subr.bf16.mxu0 %v2083
        %5100 = vmatpush1.bf16.msra.mxu0 %v2082
        %5101 = vmatprep.subr.bf16.mxu0 %v2087
        %5102 = vmatpush1.bf16.msra.mxu0 %v2086
        %5103 = vmatprep.subr.bf16.mxu0 %v2091
        %5104 = vmatpush1.bf16.msra.mxu0 %v2090
        %5105 = vmatprep.subr.bf16.mxu0 %v2095
        %5106 = vmatpush1.bf16.msra.mxu0 %v2094
        %5107 = vmatprep.subr.bf16.mxu0 %v2099
        %5108 = vmatpush1.bf16.msra.mxu0 %v2098
        %5109 = vmatprep.subr.bf16.mxu0 %v2103
        %5110 = vmatpush1.bf16.msra.mxu0 %v2102
        %5111 = vmatprep.subr.bf16.mxu0 %v2107
        %5112 = vmatpush1.bf16.msra.mxu0 %v2106
        %5113 = vmatprep.subr.bf16.mxu0 %v2111
        %5114 = vmatpush1.bf16.msra.mxu0 %v2110
        %5115 = vmatprep.subr.bf16.mxu0 %v2115
        %5116 = vmatpush1.bf16.msra.mxu0 %v2114
        %5117 = vmatprep.subr.bf16.mxu0 %v2119
        %5118 = vmatpush1.bf16.msra.mxu0 %v2118
        %5119 = vmatprep.subr.bf16.mxu0 %v2123
        %5120 = vmatpush1.bf16.msra.mxu0 %v2122
        %5121 = vmatprep.subr.bf16.mxu0 %v2127
        %5122 = vmatpush1.bf16.msra.mxu0 %v2126
        %5123 = vmatprep.subr.bf16.mxu0 %v2131
        %5124 = vmatpush1.bf16.msra.mxu0 %v2130
        %5125 = vmatprep.mubr.bf16.mxu0 %v3163
        %5126 = vmatmul.mubr.bf16.gmra.mrb[0].mxu0 %v3149
        %v5127 = vpop.f32.mrb[0].mxu0
        %v5128 = vadd.f32 %v5087, %v5127
        %v5129 = vpop.f32.mrb[0].mxu0
        %v5130 = vadd.f32 %v5089, %v5129
        %v5131 = vpop.f32.mrb[0].mxu0
        %v5132 = vpop.f32.mrb[0].mxu0
        %5133 = vdwg.mxu0
        %5134 = vmatprep.subr.bf16.mxu0 %v2135
        %5135 = vmatpush1.bf16.msra.mxu0 %v2134
        %5136 = vmatprep.subr.bf16.mxu0 %v2139
        %5137 = vmatpush1.bf16.msra.mxu0 %v2138
        %5138 = vmatprep.subr.bf16.mxu0 %v2143
        %5139 = vmatpush1.bf16.msra.mxu0 %v2142
        %5140 = vmatprep.subr.bf16.mxu0 %v2147
        %5141 = vmatpush1.bf16.msra.mxu0 %v2146
        %5142 = vmatprep.subr.bf16.mxu0 %v2151
        %5143 = vmatpush1.bf16.msra.mxu0 %v2150
        %5144 = vmatprep.subr.bf16.mxu0 %v2155
        %5145 = vmatpush1.bf16.msra.mxu0 %v2154
        %5146 = vmatprep.subr.bf16.mxu0 %v2159
        %5147 = vmatpush1.bf16.msra.mxu0 %v2158
        %5148 = vmatprep.subr.bf16.mxu0 %v2163
        %5149 = vmatpush1.bf16.msra.mxu0 %v2162
        %5150 = vmatprep.subr.bf16.mxu0 %v2167
        %5151 = vmatpush1.bf16.msra.mxu0 %v2166
        %5152 = vmatprep.subr.bf16.mxu0 %v2171
        %5153 = vmatpush1.bf16.msra.mxu0 %v2170
        %5154 = vmatprep.subr.bf16.mxu0 %v2175
        %5155 = vmatpush1.bf16.msra.mxu0 %v2174
        %5156 = vmatprep.subr.bf16.mxu0 %v2179
        %5157 = vmatpush1.bf16.msra.mxu0 %v2178
        %5158 = vmatprep.subr.bf16.mxu0 %v2183
        %5159 = vmatpush1.bf16.msra.mxu0 %v2182
        %5160 = vmatprep.subr.bf16.mxu0 %v2187
        %5161 = vmatpush1.bf16.msra.mxu0 %v2186
        %5162 = vmatprep.subr.bf16.mxu0 %v2191
        %5163 = vmatpush1.bf16.msra.mxu0 %v2190
        %5164 = vmatprep.subr.bf16.mxu0 %v2195
        %5165 = vmatpush1.bf16.msra.mxu0 %v2194
        %5166 = vmatprep.mubr.bf16.mxu0 %v3167
        %5167 = vmatmul.mubr.bf16.gmra.mrb[0].mxu0 %v3165
        %v5168 = vpop.f32.mrb[0].mxu0
        %v5169 = vadd.f32 %v5128, %v5168
        %v5170 = vpop.f32.mrb[0].mxu0
        %v5171 = vadd.f32 %v5130, %v5170
        %v5172 = vpop.f32.mrb[0].mxu0
        %v5173 = vpop.f32.mrb[0].mxu0
        %5174 = vdwg.mxu0
        %5175 = vmatprep.subr.bf16.mxu0 %v2199
        %5176 = vmatpush1.bf16.msra.mxu0 %v2198
        %5177 = vmatprep.subr.bf16.mxu0 %v2203
        %5178 = vmatpush1.bf16.msra.mxu0 %v2202
        %5179 = vmatprep.subr.bf16.mxu0 %v2207
        %5180 = vmatpush1.bf16.msra.mxu0 %v2206
        %5181 = vmatprep.subr.bf16.mxu0 %v2211
        %5182 = vmatpush1.bf16.msra.mxu0 %v2210
        %5183 = vmatprep.subr.bf16.mxu0 %v2215
        %5184 = vmatpush1.bf16.msra.mxu0 %v2214
        %5185 = vmatprep.subr.bf16.mxu0 %v2219
        %5186 = vmatpush1.bf16.msra.mxu0 %v2218
        %5187 = vmatprep.subr.bf16.mxu0 %v2223
        %5188 = vmatpush1.bf16.msra.mxu0 %v2222
        %5189 = vmatprep.subr.bf16.mxu0 %v2227
        %5190 = vmatpush1.bf16.msra.mxu0 %v2226
        %5191 = vmatprep.subr.bf16.mxu0 %v2231
        %5192 = vmatpush1.bf16.msra.mxu0 %v2230
        %5193 = vmatprep.subr.bf16.mxu0 %v2235
        %5194 = vmatpush1.bf16.msra.mxu0 %v2234
        %5195 = vmatprep.subr.bf16.mxu0 %v2239
        %5196 = vmatpush1.bf16.msra.mxu0 %v2238
        %5197 = vmatprep.subr.bf16.mxu0 %v2243
        %5198 = vmatpush1.bf16.msra.mxu0 %v2242
        %5199 = vmatprep.subr.bf16.mxu0 %v2247
        %5200 = vmatpush1.bf16.msra.mxu0 %v2246
        %5201 = vmatprep.subr.bf16.mxu0 %v2251
        %5202 = vmatpush1.bf16.msra.mxu0 %v2250
        %5203 = vmatprep.subr.bf16.mxu0 %v2255
        %5204 = vmatpush1.bf16.msra.mxu0 %v2254
        %5205 = vmatprep.subr.bf16.mxu0 %v2259
        %5206 = vmatpush1.bf16.msra.mxu0 %v2258
        %5207 = vmatprep.mubr.bf16.mxu0 %v3205
        %5208 = vmatmul.mubr.bf16.gmra.mrb[0].mxu0 %v3191
        %v5209 = vpop.f32.mrb[0].mxu0
        %v5210 = vadd.f32 %v5169, %v5209
        %v5211 = vpop.f32.mrb[0].mxu0
        %v5212 = vadd.f32 %v5171, %v5211
        %v5213 = vpop.f32.mrb[0].mxu0
        %v5214 = vpop.f32.mrb[0].mxu0
        %5215 = vdwg.mxu0
        %5216 = vmatprep.subr.bf16.mxu0 %v2263
        %5217 = vmatpush1.bf16.msra.mxu0 %v2262
        %5218 = vmatprep.subr.bf16.mxu0 %v2267
        %5219 = vmatpush1.bf16.msra.mxu0 %v2266
        %5220 = vmatprep.subr.bf16.mxu0 %v2271
        %5221 = vmatpush1.bf16.msra.mxu0 %v2270
        %5222 = vmatprep.subr.bf16.mxu0 %v2275
        %5223 = vmatpush1.bf16.msra.mxu0 %v2274
        %5224 = vmatprep.subr.bf16.mxu0 %v2279
        %5225 = vmatpush1.bf16.msra.mxu0 %v2278
        %5226 = vmatprep.subr.bf16.mxu0 %v2283
        %5227 = vmatpush1.bf16.msra.mxu0 %v2282
        %5228 = vmatprep.subr.bf16.mxu0 %v2287
        %5229 = vmatpush1.bf16.msra.mxu0 %v2286
        %5230 = vmatprep.subr.bf16.mxu0 %v2291
        %5231 = vmatpush1.bf16.msra.mxu0 %v2290
        %5232 = vmatprep.subr.bf16.mxu0 %v2295
        %5233 = vmatpush1.bf16.msra.mxu0 %v2294
        %5234 = vmatprep.subr.bf16.mxu0 %v2299
        %5235 = vmatpush1.bf16.msra.mxu0 %v2298
        %5236 = vmatprep.subr.bf16.mxu0 %v2303
        %5237 = vmatpush1.bf16.msra.mxu0 %v2302
        %5238 = vmatprep.subr.bf16.mxu0 %v2307
        %5239 = vmatpush1.bf16.msra.mxu0 %v2306
        %5240 = vmatprep.subr.bf16.mxu0 %v2311
        %5241 = vmatpush1.bf16.msra.mxu0 %v2310
        %5242 = vmatprep.subr.bf16.mxu0 %v2315
        %5243 = vmatpush1.bf16.msra.mxu0 %v2314
        %5244 = vmatprep.subr.bf16.mxu0 %v2319
        %5245 = vmatpush1.bf16.msra.mxu0 %v2318
        %5246 = vmatprep.subr.bf16.mxu0 %v2323
        %5247 = vmatpush1.bf16.msra.mxu0 %v2322
        %5248 = vmatprep.mubr.bf16.mxu0 %v3215
        %5249 = vmatmul.mubr.bf16.gmra.mrb[0].mxu0 %v3213
        %v5250 = vpop.f32.mrb[0].mxu0
        %v5251 = vadd.f32 %v5210, %v5250
        %v5252 = vpop.f32.mrb[0].mxu0
        %v5253 = vadd.f32 %v5212, %v5252
        %v5254 = vpop.f32.mrb[0].mxu0
        %v5255 = vpop.f32.mrb[0].mxu0
        %5256 = vdwg.mxu0
        %5257 = vmatprep.subr.bf16.mxu0 %v2327
        %5258 = vmatpush1.bf16.msra.mxu0 %v2326
        %5259 = vmatprep.subr.bf16.mxu0 %v2331
        %5260 = vmatpush1.bf16.msra.mxu0 %v2330
        %5261 = vmatprep.subr.bf16.mxu0 %v2335
        %5262 = vmatpush1.bf16.msra.mxu0 %v2334
        %5263 = vmatprep.subr.bf16.mxu0 %v2339
        %5264 = vmatpush1.bf16.msra.mxu0 %v2338
        %5265 = vmatprep.subr.bf16.mxu0 %v2343
        %5266 = vmatpush1.bf16.msra.mxu0 %v2342
        %5267 = vmatprep.subr.bf16.mxu0 %v2347
        %5268 = vmatpush1.bf16.msra.mxu0 %v2346
        %5269 = vmatprep.subr.bf16.mxu0 %v2351
        %5270 = vmatpush1.bf16.msra.mxu0 %v2350
        %5271 = vmatprep.subr.bf16.mxu0 %v2355
        %5272 = vmatpush1.bf16.msra.mxu0 %v2354
        %5273 = vmatprep.subr.bf16.mxu0 %v2359
        %5274 = vmatpush1.bf16.msra.mxu0 %v2358
        %5275 = vmatprep.subr.bf16.mxu0 %v2363
        %5276 = vmatpush1.bf16.msra.mxu0 %v2362
        %5277 = vmatprep.subr.bf16.mxu0 %v2367
        %5278 = vmatpush1.bf16.msra.mxu0 %v2366
        %5279 = vmatprep.subr.bf16.mxu0 %v2371
        %5280 = vmatpush1.bf16.msra.mxu0 %v2370
        %5281 = vmatprep.subr.bf16.mxu0 %v2375
        %5282 = vmatpush1.bf16.msra.mxu0 %v2374
        %5283 = vmatprep.subr.bf16.mxu0 %v2379
        %5284 = vmatpush1.bf16.msra.mxu0 %v2378
        %5285 = vmatprep.subr.bf16.mxu0 %v2383
        %5286 = vmatpush1.bf16.msra.mxu0 %v2382
        %5287 = vmatprep.subr.bf16.mxu0 %v2387
        %5288 = vmatpush1.bf16.msra.mxu0 %v2386
        %5289 = vmatprep.mubr.bf16.mxu0 %v3212
        %5290 = vmatmul.mubr.bf16.gmra.mrb[0].mxu0 %v3198
        %v5291 = vpop.f32.mrb[0].mxu0
        %v5292 = vadd.f32 %v5251, %v5291
        %v5293 = vpop.f32.mrb[0].mxu0
        %v5294 = vadd.f32 %v5253, %v5293
        %v5295 = vpop.f32.mrb[0].mxu0
        %v5296 = vpop.f32.mrb[0].mxu0
        %5297 = vdwg.mxu0
        %5298 = vmatprep.subr.bf16.mxu0 %v2391
        %5299 = vmatpush1.bf16.msra.mxu0 %v2390
        %5300 = vmatprep.subr.bf16.mxu0 %v2395
        %5301 = vmatpush1.bf16.msra.mxu0 %v2394
        %5302 = vmatprep.subr.bf16.mxu0 %v2399
        %5303 = vmatpush1.bf16.msra.mxu0 %v2398
        %5304 = vmatprep.subr.bf16.mxu0 %v2403
        %5305 = vmatpush1.bf16.msra.mxu0 %v2402
        %5306 = vmatprep.subr.bf16.mxu0 %v2407
        %5307 = vmatpush1.bf16.msra.mxu0 %v2406
        %5308 = vmatprep.subr.bf16.mxu0 %v2411
        %5309 = vmatpush1.bf16.msra.mxu0 %v2410
        %5310 = vmatprep.subr.bf16.mxu0 %v2415
        %5311 = vmatpush1.bf16.msra.mxu0 %v2414
        %5312 = vmatprep.subr.bf16.mxu0 %v2419
        %5313 = vmatpush1.bf16.msra.mxu0 %v2418
        %5314 = vmatprep.subr.bf16.mxu0 %v2423
        %5315 = vmatpush1.bf16.msra.mxu0 %v2422
        %5316 = vmatprep.subr.bf16.mxu0 %v2427
        %5317 = vmatpush1.bf16.msra.mxu0 %v2426
        %5318 = vmatprep.subr.bf16.mxu0 %v2431
        %5319 = vmatpush1.bf16.msra.mxu0 %v2430
        %5320 = vmatprep.subr.bf16.mxu0 %v2435
        %5321 = vmatpush1.bf16.msra.mxu0 %v2434
        %5322 = vmatprep.subr.bf16.mxu0 %v2439
        %5323 = vmatpush1.bf16.msra.mxu0 %v2438
        %5324 = vmatprep.subr.bf16.mxu0 %v2443
        %5325 = vmatpush1.bf16.msra.mxu0 %v2442
        %5326 = vmatprep.subr.bf16.mxu0 %v2447
        %5327 = vmatpush1.bf16.msra.mxu0 %v2446
        %5328 = vmatprep.subr.bf16.mxu0 %v2451
        %5329 = vmatpush1.bf16.msra.mxu0 %v2450
        %5330 = vmatprep.mubr.bf16.mxu0 %v3216
        %5331 = vmatmul.mubr.bf16.gmra.mrb[0].mxu0 %v3214
        %v5332 = vpop.f32.mrb[0].mxu0
        %v5333 = vadd.f32 %v5292, %v5332
        %v5334 = vpop.f32.mrb[0].mxu0
        %v5335 = vadd.f32 %v5294, %v5334
        %v5336 = vpop.f32.mrb[0].mxu0
        %v5337 = vpop.f32.mrb[0].mxu0
        %5338 = vdwg.mxu0
        %5339 = vmatprep.subr.bf16.mxu0 %v2455
        %5340 = vmatpush1.bf16.msra.mxu0 %v2454
        %5341 = vmatprep.subr.bf16.mxu0 %v2459
        %5342 = vmatpush1.bf16.msra.mxu0 %v2458
        %5343 = vmatprep.subr.bf16.mxu0 %v2463
        %5344 = vmatpush1.bf16.msra.mxu0 %v2462
        %5345 = vmatprep.subr.bf16.mxu0 %v2467
        %5346 = vmatpush1.bf16.msra.mxu0 %v2466
        %5347 = vmatprep.subr.bf16.mxu0 %v2471
        %5348 = vmatpush1.bf16.msra.mxu0 %v2470
        %5349 = vmatprep.subr.bf16.mxu0 %v2475
        %5350 = vmatpush1.bf16.msra.mxu0 %v2474
        %5351 = vmatprep.subr.bf16.mxu0 %v2479
        %5352 = vmatpush1.bf16.msra.mxu0 %v2478
        %5353 = vmatprep.subr.bf16.mxu0 %v2483
        %5354 = vmatpush1.bf16.msra.mxu0 %v2482
        %5355 = vmatprep.subr.bf16.mxu0 %v2487
        %5356 = vmatpush1.bf16.msra.mxu0 %v2486
        %5357 = vmatprep.subr.bf16.mxu0 %v2491
        %5358 = vmatpush1.bf16.msra.mxu0 %v2490
        %5359 = vmatprep.subr.bf16.mxu0 %v2495
        %5360 = vmatpush1.bf16.msra.mxu0 %v2494
        %5361 = vmatprep.subr.bf16.mxu0 %v2499
        %5362 = vmatpush1.bf16.msra.mxu0 %v2498
        %5363 = vmatprep.subr.bf16.mxu0 %v2503
        %5364 = vmatpush1.bf16.msra.mxu0 %v2502
        %5365 = vmatprep.subr.bf16.mxu0 %v2507
        %5366 = vmatpush1.bf16.msra.mxu0 %v2506
        %5367 = vmatprep.subr.bf16.mxu0 %v2511
        %5368 = vmatpush1.bf16.msra.mxu0 %v2510
        %5369 = vmatprep.subr.bf16.mxu0 %v2515
        %5370 = vmatpush1.bf16.msra.mxu0 %v2514
        %5371 = vmatprep.mubr.bf16.mxu0 %v3254
        %5372 = vmatmul.mubr.bf16.gmra.mrb[0].mxu0 %v3240
        %v5373 = vpop.f32.mrb[0].mxu0
        %v5374 = vadd.f32 %v5333, %v5373
        %v5375 = vpop.f32.mrb[0].mxu0
        %v5376 = vadd.f32 %v5335, %v5375
        %v5377 = vpop.f32.mrb[0].mxu0
        %v5378 = vpop.f32.mrb[0].mxu0
        %5379 = vdwg.mxu0
        %5380 = vmatprep.subr.bf16.mxu0 %v2519
        %5381 = vmatpush1.bf16.msra.mxu0 %v2518
        %5382 = vmatprep.subr.bf16.mxu0 %v2523
        %5383 = vmatpush1.bf16.msra.mxu0 %v2522
        %5384 = vmatprep.subr.bf16.mxu0 %v2527
        %5385 = vmatpush1.bf16.msra.mxu0 %v2526
        %5386 = vmatprep.subr.bf16.mxu0 %v2531
        %5387 = vmatpush1.bf16.msra.mxu0 %v2530
        %5388 = vmatprep.subr.bf16.mxu0 %v2535
        %5389 = vmatpush1.bf16.msra.mxu0 %v2534
        %5390 = vmatprep.subr.bf16.mxu0 %v2539
        %5391 = vmatpush1.bf16.msra.mxu0 %v2538
        %5392 = vmatprep.subr.bf16.mxu0 %v2543
        %5393 = vmatpush1.bf16.msra.mxu0 %v2542
        %5394 = vmatprep.subr.bf16.mxu0 %v2547
        %5395 = vmatpush1.bf16.msra.mxu0 %v2546
        %5396 = vmatprep.subr.bf16.mxu0 %v2551
        %5397 = vmatpush1.bf16.msra.mxu0 %v2550
        %5398 = vmatprep.subr.bf16.mxu0 %v2555
        %5399 = vmatpush1.bf16.msra.mxu0 %v2554
        %5400 = vmatprep.subr.bf16.mxu0 %v2559
        %5401 = vmatpush1.bf16.msra.mxu0 %v2558
        %5402 = vmatprep.subr.bf16.mxu0 %v2563
        %5403 = vmatpush1.bf16.msra.mxu0 %v2562
        %5404 = vmatprep.subr.bf16.mxu0 %v2567
        %5405 = vmatpush1.bf16.msra.mxu0 %v2566
        %5406 = vmatprep.subr.bf16.mxu0 %v2571
        %5407 = vmatpush1.bf16.msra.mxu0 %v2570
        %5408 = vmatprep.subr.bf16.mxu0 %v2575
        %5409 = vmatpush1.bf16.msra.mxu0 %v2574
        %5410 = vmatprep.subr.bf16.mxu0 %v2579
        %5411 = vmatpush1.bf16.msra.mxu0 %v2578
        %5412 = vmatprep.mubr.bf16.mxu0 %v3264
        %5413 = vmatmul.mubr.bf16.gmra.mrb[0].mxu0 %v3262
        %v5414 = vpop.f32.mrb[0].mxu0
        %v5415 = vadd.f32 %v5374, %v5414
        %v5416 = vpop.f32.mrb[0].mxu0
        %v5417 = vadd.f32 %v5376, %v5416
        %v5418 = vpop.f32.mrb[0].mxu0
        %v5419 = vpop.f32.mrb[0].mxu0
        %5420 = vdwg.mxu0
        %5421 = vmatprep.subr.bf16.mxu0 %v2583
        %5422 = vmatpush1.bf16.msra.mxu0 %v2582
        %5423 = vmatprep.subr.bf16.mxu0 %v2587
        %5424 = vmatpush1.bf16.msra.mxu0 %v2586
        %5425 = vmatprep.subr.bf16.mxu0 %v2591
        %5426 = vmatpush1.bf16.msra.mxu0 %v2590
        %5427 = vmatprep.subr.bf16.mxu0 %v2595
        %5428 = vmatpush1.bf16.msra.mxu0 %v2594
        %5429 = vmatprep.subr.bf16.mxu0 %v2599
        %5430 = vmatpush1.bf16.msra.mxu0 %v2598
        %5431 = vmatprep.subr.bf16.mxu0 %v2603
        %5432 = vmatpush1.bf16.msra.mxu0 %v2602
        %5433 = vmatprep.subr.bf16.mxu0 %v2607
        %5434 = vmatpush1.bf16.msra.mxu0 %v2606
        %5435 = vmatprep.subr.bf16.mxu0 %v2611
        %5436 = vmatpush1.bf16.msra.mxu0 %v2610
        %5437 = vmatprep.subr.bf16.mxu0 %v2615
        %5438 = vmatpush1.bf16.msra.mxu0 %v2614
        %5439 = vmatprep.subr.bf16.mxu0 %v2619
        %5440 = vmatpush1.bf16.msra.mxu0 %v2618
        %5441 = vmatprep.subr.bf16.mxu0 %v2623
        %5442 = vmatpush1.bf16.msra.mxu0 %v2622
        %5443 = vmatprep.subr.bf16.mxu0 %v2627
        %5444 = vmatpush1.bf16.msra.mxu0 %v2626
        %5445 = vmatprep.subr.bf16.mxu0 %v2631
        %5446 = vmatpush1.bf16.msra.mxu0 %v2630
        %5447 = vmatprep.subr.bf16.mxu0 %v2635
        %5448 = vmatpush1.bf16.msra.mxu0 %v2634
        %5449 = vmatprep.subr.bf16.mxu0 %v2639
        %5450 = vmatpush1.bf16.msra.mxu0 %v2638
        %5451 = vmatprep.subr.bf16.mxu0 %v2643
        %5452 = vmatpush1.bf16.msra.mxu0 %v2642
        %5453 = vmatprep.mubr.bf16.mxu0 %v3261
        %5454 = vmatmul.mubr.bf16.gmra.mrb[0].mxu0 %v3247
        %v5455 = vpop.f32.mrb[0].mxu0
        %v5456 = vadd.f32 %v5415, %v5455
        %v5457 = vpop.f32.mrb[0].mxu0
        %v5458 = vadd.f32 %v5417, %v5457
        %v5459 = vpop.f32.mrb[0].mxu0
        %v5460 = vpop.f32.mrb[0].mxu0
        %5461 = vdwg.mxu0
        %5462 = vmatprep.subr.bf16.mxu0 %v2647
        %5463 = vmatpush1.bf16.msra.mxu0 %v2646
        %5464 = vmatprep.subr.bf16.mxu0 %v2651
        %5465 = vmatpush1.bf16.msra.mxu0 %v2650
        %5466 = vmatprep.subr.bf16.mxu0 %v2655
        %5467 = vmatpush1.bf16.msra.mxu0 %v2654
        %5468 = vmatprep.subr.bf16.mxu0 %v2659
        %5469 = vmatpush1.bf16.msra.mxu0 %v2658
        %5470 = vmatprep.subr.bf16.mxu0 %v2663
        %5471 = vmatpush1.bf16.msra.mxu0 %v2662
        %5472 = vmatprep.subr.bf16.mxu0 %v2667
        %5473 = vmatpush1.bf16.msra.mxu0 %v2666
        %5474 = vmatprep.subr.bf16.mxu0 %v2671
        %5475 = vmatpush1.bf16.msra.mxu0 %v2670
        %5476 = vmatprep.subr.bf16.mxu0 %v2675
        %5477 = vmatpush1.bf16.msra.mxu0 %v2674
        %5478 = vmatprep.subr.bf16.mxu0 %v2679
        %5479 = vmatpush1.bf16.msra.mxu0 %v2678
        %5480 = vmatprep.subr.bf16.mxu0 %v2683
        %5481 = vmatpush1.bf16.msra.mxu0 %v2682
        %5482 = vmatprep.subr.bf16.mxu0 %v2687
        %5483 = vmatpush1.bf16.msra.mxu0 %v2686
        %5484 = vmatprep.subr.bf16.mxu0 %v2691
        %5485 = vmatpush1.bf16.msra.mxu0 %v2690
        %5486 = vmatprep.subr.bf16.mxu0 %v2695
        %5487 = vmatpush1.bf16.msra.mxu0 %v2694
        %5488 = vmatprep.subr.bf16.mxu0 %v2699
        %5489 = vmatpush1.bf16.msra.mxu0 %v2698
        %5490 = vmatprep.subr.bf16.mxu0 %v2703
        %5491 = vmatpush1.bf16.msra.mxu0 %v2702
        %5492 = vmatprep.subr.bf16.mxu0 %v2707
        %5493 = vmatpush1.bf16.msra.mxu0 %v2706
        %5494 = vmatprep.mubr.bf16.mxu0 %v3265
        %5495 = vmatmul.mubr.bf16.gmra.mrb[0].mxu0 %v3263
        %v5496 = vpop.f32.mrb[0].mxu0
        %v5497 = vadd.f32 %v5456, %v5496
        %v5498 = vpop.f32.mrb[0].mxu0
        %v5499 = vadd.f32 %v5458, %v5498
        %v5500 = vpop.f32.mrb[0].mxu0
        %v5501 = vpop.f32.mrb[0].mxu0
        %5502 = vdwg.mxu0
        %5503 = vmatprep.subr.bf16.mxu0 %v2711
        %5504 = vmatpush1.bf16.msra.mxu0 %v2710
        %5505 = vmatprep.subr.bf16.mxu0 %v2715
        %5506 = vmatpush1.bf16.msra.mxu0 %v2714
        %5507 = vmatprep.subr.bf16.mxu0 %v2719
        %5508 = vmatpush1.bf16.msra.mxu0 %v2718
        %5509 = vmatprep.subr.bf16.mxu0 %v2723
        %5510 = vmatpush1.bf16.msra.mxu0 %v2722
        %5511 = vmatprep.subr.bf16.mxu0 %v2727
        %5512 = vmatpush1.bf16.msra.mxu0 %v2726
        %5513 = vmatprep.subr.bf16.mxu0 %v2731
        %5514 = vmatpush1.bf16.msra.mxu0 %v2730
        %5515 = vmatprep.subr.bf16.mxu0 %v2735
        %5516 = vmatpush1.bf16.msra.mxu0 %v2734
        %5517 = vmatprep.subr.bf16.mxu0 %v2739
        %5518 = vmatpush1.bf16.msra.mxu0 %v2738
        %5519 = vmatprep.subr.bf16.mxu0 %v2743
        %5520 = vmatpush1.bf16.msra.mxu0 %v2742
        %5521 = vmatprep.subr.bf16.mxu0 %v2747
        %5522 = vmatpush1.bf16.msra.mxu0 %v2746
        %5523 = vmatprep.subr.bf16.mxu0 %v2751
        %5524 = vmatpush1.bf16.msra.mxu0 %v2750
        %5525 = vmatprep.subr.bf16.mxu0 %v2755
        %5526 = vmatpush1.bf16.msra.mxu0 %v2754
        %5527 = vmatprep.subr.bf16.mxu0 %v2759
        %5528 = vmatpush1.bf16.msra.mxu0 %v2758
        %5529 = vmatprep.subr.bf16.mxu0 %v2763
        %5530 = vmatpush1.bf16.msra.mxu0 %v2762
        %5531 = vmatprep.subr.bf16.mxu0 %v2767
        %5532 = vmatpush1.bf16.msra.mxu0 %v2766
        %5533 = vmatprep.subr.bf16.mxu0 %v2771
        %5534 = vmatpush1.bf16.msra.mxu0 %v2770
        %5535 = vmatprep.mubr.bf16.mxu0 %v3303
        %5536 = vmatmul.mubr.bf16.gmra.mrb[0].mxu0 %v3289
        %v5537 = vpop.f32.mrb[0].mxu0
        %v5538 = vadd.f32 %v5497, %v5537
        %v5539 = vpop.f32.mrb[0].mxu0
        %v5540 = vadd.f32 %v5499, %v5539
        %v5541 = vpop.f32.mrb[0].mxu0
        %v5542 = vpop.f32.mrb[0].mxu0
        %5543 = vdwg.mxu0
        %5544 = vmatprep.subr.bf16.mxu0 %v2775
        %5545 = vmatpush1.bf16.msra.mxu0 %v2774
        %5546 = vmatprep.subr.bf16.mxu0 %v2779
        %5547 = vmatpush1.bf16.msra.mxu0 %v2778
        %5548 = vmatprep.subr.bf16.mxu0 %v2783
        %5549 = vmatpush1.bf16.msra.mxu0 %v2782
        %5550 = vmatprep.subr.bf16.mxu0 %v2787
        %5551 = vmatpush1.bf16.msra.mxu0 %v2786
        %5552 = vmatprep.subr.bf16.mxu0 %v2791
        %5553 = vmatpush1.bf16.msra.mxu0 %v2790
        %5554 = vmatprep.subr.bf16.mxu0 %v2795
        %5555 = vmatpush1.bf16.msra.mxu0 %v2794
        %5556 = vmatprep.subr.bf16.mxu0 %v2799
        %5557 = vmatpush1.bf16.msra.mxu0 %v2798
        %5558 = vmatprep.subr.bf16.mxu0 %v2803
        %5559 = vmatpush1.bf16.msra.mxu0 %v2802
        %5560 = vmatprep.subr.bf16.mxu0 %v2807
        %5561 = vmatpush1.bf16.msra.mxu0 %v2806
        %5562 = vmatprep.subr.bf16.mxu0 %v2811
        %5563 = vmatpush1.bf16.msra.mxu0 %v2810
        %5564 = vmatprep.subr.bf16.mxu0 %v2815
        %5565 = vmatpush1.bf16.msra.mxu0 %v2814
        %5566 = vmatprep.subr.bf16.mxu0 %v2819
        %5567 = vmatpush1.bf16.msra.mxu0 %v2818
        %5568 = vmatprep.subr.bf16.mxu0 %v2823
        %5569 = vmatpush1.bf16.msra.mxu0 %v2822
        %5570 = vmatprep.subr.bf16.mxu0 %v2827
        %5571 = vmatpush1.bf16.msra.mxu0 %v2826
        %5572 = vmatprep.subr.bf16.mxu0 %v2831
        %5573 = vmatpush1.bf16.msra.mxu0 %v2830
        %5574 = vmatprep.subr.bf16.mxu0 %v2835
        %5575 = vmatpush1.bf16.msra.mxu0 %v2834
        %5576 = vmatprep.mubr.bf16.mxu0 %v3313
        %5577 = vmatmul.mubr.bf16.gmra.mrb[0].mxu0 %v3311
        %v5578 = vpop.f32.mrb[0].mxu0
        %v5579 = vadd.f32 %v5538, %v5578
        %v5580 = vpop.f32.mrb[0].mxu0
        %v5581 = vadd.f32 %v5540, %v5580
        %v5582 = vpop.f32.mrb[0].mxu0
        %v5583 = vpop.f32.mrb[0].mxu0
        %5584 = vdwg.mxu0
        %5585 = vmatprep.subr.bf16.mxu0 %v2839
        %5586 = vmatpush1.bf16.msra.mxu0 %v2838
        %5587 = vmatprep.subr.bf16.mxu0 %v2843
        %5588 = vmatpush1.bf16.msra.mxu0 %v2842
        %5589 = vmatprep.subr.bf16.mxu0 %v2847
        %5590 = vmatpush1.bf16.msra.mxu0 %v2846
        %5591 = vmatprep.subr.bf16.mxu0 %v2851
        %5592 = vmatpush1.bf16.msra.mxu0 %v2850
        %5593 = vmatprep.subr.bf16.mxu0 %v2855
        %5594 = vmatpush1.bf16.msra.mxu0 %v2854
        %5595 = vmatprep.subr.bf16.mxu0 %v2859
        %5596 = vmatpush1.bf16.msra.mxu0 %v2858
        %5597 = vmatprep.subr.bf16.mxu0 %v2863
        %5598 = vmatpush1.bf16.msra.mxu0 %v2862
        %5599 = vmatprep.subr.bf16.mxu0 %v2867
        %5600 = vmatpush1.bf16.msra.mxu0 %v2866
        %5601 = vmatprep.subr.bf16.mxu0 %v2871
        %5602 = vmatpush1.bf16.msra.mxu0 %v2870
        %5603 = vmatprep.subr.bf16.mxu0 %v2875
        %5604 = vmatpush1.bf16.msra.mxu0 %v2874
        %5605 = vmatprep.subr.bf16.mxu0 %v2879
        %5606 = vmatpush1.bf16.msra.mxu0 %v2878
        %5607 = vmatprep.subr.bf16.mxu0 %v2883
        %5608 = vmatpush1.bf16.msra.mxu0 %v2882
        %5609 = vmatprep.subr.bf16.mxu0 %v2887
        %5610 = vmatpush1.bf16.msra.mxu0 %v2886
        %5611 = vmatprep.subr.bf16.mxu0 %v2891
        %5612 = vmatpush1.bf16.msra.mxu0 %v2890
        %5613 = vmatprep.subr.bf16.mxu0 %v2895
        %5614 = vmatpush1.bf16.msra.mxu0 %v2894
        %5615 = vmatprep.subr.bf16.mxu0 %v2899
        %5616 = vmatpush1.bf16.msra.mxu0 %v2898
        %5617 = vmatprep.mubr.bf16.mxu0 %v3310
        %5618 = vmatmul.mubr.bf16.gmra.mrb[0].mxu0 %v3296
        %v5619 = vpop.f32.mrb[0].mxu0
        %v5620 = vadd.f32 %v5579, %v5619
        %v5621 = vpop.f32.mrb[0].mxu0
        %v5622 = vadd.f32 %v5581, %v5621
        %v5623 = vpop.f32.mrb[0].mxu0
        %v5624 = vpop.f32.mrb[0].mxu0
        %5625 = vdwg.mxu0
        %5626 = vmatprep.subr.bf16.mxu0 %v2903
        %5627 = vmatpush1.bf16.msra.mxu0 %v2902
        %5628 = vmatprep.subr.bf16.mxu0 %v2907
        %5629 = vmatpush1.bf16.msra.mxu0 %v2906
        %5630 = vmatprep.subr.bf16.mxu0 %v2911
        %5631 = vmatpush1.bf16.msra.mxu0 %v2910
        %5632 = vmatprep.subr.bf16.mxu0 %v2915
        %5633 = vmatpush1.bf16.msra.mxu0 %v2914
        %5634 = vmatprep.subr.bf16.mxu0 %v2919
        %5635 = vmatpush1.bf16.msra.mxu0 %v2918
        %5636 = vmatprep.subr.bf16.mxu0 %v2923
        %5637 = vmatpush1.bf16.msra.mxu0 %v2922
        %5638 = vmatprep.subr.bf16.mxu0 %v2927
        %5639 = vmatpush1.bf16.msra.mxu0 %v2926
        %5640 = vmatprep.subr.bf16.mxu0 %v2931
        %5641 = vmatpush1.bf16.msra.mxu0 %v2930
        %5642 = vmatprep.subr.bf16.mxu0 %v2935
        %5643 = vmatpush1.bf16.msra.mxu0 %v2934
        %5644 = vmatprep.subr.bf16.mxu0 %v2939
        %5645 = vmatpush1.bf16.msra.mxu0 %v2938
        %5646 = vmatprep.subr.bf16.mxu0 %v2943
        %5647 = vmatpush1.bf16.msra.mxu0 %v2942
        %5648 = vmatprep.subr.bf16.mxu0 %v2947
        %5649 = vmatpush1.bf16.msra.mxu0 %v2946
        %5650 = vmatprep.subr.bf16.mxu0 %v2951
        %5651 = vmatpush1.bf16.msra.mxu0 %v2950
        %5652 = vmatprep.subr.bf16.mxu0 %v2955
        %5653 = vmatpush1.bf16.msra.mxu0 %v2954
        %5654 = vmatprep.subr.bf16.mxu0 %v2959
        %5655 = vmatpush1.bf16.msra.mxu0 %v2958
        %5656 = vmatprep.subr.bf16.mxu0 %v2963
        %5657 = vmatpush1.bf16.msra.mxu0 %v2962
        %5658 = vmatprep.mubr.bf16.mxu0 %v3314
        %5659 = vmatmul.mubr.bf16.gmra.mrb[0].mxu0 %v3312
        %v5660 = vpop.f32.mrb[0].mxu0
        %v5661 = vadd.f32 %v5620, %v5660
        %v5662 = vpop.f32.mrb[0].mxu0
        %v5663 = vadd.f32 %v5622, %v5662
        %v5664 = vpop.f32.mrb[0].mxu0
        %v5665 = vpop.f32.mrb[0].mxu0
        %5666 = vdwg.mxu0
        %v5671 = vcombine.low %v4513, %v4515
        %v5672 = vcombine.low %v5661, %v5663
        %v5674 = vunpack.c.l.s4 1983009808
        %v5675 = vunpack.c.0.s8 %v5674
        %v5676 = vlaneseq
        %v5677 = vshrl.u32 %v5676, 7
        %v5678 = vsub.s32 %v5675, %v5677
        %v5679 = vrot.slane %v5671, %v5678
        %v5681 = vunpack.c.l.s4 1983009808
        %v5682 = vunpack.c.0.s8 %v5681
        %v5683 = vlaneseq
        %v5684 = vshrl.u32 %v5683, 7
        %v5685 = vsub.s32 %v5682, %v5684
        %v5686 = vrot.slane %v5672, %v5685
        %v5687 = vcombine.low %v5679, %v5686
        %v5689 = vadd.f32 %v2964, %v5687
        %5690 = vst [vmem:[%s241] sm:$0xff] %v5689
        %p5691 = scmp.eq.s32.totalorder %s23, 1
        // Predicated region
        $region41: #{example_net_forward.3} parent=35 // pred_check
          %p5692 = pneg %p5691
        $region42: #{example_net_forward.3} parent=35 // pred_check_branch
          %5694 = sbr.rel (%p5692) target = $region44
        $region43: #{example_net_forward.3} parent=35 // pred_region
          %v5695 = vld [vmem:[%s241] sm:$0xff]
          %v5696 = vld [vmem:[%s256] sm:$0xf]
          %v5698 = vlaneseq
          %v5699 = vshrl.u32 %v5698, 7
          %v5700 = vsub.s32 0, %v5699
          %v5701 = vrot.slane %v5696, %v5700
          %v5702 = vlaneseq
          %v5703 = vshrl.u32 %v5702, 7
          %v5704 = vsub.s32 1, %v5703
          %v5705 = vrot.slane %v5696, %v5704
          %v5706 = vlaneseq
          %v5707 = vshrl.u32 %v5706, 7
          %v5708 = vsub.s32 2, %v5707
          %v5709 = vrot.slane %v5696, %v5708
          %v5710 = vlaneseq
          %v5711 = vshrl.u32 %v5710, 7
          %v5712 = vsub.s32 3, %v5711
          %v5713 = vrot.slane %v5696, %v5712
          %v5714 = vcombine.low %v5701, %v5705
          %v5715 = vcombine.low %v5709, %v5713
          %v5717 = vunpack.c.l.s4 1983009808
          %v5718 = vunpack.c.0.s8 %v5717
          %v5719 = vlaneseq
          %v5720 = vshrl.u32 %v5719, 7
          %v5721 = vsub.s32 %v5718, %v5720
          %v5722 = vrot.slane %v5714, %v5721
          %v5724 = vunpack.c.l.s4 1983009808
          %v5725 = vunpack.c.0.s8 %v5724
          %v5726 = vlaneseq
          %v5727 = vshrl.u32 %v5726, 7
          %v5728 = vsub.s32 %v5725, %v5727
          %v5729 = vrot.slane %v5715, %v5728
          %v5730 = vcombine.low %v5722, %v5729
          %v5732 = vmul.f32 %v5695, %v5730
          %v5733 = vld [vmem:[%s260] sm:$0xf]
          %v5735 = vlaneseq
          %v5736 = vshrl.u32 %v5735, 7
          %v5737 = vsub.s32 0, %v5736
          %v5738 = vrot.slane %v5733, %v5737
          %v5739 = vlaneseq
          %v5740 = vshrl.u32 %v5739, 7
          %v5741 = vsub.s32 1, %v5740
          %v5742 = vrot.slane %v5733, %v5741
          %v5743 = vlaneseq
          %v5744 = vshrl.u32 %v5743, 7
          %v5745 = vsub.s32 2, %v5744
          %v5746 = vrot.slane %v5733, %v5745
          %v5747 = vlaneseq
          %v5748 = vshrl.u32 %v5747, 7
          %v5749 = vsub.s32 3, %v5748
          %v5750 = vrot.slane %v5733, %v5749
          %v5751 = vcombine.low %v5738, %v5742
          %v5752 = vcombine.low %v5746, %v5750
          %v5754 = vunpack.c.l.s4 1983009808
          %v5755 = vunpack.c.0.s8 %v5754
          %v5756 = vlaneseq
          %v5757 = vshrl.u32 %v5756, 7
          %v5758 = vsub.s32 %v5755, %v5757
          %v5759 = vrot.slane %v5751, %v5758
          %v5761 = vunpack.c.l.s4 1983009808
          %v5762 = vunpack.c.0.s8 %v5761
          %v5763 = vlaneseq
          %v5764 = vshrl.u32 %v5763, 7
          %v5765 = vsub.s32 %v5762, %v5764
          %v5766 = vrot.slane %v5752, %v5765
          %v5767 = vcombine.low %v5759, %v5766
          %v5769 = vadd.f32 %v5732, %v5767
          %5770 = vst [vmem:[%s241] sm:$0xff] %v5769
        $region44: #{example_net_forward.3} parent=35 // pred_fallthru
          _
        %s5771 = sand.u32 %s139, 1
        %s5772 = scalar_lea.sflag [#allocation3], %s5771
        %s5773 = sand.u32 %s139, 1
        %s5774 = smul.addr %s5773, 8
        %s5775 = scalar_lea.vmem [#allocation2], %s5774
        // Predicated region
        $region45: #{example_net_forward.3} parent=35 // pred_check
          %p5776 = pneg %p149
        $region46: #{example_net_forward.3} parent=35 // pred_check_branch
          %5778 = sbr.rel (%p5776) target = $region48
        $region47: #{example_net_forward.3} parent=35 // pred_region
          %s5779 = smul.u32 4, %s22
          %s5781 = ssub.s32 128, 128
          %5782 = vsyncadd %s5772, %s5781
          %s5783 = smul.addr %s5779, 32
          %s5784 = scalar_lea.hbm %s4, %s5783
          %s5786 = sshll.u32 %s5775, 4
          %s5787 = int_to_ptr.vmem [resolvable:$true] %s5786
          %5789 = dma.vmem_to_hbm [thread:$0]  %s5787, 128, %s5784, %s5772
        $region48: #{example_net_forward.3} parent=35 // pred_fallthru
          _
      $region36: #{example_net_forward.3} parent=5 // pred_fallthru
        _
      %p5790 = scmp.le.s32.totalorder 2, %s13
      // Predicated region
      $region49: #{example_net_forward.3} parent=5 // pred_check
        %p5791 = pneg %p5790
      $region50: #{example_net_forward.3} parent=5 // pred_check_branch
        %5793 = sbr.rel (%p5791) target = $region52
      $region51: #{example_net_forward.3} parent=5 // pred_region
        %s5794 = ssub.s32 %s13, 2
        // Predicated region
        $region53: #{example_net_forward.3} parent=51 // pred_check
          %p5795 = pneg %p155
        $region54: #{example_net_forward.3} parent=51 // pred_check_branch
          %5797 = sbr.rel (%p5795) target = $region56
        $region55: #{example_net_forward.3} parent=51 // pred_region
          %s5798 = sand.u32 %s140, 1
          %s5799 = scalar_lea.sflag [#allocation3], %s5798
          %s5800 = sand.u32 %s140, 1
          %s5801 = smul.addr %s5800, 8
          %s5802 = scalar_lea.vmem [#allocation2], %s5801
          %5803 = dma.done %s5799, 128
        $region56: #{example_net_forward.3} parent=51 // pred_fallthru
          _
      $region52: #{example_net_forward.3} parent=5 // pred_fallthru
        _
    $region6: #{example_net_forward.3} parent=1 // loop_footer
      %s17 = sadd.s32 1, %s13
    $region7: #{example_net_forward.3} parent=1 // loop_footer_branch
      %12 = sbr.rel target = $region3
    $region8: #{example_net_forward.3} parent=1 // loop_exit
      _
    %5804 = vsyncpa [#allocation3], 1
    %s5805 = scalar_lea.sflag [#allocation3], 1
    %5806 = vsyncpa %s5805, 1

</llo_original>
